<compile_context>
chip_gen: v6e
topology: v6e:2x2x1
jax: 0.10.0
libtpu: 0.0.40
codegen_flags: <defaults>
</compile_context>

<pallas_src>
import functools
import math

import jax
import jax.numpy as jnp
from jax import lax
from jax.experimental import pallas as pl
from jax.experimental.pallas import tpu as pltpu


def _gelu(x):
    # TODO(synk): PyTorch nn.GELU() uses the exact erf form; the tanh
    # approximation is used here (EUP-friendly). The self-check reference uses
    # the same approximation, so the comparison is exact up to matmul precision.
    return jax.nn.gelu(x, approximate=True)


# ----------------------------------------------------------------------------
# Pallas kernel: one ConvTranspose2d(k=3, s=2, p=1, op=1) layer (+bias, +GELU)
# ----------------------------------------------------------------------------
def _convt_kernel(x_ref, w_ref, b_ref, o_ref, *, block_b, pp, wp1,
                  apply_gelu, compute_dtype):
    """
    x_ref : (B, Pp + W + 2, Ci)  bottom/right-zero-padded, spatially flattened
                                  activation (row r = a*(W+1)+b of the padded
                                  (H+1)x(W+1) grid), plus W+2 trailing zero rows
    w_ref : (3, 3, Ci, Co)       per-tap weights (ky, kx, ci, co)
    b_ref : (1, Co)              bias
    o_ref : (B, 4, Pp, Co)       4 output-parity planes (index = dy*2+dx) over
                                  the padded (H+1)x(W+1) grid
    """
    bias = b_ref[...]                                    # (1, Co)

    def tap(ky, kx):
        w = w_ref[ky, kx, :, :]                          # (Ci, Co)
        return w.astype(compute_dtype) if compute_dtype is not None else w

    w11, w12, w10 = tap(1, 1), tap(1, 2), tap(1, 0)
    w21, w01 = tap(2, 1), tap(0, 1)
    w22, w20, w02, w00 = tap(2, 2), tap(2, 0), tap(0, 2), tap(0, 0)

    def mm(a, w):
        return jnp.dot(a, w, preferred_element_type=jnp.float32)

    for s in range(block_b):                             # static, unrolled
        def view(off):
            v = x_ref[s, off:off + pp, :]                # (Pp, Ci)
            return v.astype(compute_dtype) if compute_dtype is not None else v

        x00 = view(0)          # input pixel (a,   b  )
        x01 = view(1)          # input pixel (a,   b+1) -- zero past right edge
        x10 = view(wp1)        # input pixel (a+1, b  ) -- zero past bottom edge
        x11 = view(wp1 + 1)    # input pixel (a+1, b+1)

        p00 = mm(x00, w11)
        p01 = mm(x00, w12) + mm(x01, w10)
        p10 = mm(x00, w21) + mm(x10, w01)
        p11 = mm(x00, w22) + mm(x01, w20) + mm(x10, w02) + mm(x11, w00)

        for k, p in enumerate((p00, p01, p10, p11)):
            y = p + bias
            if apply_gelu:
                y = _gelu(y)
            o_ref[s, k, :, :] = y


# ----------------------------------------------------------------------------
# Wrapper helpers
# ----------------------------------------------------------------------------
def _pick_block_batch(n, bytes_per_sample, vmem_budget=8 << 20):
    """Largest divisor of n that fits the VMEM budget while keeping >= 2 grid
    steps (so both v7x TensorCores get work). v5e/v6e are single-TC and only
    benefit from the amortized per-step overhead."""
    cap = max(1, vmem_budget // max(bytes_per_sample, 1))
    best = 1
    for b in range(1, n + 1):
        if n % b == 0 and b <= cap and (n // b >= 2 or n == 1):
            best = b
    return best


def _conv_transpose_2x(act, weight, bias, *, apply_gelu, compute_dtype):
    """act: (N, H, W, Ci) channel-last -> (N, 2H, 2W, Co) channel-last."""
    n, h, w, ci = act.shape
    co = weight.shape[1]
    pp = (h + 1) * (w + 1)          # padded spatial positions per sample
    pp2 = pp + (w + 2)              # + trailing zero rows so all 4 views fit

    # Bottom/right zero pad (this is exactly the ConvTranspose boundary /
    # output_padding behaviour), flatten padded spatial, append zero rows.
    xp = jnp.pad(act, ((0, 0), (0, 1), (0, 1), (0, 0)))
    xpf = jnp.pad(xp.reshape(n, pp, ci), ((0, 0), (0, w + 2), (0, 0)))

    w_taps = jnp.transpose(weight, (2, 3, 0, 1))         # (3, 3, Ci, Co)
    b2 = bias.reshape(1, co)

    bytes_per_sample = 2 * 4 * (pp2 * ci + 4 * pp * co)  # double-buffered i/o
    bb = _pick_block_batch(n, bytes_per_sample)

    kernel = functools.partial(
        _convt_kernel, block_b=bb, pp=pp, wp1=w + 1,
        apply_gelu=apply_gelu, compute_dtype=compute_dtype)

    planes = pl.pallas_call(
        kernel,
        out_shape=jax.ShapeDtypeStruct((n, 4, pp, co), jnp.float32),
        grid_spec=pltpu.PrefetchScalarGridSpec(
            num_scalar_prefetch=0,
            grid=(n // bb,),
            in_specs=[
                pl.BlockSpec((bb, pp2, ci), lambda i: (i, 0, 0)),
                pl.BlockSpec((3, 3, ci, co), lambda i: (0, 0, 0, 0)),
                pl.BlockSpec((1, co), lambda i: (0, 0)),
            ],
            out_specs=pl.BlockSpec((bb, 4, pp, co), lambda i: (i, 0, 0, 0)),
        ),
        compiler_params=pltpu.CompilerParams(
            dimension_semantics=("parallel",)),
    )(xpf, w_taps, b2)

    # Pixel-shuffle the 4 parity planes into the dense (2H, 2W) grid
    # (cheap XLA reshape/transpose on the layer output only).
    planes = planes.reshape(n, 2, 2, h + 1, w + 1, co)[:, :, :, :h, :w, :]
    out = jnp.transpose(planes, (0, 3, 1, 4, 2, 5)).reshape(n, 2 * h, 2 * w, co)
    return out


@functools.partial(jax.jit, static_argnames=("compute_dtype",))
def rec_trac_head2(x, params, compute_dtype=None):
    """x: (N, L, C_in), L a perfect square.
    params: 3 tuples (weight, bias), weight in PyTorch ConvTranspose2d layout
    (C_in, C_out, 3, 3). Returns (N, 2, 8*sqrt(L), 8*sqrt(L)) NCHW."""
    n, l, cin = x.shape
    h = int(math.isqrt(l))
    assert h * h == l, "sequence length must be a perfect square"
    # x.transpose(1,2).unflatten(2,(H,W)) in NCHW == this reshape in channel-last.
    act = x.reshape(n, h, h, cin)

    (w1, b1), (w2, b2), (w3, b3) = params
    act = _conv_transpose_2x(act, w1, b1, apply_gelu=True,
                             compute_dtype=compute_dtype)
    act = _conv_transpose_2x(act, w2, b2, apply_gelu=True,
                             compute_dtype=compute_dtype)
    act = _conv_transpose_2x(act, w3, b3, apply_gelu=False,
                             compute_dtype=compute_dtype)
    return jnp.transpose(act, (0, 3, 1, 2))              # NHWC -> NCHW


# ----------------------------------------------------------------------------
# Pure-JAX reference (for a silent self-check)
# ----------------------------------------------------------------------------
def _conv_transpose_ref(act_nchw, weight, bias):
    # ConvTranspose2d(k=3, s=2, p=1, op=1) == lhs-dilated conv with the
    # spatially flipped, in/out-channel-swapped kernel, padding (1, 2).
    w_t = jnp.transpose(weight[:, :, ::-1, ::-1], (1, 0, 2, 3))   # (Co, Ci, 3, 3)
    out = lax.conv_general_dilated(
        act_nchw, w_t, window_strides=(1, 1),
        padding=((1, 2), (1, 2)), lhs_dilation=(2, 2),
        dimension_numbers=("NCHW", "OIHW", "NCHW"),
        precision=lax.Precision.HIGHEST)
    return out + bias[None, :, None, None]


def reference(x, params):
    n, l, cin = x.shape
    h = int(math.isqrt(l))
    act = jnp.transpose(x, (0, 2, 1)).reshape(n, cin, h, h)
    (w1, b1), (w2, b2), (w3, b3) = params
    act = _gelu(_conv_transpose_ref(act, w1, b1))
    act = _gelu(_conv_transpose_ref(act, w2, b2))
    act = _conv_transpose_ref(act, w3, b3)
    return act


if __name__ == "__main__":
    # Small shapes implied by the forward: tokens L=16 (H=W=4), hidden=32.
    N, L, C_IN = 2, 16, 32

    key = jax.random.PRNGKey(0)
    ks = jax.random.split(key, 7)
    x = jax.random.normal(ks[0], (N, L, C_IN), dtype=jnp.float32)

    def convt_params(kw, kb, ci, co):
        w = 0.05 * jax.random.normal(kw, (ci, co, 3, 3), dtype=jnp.float32)
        b = 0.05 * jax.random.normal(kb, (co,), dtype=jnp.float32)
        return w, b

    params = (
        convt_params(ks[1], ks[2], C_IN, 64),
        convt_params(ks[3], ks[4], 64, 32),
        convt_params(ks[5], ks[6], 32, 2),
    )

    # f32 matmul path (exact).
    out = jax.block_until_ready(rec_trac_head2(x, params))
    ref = reference(x, params)
    assert out.shape == (N, 2, 8 * 4, 8 * 4), out.shape
    err = float(jnp.max(jnp.abs(out - ref)))
    assert err < 5e-3, f"f32 kernel mismatch: {err}"

    # bf16 matmul operands (v6e/v7x MXU fast path); f32 accumulation/elementwise.
    out_bf16 = jax.block_until_ready(
        rec_trac_head2(x, params, compute_dtype=jnp.bfloat16))
    err_bf16 = float(jnp.max(jnp.abs(out_bf16 - ref)))
    assert err_bf16 < 5e-2, f"bf16 kernel mismatch: {err_bf16}"

    print("KERNEL_OK")
</pallas_src>

<mosaic_0001>
module attributes {stable_mosaic.version = 11 : i64} {
  func.func @_convt_kernel(%arg0: i32, %arg1: memref<1x31x32xf32, #tpu.memory_space<vmem>>, %arg2: memref<3x3x32x64xf32, #tpu.memory_space<vmem>>, %arg3: memref<1x64xf32, #tpu.memory_space<vmem>>, %arg4: memref<1x4x25x64xf32, #tpu.memory_space<vmem>>) attributes {dimension_semantics = [#tpu.dimension_semantics<parallel>], iteration_bounds = array<i64: 2>, scalar_prefetch = 0 : i64, scratch_operands = 0 : i64, tpu.core_type = #tpu.core_type<tc>, window_params = [{transform_indices = @transform_0, window_bounds = array<i64: 1, 31, 32>}, {pipeline_mode = #tpu.pipeline_mode<synchronous>, transform_indices = @transform_1, window_bounds = array<i64: 3, 3, 32, 64>}, {pipeline_mode = #tpu.pipeline_mode<synchronous>, transform_indices = @transform_2, window_bounds = array<i64: 1, 64>}, {transform_indices = @transform_3, window_bounds = array<i64: 1, 4, 25, 64>}]} {
    %c0 = arith.constant 0 : index
    %c0_0 = arith.constant 0 : index
    %0 = vector.load %arg3[%c0, %c0_0] : memref<1x64xf32, #tpu.memory_space<vmem>>, vector<1x64xf32>
    %c1 = arith.constant 1 : index
    %c1_1 = arith.constant 1 : index
    %c0_2 = arith.constant 0 : index
    %c0_3 = arith.constant 0 : index
    %1 = vector.load %arg2[%c1, %c1_1, %c0_2, %c0_3] : memref<3x3x32x64xf32, #tpu.memory_space<vmem>>, vector<1x1x32x64xf32>
    %2 = vector.shape_cast %1 : vector<1x1x32x64xf32> to vector<32x64xf32>
    %c1_4 = arith.constant 1 : index
    %c2 = arith.constant 2 : index
    %c0_5 = arith.constant 0 : index
    %c0_6 = arith.constant 0 : index
    %3 = vector.load %arg2[%c1_4, %c2, %c0_5, %c0_6] : memref<3x3x32x64xf32, #tpu.memory_space<vmem>>, vector<1x1x32x64xf32>
    %4 = vector.shape_cast %3 : vector<1x1x32x64xf32> to vector<32x64xf32>
    %c1_7 = arith.constant 1 : index
    %c0_8 = arith.constant 0 : index
    %c0_9 = arith.constant 0 : index
    %c0_10 = arith.constant 0 : index
    %5 = vector.load %arg2[%c1_7, %c0_8, %c0_9, %c0_10] : memref<3x3x32x64xf32, #tpu.memory_space<vmem>>, vector<1x1x32x64xf32>
    %6 = vector.shape_cast %5 : vector<1x1x32x64xf32> to vector<32x64xf32>
    %c2_11 = arith.constant 2 : index
    %c1_12 = arith.constant 1 : index
    %c0_13 = arith.constant 0 : index
    %c0_14 = arith.constant 0 : index
    %7 = vector.load %arg2[%c2_11, %c1_12, %c0_13, %c0_14] : memref<3x3x32x64xf32, #tpu.memory_space<vmem>>, vector<1x1x32x64xf32>
    %8 = vector.shape_cast %7 : vector<1x1x32x64xf32> to vector<32x64xf32>
    %c0_15 = arith.constant 0 : index
    %c1_16 = arith.constant 1 : index
    %c0_17 = arith.constant 0 : index
    %c0_18 = arith.constant 0 : index
    %9 = vector.load %arg2[%c0_15, %c1_16, %c0_17, %c0_18] : memref<3x3x32x64xf32, #tpu.memory_space<vmem>>, vector<1x1x32x64xf32>
    %10 = vector.shape_cast %9 : vector<1x1x32x64xf32> to vector<32x64xf32>
    %c2_19 = arith.constant 2 : index
    %c2_20 = arith.constant 2 : index
    %c0_21 = arith.constant 0 : index
    %c0_22 = arith.constant 0 : index
    %11 = vector.load %arg2[%c2_19, %c2_20, %c0_21, %c0_22] : memref<3x3x32x64xf32, #tpu.memory_space<vmem>>, vector<1x1x32x64xf32>
    %12 = vector.shape_cast %11 : vector<1x1x32x64xf32> to vector<32x64xf32>
    %c2_23 = arith.constant 2 : index
    %c0_24 = arith.constant 0 : index
    %c0_25 = arith.constant 0 : index
    %c0_26 = arith.constant 0 : index
    %13 = vector.load %arg2[%c2_23, %c0_24, %c0_25, %c0_26] : memref<3x3x32x64xf32, #tpu.memory_space<vmem>>, vector<1x1x32x64xf32>
    %14 = vector.shape_cast %13 : vector<1x1x32x64xf32> to vector<32x64xf32>
    %c0_27 = arith.constant 0 : index
    %c2_28 = arith.constant 2 : index
    %c0_29 = arith.constant 0 : index
    %c0_30 = arith.constant 0 : index
    %15 = vector.load %arg2[%c0_27, %c2_28, %c0_29, %c0_30] : memref<3x3x32x64xf32, #tpu.memory_space<vmem>>, vector<1x1x32x64xf32>
    %16 = vector.shape_cast %15 : vector<1x1x32x64xf32> to vector<32x64xf32>
    %c0_31 = arith.constant 0 : index
    %c0_32 = arith.constant 0 : index
    %c0_33 = arith.constant 0 : index
    %c0_34 = arith.constant 0 : index
    %17 = vector.load %arg2[%c0_31, %c0_32, %c0_33, %c0_34] : memref<3x3x32x64xf32, #tpu.memory_space<vmem>>, vector<1x1x32x64xf32>
    %18 = vector.shape_cast %17 : vector<1x1x32x64xf32> to vector<32x64xf32>
    %c0_35 = arith.constant 0 : index
    %c0_36 = arith.constant 0 : index
    %c0_37 = arith.constant 0 : index
    %19 = vector.load %arg1[%c0_35, %c0_36, %c0_37] : memref<1x31x32xf32, #tpu.memory_space<vmem>>, vector<1x25x32xf32>
    %20 = vector.shape_cast %19 : vector<1x25x32xf32> to vector<25x32xf32>
    %c0_38 = arith.constant 0 : index
    %c1_39 = arith.constant 1 : index
    %c0_40 = arith.constant 0 : index
    %21 = vector.load %arg1[%c0_38, %c1_39, %c0_40] : memref<1x31x32xf32, #tpu.memory_space<vmem>>, vector<1x25x32xf32>
    %22 = vector.shape_cast %21 : vector<1x25x32xf32> to vector<25x32xf32>
    %c0_41 = arith.constant 0 : index
    %c5 = arith.constant 5 : index
    %c0_42 = arith.constant 0 : index
    %23 = vector.load %arg1[%c0_41, %c5, %c0_42] : memref<1x31x32xf32, #tpu.memory_space<vmem>>, vector<1x25x32xf32>
    %24 = vector.shape_cast %23 : vector<1x25x32xf32> to vector<25x32xf32>
    %c0_43 = arith.constant 0 : index
    %c6 = arith.constant 6 : index
    %c0_44 = arith.constant 0 : index
    %25 = vector.load %arg1[%c0_43, %c6, %c0_44] : memref<1x31x32xf32, #tpu.memory_space<vmem>>, vector<1x25x32xf32>
    %26 = vector.shape_cast %25 : vector<1x25x32xf32> to vector<25x32xf32>
    %cst = arith.constant dense<0.000000e+00> : vector<25x64xf32>
    %27 = tpu.matmul %20, %2, %cst {dimension_numbers = #tpu.dot_dimension_numbers<[1], [0], [0], [1], [0, 0, 1, 1], [], []>} : vector<25x32xf32>, vector<32x64xf32>, vector<25x64xf32> -> vector<25x64xf32>
    %cst_45 = arith.constant dense<0.000000e+00> : vector<25x64xf32>
    %28 = tpu.matmul %20, %4, %cst_45 {dimension_numbers = #tpu.dot_dimension_numbers<[1], [0], [0], [1], [0, 0, 1, 1], [], []>} : vector<25x32xf32>, vector<32x64xf32>, vector<25x64xf32> -> vector<25x64xf32>
    %cst_46 = arith.constant dense<0.000000e+00> : vector<25x64xf32>
    %29 = tpu.matmul %22, %6, %cst_46 {dimension_numbers = #tpu.dot_dimension_numbers<[1], [0], [0], [1], [0, 0, 1, 1], [], []>} : vector<25x32xf32>, vector<32x64xf32>, vector<25x64xf32> -> vector<25x64xf32>
    %30 = arith.addf %28, %29 : vector<25x64xf32>
    %cst_47 = arith.constant dense<0.000000e+00> : vector<25x64xf32>
    %31 = tpu.matmul %20, %8, %cst_47 {dimension_numbers = #tpu.dot_dimension_numbers<[1], [0], [0], [1], [0, 0, 1, 1], [], []>} : vector<25x32xf32>, vector<32x64xf32>, vector<25x64xf32> -> vector<25x64xf32>
    %cst_48 = arith.constant dense<0.000000e+00> : vector<25x64xf32>
    %32 = tpu.matmul %24, %10, %cst_48 {dimension_numbers = #tpu.dot_dimension_numbers<[1], [0], [0], [1], [0, 0, 1, 1], [], []>} : vector<25x32xf32>, vector<32x64xf32>, vector<25x64xf32> -> vector<25x64xf32>
    %33 = arith.addf %31, %32 : vector<25x64xf32>
    %cst_49 = arith.constant dense<0.000000e+00> : vector<25x64xf32>
    %34 = tpu.matmul %20, %12, %cst_49 {dimension_numbers = #tpu.dot_dimension_numbers<[1], [0], [0], [1], [0, 0, 1, 1], [], []>} : vector<25x32xf32>, vector<32x64xf32>, vector<25x64xf32> -> vector<25x64xf32>
    %cst_50 = arith.constant dense<0.000000e+00> : vector<25x64xf32>
    %35 = tpu.matmul %22, %14, %cst_50 {dimension_numbers = #tpu.dot_dimension_numbers<[1], [0], [0], [1], [0, 0, 1, 1], [], []>} : vector<25x32xf32>, vector<32x64xf32>, vector<25x64xf32> -> vector<25x64xf32>
    %36 = arith.addf %34, %35 : vector<25x64xf32>
    %cst_51 = arith.constant dense<0.000000e+00> : vector<25x64xf32>
    %37 = tpu.matmul %24, %16, %cst_51 {dimension_numbers = #tpu.dot_dimension_numbers<[1], [0], [0], [1], [0, 0, 1, 1], [], []>} : vector<25x32xf32>, vector<32x64xf32>, vector<25x64xf32> -> vector<25x64xf32>
    %38 = arith.addf %36, %37 : vector<25x64xf32>
    %cst_52 = arith.constant dense<0.000000e+00> : vector<25x64xf32>
    %39 = tpu.matmul %26, %18, %cst_52 {dimension_numbers = #tpu.dot_dimension_numbers<[1], [0], [0], [1], [0, 0, 1, 1], [], []>} : vector<25x32xf32>, vector<32x64xf32>, vector<25x64xf32> -> vector<25x64xf32>
    %40 = arith.addf %38, %39 : vector<25x64xf32>
    %41 = vector.broadcast %0 : vector<1x64xf32> to vector<25x64xf32>
    %42 = arith.addf %27, %41 : vector<25x64xf32>
    %43 = arith.mulf %42, %42 : vector<25x64xf32>
    %44 = arith.mulf %42, %43 : vector<25x64xf32>
    %cst_53 = arith.constant 4.471500e-02 : f32
    %45 = vector.broadcast %cst_53 : f32 to vector<25x64xf32>
    %46 = arith.mulf %45, %44 : vector<25x64xf32>
    %47 = arith.addf %42, %46 : vector<25x64xf32>
    %cst_54 = arith.constant 0.797884583 : f32
    %48 = vector.broadcast %cst_54 : f32 to vector<25x64xf32>
    %49 = arith.mulf %48, %47 : vector<25x64xf32>
    %50 = math.tanh %49 : vector<25x64xf32>
    %cst_55 = arith.constant 1.000000e+00 : f32
    %51 = vector.broadcast %cst_55 : f32 to vector<25x64xf32>
    %52 = arith.addf %51, %50 : vector<25x64xf32>
    %cst_56 = arith.constant 5.000000e-01 : f32
    %53 = vector.broadcast %cst_56 : f32 to vector<25x64xf32>
    %54 = arith.mulf %53, %52 : vector<25x64xf32>
    %55 = arith.mulf %42, %54 : vector<25x64xf32>
    %c0_57 = arith.constant 0 : index
    %c0_58 = arith.constant 0 : index
    %c0_59 = arith.constant 0 : index
    %c0_60 = arith.constant 0 : index
    %56 = vector.load %arg4[%c0_57, %c0_58, %c0_59, %c0_60] : memref<1x4x25x64xf32, #tpu.memory_space<vmem>>, vector<1x1x25x64xf32>
    %57 = vector.shape_cast %56 : vector<1x1x25x64xf32> to vector<25x64xf32>
    %58 = vector.shape_cast %55 : vector<25x64xf32> to vector<1x1x25x64xf32>
    tpu.vector_store %arg4[%c0_57, %c0_58, %c0_59, %c0_60], %58 {strides = array<i32>} : memref<1x4x25x64xf32, #tpu.memory_space<vmem>>, vector<1x1x25x64xf32>,
    %59 = vector.broadcast %0 : vector<1x64xf32> to vector<25x64xf32>
    %60 = arith.addf %30, %59 : vector<25x64xf32>
    %61 = arith.mulf %60, %60 : vector<25x64xf32>
    %62 = arith.mulf %60, %61 : vector<25x64xf32>
    %cst_61 = arith.constant 4.471500e-02 : f32
    %63 = vector.broadcast %cst_61 : f32 to vector<25x64xf32>
    %64 = arith.mulf %63, %62 : vector<25x64xf32>
    %65 = arith.addf %60, %64 : vector<25x64xf32>
    %cst_62 = arith.constant 0.797884583 : f32
    %66 = vector.broadcast %cst_62 : f32 to vector<25x64xf32>
    %67 = arith.mulf %66, %65 : vector<25x64xf32>
    %68 = math.tanh %67 : vector<25x64xf32>
    %cst_63 = arith.constant 1.000000e+00 : f32
    %69 = vector.broadcast %cst_63 : f32 to vector<25x64xf32>
    %70 = arith.addf %69, %68 : vector<25x64xf32>
    %cst_64 = arith.constant 5.000000e-01 : f32
    %71 = vector.broadcast %cst_64 : f32 to vector<25x64xf32>
    %72 = arith.mulf %71, %70 : vector<25x64xf32>
    %73 = arith.mulf %60, %72 : vector<25x64xf32>
    %c0_65 = arith.constant 0 : index
    %c1_66 = arith.constant 1 : index
    %c0_67 = arith.constant 0 : index
    %c0_68 = arith.constant 0 : index
    %74 = vector.load %arg4[%c0_65, %c1_66, %c0_67, %c0_68] : memref<1x4x25x64xf32, #tpu.memory_space<vmem>>, vector<1x1x25x64xf32>
    %75 = vector.shape_cast %74 : vector<1x1x25x64xf32> to vector<25x64xf32>
    %76 = vector.shape_cast %73 : vector<25x64xf32> to vector<1x1x25x64xf32>
    tpu.vector_store %arg4[%c0_65, %c1_66, %c0_67, %c0_68], %76 {strides = array<i32>} : memref<1x4x25x64xf32, #tpu.memory_space<vmem>>, vector<1x1x25x64xf32>,
    %77 = vector.broadcast %0 : vector<1x64xf32> to vector<25x64xf32>
    %78 = arith.addf %33, %77 : vector<25x64xf32>
    %79 = arith.mulf %78, %78 : vector<25x64xf32>
    %80 = arith.mulf %78, %79 : vector<25x64xf32>
    %cst_69 = arith.constant 4.471500e-02 : f32
    %81 = vector.broadcast %cst_69 : f32 to vector<25x64xf32>
    %82 = arith.mulf %81, %80 : vector<25x64xf32>
    %83 = arith.addf %78, %82 : vector<25x64xf32>
    %cst_70 = arith.constant 0.797884583 : f32
    %84 = vector.broadcast %cst_70 : f32 to vector<25x64xf32>
    %85 = arith.mulf %84, %83 : vector<25x64xf32>
    %86 = math.tanh %85 : vector<25x64xf32>
    %cst_71 = arith.constant 1.000000e+00 : f32
    %87 = vector.broadcast %cst_71 : f32 to vector<25x64xf32>
    %88 = arith.addf %87, %86 : vector<25x64xf32>
    %cst_72 = arith.constant 5.000000e-01 : f32
    %89 = vector.broadcast %cst_72 : f32 to vector<25x64xf32>
    %90 = arith.mulf %89, %88 : vector<25x64xf32>
    %91 = arith.mulf %78, %90 : vector<25x64xf32>
    %c0_73 = arith.constant 0 : index
    %c2_74 = arith.constant 2 : index
    %c0_75 = arith.constant 0 : index
    %c0_76 = arith.constant 0 : index
    %92 = vector.load %arg4[%c0_73, %c2_74, %c0_75, %c0_76] : memref<1x4x25x64xf32, #tpu.memory_space<vmem>>, vector<1x1x25x64xf32>
    %93 = vector.shape_cast %92 : vector<1x1x25x64xf32> to vector<25x64xf32>
    %94 = vector.shape_cast %91 : vector<25x64xf32> to vector<1x1x25x64xf32>
    tpu.vector_store %arg4[%c0_73, %c2_74, %c0_75, %c0_76], %94 {strides = array<i32>} : memref<1x4x25x64xf32, #tpu.memory_space<vmem>>, vector<1x1x25x64xf32>,
    %95 = vector.broadcast %0 : vector<1x64xf32> to vector<25x64xf32>
    %96 = arith.addf %40, %95 : vector<25x64xf32>
    %97 = arith.mulf %96, %96 : vector<25x64xf32>
    %98 = arith.mulf %96, %97 : vector<25x64xf32>
    %cst_77 = arith.constant 4.471500e-02 : f32
    %99 = vector.broadcast %cst_77 : f32 to vector<25x64xf32>
    %100 = arith.mulf %99, %98 : vector<25x64xf32>
    %101 = arith.addf %96, %100 : vector<25x64xf32>
    %cst_78 = arith.constant 0.797884583 : f32
    %102 = vector.broadcast %cst_78 : f32 to vector<25x64xf32>
    %103 = arith.mulf %102, %101 : vector<25x64xf32>
    %104 = math.tanh %103 : vector<25x64xf32>
    %cst_79 = arith.constant 1.000000e+00 : f32
    %105 = vector.broadcast %cst_79 : f32 to vector<25x64xf32>
    %106 = arith.addf %105, %104 : vector<25x64xf32>
    %cst_80 = arith.constant 5.000000e-01 : f32
    %107 = vector.broadcast %cst_80 : f32 to vector<25x64xf32>
    %108 = arith.mulf %107, %106 : vector<25x64xf32>
    %109 = arith.mulf %96, %108 : vector<25x64xf32>
    %c0_81 = arith.constant 0 : index
    %c3 = arith.constant 3 : index
    %c0_82 = arith.constant 0 : index
    %c0_83 = arith.constant 0 : index
    %110 = vector.load %arg4[%c0_81, %c3, %c0_82, %c0_83] : memref<1x4x25x64xf32, #tpu.memory_space<vmem>>, vector<1x1x25x64xf32>
    %111 = vector.shape_cast %110 : vector<1x1x25x64xf32> to vector<25x64xf32>
    %112 = vector.shape_cast %109 : vector<25x64xf32> to vector<1x1x25x64xf32>
    tpu.vector_store %arg4[%c0_81, %c3, %c0_82, %c0_83], %112 {strides = array<i32>} : memref<1x4x25x64xf32, #tpu.memory_space<vmem>>, vector<1x1x25x64xf32>,
    return
  }
  func.func @transform_0(%arg0: i32) -> (i32, i32, i32) {
    %c0_i32 = arith.constant 0 : i32
    %c0_i32_0 = arith.constant 0 : i32
    %c0_i32_1 = arith.constant 0 : i32
    return %arg0, %c0_i32, %c0_i32_0 : i32, i32, i32
  }
  func.func @transform_1(%arg0: i32) -> (i32, i32, i32, i32) {
    %c0_i32 = arith.constant 0 : i32
    %c0_i32_0 = arith.constant 0 : i32
    %c0_i32_1 = arith.constant 0 : i32
    %c0_i32_2 = arith.constant 0 : i32
    %c0_i32_3 = arith.constant 0 : i32
    return %c0_i32, %c0_i32_0, %c0_i32_1, %c0_i32_2 : i32, i32, i32, i32
  }
  func.func @transform_2(%arg0: i32) -> (i32, i32) {
    %c0_i32 = arith.constant 0 : i32
    %c0_i32_0 = arith.constant 0 : i32
    %c0_i32_1 = arith.constant 0 : i32
    return %c0_i32, %c0_i32_0 : i32, i32
  }
  func.func @transform_3(%arg0: i32) -> (i32, i32, i32, i32) {
    %c0_i32 = arith.constant 0 : i32
    %c0_i32_0 = arith.constant 0 : i32
    %c0_i32_1 = arith.constant 0 : i32
    %c0_i32_2 = arith.constant 0 : i32
    return %arg0, %c0_i32, %c0_i32_0, %c0_i32_1 : i32, i32, i32, i32
  }
}

module attributes {stable_mosaic.version = 11 : i64} {
  func.func @_convt_kernel(%arg0: i32, %arg1: memref<1x91x64xf32, #tpu.memory_space<vmem>>, %arg2: memref<3x3x64x32xf32, #tpu.memory_space<vmem>>, %arg3: memref<1x32xf32, #tpu.memory_space<vmem>>, %arg4: memref<1x4x81x32xf32, #tpu.memory_space<vmem>>) attributes {dimension_semantics = [#tpu.dimension_semantics<parallel>], iteration_bounds = array<i64: 2>, scalar_prefetch = 0 : i64, scratch_operands = 0 : i64, tpu.core_type = #tpu.core_type<tc>, window_params = [{transform_indices = @transform_0, window_bounds = array<i64: 1, 91, 64>}, {pipeline_mode = #tpu.pipeline_mode<synchronous>, transform_indices = @transform_1, window_bounds = array<i64: 3, 3, 64, 32>}, {pipeline_mode = #tpu.pipeline_mode<synchronous>, transform_indices = @transform_2, window_bounds = array<i64: 1, 32>}, {transform_indices = @transform_3, window_bounds = array<i64: 1, 4, 81, 32>}]} {
    %c0 = arith.constant 0 : index
    %c0_0 = arith.constant 0 : index
    %0 = vector.load %arg3[%c0, %c0_0] : memref<1x32xf32, #tpu.memory_space<vmem>>, vector<1x32xf32>
    %c1 = arith.constant 1 : index
    %c1_1 = arith.constant 1 : index
    %c0_2 = arith.constant 0 : index
    %c0_3 = arith.constant 0 : index
    %1 = vector.load %arg2[%c1, %c1_1, %c0_2, %c0_3] : memref<3x3x64x32xf32, #tpu.memory_space<vmem>>, vector<1x1x64x32xf32>
    %2 = vector.shape_cast %1 : vector<1x1x64x32xf32> to vector<64x32xf32>
    %c1_4 = arith.constant 1 : index
    %c2 = arith.constant 2 : index
    %c0_5 = arith.constant 0 : index
    %c0_6 = arith.constant 0 : index
    %3 = vector.load %arg2[%c1_4, %c2, %c0_5, %c0_6] : memref<3x3x64x32xf32, #tpu.memory_space<vmem>>, vector<1x1x64x32xf32>
    %4 = vector.shape_cast %3 : vector<1x1x64x32xf32> to vector<64x32xf32>
    %c1_7 = arith.constant 1 : index
    %c0_8 = arith.constant 0 : index
    %c0_9 = arith.constant 0 : index
    %c0_10 = arith.constant 0 : index
    %5 = vector.load %arg2[%c1_7, %c0_8, %c0_9, %c0_10] : memref<3x3x64x32xf32, #tpu.memory_space<vmem>>, vector<1x1x64x32xf32>
    %6 = vector.shape_cast %5 : vector<1x1x64x32xf32> to vector<64x32xf32>
    %c2_11 = arith.constant 2 : index
    %c1_12 = arith.constant 1 : index
    %c0_13 = arith.constant 0 : index
    %c0_14 = arith.constant 0 : index
    %7 = vector.load %arg2[%c2_11, %c1_12, %c0_13, %c0_14] : memref<3x3x64x32xf32, #tpu.memory_space<vmem>>, vector<1x1x64x32xf32>
    %8 = vector.shape_cast %7 : vector<1x1x64x32xf32> to vector<64x32xf32>
    %c0_15 = arith.constant 0 : index
    %c1_16 = arith.constant 1 : index
    %c0_17 = arith.constant 0 : index
    %c0_18 = arith.constant 0 : index
    %9 = vector.load %arg2[%c0_15, %c1_16, %c0_17, %c0_18] : memref<3x3x64x32xf32, #tpu.memory_space<vmem>>, vector<1x1x64x32xf32>
    %10 = vector.shape_cast %9 : vector<1x1x64x32xf32> to vector<64x32xf32>
    %c2_19 = arith.constant 2 : index
    %c2_20 = arith.constant 2 : index
    %c0_21 = arith.constant 0 : index
    %c0_22 = arith.constant 0 : index
    %11 = vector.load %arg2[%c2_19, %c2_20, %c0_21, %c0_22] : memref<3x3x64x32xf32, #tpu.memory_space<vmem>>, vector<1x1x64x32xf32>
    %12 = vector.shape_cast %11 : vector<1x1x64x32xf32> to vector<64x32xf32>
    %c2_23 = arith.constant 2 : index
    %c0_24 = arith.constant 0 : index
    %c0_25 = arith.constant 0 : index
    %c0_26 = arith.constant 0 : index
    %13 = vector.load %arg2[%c2_23, %c0_24, %c0_25, %c0_26] : memref<3x3x64x32xf32, #tpu.memory_space<vmem>>, vector<1x1x64x32xf32>
    %14 = vector.shape_cast %13 : vector<1x1x64x32xf32> to vector<64x32xf32>
    %c0_27 = arith.constant 0 : index
    %c2_28 = arith.constant 2 : index
    %c0_29 = arith.constant 0 : index
    %c0_30 = arith.constant 0 : index
    %15 = vector.load %arg2[%c0_27, %c2_28, %c0_29, %c0_30] : memref<3x3x64x32xf32, #tpu.memory_space<vmem>>, vector<1x1x64x32xf32>
    %16 = vector.shape_cast %15 : vector<1x1x64x32xf32> to vector<64x32xf32>
    %c0_31 = arith.constant 0 : index
    %c0_32 = arith.constant 0 : index
    %c0_33 = arith.constant 0 : index
    %c0_34 = arith.constant 0 : index
    %17 = vector.load %arg2[%c0_31, %c0_32, %c0_33, %c0_34] : memref<3x3x64x32xf32, #tpu.memory_space<vmem>>, vector<1x1x64x32xf32>
    %18 = vector.shape_cast %17 : vector<1x1x64x32xf32> to vector<64x32xf32>
    %c0_35 = arith.constant 0 : index
    %c0_36 = arith.constant 0 : index
    %c0_37 = arith.constant 0 : index
    %19 = vector.load %arg1[%c0_35, %c0_36, %c0_37] : memref<1x91x64xf32, #tpu.memory_space<vmem>>, vector<1x81x64xf32>
    %20 = vector.shape_cast %19 : vector<1x81x64xf32> to vector<81x64xf32>
    %c0_38 = arith.constant 0 : index
    %c1_39 = arith.constant 1 : index
    %c0_40 = arith.constant 0 : index
    %21 = vector.load %arg1[%c0_38, %c1_39, %c0_40] : memref<1x91x64xf32, #tpu.memory_space<vmem>>, vector<1x81x64xf32>
    %22 = vector.shape_cast %21 : vector<1x81x64xf32> to vector<81x64xf32>
    %c0_41 = arith.constant 0 : index
    %c9 = arith.constant 9 : index
    %c0_42 = arith.constant 0 : index
    %23 = vector.load %arg1[%c0_41, %c9, %c0_42] : memref<1x91x64xf32, #tpu.memory_space<vmem>>, vector<1x81x64xf32>
    %24 = vector.shape_cast %23 : vector<1x81x64xf32> to vector<81x64xf32>
    %c0_43 = arith.constant 0 : index
    %c10 = arith.constant 10 : index
    %c0_44 = arith.constant 0 : index
    %25 = vector.load %arg1[%c0_43, %c10, %c0_44] : memref<1x91x64xf32, #tpu.memory_space<vmem>>, vector<1x81x64xf32>
    %26 = vector.shape_cast %25 : vector<1x81x64xf32> to vector<81x64xf32>
    %cst = arith.constant dense<0.000000e+00> : vector<81x32xf32>
    %27 = tpu.matmul %20, %2, %cst {dimension_numbers = #tpu.dot_dimension_numbers<[1], [0], [0], [1], [0, 0, 1, 1], [], []>} : vector<81x64xf32>, vector<64x32xf32>, vector<81x32xf32> -> vector<81x32xf32>
    %cst_45 = arith.constant dense<0.000000e+00> : vector<81x32xf32>
    %28 = tpu.matmul %20, %4, %cst_45 {dimension_numbers = #tpu.dot_dimension_numbers<[1], [0], [0], [1], [0, 0, 1, 1], [], []>} : vector<81x64xf32>, vector<64x32xf32>, vector<81x32xf32> -> vector<81x32xf32>
    %cst_46 = arith.constant dense<0.000000e+00> : vector<81x32xf32>
    %29 = tpu.matmul %22, %6, %cst_46 {dimension_numbers = #tpu.dot_dimension_numbers<[1], [0], [0], [1], [0, 0, 1, 1], [], []>} : vector<81x64xf32>, vector<64x32xf32>, vector<81x32xf32> -> vector<81x32xf32>
    %30 = arith.addf %28, %29 : vector<81x32xf32>
    %cst_47 = arith.constant dense<0.000000e+00> : vector<81x32xf32>
    %31 = tpu.matmul %20, %8, %cst_47 {dimension_numbers = #tpu.dot_dimension_numbers<[1], [0], [0], [1], [0, 0, 1, 1], [], []>} : vector<81x64xf32>, vector<64x32xf32>, vector<81x32xf32> -> vector<81x32xf32>
    %cst_48 = arith.constant dense<0.000000e+00> : vector<81x32xf32>
    %32 = tpu.matmul %24, %10, %cst_48 {dimension_numbers = #tpu.dot_dimension_numbers<[1], [0], [0], [1], [0, 0, 1, 1], [], []>} : vector<81x64xf32>, vector<64x32xf32>, vector<81x32xf32> -> vector<81x32xf32>
    %33 = arith.addf %31, %32 : vector<81x32xf32>
    %cst_49 = arith.constant dense<0.000000e+00> : vector<81x32xf32>
    %34 = tpu.matmul %20, %12, %cst_49 {dimension_numbers = #tpu.dot_dimension_numbers<[1], [0], [0], [1], [0, 0, 1, 1], [], []>} : vector<81x64xf32>, vector<64x32xf32>, vector<81x32xf32> -> vector<81x32xf32>
    %cst_50 = arith.constant dense<0.000000e+00> : vector<81x32xf32>
    %35 = tpu.matmul %22, %14, %cst_50 {dimension_numbers = #tpu.dot_dimension_numbers<[1], [0], [0], [1], [0, 0, 1, 1], [], []>} : vector<81x64xf32>, vector<64x32xf32>, vector<81x32xf32> -> vector<81x32xf32>
    %36 = arith.addf %34, %35 : vector<81x32xf32>
    %cst_51 = arith.constant dense<0.000000e+00> : vector<81x32xf32>
    %37 = tpu.matmul %24, %16, %cst_51 {dimension_numbers = #tpu.dot_dimension_numbers<[1], [0], [0], [1], [0, 0, 1, 1], [], []>} : vector<81x64xf32>, vector<64x32xf32>, vector<81x32xf32> -> vector<81x32xf32>
    %38 = arith.addf %36, %37 : vector<81x32xf32>
    %cst_52 = arith.constant dense<0.000000e+00> : vector<81x32xf32>
    %39 = tpu.matmul %26, %18, %cst_52 {dimension_numbers = #tpu.dot_dimension_numbers<[1], [0], [0], [1], [0, 0, 1, 1], [], []>} : vector<81x64xf32>, vector<64x32xf32>, vector<81x32xf32> -> vector<81x32xf32>
    %40 = arith.addf %38, %39 : vector<81x32xf32>
    %41 = vector.broadcast %0 : vector<1x32xf32> to vector<81x32xf32>
    %42 = arith.addf %27, %41 : vector<81x32xf32>
    %43 = arith.mulf %42, %42 : vector<81x32xf32>
    %44 = arith.mulf %42, %43 : vector<81x32xf32>
    %cst_53 = arith.constant 4.471500e-02 : f32
    %45 = vector.broadcast %cst_53 : f32 to vector<81x32xf32>
    %46 = arith.mulf %45, %44 : vector<81x32xf32>
    %47 = arith.addf %42, %46 : vector<81x32xf32>
    %cst_54 = arith.constant 0.797884583 : f32
    %48 = vector.broadcast %cst_54 : f32 to vector<81x32xf32>
    %49 = arith.mulf %48, %47 : vector<81x32xf32>
    %50 = math.tanh %49 : vector<81x32xf32>
    %cst_55 = arith.constant 1.000000e+00 : f32
    %51 = vector.broadcast %cst_55 : f32 to vector<81x32xf32>
    %52 = arith.addf %51, %50 : vector<81x32xf32>
    %cst_56 = arith.constant 5.000000e-01 : f32
    %53 = vector.broadcast %cst_56 : f32 to vector<81x32xf32>
    %54 = arith.mulf %53, %52 : vector<81x32xf32>
    %55 = arith.mulf %42, %54 : vector<81x32xf32>
    %c0_57 = arith.constant 0 : index
    %c0_58 = arith.constant 0 : index
    %c0_59 = arith.constant 0 : index
    %c0_60 = arith.constant 0 : index
    %56 = vector.load %arg4[%c0_57, %c0_58, %c0_59, %c0_60] : memref<1x4x81x32xf32, #tpu.memory_space<vmem>>, vector<1x1x81x32xf32>
    %57 = vector.shape_cast %56 : vector<1x1x81x32xf32> to vector<81x32xf32>
    %58 = vector.shape_cast %55 : vector<81x32xf32> to vector<1x1x81x32xf32>
    tpu.vector_store %arg4[%c0_57, %c0_58, %c0_59, %c0_60], %58 {strides = array<i32>} : memref<1x4x81x32xf32, #tpu.memory_space<vmem>>, vector<1x1x81x32xf32>,
    %59 = vector.broadcast %0 : vector<1x32xf32> to vector<81x32xf32>
    %60 = arith.addf %30, %59 : vector<81x32xf32>
    %61 = arith.mulf %60, %60 : vector<81x32xf32>
    %62 = arith.mulf %60, %61 : vector<81x32xf32>
    %cst_61 = arith.constant 4.471500e-02 : f32
    %63 = vector.broadcast %cst_61 : f32 to vector<81x32xf32>
    %64 = arith.mulf %63, %62 : vector<81x32xf32>
    %65 = arith.addf %60, %64 : vector<81x32xf32>
    %cst_62 = arith.constant 0.797884583 : f32
    %66 = vector.broadcast %cst_62 : f32 to vector<81x32xf32>
    %67 = arith.mulf %66, %65 : vector<81x32xf32>
    %68 = math.tanh %67 : vector<81x32xf32>
    %cst_63 = arith.constant 1.000000e+00 : f32
    %69 = vector.broadcast %cst_63 : f32 to vector<81x32xf32>
    %70 = arith.addf %69, %68 : vector<81x32xf32>
    %cst_64 = arith.constant 5.000000e-01 : f32
    %71 = vector.broadcast %cst_64 : f32 to vector<81x32xf32>
    %72 = arith.mulf %71, %70 : vector<81x32xf32>
    %73 = arith.mulf %60, %72 : vector<81x32xf32>
    %c0_65 = arith.constant 0 : index
    %c1_66 = arith.constant 1 : index
    %c0_67 = arith.constant 0 : index
    %c0_68 = arith.constant 0 : index
    %74 = vector.load %arg4[%c0_65, %c1_66, %c0_67, %c0_68] : memref<1x4x81x32xf32, #tpu.memory_space<vmem>>, vector<1x1x81x32xf32>
    %75 = vector.shape_cast %74 : vector<1x1x81x32xf32> to vector<81x32xf32>
    %76 = vector.shape_cast %73 : vector<81x32xf32> to vector<1x1x81x32xf32>
    tpu.vector_store %arg4[%c0_65, %c1_66, %c0_67, %c0_68], %76 {strides = array<i32>} : memref<1x4x81x32xf32, #tpu.memory_space<vmem>>, vector<1x1x81x32xf32>,
    %77 = vector.broadcast %0 : vector<1x32xf32> to vector<81x32xf32>
    %78 = arith.addf %33, %77 : vector<81x32xf32>
    %79 = arith.mulf %78, %78 : vector<81x32xf32>
    %80 = arith.mulf %78, %79 : vector<81x32xf32>
    %cst_69 = arith.constant 4.471500e-02 : f32
    %81 = vector.broadcast %cst_69 : f32 to vector<81x32xf32>
    %82 = arith.mulf %81, %80 : vector<81x32xf32>
    %83 = arith.addf %78, %82 : vector<81x32xf32>
    %cst_70 = arith.constant 0.797884583 : f32
    %84 = vector.broadcast %cst_70 : f32 to vector<81x32xf32>
    %85 = arith.mulf %84, %83 : vector<81x32xf32>
    %86 = math.tanh %85 : vector<81x32xf32>
    %cst_71 = arith.constant 1.000000e+00 : f32
    %87 = vector.broadcast %cst_71 : f32 to vector<81x32xf32>
    %88 = arith.addf %87, %86 : vector<81x32xf32>
    %cst_72 = arith.constant 5.000000e-01 : f32
    %89 = vector.broadcast %cst_72 : f32 to vector<81x32xf32>
    %90 = arith.mulf %89, %88 : vector<81x32xf32>
    %91 = arith.mulf %78, %90 : vector<81x32xf32>
    %c0_73 = arith.constant 0 : index
    %c2_74 = arith.constant 2 : index
    %c0_75 = arith.constant 0 : index
    %c0_76 = arith.constant 0 : index
    %92 = vector.load %arg4[%c0_73, %c2_74, %c0_75, %c0_76] : memref<1x4x81x32xf32, #tpu.memory_space<vmem>>, vector<1x1x81x32xf32>
    %93 = vector.shape_cast %92 : vector<1x1x81x32xf32> to vector<81x32xf32>
    %94 = vector.shape_cast %91 : vector<81x32xf32> to vector<1x1x81x32xf32>
    tpu.vector_store %arg4[%c0_73, %c2_74, %c0_75, %c0_76], %94 {strides = array<i32>} : memref<1x4x81x32xf32, #tpu.memory_space<vmem>>, vector<1x1x81x32xf32>,
    %95 = vector.broadcast %0 : vector<1x32xf32> to vector<81x32xf32>
    %96 = arith.addf %40, %95 : vector<81x32xf32>
    %97 = arith.mulf %96, %96 : vector<81x32xf32>
    %98 = arith.mulf %96, %97 : vector<81x32xf32>
    %cst_77 = arith.constant 4.471500e-02 : f32
    %99 = vector.broadcast %cst_77 : f32 to vector<81x32xf32>
    %100 = arith.mulf %99, %98 : vector<81x32xf32>
    %101 = arith.addf %96, %100 : vector<81x32xf32>
    %cst_78 = arith.constant 0.797884583 : f32
    %102 = vector.broadcast %cst_78 : f32 to vector<81x32xf32>
    %103 = arith.mulf %102, %101 : vector<81x32xf32>
    %104 = math.tanh %103 : vector<81x32xf32>
    %cst_79 = arith.constant 1.000000e+00 : f32
    %105 = vector.broadcast %cst_79 : f32 to vector<81x32xf32>
    %106 = arith.addf %105, %104 : vector<81x32xf32>
    %cst_80 = arith.constant 5.000000e-01 : f32
    %107 = vector.broadcast %cst_80 : f32 to vector<81x32xf32>
    %108 = arith.mulf %107, %106 : vector<81x32xf32>
    %109 = arith.mulf %96, %108 : vector<81x32xf32>
    %c0_81 = arith.constant 0 : index
    %c3 = arith.constant 3 : index
    %c0_82 = arith.constant 0 : index
    %c0_83 = arith.constant 0 : index
    %110 = vector.load %arg4[%c0_81, %c3, %c0_82, %c0_83] : memref<1x4x81x32xf32, #tpu.memory_space<vmem>>, vector<1x1x81x32xf32>
    %111 = vector.shape_cast %110 : vector<1x1x81x32xf32> to vector<81x32xf32>
    %112 = vector.shape_cast %109 : vector<81x32xf32> to vector<1x1x81x32xf32>
    tpu.vector_store %arg4[%c0_81, %c3, %c0_82, %c0_83], %112 {strides = array<i32>} : memref<1x4x81x32xf32, #tpu.memory_space<vmem>>, vector<1x1x81x32xf32>,
    return
  }
  func.func @transform_0(%arg0: i32) -> (i32, i32, i32) {
    %c0_i32 = arith.constant 0 : i32
    %c0_i32_0 = arith.constant 0 : i32
    %c0_i32_1 = arith.constant 0 : i32
    return %arg0, %c0_i32, %c0_i32_0 : i32, i32, i32
  }
  func.func @transform_1(%arg0: i32) -> (i32, i32, i32, i32) {
    %c0_i32 = arith.constant 0 : i32
    %c0_i32_0 = arith.constant 0 : i32
    %c0_i32_1 = arith.constant 0 : i32
    %c0_i32_2 = arith.constant 0 : i32
    %c0_i32_3 = arith.constant 0 : i32
    return %c0_i32, %c0_i32_0, %c0_i32_1, %c0_i32_2 : i32, i32, i32, i32
  }
  func.func @transform_2(%arg0: i32) -> (i32, i32) {
    %c0_i32 = arith.constant 0 : i32
    %c0_i32_0 = arith.constant 0 : i32
    %c0_i32_1 = arith.constant 0 : i32
    return %c0_i32, %c0_i32_0 : i32, i32
  }
  func.func @transform_3(%arg0: i32) -> (i32, i32, i32, i32) {
    %c0_i32 = arith.constant 0 : i32
    %c0_i32_0 = arith.constant 0 : i32
    %c0_i32_1 = arith.constant 0 : i32
    %c0_i32_2 = arith.constant 0 : i32
    return %arg0, %c0_i32, %c0_i32_0, %c0_i32_1 : i32, i32, i32, i32
  }
}

module attributes {stable_mosaic.version = 11 : i64} {
  func.func @_convt_kernel(%arg0: i32, %arg1: memref<1x307x32xf32, #tpu.memory_space<vmem>>, %arg2: memref<3x3x32x2xf32, #tpu.memory_space<vmem>>, %arg3: memref<1x2xf32, #tpu.memory_space<vmem>>, %arg4: memref<1x4x289x2xf32, #tpu.memory_space<vmem>>) attributes {dimension_semantics = [#tpu.dimension_semantics<parallel>], iteration_bounds = array<i64: 2>, scalar_prefetch = 0 : i64, scratch_operands = 0 : i64, tpu.core_type = #tpu.core_type<tc>, window_params = [{transform_indices = @transform_0, window_bounds = array<i64: 1, 307, 32>}, {pipeline_mode = #tpu.pipeline_mode<synchronous>, transform_indices = @transform_1, window_bounds = array<i64: 3, 3, 32, 2>}, {pipeline_mode = #tpu.pipeline_mode<synchronous>, transform_indices = @transform_2, window_bounds = array<i64: 1, 2>}, {transform_indices = @transform_3, window_bounds = array<i64: 1, 4, 289, 2>}]} {
    %c0 = arith.constant 0 : index
    %c0_0 = arith.constant 0 : index
    %0 = vector.load %arg3[%c0, %c0_0] : memref<1x2xf32, #tpu.memory_space<vmem>>, vector<1x2xf32>
    %c1 = arith.constant 1 : index
    %c1_1 = arith.constant 1 : index
    %c0_2 = arith.constant 0 : index
    %c0_3 = arith.constant 0 : index
    %1 = vector.load %arg2[%c1, %c1_1, %c0_2, %c0_3] : memref<3x3x32x2xf32, #tpu.memory_space<vmem>>, vector<1x1x32x2xf32>
    %2 = vector.shape_cast %1 : vector<1x1x32x2xf32> to vector<32x2xf32>
    %c1_4 = arith.constant 1 : index
    %c2 = arith.constant 2 : index
    %c0_5 = arith.constant 0 : index
    %c0_6 = arith.constant 0 : index
    %3 = vector.load %arg2[%c1_4, %c2, %c0_5, %c0_6] : memref<3x3x32x2xf32, #tpu.memory_space<vmem>>, vector<1x1x32x2xf32>
    %4 = vector.shape_cast %3 : vector<1x1x32x2xf32> to vector<32x2xf32>
    %c1_7 = arith.constant 1 : index
    %c0_8 = arith.constant 0 : index
    %c0_9 = arith.constant 0 : index
    %c0_10 = arith.constant 0 : index
    %5 = vector.load %arg2[%c1_7, %c0_8, %c0_9, %c0_10] : memref<3x3x32x2xf32, #tpu.memory_space<vmem>>, vector<1x1x32x2xf32>
    %6 = vector.shape_cast %5 : vector<1x1x32x2xf32> to vector<32x2xf32>
    %c2_11 = arith.constant 2 : index
    %c1_12 = arith.constant 1 : index
    %c0_13 = arith.constant 0 : index
    %c0_14 = arith.constant 0 : index
    %7 = vector.load %arg2[%c2_11, %c1_12, %c0_13, %c0_14] : memref<3x3x32x2xf32, #tpu.memory_space<vmem>>, vector<1x1x32x2xf32>
    %8 = vector.shape_cast %7 : vector<1x1x32x2xf32> to vector<32x2xf32>
    %c0_15 = arith.constant 0 : index
    %c1_16 = arith.constant 1 : index
    %c0_17 = arith.constant 0 : index
    %c0_18 = arith.constant 0 : index
    %9 = vector.load %arg2[%c0_15, %c1_16, %c0_17, %c0_18] : memref<3x3x32x2xf32, #tpu.memory_space<vmem>>, vector<1x1x32x2xf32>
    %10 = vector.shape_cast %9 : vector<1x1x32x2xf32> to vector<32x2xf32>
    %c2_19 = arith.constant 2 : index
    %c2_20 = arith.constant 2 : index
    %c0_21 = arith.constant 0 : index
    %c0_22 = arith.constant 0 : index
    %11 = vector.load %arg2[%c2_19, %c2_20, %c0_21, %c0_22] : memref<3x3x32x2xf32, #tpu.memory_space<vmem>>, vector<1x1x32x2xf32>
    %12 = vector.shape_cast %11 : vector<1x1x32x2xf32> to vector<32x2xf32>
    %c2_23 = arith.constant 2 : index
    %c0_24 = arith.constant 0 : index
    %c0_25 = arith.constant 0 : index
    %c0_26 = arith.constant 0 : index
    %13 = vector.load %arg2[%c2_23, %c0_24, %c0_25, %c0_26] : memref<3x3x32x2xf32, #tpu.memory_space<vmem>>, vector<1x1x32x2xf32>
    %14 = vector.shape_cast %13 : vector<1x1x32x2xf32> to vector<32x2xf32>
    %c0_27 = arith.constant 0 : index
    %c2_28 = arith.constant 2 : index
    %c0_29 = arith.constant 0 : index
    %c0_30 = arith.constant 0 : index
    %15 = vector.load %arg2[%c0_27, %c2_28, %c0_29, %c0_30] : memref<3x3x32x2xf32, #tpu.memory_space<vmem>>, vector<1x1x32x2xf32>
    %16 = vector.shape_cast %15 : vector<1x1x32x2xf32> to vector<32x2xf32>
    %c0_31 = arith.constant 0 : index
    %c0_32 = arith.constant 0 : index
    %c0_33 = arith.constant 0 : index
    %c0_34 = arith.constant 0 : index
    %17 = vector.load %arg2[%c0_31, %c0_32, %c0_33, %c0_34] : memref<3x3x32x2xf32, #tpu.memory_space<vmem>>, vector<1x1x32x2xf32>
    %18 = vector.shape_cast %17 : vector<1x1x32x2xf32> to vector<32x2xf32>
    %c0_35 = arith.constant 0 : index
    %c0_36 = arith.constant 0 : index
    %c0_37 = arith.constant 0 : index
    %19 = vector.load %arg1[%c0_35, %c0_36, %c0_37] : memref<1x307x32xf32, #tpu.memory_space<vmem>>, vector<1x289x32xf32>
    %20 = vector.shape_cast %19 : vector<1x289x32xf32> to vector<289x32xf32>
    %c0_38 = arith.constant 0 : index
    %c1_39 = arith.constant 1 : index
    %c0_40 = arith.constant 0 : index
    %21 = vector.load %arg1[%c0_38, %c1_39, %c0_40] : memref<1x307x32xf32, #tpu.memory_space<vmem>>, vector<1x289x32xf32>
    %22 = vector.shape_cast %21 : vector<1x289x32xf32> to vector<289x32xf32>
    %c0_41 = arith.constant 0 : index
    %c17 = arith.constant 17 : index
    %c0_42 = arith.constant 0 : index
    %23 = vector.load %arg1[%c0_41, %c17, %c0_42] : memref<1x307x32xf32, #tpu.memory_space<vmem>>, vector<1x289x32xf32>
    %24 = vector.shape_cast %23 : vector<1x289x32xf32> to vector<289x32xf32>
    %c0_43 = arith.constant 0 : index
    %c18 = arith.constant 18 : index
    %c0_44 = arith.constant 0 : index
    %25 = vector.load %arg1[%c0_43, %c18, %c0_44] : memref<1x307x32xf32, #tpu.memory_space<vmem>>, vector<1x289x32xf32>
    %26 = vector.shape_cast %25 : vector<1x289x32xf32> to vector<289x32xf32>
    %cst = arith.constant dense<0.000000e+00> : vector<289x2xf32>
    %27 = tpu.matmul %20, %2, %cst {dimension_numbers = #tpu.dot_dimension_numbers<[1], [0], [0], [1], [0, 0, 1, 1], [], []>} : vector<289x32xf32>, vector<32x2xf32>, vector<289x2xf32> -> vector<289x2xf32>
    %cst_45 = arith.constant dense<0.000000e+00> : vector<289x2xf32>
    %28 = tpu.matmul %20, %4, %cst_45 {dimension_numbers = #tpu.dot_dimension_numbers<[1], [0], [0], [1], [0, 0, 1, 1], [], []>} : vector<289x32xf32>, vector<32x2xf32>, vector<289x2xf32> -> vector<289x2xf32>
    %cst_46 = arith.constant dense<0.000000e+00> : vector<289x2xf32>
    %29 = tpu.matmul %22, %6, %cst_46 {dimension_numbers = #tpu.dot_dimension_numbers<[1], [0], [0], [1], [0, 0, 1, 1], [], []>} : vector<289x32xf32>, vector<32x2xf32>, vector<289x2xf32> -> vector<289x2xf32>
    %30 = arith.addf %28, %29 : vector<289x2xf32>
    %cst_47 = arith.constant dense<0.000000e+00> : vector<289x2xf32>
    %31 = tpu.matmul %20, %8, %cst_47 {dimension_numbers = #tpu.dot_dimension_numbers<[1], [0], [0], [1], [0, 0, 1, 1], [], []>} : vector<289x32xf32>, vector<32x2xf32>, vector<289x2xf32> -> vector<289x2xf32>
    %cst_48 = arith.constant dense<0.000000e+00> : vector<289x2xf32>
    %32 = tpu.matmul %24, %10, %cst_48 {dimension_numbers = #tpu.dot_dimension_numbers<[1], [0], [0], [1], [0, 0, 1, 1], [], []>} : vector<289x32xf32>, vector<32x2xf32>, vector<289x2xf32> -> vector<289x2xf32>
    %33 = arith.addf %31, %32 : vector<289x2xf32>
    %cst_49 = arith.constant dense<0.000000e+00> : vector<289x2xf32>
    %34 = tpu.matmul %20, %12, %cst_49 {dimension_numbers = #tpu.dot_dimension_numbers<[1], [0], [0], [1], [0, 0, 1, 1], [], []>} : vector<289x32xf32>, vector<32x2xf32>, vector<289x2xf32> -> vector<289x2xf32>
    %cst_50 = arith.constant dense<0.000000e+00> : vector<289x2xf32>
    %35 = tpu.matmul %22, %14, %cst_50 {dimension_numbers = #tpu.dot_dimension_numbers<[1], [0], [0], [1], [0, 0, 1, 1], [], []>} : vector<289x32xf32>, vector<32x2xf32>, vector<289x2xf32> -> vector<289x2xf32>
    %36 = arith.addf %34, %35 : vector<289x2xf32>
    %cst_51 = arith.constant dense<0.000000e+00> : vector<289x2xf32>
    %37 = tpu.matmul %24, %16, %cst_51 {dimension_numbers = #tpu.dot_dimension_numbers<[1], [0], [0], [1], [0, 0, 1, 1], [], []>} : vector<289x32xf32>, vector<32x2xf32>, vector<289x2xf32> -> vector<289x2xf32>
    %38 = arith.addf %36, %37 : vector<289x2xf32>
    %cst_52 = arith.constant dense<0.000000e+00> : vector<289x2xf32>
    %39 = tpu.matmul %26, %18, %cst_52 {dimension_numbers = #tpu.dot_dimension_numbers<[1], [0], [0], [1], [0, 0, 1, 1], [], []>} : vector<289x32xf32>, vector<32x2xf32>, vector<289x2xf32> -> vector<289x2xf32>
    %40 = arith.addf %38, %39 : vector<289x2xf32>
    %41 = vector.broadcast %0 : vector<1x2xf32> to vector<289x2xf32>
    %42 = arith.addf %27, %41 : vector<289x2xf32>
    %c0_53 = arith.constant 0 : index
    %c0_54 = arith.constant 0 : index
    %c0_55 = arith.constant 0 : index
    %c0_56 = arith.constant 0 : index
    %43 = vector.load %arg4[%c0_53, %c0_54, %c0_55, %c0_56] : memref<1x4x289x2xf32, #tpu.memory_space<vmem>>, vector<1x1x289x2xf32>
    %44 = vector.shape_cast %43 : vector<1x1x289x2xf32> to vector<289x2xf32>
    %45 = vector.shape_cast %42 : vector<289x2xf32> to vector<1x1x289x2xf32>
    tpu.vector_store %arg4[%c0_53, %c0_54, %c0_55, %c0_56], %45 {strides = array<i32>} : memref<1x4x289x2xf32, #tpu.memory_space<vmem>>, vector<1x1x289x2xf32>,
    %46 = vector.broadcast %0 : vector<1x2xf32> to vector<289x2xf32>
    %47 = arith.addf %30, %46 : vector<289x2xf32>
    %c0_57 = arith.constant 0 : index
    %c1_58 = arith.constant 1 : index
    %c0_59 = arith.constant 0 : index
    %c0_60 = arith.constant 0 : index
    %48 = vector.load %arg4[%c0_57, %c1_58, %c0_59, %c0_60] : memref<1x4x289x2xf32, #tpu.memory_space<vmem>>, vector<1x1x289x2xf32>
    %49 = vector.shape_cast %48 : vector<1x1x289x2xf32> to vector<289x2xf32>
    %50 = vector.shape_cast %47 : vector<289x2xf32> to vector<1x1x289x2xf32>
    tpu.vector_store %arg4[%c0_57, %c1_58, %c0_59, %c0_60], %50 {strides = array<i32>} : memref<1x4x289x2xf32, #tpu.memory_space<vmem>>, vector<1x1x289x2xf32>,
    %51 = vector.broadcast %0 : vector<1x2xf32> to vector<289x2xf32>
    %52 = arith.addf %33, %51 : vector<289x2xf32>
    %c0_61 = arith.constant 0 : index
    %c2_62 = arith.constant 2 : index
    %c0_63 = arith.constant 0 : index
    %c0_64 = arith.constant 0 : index
    %53 = vector.load %arg4[%c0_61, %c2_62, %c0_63, %c0_64] : memref<1x4x289x2xf32, #tpu.memory_space<vmem>>, vector<1x1x289x2xf32>
    %54 = vector.shape_cast %53 : vector<1x1x289x2xf32> to vector<289x2xf32>
    %55 = vector.shape_cast %52 : vector<289x2xf32> to vector<1x1x289x2xf32>
    tpu.vector_store %arg4[%c0_61, %c2_62, %c0_63, %c0_64], %55 {strides = array<i32>} : memref<1x4x289x2xf32, #tpu.memory_space<vmem>>, vector<1x1x289x2xf32>,
    %56 = vector.broadcast %0 : vector<1x2xf32> to vector<289x2xf32>
    %57 = arith.addf %40, %56 : vector<289x2xf32>
    %c0_65 = arith.constant 0 : index
    %c3 = arith.constant 3 : index
    %c0_66 = arith.constant 0 : index
    %c0_67 = arith.constant 0 : index
    %58 = vector.load %arg4[%c0_65, %c3, %c0_66, %c0_67] : memref<1x4x289x2xf32, #tpu.memory_space<vmem>>, vector<1x1x289x2xf32>
    %59 = vector.shape_cast %58 : vector<1x1x289x2xf32> to vector<289x2xf32>
    %60 = vector.shape_cast %57 : vector<289x2xf32> to vector<1x1x289x2xf32>
    tpu.vector_store %arg4[%c0_65, %c3, %c0_66, %c0_67], %60 {strides = array<i32>} : memref<1x4x289x2xf32, #tpu.memory_space<vmem>>, vector<1x1x289x2xf32>,
    return
  }
  func.func @transform_0(%arg0: i32) -> (i32, i32, i32) {
    %c0_i32 = arith.constant 0 : i32
    %c0_i32_0 = arith.constant 0 : i32
    %c0_i32_1 = arith.constant 0 : i32
    return %arg0, %c0_i32, %c0_i32_0 : i32, i32, i32
  }
  func.func @transform_1(%arg0: i32) -> (i32, i32, i32, i32) {
    %c0_i32 = arith.constant 0 : i32
    %c0_i32_0 = arith.constant 0 : i32
    %c0_i32_1 = arith.constant 0 : i32
    %c0_i32_2 = arith.constant 0 : i32
    %c0_i32_3 = arith.constant 0 : i32
    return %c0_i32, %c0_i32_0, %c0_i32_1, %c0_i32_2 : i32, i32, i32, i32
  }
  func.func @transform_2(%arg0: i32) -> (i32, i32) {
    %c0_i32 = arith.constant 0 : i32
    %c0_i32_0 = arith.constant 0 : i32
    %c0_i32_1 = arith.constant 0 : i32
    return %c0_i32, %c0_i32_0 : i32, i32
  }
  func.func @transform_3(%arg0: i32) -> (i32, i32, i32, i32) {
    %c0_i32 = arith.constant 0 : i32
    %c0_i32_0 = arith.constant 0 : i32
    %c0_i32_1 = arith.constant 0 : i32
    %c0_i32_2 = arith.constant 0 : i32
    return %arg0, %c0_i32, %c0_i32_0, %c0_i32_1 : i32, i32, i32, i32
  }
}

</mosaic_0001>

<llo_original>
// kernel: rec_trac_head2.3
$region0: #{rec_trac_head2.3}
  #allocation0 [shape = 'u32[]', space=smem, size = 0x4, offset = 0x4, fixed_abs, tag = 'smem constant byte address 0x4 - core index']
  #allocation1 [shape = 'u32[144,128]{1,0:T(1,128)}', space=vmem, size = 0x12000, scoped, tag = 'internal scratch']
  %s0 = inlined_call_operand.vmem [shape: f32[2,31,32], index: 0, kind: input, shape index: {}]
  %s1 = inlined_call_operand.hbm [shape: f32[3,3,32,64], index: 1, kind: input, shape index: {}]
  %s2 = inlined_call_operand.hbm [shape: f32[1,64], index: 2, kind: input, shape index: {}]
  %s3 = inlined_call_operand.vmem [shape: f32[2,4,25,64], index: 3, kind: output, shape index: {}]
  %s4 = sld [smem:[#allocation0]]
  $region53: #{rec_trac_head2.3} parent=0
    _
  %s6 = ssub.s32 1, %s4
  %s7 = scalar_select 0, %s6, %s4
  $region1: #{rec_trac_head2.3} parent=0
    #allocation2 [shape = 'u8[147456]{0}', space=vmem, size = 0x24000, scoped, tag = 'input window, operand 1, single buffered']
    #allocation3 [shape = 's32[2]{0}', space=sflag, size = 0x8, scoped, tag = 'scoped memory for rec_trac_head2.3']
    #allocation4 [shape = 'u8[512]{0}', space=vmem, size = 0x400, scoped, tag = 'input window, operand 2, single buffered']
    #allocation5 [shape = 's32[1]{0}', space=sflag, size = 0x4, scoped, tag = 'scoped memory for rec_trac_head2.3']
    %8 = vsyncpa [#allocation3], 0
    %9 = vsyncpa [#allocation5], 0
    loop: start=0, step=1, limit=4
    $region2: #{rec_trac_head2.3} parent=1 // loop_pre_header
      _
    $region3: #{rec_trac_head2.3} parent=1 // loop_header
      %s11 = sphi 0, %s15
      %p12 = scmp.ge.s32.totalorder %s11, 4
      %s21 = sphi 0, %s23
      %s24 = sphi 0, %s21
      %s25 = sphi 0, %s24
      %s41 = sphi 0, %s25
      %s45 = sphi 0, %s45
      %s47 = sphi 0, %s45
      %s48 = sphi 0, %s47
      %s62 = sphi 0, %s48
      %s66 = sphi 0, %s66
      %s68 = sphi 0, %s66
      %s69 = sphi 0, %s68
      %s83 = sphi 0, %s69
      %s89 = sphi 0, %s91
      %s92 = sphi 0, %s89
      %s93 = sphi 0, %s92
      %s109 = sphi 0, %s93
    $region4: #{rec_trac_head2.3} parent=1 // loop_header_branch
      %14 = sbr.rel (%p12) target = $region8
    $region5: #{rec_trac_head2.3} parent=1 // loop_body
      %s16 = ssub.s32 %s11, 1
      %s17 = ssub.s32 %s11, 2
      %s18 = sadd.s32 %s11, 1
      %s19 = ssub.s32 %s11, %s18
      %p20 = scmp.eq.s32.totalorder %s19, 0
      %s22 = sadd.s32 %s21, 1
      %s23 = scalar_select %p20, %s21, %s22
      %p26 = pneg %p20
      %p27 = scmp.eq.s32.totalorder %s11, 1
      %p28 = por %p26, %p27
      %p29 = scmp.ne.s32.totalorder %s21, %s24
      %p30 = scmp.eq.s32.totalorder %s11, 0
      %p31 = por %p29, %p30
      %p32 = scmp.ne.s32.totalorder %s21, %s24
      %p33 = scmp.eq.s32.totalorder %s16, 1
      %p34 = por %p32, %p33
      %p35 = scmp.ne.s32.totalorder %s24, %s25
      %p36 = scmp.eq.s32.totalorder %s16, 0
      %p37 = por %p35, %p36
      %p38 = scmp.ne.s32.totalorder %s24, %s25
      %p39 = scmp.eq.s32.totalorder %s17, 1
      %p40 = por %p38, %p39
      %p42 = scmp.ne.s32.totalorder %s25, %s41
      %p43 = scmp.eq.s32.totalorder %s17, 0
      %p44 = por %p42, %p43
      %s46 = sadd.s32 %s45, 1
      %p49 = scmp.eq.s32.totalorder %s11, 1
      %p50 = scmp.ne.s32.totalorder %s45, %s47
      %p51 = scmp.eq.s32.totalorder %s11, 0
      %p52 = por %p50, %p51
      %p53 = scmp.ne.s32.totalorder %s45, %s47
      %p54 = scmp.eq.s32.totalorder %s16, 1
      %p55 = por %p53, %p54
      %p56 = scmp.ne.s32.totalorder %s47, %s48
      %p57 = scmp.eq.s32.totalorder %s16, 0
      %p58 = por %p56, %p57
      %p59 = scmp.ne.s32.totalorder %s47, %s48
      %p60 = scmp.eq.s32.totalorder %s17, 1
      %p61 = por %p59, %p60
      %p63 = scmp.ne.s32.totalorder %s48, %s62
      %p64 = scmp.eq.s32.totalorder %s17, 0
      %p65 = por %p63, %p64
      %s67 = sadd.s32 %s66, 1
      %p70 = scmp.eq.s32.totalorder %s11, 1
      %p71 = scmp.ne.s32.totalorder %s66, %s68
      %p72 = scmp.eq.s32.totalorder %s11, 0
      %p73 = por %p71, %p72
      %p74 = scmp.ne.s32.totalorder %s66, %s68
      %p75 = scmp.eq.s32.totalorder %s16, 1
      %p76 = por %p74, %p75
      %p77 = scmp.ne.s32.totalorder %s68, %s69
      %p78 = scmp.eq.s32.totalorder %s16, 0
      %p79 = por %p77, %p78
      %p80 = scmp.ne.s32.totalorder %s68, %s69
      %p81 = scmp.eq.s32.totalorder %s17, 1
      %p82 = por %p80, %p81
      %p84 = scmp.ne.s32.totalorder %s69, %s83
      %p85 = scmp.eq.s32.totalorder %s17, 0
      %p86 = por %p84, %p85
      %s87 = ssub.s32 %s11, %s18
      %p88 = scmp.eq.s32.totalorder %s87, 0
      %s90 = sadd.s32 %s89, 1
      %s91 = scalar_select %p88, %s89, %s90
      %p94 = pneg %p88
      %p95 = scmp.eq.s32.totalorder %s11, 1
      %p96 = por %p94, %p95
      %p97 = scmp.ne.s32.totalorder %s89, %s92
      %p98 = scmp.eq.s32.totalorder %s11, 0
      %p99 = por %p97, %p98
      %p100 = scmp.ne.s32.totalorder %s89, %s92
      %p101 = scmp.eq.s32.totalorder %s16, 1
      %p102 = por %p100, %p101
      %p103 = scmp.ne.s32.totalorder %s92, %s93
      %p104 = scmp.eq.s32.totalorder %s16, 0
      %p105 = por %p103, %p104
      %p106 = scmp.ne.s32.totalorder %s92, %s93
      %p107 = scmp.eq.s32.totalorder %s17, 1
      %p108 = por %p106, %p107
      %p110 = scmp.ne.s32.totalorder %s93, %s109
      %p111 = scmp.eq.s32.totalorder %s17, 0
      %p112 = por %p110, %p111
      %p113 = scmp.le.s32.totalorder 1, %s11
      %p114 = scmp.lt.s32.totalorder %s11, 3
      %p115 = pnand %p113, %p114
      %p116 = pneg %p115
      // Predicated region
      $region9: #{rec_trac_head2.3} parent=5 // pred_check
        _
      $region10: #{rec_trac_head2.3} parent=5 // pred_check_branch
        %118 = sbr.rel (%p115) target = $region12
      $region11: #{rec_trac_head2.3} parent=5 // pred_region
        %s119 = ssub.s32 %s11, 1
        // Predicated region
        $region13: #{rec_trac_head2.3} parent=11 // pred_check
          %p120 = pneg %p58
        $region14: #{rec_trac_head2.3} parent=11 // pred_check_branch
          %122 = sbr.rel (%p120) target = $region16
        $region15: #{rec_trac_head2.3} parent=11 // pred_region
          %s124 = ssub.s32 4608, 4608
          %125 = vsyncadd [#allocation3], %s124
          %s126 = sshll.u32 [#allocation2], 4
          %s127 = int_to_ptr.vmem [resolvable:$true] %s126
          %132 = dma.hbm_to_vmem [thread:$0]  %s1, 4608, %s127, [#allocation3], 128, 128, 8
        $region16: #{rec_trac_head2.3} parent=11 // pred_fallthru
          _
        // Predicated region
        $region17: #{rec_trac_head2.3} parent=11 // pred_check
          %p133 = pneg %p79
        $region18: #{rec_trac_head2.3} parent=11 // pred_check_branch
          %135 = sbr.rel (%p133) target = $region20
        $region19: #{rec_trac_head2.3} parent=11 // pred_region
          %s137 = ssub.s32 16, 16
          %138 = vsyncadd [#allocation5], %s137
          %s140 = sshll.u32 [#allocation4], 4
          %s141 = int_to_ptr.vmem [resolvable:$true] %s140
          %143 = dma.hbm_to_vmem [thread:$0]  %s2, 16, %s141, [#allocation5]
        $region20: #{rec_trac_head2.3} parent=11 // pred_fallthru
          _
      $region12: #{rec_trac_head2.3} parent=5 // pred_fallthru
        _
      %p144 = scmp.lt.s32.totalorder %s11, 2
      // Predicated region
      $region21: #{rec_trac_head2.3} parent=5 // pred_check
        %p145 = pneg %p144
      $region22: #{rec_trac_head2.3} parent=5 // pred_check_branch
        %147 = sbr.rel (%p145) target = $region24
      $region23: #{rec_trac_head2.3} parent=5 // pred_region
        // Predicated region
        $region25: #{rec_trac_head2.3} parent=23 // pred_check
          %p148 = pneg %p31
        $region26: #{rec_trac_head2.3} parent=23 // pred_check_branch
          %150 = sbr.rel (%p148) target = $region28
        $region27: #{rec_trac_head2.3} parent=23 // pred_region
          %p151 = scmp.lt.s32.totalorder %s11, 1
          %s152 = scalar_select %p151, %s11, 1
          %s153 = smul.addr %s152, 4
          %s154 = smul.addr %s153, 8
          %s155 = scalar_lea.vmem %s0, %s154
        $region28: #{rec_trac_head2.3} parent=23 // pred_fallthru
          _
      $region24: #{rec_trac_head2.3} parent=5 // pred_fallthru
        _
      %p156 = scmp.le.s32.totalorder 1, %s11
      %p157 = scmp.lt.s32.totalorder %s11, 3
      %p158 = pnand %p156, %p157
      %p159 = pneg %p158
      // Predicated region
      $region29: #{rec_trac_head2.3} parent=5 // pred_check
        _
      $region30: #{rec_trac_head2.3} parent=5 // pred_check_branch
        %161 = sbr.rel (%p158) target = $region32
      $region31: #{rec_trac_head2.3} parent=5 // pred_region
        %s162 = ssub.s32 %s11, 1
        // Predicated region
        $region33: #{rec_trac_head2.3} parent=31 // pred_check
          %p163 = pneg %p58
        $region34: #{rec_trac_head2.3} parent=31 // pred_check_branch
          %165 = sbr.rel (%p163) target = $region36
        $region35: #{rec_trac_head2.3} parent=31 // pred_region
          %166 = dma.done [#allocation3], 4608
        $region36: #{rec_trac_head2.3} parent=31 // pred_fallthru
          _
        // Predicated region
        $region37: #{rec_trac_head2.3} parent=31 // pred_check
          %p167 = pneg %p79
        $region38: #{rec_trac_head2.3} parent=31 // pred_check_branch
          %169 = sbr.rel (%p167) target = $region40
        $region39: #{rec_trac_head2.3} parent=31 // pred_region
          %170 = dma.done [#allocation5], 16
        $region40: #{rec_trac_head2.3} parent=31 // pred_fallthru
          _
        %p171 = scmp.lt.s32.totalorder %s16, 1
        %s172 = scalar_select %p171, %s16, 1
        %s173 = smul.addr %s172, 4
        %s174 = smul.addr %s173, 8
        %s175 = scalar_lea.vmem %s0, %s174
        %p176 = pneg %p37
        %p177 = pneg %p34
        %p178 = pneg %p58
        %p179 = pneg %p55
        %p180 = pneg %p79
        %p181 = pneg %p76
        %p182 = pneg %p105
        %p183 = pneg %p102
        %p184 = scmp.lt.s32.totalorder %s16, 1
        %s185 = scalar_select %p184, %s16, 1
        %s186 = smul.addr %s185, 16
        %s187 = smul.addr %s186, 8
        %s188 = scalar_lea.vmem %s3, %s187
        %p189 = scmp.lt.s32.totalorder %s16, 1
        %s190 = scalar_select %p189, %s16, 1
        %s191 = smul.addr %s190, 4
        %s192 = smul.addr %s191, 8
        %s193 = scalar_lea.vmem %s0, %s192
        %p194 = scmp.lt.s32.totalorder %s16, 1
        %s195 = scalar_select %p194, %s16, 1
        %s196 = smul.addr %s195, 16
        %s197 = smul.addr %s196, 8
        %s198 = scalar_lea.vmem %s3, %s197
        %v199 = vld [vmem:[#allocation4] sm:$0x1]
        %s200 = scalar_lea.vmem [#allocation2], 128
        %v201 = vld [vmem:[%s200] sm:$0xff]
        %v202 = vld [vmem:[%s200 + $0x8] sm:$0xff]
        %v203 = vld [vmem:[%s200 + $0x10] sm:$0xff]
        %v204 = vld [vmem:[%s200 + $0x18] sm:$0xff]
        %s205 = scalar_lea.vmem [#allocation2], 160
        %v206 = vld [vmem:[%s205] sm:$0xff]
        %v207 = vld [vmem:[%s205 + $0x8] sm:$0xff]
        %v208 = vld [vmem:[%s205 + $0x10] sm:$0xff]
        %v209 = vld [vmem:[%s205 + $0x18] sm:$0xff]
        %s210 = scalar_lea.vmem [#allocation2], 96
        %v211 = vld [vmem:[%s210] sm:$0xff]
        %v212 = vld [vmem:[%s210 + $0x8] sm:$0xff]
        %v213 = vld [vmem:[%s210 + $0x10] sm:$0xff]
        %v214 = vld [vmem:[%s210 + $0x18] sm:$0xff]
        %s215 = scalar_lea.vmem [#allocation2], 224
        %v216 = vld [vmem:[%s215] sm:$0xff]
        %v217 = vld [vmem:[%s215 + $0x8] sm:$0xff]
        %v218 = vld [vmem:[%s215 + $0x10] sm:$0xff]
        %v219 = vld [vmem:[%s215 + $0x18] sm:$0xff]
        %s220 = scalar_lea.vmem [#allocation2], 32
        %v221 = vld [vmem:[%s220] sm:$0xff]
        %v222 = vld [vmem:[%s220 + $0x8] sm:$0xff]
        %v223 = vld [vmem:[%s220 + $0x10] sm:$0xff]
        %v224 = vld [vmem:[%s220 + $0x18] sm:$0xff]
        %s225 = scalar_lea.vmem [#allocation2], 256
        %v226 = vld [vmem:[%s225] sm:$0xff]
        %v227 = vld [vmem:[%s225 + $0x8] sm:$0xff]
        %v228 = vld [vmem:[%s225 + $0x10] sm:$0xff]
        %v229 = vld [vmem:[%s225 + $0x18] sm:$0xff]
        %s230 = scalar_lea.vmem [#allocation2], 192
        %v231 = vld [vmem:[%s230] sm:$0xff]
        %v232 = vld [vmem:[%s230 + $0x8] sm:$0xff]
        %v233 = vld [vmem:[%s230 + $0x10] sm:$0xff]
        %v234 = vld [vmem:[%s230 + $0x18] sm:$0xff]
        %s235 = scalar_lea.vmem [#allocation2], 64
        %v236 = vld [vmem:[%s235] sm:$0xff]
        %v237 = vld [vmem:[%s235 + $0x8] sm:$0xff]
        %v238 = vld [vmem:[%s235 + $0x10] sm:$0xff]
        %v239 = vld [vmem:[%s235 + $0x18] sm:$0xff]
        %v240 = vld [vmem:[#allocation2] sm:$0xff]
        %v241 = vld [vmem:[#allocation2 + $0x8] sm:$0xff]
        %v242 = vld [vmem:[#allocation2 + $0x10] sm:$0xff]
        %v243 = vld [vmem:[#allocation2 + $0x18] sm:$0xff]
        %v244 = vld [vmem:[%s193] sm:$0xff]
        %v245 = vld [vmem:[%s193 + $0x8] sm:$0xff]
        %v246 = vld [vmem:[%s193 + $0x10] sm:$0xff]
        %v247 = vld [vmem:[%s193 + $0x18] sm:$0x1]
        %v248 = vld [vmem:[%s193 + $0x1] sm:$0xff]
        %v249 = vld [vmem:[%s193 + $0x9] sm:$0xff]
        %v250 = vld [vmem:[%s193 + $0x11] sm:$0xff]
        %v251 = vld [vmem:[%s193 + $0x19] sm:$0x1]
        %v252 = vld [vmem:[%s193 + $0x5] sm:$0xff]
        %v253 = vld [vmem:[%s193 + $0xd] sm:$0xff]
        %v254 = vld [vmem:[%s193 + $0x15] sm:$0xff]
        %v255 = vld [vmem:[%s193 + $0x1d] sm:$0x1]
        %v256 = vld [vmem:[%s193 + $0x6] sm:$0xff]
        %v257 = vld [vmem:[%s193 + $0xe] sm:$0xff]
        %v258 = vld [vmem:[%s193 + $0x16] sm:$0xff]
        %v259 = vld [vmem:[%s193 + $0x1e] sm:$0x1]
        %vm260 = vcmask 261120
        %v262 = vsel %vm260, %v248, 0
        %v265 = vsel %vm260, %v249, 0
        %v268 = vsel %vm260, %v250, 0
        %v271 = vsel %vm260, %v251, 0
        %273 = vmatprep.subr.mxu0 0.0
        %274 = vmatpush1.msra.mxu0 0.0
        %275 = vmatprep.subr.mxu0 0.0
        %276 = vmatpush1.msra.mxu0 0.0
        %277 = vmatprep.subr.mxu0 0.0
        %278 = vmatpush1.msra.mxu0 0.0
        %279 = vmatprep.subr.mxu0 0.0
        %280 = vmatpush1.msra.mxu0 0.0
        %281 = vmatprep.subr.mxu0 0.0
        %282 = vmatpush1.msra.mxu0 0.0
        %283 = vmatprep.subr.mxu0 0.0
        %284 = vmatpush1.msra.mxu0 0.0
        %285 = vmatprep.subr.mxu0 0.0
        %286 = vmatpush1.msra.mxu0 0.0
        %287 = vmatprep.subr.mxu0 0.0
        %288 = vmatpush1.msra.mxu0 0.0
        %289 = vmatprep.subr.mxu0 0.0
        %290 = vmatpush1.msra.mxu0 0.0
        %291 = vmatprep.subr.mxu0 0.0
        %292 = vmatpush1.msra.mxu0 0.0
        %293 = vmatprep.subr.mxu0 0.0
        %294 = vmatpush1.msra.mxu0 0.0
        %295 = vmatprep.subr.mxu0 0.0
        %296 = vmatpush1.msra.mxu0 0.0
        %297 = vmatprep.subr.mxu0 0.0
        %298 = vmatpush1.msra.mxu0 %v214
        %299 = vmatprep.subr.mxu0 0.0
        %300 = vmatpush1.msra.mxu0 %v213
        %301 = vmatprep.subr.mxu0 0.0
        %302 = vmatpush1.msra.mxu0 %v212
        %303 = vmatprep.subr.mxu0 0.0
        %304 = vmatpush1.msra.mxu0 %v211
        %305 = vmatprep.subr.mxu0 0.0
        %306 = vmatpush2.msra.mxu0 0.0
        %307 = vmatprep.subr.mxu0 0.0
        %308 = vmatpush2.msra.mxu0 0.0
        %309 = vmatprep.subr.mxu0 0.0
        %310 = vmatpush2.msra.mxu0 0.0
        %311 = vmatprep.subr.mxu0 0.0
        %312 = vmatpush2.msra.mxu0 0.0
        %313 = vmatprep.subr.mxu0 0.0
        %314 = vmatpush2.msra.mxu0 0.0
        %315 = vmatprep.subr.mxu0 0.0
        %316 = vmatpush2.msra.mxu0 0.0
        %317 = vmatprep.subr.mxu0 0.0
        %318 = vmatpush2.msra.mxu0 0.0
        %319 = vmatprep.subr.mxu0 0.0
        %320 = vmatpush2.msra.mxu0 0.0
        %321 = vmatprep.subr.mxu0 0.0
        %322 = vmatpush2.msra.mxu0 0.0
        %323 = vmatprep.subr.mxu0 0.0
        %324 = vmatpush2.msra.mxu0 0.0
        %325 = vmatprep.subr.mxu0 0.0
        %326 = vmatpush2.msra.mxu0 0.0
        %327 = vmatprep.subr.mxu0 0.0
        %328 = vmatpush2.msra.mxu0 0.0
        %329 = vmatprep.subr.mxu0 0.0
        %330 = vmatpush2.msra.mxu0 0.0
        %331 = vmatprep.subr.mxu0 0.0
        %332 = vmatpush2.msra.mxu0 0.0
        %333 = vmatprep.subr.mxu0 0.0
        %334 = vmatpush2.msra.mxu0 0.0
        %335 = vmatprep.subr.mxu0 0.0
        %336 = vmatpush2.msra.mxu0 0.0
        %337 = vmatprep.mubr.f32.mxu0 0.0
        %338 = vmatmul.mubr.f32.gmra.mxu0 %v262
        %v339 = vpop.f32.mrf.mxu0
        %v340 = vadd.f32 0.0, %v339
        %v341 = vpop.f32.mrf.mxu0
        %342 = vmatprep.mubr.f32.mxu0 0.0
        %343 = vmatmul.mubr.f32.gmra.mxu0 %v265
        %v344 = vpop.f32.mrf.mxu0
        %v345 = vadd.f32 0.0, %v344
        %v346 = vpop.f32.mrf.mxu0
        %347 = vmatprep.mubr.f32.mxu0 0.0
        %348 = vmatmul.mubr.f32.gmra.mxu0 %v268
        %v349 = vpop.f32.mrf.mxu0
        %v350 = vadd.f32 0.0, %v349
        %v351 = vpop.f32.mrf.mxu0
        %352 = vmatprep.mubr.f32.mxu0 0.0
        %353 = vmatmul.mubr.f32.gmra.mxu0 %v271
        %v354 = vpop.f32.mrf.mxu0
        %v355 = vadd.f32 0.0, %v354
        %v356 = vpop.f32.mrf.mxu0
        %357 = vdwg.mxu0
        %v359 = vsel %vm260, %v244, 0
        %v362 = vsel %vm260, %v245, 0
        %v365 = vsel %vm260, %v246, 0
        %v368 = vsel %vm260, %v247, 0
        %370 = vmatprep.subr.mxu0 0.0
        %371 = vmatpush1.msra.mxu0 0.0
        %372 = vmatprep.subr.mxu0 0.0
        %373 = vmatpush1.msra.mxu0 0.0
        %374 = vmatprep.subr.mxu0 0.0
        %375 = vmatpush1.msra.mxu0 0.0
        %376 = vmatprep.subr.mxu0 0.0
        %377 = vmatpush1.msra.mxu0 0.0
        %378 = vmatprep.subr.mxu0 0.0
        %379 = vmatpush1.msra.mxu0 0.0
        %380 = vmatprep.subr.mxu0 0.0
        %381 = vmatpush1.msra.mxu0 0.0
        %382 = vmatprep.subr.mxu0 0.0
        %383 = vmatpush1.msra.mxu0 0.0
        %384 = vmatprep.subr.mxu0 0.0
        %385 = vmatpush1.msra.mxu0 0.0
        %386 = vmatprep.subr.mxu0 0.0
        %387 = vmatpush1.msra.mxu0 0.0
        %388 = vmatprep.subr.mxu0 0.0
        %389 = vmatpush1.msra.mxu0 0.0
        %390 = vmatprep.subr.mxu0 0.0
        %391 = vmatpush1.msra.mxu0 0.0
        %392 = vmatprep.subr.mxu0 0.0
        %393 = vmatpush1.msra.mxu0 0.0
        %394 = vmatprep.subr.mxu0 0.0
        %395 = vmatpush1.msra.mxu0 %v209
        %396 = vmatprep.subr.mxu0 0.0
        %397 = vmatpush1.msra.mxu0 %v208
        %398 = vmatprep.subr.mxu0 0.0
        %399 = vmatpush1.msra.mxu0 %v207
        %400 = vmatprep.subr.mxu0 0.0
        %401 = vmatpush1.msra.mxu0 %v206
        %402 = vmatprep.subr.mxu0 0.0
        %403 = vmatpush2.msra.mxu0 0.0
        %404 = vmatprep.subr.mxu0 0.0
        %405 = vmatpush2.msra.mxu0 0.0
        %406 = vmatprep.subr.mxu0 0.0
        %407 = vmatpush2.msra.mxu0 0.0
        %408 = vmatprep.subr.mxu0 0.0
        %409 = vmatpush2.msra.mxu0 0.0
        %410 = vmatprep.subr.mxu0 0.0
        %411 = vmatpush2.msra.mxu0 0.0
        %412 = vmatprep.subr.mxu0 0.0
        %413 = vmatpush2.msra.mxu0 0.0
        %414 = vmatprep.subr.mxu0 0.0
        %415 = vmatpush2.msra.mxu0 0.0
        %416 = vmatprep.subr.mxu0 0.0
        %417 = vmatpush2.msra.mxu0 0.0
        %418 = vmatprep.subr.mxu0 0.0
        %419 = vmatpush2.msra.mxu0 0.0
        %420 = vmatprep.subr.mxu0 0.0
        %421 = vmatpush2.msra.mxu0 0.0
        %422 = vmatprep.subr.mxu0 0.0
        %423 = vmatpush2.msra.mxu0 0.0
        %424 = vmatprep.subr.mxu0 0.0
        %425 = vmatpush2.msra.mxu0 0.0
        %426 = vmatprep.subr.mxu0 0.0
        %427 = vmatpush2.msra.mxu0 0.0
        %428 = vmatprep.subr.mxu0 0.0
        %429 = vmatpush2.msra.mxu0 0.0
        %430 = vmatprep.subr.mxu0 0.0
        %431 = vmatpush2.msra.mxu0 0.0
        %432 = vmatprep.subr.mxu0 0.0
        %433 = vmatpush2.msra.mxu0 0.0
        %434 = vmatprep.mubr.f32.mxu0 0.0
        %435 = vmatmul.mubr.f32.gmra.mxu0 %v359
        %v436 = vpop.f32.mrf.mxu0
        %v437 = vadd.f32 %v340, %v436
        %v438 = vpop.f32.mrf.mxu0
        %439 = vmatprep.mubr.f32.mxu0 0.0
        %440 = vmatmul.mubr.f32.gmra.mxu0 %v362
        %v441 = vpop.f32.mrf.mxu0
        %v442 = vadd.f32 %v345, %v441
        %v443 = vpop.f32.mrf.mxu0
        %444 = vmatprep.mubr.f32.mxu0 0.0
        %445 = vmatmul.mubr.f32.gmra.mxu0 %v365
        %v446 = vpop.f32.mrf.mxu0
        %v447 = vadd.f32 %v350, %v446
        %v448 = vpop.f32.mrf.mxu0
        %449 = vmatprep.mubr.f32.mxu0 0.0
        %450 = vmatmul.mubr.f32.gmra.mxu0 %v368
        %v451 = vpop.f32.mrf.mxu0
        %v452 = vadd.f32 %v355, %v451
        %v453 = vpop.f32.mrf.mxu0
        %454 = vdwg.mxu0
        %v456 = vsel %vm260, %v252, 0
        %v459 = vsel %vm260, %v253, 0
        %v462 = vsel %vm260, %v254, 0
        %v465 = vsel %vm260, %v255, 0
        %467 = vmatprep.subr.mxu0 0.0
        %468 = vmatpush1.msra.mxu0 0.0
        %469 = vmatprep.subr.mxu0 0.0
        %470 = vmatpush1.msra.mxu0 0.0
        %471 = vmatprep.subr.mxu0 0.0
        %472 = vmatpush1.msra.mxu0 0.0
        %473 = vmatprep.subr.mxu0 0.0
        %474 = vmatpush1.msra.mxu0 0.0
        %475 = vmatprep.subr.mxu0 0.0
        %476 = vmatpush1.msra.mxu0 0.0
        %477 = vmatprep.subr.mxu0 0.0
        %478 = vmatpush1.msra.mxu0 0.0
        %479 = vmatprep.subr.mxu0 0.0
        %480 = vmatpush1.msra.mxu0 0.0
        %481 = vmatprep.subr.mxu0 0.0
        %482 = vmatpush1.msra.mxu0 0.0
        %483 = vmatprep.subr.mxu0 0.0
        %484 = vmatpush1.msra.mxu0 0.0
        %485 = vmatprep.subr.mxu0 0.0
        %486 = vmatpush1.msra.mxu0 0.0
        %487 = vmatprep.subr.mxu0 0.0
        %488 = vmatpush1.msra.mxu0 0.0
        %489 = vmatprep.subr.mxu0 0.0
        %490 = vmatpush1.msra.mxu0 0.0
        %491 = vmatprep.subr.mxu0 0.0
        %492 = vmatpush1.msra.mxu0 %v224
        %493 = vmatprep.subr.mxu0 0.0
        %494 = vmatpush1.msra.mxu0 %v223
        %495 = vmatprep.subr.mxu0 0.0
        %496 = vmatpush1.msra.mxu0 %v222
        %497 = vmatprep.subr.mxu0 0.0
        %498 = vmatpush1.msra.mxu0 %v221
        %499 = vmatprep.subr.mxu0 0.0
        %500 = vmatpush2.msra.mxu0 0.0
        %501 = vmatprep.subr.mxu0 0.0
        %502 = vmatpush2.msra.mxu0 0.0
        %503 = vmatprep.subr.mxu0 0.0
        %504 = vmatpush2.msra.mxu0 0.0
        %505 = vmatprep.subr.mxu0 0.0
        %506 = vmatpush2.msra.mxu0 0.0
        %507 = vmatprep.subr.mxu0 0.0
        %508 = vmatpush2.msra.mxu0 0.0
        %509 = vmatprep.subr.mxu0 0.0
        %510 = vmatpush2.msra.mxu0 0.0
        %511 = vmatprep.subr.mxu0 0.0
        %512 = vmatpush2.msra.mxu0 0.0
        %513 = vmatprep.subr.mxu0 0.0
        %514 = vmatpush2.msra.mxu0 0.0
        %515 = vmatprep.subr.mxu0 0.0
        %516 = vmatpush2.msra.mxu0 0.0
        %517 = vmatprep.subr.mxu0 0.0
        %518 = vmatpush2.msra.mxu0 0.0
        %519 = vmatprep.subr.mxu0 0.0
        %520 = vmatpush2.msra.mxu0 0.0
        %521 = vmatprep.subr.mxu0 0.0
        %522 = vmatpush2.msra.mxu0 0.0
        %523 = vmatprep.subr.mxu0 0.0
        %524 = vmatpush2.msra.mxu0 0.0
        %525 = vmatprep.subr.mxu0 0.0
        %526 = vmatpush2.msra.mxu0 0.0
        %527 = vmatprep.subr.mxu0 0.0
        %528 = vmatpush2.msra.mxu0 0.0
        %529 = vmatprep.subr.mxu0 0.0
        %530 = vmatpush2.msra.mxu0 0.0
        %531 = vmatprep.mubr.f32.mxu0 0.0
        %532 = vmatmul.mubr.f32.gmra.mxu0 %v456
        %v533 = vpop.f32.mrf.mxu0
        %v534 = vadd.f32 0.0, %v533
        %v535 = vpop.f32.mrf.mxu0
        %536 = vmatprep.mubr.f32.mxu0 0.0
        %537 = vmatmul.mubr.f32.gmra.mxu0 %v459
        %v538 = vpop.f32.mrf.mxu0
        %v539 = vadd.f32 0.0, %v538
        %v540 = vpop.f32.mrf.mxu0
        %541 = vmatprep.mubr.f32.mxu0 0.0
        %542 = vmatmul.mubr.f32.gmra.mxu0 %v462
        %v543 = vpop.f32.mrf.mxu0
        %v544 = vadd.f32 0.0, %v543
        %v545 = vpop.f32.mrf.mxu0
        %546 = vmatprep.mubr.f32.mxu0 0.0
        %547 = vmatmul.mubr.f32.gmra.mxu0 %v465
        %v548 = vpop.f32.mrf.mxu0
        %v549 = vadd.f32 0.0, %v548
        %v550 = vpop.f32.mrf.mxu0
        %551 = vdwg.mxu0
        %552 = vmatprep.subr.mxu0 0.0
        %553 = vmatpush1.msra.mxu0 0.0
        %554 = vmatprep.subr.mxu0 0.0
        %555 = vmatpush1.msra.mxu0 0.0
        %556 = vmatprep.subr.mxu0 0.0
        %557 = vmatpush1.msra.mxu0 0.0
        %558 = vmatprep.subr.mxu0 0.0
        %559 = vmatpush1.msra.mxu0 0.0
        %560 = vmatprep.subr.mxu0 0.0
        %561 = vmatpush1.msra.mxu0 0.0
        %562 = vmatprep.subr.mxu0 0.0
        %563 = vmatpush1.msra.mxu0 0.0
        %564 = vmatprep.subr.mxu0 0.0
        %565 = vmatpush1.msra.mxu0 0.0
        %566 = vmatprep.subr.mxu0 0.0
        %567 = vmatpush1.msra.mxu0 0.0
        %568 = vmatprep.subr.mxu0 0.0
        %569 = vmatpush1.msra.mxu0 0.0
        %570 = vmatprep.subr.mxu0 0.0
        %571 = vmatpush1.msra.mxu0 0.0
        %572 = vmatprep.subr.mxu0 0.0
        %573 = vmatpush1.msra.mxu0 0.0
        %574 = vmatprep.subr.mxu0 0.0
        %575 = vmatpush1.msra.mxu0 0.0
        %576 = vmatprep.subr.mxu0 0.0
        %577 = vmatpush1.msra.mxu0 %v219
        %578 = vmatprep.subr.mxu0 0.0
        %579 = vmatpush1.msra.mxu0 %v218
        %580 = vmatprep.subr.mxu0 0.0
        %581 = vmatpush1.msra.mxu0 %v217
        %582 = vmatprep.subr.mxu0 0.0
        %583 = vmatpush1.msra.mxu0 %v216
        %584 = vmatprep.subr.mxu0 0.0
        %585 = vmatpush2.msra.mxu0 0.0
        %586 = vmatprep.subr.mxu0 0.0
        %587 = vmatpush2.msra.mxu0 0.0
        %588 = vmatprep.subr.mxu0 0.0
        %589 = vmatpush2.msra.mxu0 0.0
        %590 = vmatprep.subr.mxu0 0.0
        %591 = vmatpush2.msra.mxu0 0.0
        %592 = vmatprep.subr.mxu0 0.0
        %593 = vmatpush2.msra.mxu0 0.0
        %594 = vmatprep.subr.mxu0 0.0
        %595 = vmatpush2.msra.mxu0 0.0
        %596 = vmatprep.subr.mxu0 0.0
        %597 = vmatpush2.msra.mxu0 0.0
        %598 = vmatprep.subr.mxu0 0.0
        %599 = vmatpush2.msra.mxu0 0.0
        %600 = vmatprep.subr.mxu0 0.0
        %601 = vmatpush2.msra.mxu0 0.0
        %602 = vmatprep.subr.mxu0 0.0
        %603 = vmatpush2.msra.mxu0 0.0
        %604 = vmatprep.subr.mxu0 0.0
        %605 = vmatpush2.msra.mxu0 0.0
        %606 = vmatprep.subr.mxu0 0.0
        %607 = vmatpush2.msra.mxu0 0.0
        %608 = vmatprep.subr.mxu0 0.0
        %609 = vmatpush2.msra.mxu0 0.0
        %610 = vmatprep.subr.mxu0 0.0
        %611 = vmatpush2.msra.mxu0 0.0
        %612 = vmatprep.subr.mxu0 0.0
        %613 = vmatpush2.msra.mxu0 0.0
        %614 = vmatprep.subr.mxu0 0.0
        %615 = vmatpush2.msra.mxu0 0.0
        %616 = vmatprep.mubr.f32.mxu0 0.0
        %617 = vmatmul.mubr.f32.gmra.mxu0 %v359
        %v618 = vpop.f32.mrf.mxu0
        %v619 = vadd.f32 %v534, %v618
        %v620 = vpop.f32.mrf.mxu0
        %621 = vmatprep.mubr.f32.mxu0 0.0
        %622 = vmatmul.mubr.f32.gmra.mxu0 %v362
        %v623 = vpop.f32.mrf.mxu0
        %v624 = vadd.f32 %v539, %v623
        %v625 = vpop.f32.mrf.mxu0
        %626 = vmatprep.mubr.f32.mxu0 0.0
        %627 = vmatmul.mubr.f32.gmra.mxu0 %v365
        %v628 = vpop.f32.mrf.mxu0
        %v629 = vadd.f32 %v544, %v628
        %v630 = vpop.f32.mrf.mxu0
        %631 = vmatprep.mubr.f32.mxu0 0.0
        %632 = vmatmul.mubr.f32.gmra.mxu0 %v368
        %v633 = vpop.f32.mrf.mxu0
        %v634 = vadd.f32 %v549, %v633
        %v635 = vpop.f32.mrf.mxu0
        %636 = vdwg.mxu0
        %637 = vmatprep.subr.mxu0 0.0
        %638 = vmatpush1.msra.mxu0 0.0
        %639 = vmatprep.subr.mxu0 0.0
        %640 = vmatpush1.msra.mxu0 0.0
        %641 = vmatprep.subr.mxu0 0.0
        %642 = vmatpush1.msra.mxu0 0.0
        %643 = vmatprep.subr.mxu0 0.0
        %644 = vmatpush1.msra.mxu0 0.0
        %645 = vmatprep.subr.mxu0 0.0
        %646 = vmatpush1.msra.mxu0 0.0
        %647 = vmatprep.subr.mxu0 0.0
        %648 = vmatpush1.msra.mxu0 0.0
        %649 = vmatprep.subr.mxu0 0.0
        %650 = vmatpush1.msra.mxu0 0.0
        %651 = vmatprep.subr.mxu0 0.0
        %652 = vmatpush1.msra.mxu0 0.0
        %653 = vmatprep.subr.mxu0 0.0
        %654 = vmatpush1.msra.mxu0 0.0
        %655 = vmatprep.subr.mxu0 0.0
        %656 = vmatpush1.msra.mxu0 0.0
        %657 = vmatprep.subr.mxu0 0.0
        %658 = vmatpush1.msra.mxu0 0.0
        %659 = vmatprep.subr.mxu0 0.0
        %660 = vmatpush1.msra.mxu0 0.0
        %661 = vmatprep.subr.mxu0 0.0
        %662 = vmatpush1.msra.mxu0 %v234
        %663 = vmatprep.subr.mxu0 0.0
        %664 = vmatpush1.msra.mxu0 %v233
        %665 = vmatprep.subr.mxu0 0.0
        %666 = vmatpush1.msra.mxu0 %v232
        %667 = vmatprep.subr.mxu0 0.0
        %668 = vmatpush1.msra.mxu0 %v231
        %669 = vmatprep.subr.mxu0 0.0
        %670 = vmatpush2.msra.mxu0 0.0
        %671 = vmatprep.subr.mxu0 0.0
        %672 = vmatpush2.msra.mxu0 0.0
        %673 = vmatprep.subr.mxu0 0.0
        %674 = vmatpush2.msra.mxu0 0.0
        %675 = vmatprep.subr.mxu0 0.0
        %676 = vmatpush2.msra.mxu0 0.0
        %677 = vmatprep.subr.mxu0 0.0
        %678 = vmatpush2.msra.mxu0 0.0
        %679 = vmatprep.subr.mxu0 0.0
        %680 = vmatpush2.msra.mxu0 0.0
        %681 = vmatprep.subr.mxu0 0.0
        %682 = vmatpush2.msra.mxu0 0.0
        %683 = vmatprep.subr.mxu0 0.0
        %684 = vmatpush2.msra.mxu0 0.0
        %685 = vmatprep.subr.mxu0 0.0
        %686 = vmatpush2.msra.mxu0 0.0
        %687 = vmatprep.subr.mxu0 0.0
        %688 = vmatpush2.msra.mxu0 0.0
        %689 = vmatprep.subr.mxu0 0.0
        %690 = vmatpush2.msra.mxu0 0.0
        %691 = vmatprep.subr.mxu0 0.0
        %692 = vmatpush2.msra.mxu0 0.0
        %693 = vmatprep.subr.mxu0 0.0
        %694 = vmatpush2.msra.mxu0 0.0
        %695 = vmatprep.subr.mxu0 0.0
        %696 = vmatpush2.msra.mxu0 0.0
        %697 = vmatprep.subr.mxu0 0.0
        %698 = vmatpush2.msra.mxu0 0.0
        %699 = vmatprep.subr.mxu0 0.0
        %700 = vmatpush2.msra.mxu0 0.0
        %701 = vmatprep.mubr.f32.mxu0 0.0
        %702 = vmatmul.mubr.f32.gmra.mxu0 %v262
        %v703 = vpop.f32.mrf.mxu0
        %v704 = vadd.f32 0.0, %v703
        %v705 = vpop.f32.mrf.mxu0
        %706 = vmatprep.mubr.f32.mxu0 0.0
        %707 = vmatmul.mubr.f32.gmra.mxu0 %v265
        %v708 = vpop.f32.mrf.mxu0
        %v709 = vadd.f32 0.0, %v708
        %v710 = vpop.f32.mrf.mxu0
        %711 = vmatprep.mubr.f32.mxu0 0.0
        %712 = vmatmul.mubr.f32.gmra.mxu0 %v268
        %v713 = vpop.f32.mrf.mxu0
        %v714 = vadd.f32 0.0, %v713
        %v715 = vpop.f32.mrf.mxu0
        %716 = vmatprep.mubr.f32.mxu0 0.0
        %717 = vmatmul.mubr.f32.gmra.mxu0 %v271
        %v718 = vpop.f32.mrf.mxu0
        %v719 = vadd.f32 0.0, %v718
        %v720 = vpop.f32.mrf.mxu0
        %721 = vdwg.mxu0
        %722 = vmatprep.subr.mxu0 0.0
        %723 = vmatpush1.msra.mxu0 0.0
        %724 = vmatprep.subr.mxu0 0.0
        %725 = vmatpush1.msra.mxu0 0.0
        %726 = vmatprep.subr.mxu0 0.0
        %727 = vmatpush1.msra.mxu0 0.0
        %728 = vmatprep.subr.mxu0 0.0
        %729 = vmatpush1.msra.mxu0 0.0
        %730 = vmatprep.subr.mxu0 0.0
        %731 = vmatpush1.msra.mxu0 0.0
        %732 = vmatprep.subr.mxu0 0.0
        %733 = vmatpush1.msra.mxu0 0.0
        %734 = vmatprep.subr.mxu0 0.0
        %735 = vmatpush1.msra.mxu0 0.0
        %736 = vmatprep.subr.mxu0 0.0
        %737 = vmatpush1.msra.mxu0 0.0
        %738 = vmatprep.subr.mxu0 0.0
        %739 = vmatpush1.msra.mxu0 0.0
        %740 = vmatprep.subr.mxu0 0.0
        %741 = vmatpush1.msra.mxu0 0.0
        %742 = vmatprep.subr.mxu0 0.0
        %743 = vmatpush1.msra.mxu0 0.0
        %744 = vmatprep.subr.mxu0 0.0
        %745 = vmatpush1.msra.mxu0 0.0
        %746 = vmatprep.subr.mxu0 0.0
        %747 = vmatpush1.msra.mxu0 %v229
        %748 = vmatprep.subr.mxu0 0.0
        %749 = vmatpush1.msra.mxu0 %v228
        %750 = vmatprep.subr.mxu0 0.0
        %751 = vmatpush1.msra.mxu0 %v227
        %752 = vmatprep.subr.mxu0 0.0
        %753 = vmatpush1.msra.mxu0 %v226
        %754 = vmatprep.subr.mxu0 0.0
        %755 = vmatpush2.msra.mxu0 0.0
        %756 = vmatprep.subr.mxu0 0.0
        %757 = vmatpush2.msra.mxu0 0.0
        %758 = vmatprep.subr.mxu0 0.0
        %759 = vmatpush2.msra.mxu0 0.0
        %760 = vmatprep.subr.mxu0 0.0
        %761 = vmatpush2.msra.mxu0 0.0
        %762 = vmatprep.subr.mxu0 0.0
        %763 = vmatpush2.msra.mxu0 0.0
        %764 = vmatprep.subr.mxu0 0.0
        %765 = vmatpush2.msra.mxu0 0.0
        %766 = vmatprep.subr.mxu0 0.0
        %767 = vmatpush2.msra.mxu0 0.0
        %768 = vmatprep.subr.mxu0 0.0
        %769 = vmatpush2.msra.mxu0 0.0
        %770 = vmatprep.subr.mxu0 0.0
        %771 = vmatpush2.msra.mxu0 0.0
        %772 = vmatprep.subr.mxu0 0.0
        %773 = vmatpush2.msra.mxu0 0.0
        %774 = vmatprep.subr.mxu0 0.0
        %775 = vmatpush2.msra.mxu0 0.0
        %776 = vmatprep.subr.mxu0 0.0
        %777 = vmatpush2.msra.mxu0 0.0
        %778 = vmatprep.subr.mxu0 0.0
        %779 = vmatpush2.msra.mxu0 0.0
        %780 = vmatprep.subr.mxu0 0.0
        %781 = vmatpush2.msra.mxu0 0.0
        %782 = vmatprep.subr.mxu0 0.0
        %783 = vmatpush2.msra.mxu0 0.0
        %784 = vmatprep.subr.mxu0 0.0
        %785 = vmatpush2.msra.mxu0 0.0
        %786 = vmatprep.mubr.f32.mxu0 0.0
        %787 = vmatmul.mubr.f32.gmra.mxu0 %v359
        %v788 = vpop.f32.mrf.mxu0
        %v789 = vadd.f32 %v704, %v788
        %v790 = vpop.f32.mrf.mxu0
        %791 = vmatprep.mubr.f32.mxu0 0.0
        %792 = vmatmul.mubr.f32.gmra.mxu0 %v362
        %v793 = vpop.f32.mrf.mxu0
        %v794 = vadd.f32 %v709, %v793
        %v795 = vpop.f32.mrf.mxu0
        %796 = vmatprep.mubr.f32.mxu0 0.0
        %797 = vmatmul.mubr.f32.gmra.mxu0 %v365
        %v798 = vpop.f32.mrf.mxu0
        %v799 = vadd.f32 %v714, %v798
        %v800 = vpop.f32.mrf.mxu0
        %801 = vmatprep.mubr.f32.mxu0 0.0
        %802 = vmatmul.mubr.f32.gmra.mxu0 %v368
        %v803 = vpop.f32.mrf.mxu0
        %v804 = vadd.f32 %v719, %v803
        %v805 = vpop.f32.mrf.mxu0
        %806 = vdwg.mxu0
        %807 = vmatprep.subr.mxu0 0.0
        %808 = vmatpush1.msra.mxu0 0.0
        %809 = vmatprep.subr.mxu0 0.0
        %810 = vmatpush1.msra.mxu0 0.0
        %811 = vmatprep.subr.mxu0 0.0
        %812 = vmatpush1.msra.mxu0 0.0
        %813 = vmatprep.subr.mxu0 0.0
        %814 = vmatpush1.msra.mxu0 0.0
        %815 = vmatprep.subr.mxu0 0.0
        %816 = vmatpush1.msra.mxu0 0.0
        %817 = vmatprep.subr.mxu0 0.0
        %818 = vmatpush1.msra.mxu0 0.0
        %819 = vmatprep.subr.mxu0 0.0
        %820 = vmatpush1.msra.mxu0 0.0
        %821 = vmatprep.subr.mxu0 0.0
        %822 = vmatpush1.msra.mxu0 0.0
        %823 = vmatprep.subr.mxu0 0.0
        %824 = vmatpush1.msra.mxu0 0.0
        %825 = vmatprep.subr.mxu0 0.0
        %826 = vmatpush1.msra.mxu0 0.0
        %827 = vmatprep.subr.mxu0 0.0
        %828 = vmatpush1.msra.mxu0 0.0
        %829 = vmatprep.subr.mxu0 0.0
        %830 = vmatpush1.msra.mxu0 0.0
        %831 = vmatprep.subr.mxu0 0.0
        %832 = vmatpush1.msra.mxu0 %v239
        %833 = vmatprep.subr.mxu0 0.0
        %834 = vmatpush1.msra.mxu0 %v238
        %835 = vmatprep.subr.mxu0 0.0
        %836 = vmatpush1.msra.mxu0 %v237
        %837 = vmatprep.subr.mxu0 0.0
        %838 = vmatpush1.msra.mxu0 %v236
        %839 = vmatprep.subr.mxu0 0.0
        %840 = vmatpush2.msra.mxu0 0.0
        %841 = vmatprep.subr.mxu0 0.0
        %842 = vmatpush2.msra.mxu0 0.0
        %843 = vmatprep.subr.mxu0 0.0
        %844 = vmatpush2.msra.mxu0 0.0
        %845 = vmatprep.subr.mxu0 0.0
        %846 = vmatpush2.msra.mxu0 0.0
        %847 = vmatprep.subr.mxu0 0.0
        %848 = vmatpush2.msra.mxu0 0.0
        %849 = vmatprep.subr.mxu0 0.0
        %850 = vmatpush2.msra.mxu0 0.0
        %851 = vmatprep.subr.mxu0 0.0
        %852 = vmatpush2.msra.mxu0 0.0
        %853 = vmatprep.subr.mxu0 0.0
        %854 = vmatpush2.msra.mxu0 0.0
        %855 = vmatprep.subr.mxu0 0.0
        %856 = vmatpush2.msra.mxu0 0.0
        %857 = vmatprep.subr.mxu0 0.0
        %858 = vmatpush2.msra.mxu0 0.0
        %859 = vmatprep.subr.mxu0 0.0
        %860 = vmatpush2.msra.mxu0 0.0
        %861 = vmatprep.subr.mxu0 0.0
        %862 = vmatpush2.msra.mxu0 0.0
        %863 = vmatprep.subr.mxu0 0.0
        %864 = vmatpush2.msra.mxu0 0.0
        %865 = vmatprep.subr.mxu0 0.0
        %866 = vmatpush2.msra.mxu0 0.0
        %867 = vmatprep.subr.mxu0 0.0
        %868 = vmatpush2.msra.mxu0 0.0
        %869 = vmatprep.subr.mxu0 0.0
        %870 = vmatpush2.msra.mxu0 0.0
        %871 = vmatprep.mubr.f32.mxu0 0.0
        %872 = vmatmul.mubr.f32.gmra.mxu0 %v456
        %v873 = vpop.f32.mrf.mxu0
        %v874 = vadd.f32 0.0, %v873
        %v875 = vpop.f32.mrf.mxu0
        %876 = vmatprep.mubr.f32.mxu0 0.0
        %877 = vmatmul.mubr.f32.gmra.mxu0 %v459
        %v878 = vpop.f32.mrf.mxu0
        %v879 = vadd.f32 0.0, %v878
        %v880 = vpop.f32.mrf.mxu0
        %881 = vmatprep.mubr.f32.mxu0 0.0
        %882 = vmatmul.mubr.f32.gmra.mxu0 %v462
        %v883 = vpop.f32.mrf.mxu0
        %v884 = vadd.f32 0.0, %v883
        %v885 = vpop.f32.mrf.mxu0
        %886 = vmatprep.mubr.f32.mxu0 0.0
        %887 = vmatmul.mubr.f32.gmra.mxu0 %v465
        %v888 = vpop.f32.mrf.mxu0
        %v889 = vadd.f32 0.0, %v888
        %v890 = vpop.f32.mrf.mxu0
        %891 = vdwg.mxu0
        %v892 = vadd.f32 %v789, %v874
        %v893 = vadd.f32 %v794, %v879
        %v894 = vadd.f32 %v799, %v884
        %v895 = vadd.f32 %v804, %v889
        %v897 = vsel %vm260, %v256, 0
        %v900 = vsel %vm260, %v257, 0
        %v903 = vsel %vm260, %v258, 0
        %v906 = vsel %vm260, %v259, 0
        %908 = vmatprep.subr.mxu0 0.0
        %909 = vmatpush1.msra.mxu0 0.0
        %910 = vmatprep.subr.mxu0 0.0
        %911 = vmatpush1.msra.mxu0 0.0
        %912 = vmatprep.subr.mxu0 0.0
        %913 = vmatpush1.msra.mxu0 0.0
        %914 = vmatprep.subr.mxu0 0.0
        %915 = vmatpush1.msra.mxu0 0.0
        %916 = vmatprep.subr.mxu0 0.0
        %917 = vmatpush1.msra.mxu0 0.0
        %918 = vmatprep.subr.mxu0 0.0
        %919 = vmatpush1.msra.mxu0 0.0
        %920 = vmatprep.subr.mxu0 0.0
        %921 = vmatpush1.msra.mxu0 0.0
        %922 = vmatprep.subr.mxu0 0.0
        %923 = vmatpush1.msra.mxu0 0.0
        %924 = vmatprep.subr.mxu0 0.0
        %925 = vmatpush1.msra.mxu0 0.0
        %926 = vmatprep.subr.mxu0 0.0
        %927 = vmatpush1.msra.mxu0 0.0
        %928 = vmatprep.subr.mxu0 0.0
        %929 = vmatpush1.msra.mxu0 0.0
        %930 = vmatprep.subr.mxu0 0.0
        %931 = vmatpush1.msra.mxu0 0.0
        %932 = vmatprep.subr.mxu0 0.0
        %933 = vmatpush1.msra.mxu0 %v243
        %934 = vmatprep.subr.mxu0 0.0
        %935 = vmatpush1.msra.mxu0 %v242
        %936 = vmatprep.subr.mxu0 0.0
        %937 = vmatpush1.msra.mxu0 %v241
        %938 = vmatprep.subr.mxu0 0.0
        %939 = vmatpush1.msra.mxu0 %v240
        %940 = vmatprep.subr.mxu0 0.0
        %941 = vmatpush2.msra.mxu0 0.0
        %942 = vmatprep.subr.mxu0 0.0
        %943 = vmatpush2.msra.mxu0 0.0
        %944 = vmatprep.subr.mxu0 0.0
        %945 = vmatpush2.msra.mxu0 0.0
        %946 = vmatprep.subr.mxu0 0.0
        %947 = vmatpush2.msra.mxu0 0.0
        %948 = vmatprep.subr.mxu0 0.0
        %949 = vmatpush2.msra.mxu0 0.0
        %950 = vmatprep.subr.mxu0 0.0
        %951 = vmatpush2.msra.mxu0 0.0
        %952 = vmatprep.subr.mxu0 0.0
        %953 = vmatpush2.msra.mxu0 0.0
        %954 = vmatprep.subr.mxu0 0.0
        %955 = vmatpush2.msra.mxu0 0.0
        %956 = vmatprep.subr.mxu0 0.0
        %957 = vmatpush2.msra.mxu0 0.0
        %958 = vmatprep.subr.mxu0 0.0
        %959 = vmatpush2.msra.mxu0 0.0
        %960 = vmatprep.subr.mxu0 0.0
        %961 = vmatpush2.msra.mxu0 0.0
        %962 = vmatprep.subr.mxu0 0.0
        %963 = vmatpush2.msra.mxu0 0.0
        %964 = vmatprep.subr.mxu0 0.0
        %965 = vmatpush2.msra.mxu0 0.0
        %966 = vmatprep.subr.mxu0 0.0
        %967 = vmatpush2.msra.mxu0 0.0
        %968 = vmatprep.subr.mxu0 0.0
        %969 = vmatpush2.msra.mxu0 0.0
        %970 = vmatprep.subr.mxu0 0.0
        %971 = vmatpush2.msra.mxu0 0.0
        %972 = vmatprep.mubr.f32.mxu0 0.0
        %973 = vmatmul.mubr.f32.gmra.mxu0 %v897
        %v974 = vpop.f32.mrf.mxu0
        %v975 = vadd.f32 0.0, %v974
        %v976 = vpop.f32.mrf.mxu0
        %977 = vmatprep.mubr.f32.mxu0 0.0
        %978 = vmatmul.mubr.f32.gmra.mxu0 %v900
        %v979 = vpop.f32.mrf.mxu0
        %v980 = vadd.f32 0.0, %v979
        %v981 = vpop.f32.mrf.mxu0
        %982 = vmatprep.mubr.f32.mxu0 0.0
        %983 = vmatmul.mubr.f32.gmra.mxu0 %v903
        %v984 = vpop.f32.mrf.mxu0
        %v985 = vadd.f32 0.0, %v984
        %v986 = vpop.f32.mrf.mxu0
        %987 = vmatprep.mubr.f32.mxu0 0.0
        %988 = vmatmul.mubr.f32.gmra.mxu0 %v906
        %v989 = vpop.f32.mrf.mxu0
        %v990 = vadd.f32 0.0, %v989
        %v991 = vpop.f32.mrf.mxu0
        %992 = vdwg.mxu0
        %v993 = vadd.f32 %v892, %v975
        %v994 = vadd.f32 %v893, %v980
        %v995 = vadd.f32 %v894, %v985
        %v996 = vadd.f32 %v895, %v990
        %v998 = vlaneseq
        %v999 = vshrl.u32 %v998, 7
        %v1000 = vsub.s32 0, %v999
        %v1001 = vrot.slane %v199, %v1000
        %1003 = vmatprep.subr.mxu0 0.0
        %1004 = vmatpush1.msra.mxu0 0.0
        %1005 = vmatprep.subr.mxu0 0.0
        %1006 = vmatpush1.msra.mxu0 0.0
        %1007 = vmatprep.subr.mxu0 0.0
        %1008 = vmatpush1.msra.mxu0 0.0
        %1009 = vmatprep.subr.mxu0 0.0
        %1010 = vmatpush1.msra.mxu0 0.0
        %1011 = vmatprep.subr.mxu0 0.0
        %1012 = vmatpush1.msra.mxu0 0.0
        %1013 = vmatprep.subr.mxu0 0.0
        %1014 = vmatpush1.msra.mxu0 0.0
        %1015 = vmatprep.subr.mxu0 0.0
        %1016 = vmatpush1.msra.mxu0 0.0
        %1017 = vmatprep.subr.mxu0 0.0
        %1018 = vmatpush1.msra.mxu0 0.0
        %1019 = vmatprep.subr.mxu0 0.0
        %1020 = vmatpush1.msra.mxu0 0.0
        %1021 = vmatprep.subr.mxu0 0.0
        %1022 = vmatpush1.msra.mxu0 0.0
        %1023 = vmatprep.subr.mxu0 0.0
        %1024 = vmatpush1.msra.mxu0 0.0
        %1025 = vmatprep.subr.mxu0 0.0
        %1026 = vmatpush1.msra.mxu0 0.0
        %1027 = vmatprep.subr.mxu0 0.0
        %1028 = vmatpush1.msra.mxu0 %v204
        %1029 = vmatprep.subr.mxu0 0.0
        %1030 = vmatpush1.msra.mxu0 %v203
        %1031 = vmatprep.subr.mxu0 0.0
        %1032 = vmatpush1.msra.mxu0 %v202
        %1033 = vmatprep.subr.mxu0 0.0
        %1034 = vmatpush1.msra.mxu0 %v201
        %1035 = vmatprep.subr.mxu0 0.0
        %1036 = vmatpush2.msra.mxu0 0.0
        %1037 = vmatprep.subr.mxu0 0.0
        %1038 = vmatpush2.msra.mxu0 0.0
        %1039 = vmatprep.subr.mxu0 0.0
        %1040 = vmatpush2.msra.mxu0 0.0
        %1041 = vmatprep.subr.mxu0 0.0
        %1042 = vmatpush2.msra.mxu0 0.0
        %1043 = vmatprep.subr.mxu0 0.0
        %1044 = vmatpush2.msra.mxu0 0.0
        %1045 = vmatprep.subr.mxu0 0.0
        %1046 = vmatpush2.msra.mxu0 0.0
        %1047 = vmatprep.subr.mxu0 0.0
        %1048 = vmatpush2.msra.mxu0 0.0
        %1049 = vmatprep.subr.mxu0 0.0
        %1050 = vmatpush2.msra.mxu0 0.0
        %1051 = vmatprep.subr.mxu0 0.0
        %1052 = vmatpush2.msra.mxu0 0.0
        %1053 = vmatprep.subr.mxu0 0.0
        %1054 = vmatpush2.msra.mxu0 0.0
        %1055 = vmatprep.subr.mxu0 0.0
        %1056 = vmatpush2.msra.mxu0 0.0
        %1057 = vmatprep.subr.mxu0 0.0
        %1058 = vmatpush2.msra.mxu0 0.0
        %1059 = vmatprep.subr.mxu0 0.0
        %1060 = vmatpush2.msra.mxu0 0.0
        %1061 = vmatprep.subr.mxu0 0.0
        %1062 = vmatpush2.msra.mxu0 0.0
        %1063 = vmatprep.subr.mxu0 0.0
        %1064 = vmatpush2.msra.mxu0 0.0
        %1065 = vmatprep.subr.mxu0 0.0
        %1066 = vmatpush2.msra.mxu0 0.0
        %1067 = vmatprep.mubr.f32.mxu0 0.0
        %1068 = vmatmul.mubr.f32.gmra.mxu0 %v359
        %v1069 = vpop.f32.mrf.mxu0
        %v1070 = vadd.f32 %v1001, %v1069
        %v1071 = vpop.f32.mrf.mxu0
        %1072 = vmatprep.mubr.f32.mxu0 0.0
        %1073 = vmatmul.mubr.f32.gmra.mxu0 %v362
        %v1074 = vpop.f32.mrf.mxu0
        %v1075 = vadd.f32 %v1001, %v1074
        %v1076 = vpop.f32.mrf.mxu0
        %1077 = vmatprep.mubr.f32.mxu0 0.0
        %1078 = vmatmul.mubr.f32.gmra.mxu0 %v365
        %v1079 = vpop.f32.mrf.mxu0
        %v1080 = vadd.f32 %v1001, %v1079
        %v1081 = vpop.f32.mrf.mxu0
        %1082 = vmatprep.mubr.f32.mxu0 0.0
        %1083 = vmatmul.mubr.f32.gmra.mxu0 %v368
        %v1084 = vpop.f32.mrf.mxu0
        %v1085 = vadd.f32 %v1001, %v1084
        %v1086 = vpop.f32.mrf.mxu0
        %1087 = vdwg.mxu0
        %v1088 = vmul.f32 %v1070, %v1070
        %v1089 = vmul.f32 %v1075, %v1075
        %v1090 = vmul.f32 %v1080, %v1080
        %v1091 = vmul.f32 %v1085, %v1085
        %v1092 = vmul.f32 %v1070, %v1088
        %v1093 = vmul.f32 %v1075, %v1089
        %v1094 = vmul.f32 %v1080, %v1090
        %v1095 = vmul.f32 %v1085, %v1091
        %v1096 = vmul.f32 %v1092, 0.044715
        %v1097 = vmul.f32 %v1093, 0.044715
        %v1098 = vmul.f32 %v1094, 0.044715
        %v1099 = vmul.f32 %v1095, 0.044715
        %v1100 = vadd.f32 %v1070, %v1096
        %v1101 = vadd.f32 %v1075, %v1097
        %v1102 = vadd.f32 %v1080, %v1098
        %v1103 = vadd.f32 %v1085, %v1099
        %v1104 = vmul.f32 %v1100, 0.7978846
        %v1105 = vmul.f32 %v1101, 0.7978846
        %v1106 = vmul.f32 %v1102, 0.7978846
        %v1107 = vmul.f32 %v1103, 0.7978846
        %v1108 = vtanh.pop %v1104
        %v1109 = vtanh.pop %v1105
        %v1110 = vtanh.pop %v1106
        %v1111 = vtanh.pop %v1107
        %v1112 = vadd.f32 %v1108, 1.0
        %v1113 = vadd.f32 %v1109, 1.0
        %v1114 = vadd.f32 %v1110, 1.0
        %v1115 = vadd.f32 %v1111, 1.0
        %v1116 = vmul.f32 %v1112, 0.5
        %v1117 = vmul.f32 %v1113, 0.5
        %v1118 = vmul.f32 %v1114, 0.5
        %v1119 = vmul.f32 %v1115, 0.5
        %v1120 = vmul.f32 %v1070, %v1116
        %v1121 = vmul.f32 %v1075, %v1117
        %v1122 = vmul.f32 %v1080, %v1118
        %v1123 = vmul.f32 %v1085, %v1119
        %vm1124 = vcmask 523264
        %1125 = vst.msk [vmem:[%s198] sm:$0xff] %vm1124, %v1120
        %1126 = vst.msk [vmem:[%s198 + $0x8] sm:$0xff] %vm1124, %v1121
        %1127 = vst.msk [vmem:[%s198 + $0x10] sm:$0xff] %vm1124, %v1122
        %vm1128 = vcmask 516096
        %1129 = vst.msk [vmem:[%s198 + $0x18] sm:$0x1] %vm1128, %v1123
        %v1130 = vadd.f32 %v437, %v1001
        %v1131 = vadd.f32 %v442, %v1001
        %v1132 = vadd.f32 %v447, %v1001
        %v1133 = vadd.f32 %v452, %v1001
        %v1134 = vmul.f32 %v1130, %v1130
        %v1135 = vmul.f32 %v1131, %v1131
        %v1136 = vmul.f32 %v1132, %v1132
        %v1137 = vmul.f32 %v1133, %v1133
        %v1138 = vmul.f32 %v1130, %v1134
        %v1139 = vmul.f32 %v1131, %v1135
        %v1140 = vmul.f32 %v1132, %v1136
        %v1141 = vmul.f32 %v1133, %v1137
        %v1142 = vmul.f32 %v1138, 0.044715
        %v1143 = vmul.f32 %v1139, 0.044715
        %v1144 = vmul.f32 %v1140, 0.044715
        %v1145 = vmul.f32 %v1141, 0.044715
        %v1146 = vadd.f32 %v1130, %v1142
        %v1147 = vadd.f32 %v1131, %v1143
        %v1148 = vadd.f32 %v1132, %v1144
        %v1149 = vadd.f32 %v1133, %v1145
        %v1150 = vmul.f32 %v1146, 0.7978846
        %v1151 = vmul.f32 %v1147, 0.7978846
        %v1152 = vmul.f32 %v1148, 0.7978846
        %v1153 = vmul.f32 %v1149, 0.7978846
        %v1154 = vtanh.pop %v1150
        %v1155 = vtanh.pop %v1151
        %v1156 = vtanh.pop %v1152
        %v1157 = vtanh.pop %v1153
        %v1158 = vadd.f32 %v1154, 1.0
        %v1159 = vadd.f32 %v1155, 1.0
        %v1160 = vadd.f32 %v1156, 1.0
        %v1161 = vadd.f32 %v1157, 1.0
        %v1162 = vmul.f32 %v1158, 0.5
        %v1163 = vmul.f32 %v1159, 0.5
        %v1164 = vmul.f32 %v1160, 0.5
        %v1165 = vmul.f32 %v1161, 0.5
        %v1166 = vmul.f32 %v1130, %v1162
        %v1167 = vmul.f32 %v1131, %v1163
        %v1168 = vmul.f32 %v1132, %v1164
        %v1169 = vmul.f32 %v1133, %v1165
        %s1170 = scalar_lea.vmem %s198, 32
        %1171 = vst.msk [vmem:[%s1170] sm:$0xff] %vm1124, %v1166
        %1172 = vst.msk [vmem:[%s1170 + $0x8] sm:$0xff] %vm1124, %v1167
        %1173 = vst.msk [vmem:[%s1170 + $0x10] sm:$0xff] %vm1124, %v1168
        %1174 = vst.msk [vmem:[%s1170 + $0x18] sm:$0x1] %vm1128, %v1169
        %v1175 = vadd.f32 %v619, %v1001
        %v1176 = vadd.f32 %v624, %v1001
        %v1177 = vadd.f32 %v629, %v1001
        %v1178 = vadd.f32 %v634, %v1001
        %v1179 = vmul.f32 %v1175, %v1175
        %v1180 = vmul.f32 %v1176, %v1176
        %v1181 = vmul.f32 %v1177, %v1177
        %v1182 = vmul.f32 %v1178, %v1178
        %v1183 = vmul.f32 %v1175, %v1179
        %v1184 = vmul.f32 %v1176, %v1180
        %v1185 = vmul.f32 %v1177, %v1181
        %v1186 = vmul.f32 %v1178, %v1182
        %v1187 = vmul.f32 %v1183, 0.044715
        %v1188 = vmul.f32 %v1184, 0.044715
        %v1189 = vmul.f32 %v1185, 0.044715
        %v1190 = vmul.f32 %v1186, 0.044715
        %v1191 = vadd.f32 %v1175, %v1187
        %v1192 = vadd.f32 %v1176, %v1188
        %v1193 = vadd.f32 %v1177, %v1189
        %v1194 = vadd.f32 %v1178, %v1190
        %v1195 = vmul.f32 %v1191, 0.7978846
        %v1196 = vmul.f32 %v1192, 0.7978846
        %v1197 = vmul.f32 %v1193, 0.7978846
        %v1198 = vmul.f32 %v1194, 0.7978846
        %v1199 = vtanh.pop %v1195
        %v1200 = vtanh.pop %v1196
        %v1201 = vtanh.pop %v1197
        %v1202 = vtanh.pop %v1198
        %v1203 = vadd.f32 %v1199, 1.0
        %v1204 = vadd.f32 %v1200, 1.0
        %v1205 = vadd.f32 %v1201, 1.0
        %v1206 = vadd.f32 %v1202, 1.0
        %v1207 = vmul.f32 %v1203, 0.5
        %v1208 = vmul.f32 %v1204, 0.5
        %v1209 = vmul.f32 %v1205, 0.5
        %v1210 = vmul.f32 %v1206, 0.5
        %v1211 = vmul.f32 %v1175, %v1207
        %v1212 = vmul.f32 %v1176, %v1208
        %v1213 = vmul.f32 %v1177, %v1209
        %v1214 = vmul.f32 %v1178, %v1210
        %s1215 = scalar_lea.vmem %s198, 64
        %1216 = vst.msk [vmem:[%s1215] sm:$0xff] %vm1124, %v1211
        %1217 = vst.msk [vmem:[%s1215 + $0x8] sm:$0xff] %vm1124, %v1212
        %1218 = vst.msk [vmem:[%s1215 + $0x10] sm:$0xff] %vm1124, %v1213
        %1219 = vst.msk [vmem:[%s1215 + $0x18] sm:$0x1] %vm1128, %v1214
        %v1220 = vadd.f32 %v993, %v1001
        %v1221 = vadd.f32 %v994, %v1001
        %v1222 = vadd.f32 %v995, %v1001
        %v1223 = vadd.f32 %v996, %v1001
        %v1224 = vmul.f32 %v1220, %v1220
        %v1225 = vmul.f32 %v1221, %v1221
        %v1226 = vmul.f32 %v1222, %v1222
        %v1227 = vmul.f32 %v1223, %v1223
        %v1228 = vmul.f32 %v1220, %v1224
        %v1229 = vmul.f32 %v1221, %v1225
        %v1230 = vmul.f32 %v1222, %v1226
        %v1231 = vmul.f32 %v1223, %v1227
        %v1232 = vmul.f32 %v1228, 0.044715
        %v1233 = vmul.f32 %v1229, 0.044715
        %v1234 = vmul.f32 %v1230, 0.044715
        %v1235 = vmul.f32 %v1231, 0.044715
        %v1236 = vadd.f32 %v1220, %v1232
        %v1237 = vadd.f32 %v1221, %v1233
        %v1238 = vadd.f32 %v1222, %v1234
        %v1239 = vadd.f32 %v1223, %v1235
        %v1240 = vmul.f32 %v1236, 0.7978846
        %v1241 = vmul.f32 %v1237, 0.7978846
        %v1242 = vmul.f32 %v1238, 0.7978846
        %v1243 = vmul.f32 %v1239, 0.7978846
        %v1244 = vtanh.pop %v1240
        %v1245 = vtanh.pop %v1241
        %v1246 = vtanh.pop %v1242
        %v1247 = vtanh.pop %v1243
        %v1248 = vadd.f32 %v1244, 1.0
        %v1249 = vadd.f32 %v1245, 1.0
        %v1250 = vadd.f32 %v1246, 1.0
        %v1251 = vadd.f32 %v1247, 1.0
        %v1252 = vmul.f32 %v1248, 0.5
        %v1253 = vmul.f32 %v1249, 0.5
        %v1254 = vmul.f32 %v1250, 0.5
        %v1255 = vmul.f32 %v1251, 0.5
        %v1256 = vmul.f32 %v1220, %v1252
        %v1257 = vmul.f32 %v1221, %v1253
        %v1258 = vmul.f32 %v1222, %v1254
        %v1259 = vmul.f32 %v1223, %v1255
        %s1260 = scalar_lea.vmem %s198, 96
        %1261 = vst.msk [vmem:[%s1260] sm:$0xff] %vm1124, %v1256
        %1262 = vst.msk [vmem:[%s1260 + $0x8] sm:$0xff] %vm1124, %v1257
        %1263 = vst.msk [vmem:[%s1260 + $0x10] sm:$0xff] %vm1124, %v1258
        %1264 = vst.msk [vmem:[%s1260 + $0x18] sm:$0x1] %vm1128, %v1259
        %p1265 = scmp.lt.s32.totalorder %s16, 1
        %s1266 = scalar_select %p1265, %s16, 1
        %s1267 = smul.addr %s1266, 16
        %s1268 = smul.addr %s1267, 8
        %s1269 = scalar_lea.vmem %s3, %s1268
        // Predicated region
        $region41: #{rec_trac_head2.3} parent=31 // pred_check
          %p1270 = pneg %p102
        $region42: #{rec_trac_head2.3} parent=31 // pred_check_branch
          %1272 = sbr.rel (%p1270) target = $region44
        $region43: #{rec_trac_head2.3} parent=31 // pred_region
          _
        $region44: #{rec_trac_head2.3} parent=31 // pred_fallthru
          _
      $region32: #{rec_trac_head2.3} parent=5 // pred_fallthru
        _
      %p1273 = scmp.le.s32.totalorder 2, %s11
      // Predicated region
      $region45: #{rec_trac_head2.3} parent=5 // pred_check
        %p1274 = pneg %p1273
      $region46: #{rec_trac_head2.3} parent=5 // pred_check_branch
        %1276 = sbr.rel (%p1274) target = $region48
      $region47: #{rec_trac_head2.3} parent=5 // pred_region
        %s1277 = ssub.s32 %s11, 2
        // Predicated region
        $region49: #{rec_trac_head2.3} parent=47 // pred_check
          %p1278 = pneg %p108
        $region50: #{rec_trac_head2.3} parent=47 // pred_check_branch
          %1280 = sbr.rel (%p1278) target = $region52
        $region51: #{rec_trac_head2.3} parent=47 // pred_region
          %p1281 = scmp.lt.s32.totalorder %s17, 1
          %s1282 = scalar_select %p1281, %s17, 1
          %s1283 = smul.addr %s1282, 16
          %s1284 = smul.addr %s1283, 8
          %s1285 = scalar_lea.vmem %s3, %s1284
        $region52: #{rec_trac_head2.3} parent=47 // pred_fallthru
          _
      $region48: #{rec_trac_head2.3} parent=5 // pred_fallthru
        _
    $region6: #{rec_trac_head2.3} parent=1 // loop_footer
      %s15 = sadd.s32 1, %s11
    $region7: #{rec_trac_head2.3} parent=1 // loop_footer_branch
      %10 = sbr.rel target = $region3
    $region8: #{rec_trac_head2.3} parent=1 // loop_exit
      _
    %1286 = vsyncpa [#allocation3], 1
    %s1287 = scalar_lea.sflag [#allocation3], 1
    %1288 = vsyncpa %s1287, 1
    %1289 = vsyncpa [#allocation5], 1

// kernel: rec_trac_head2.4
$region0: #{rec_trac_head2.4}
  #allocation0 [shape = 'u32[]', space=smem, size = 0x4, offset = 0x4, fixed_abs, tag = 'smem constant byte address 0x4 - core index']
  #allocation1 [shape = 'u32[144,128]{1,0:T(1,128)}', space=vmem, size = 0x12000, scoped, tag = 'internal scratch']
  %s0 = inlined_call_operand.vmem [shape: f32[2,91,64], index: 0, kind: input, shape index: {}]
  %s1 = inlined_call_operand.vmem [shape: f32[3,3,64,32], index: 1, kind: input, shape index: {}]
  %s2 = inlined_call_operand.vmem [shape: f32[1,32], index: 2, kind: input, shape index: {}]
  %s3 = inlined_call_operand.vmem [shape: f32[2,4,81,32], index: 3, kind: output, shape index: {}]
  %s4 = sld [smem:[#allocation0]]
  $region45: #{rec_trac_head2.4} parent=0
    _
  %s6 = ssub.s32 1, %s4
  %s7 = scalar_select 0, %s6, %s4
  loop: start=0, step=1, limit=4
  $region2: #{rec_trac_head2.4} parent=0 // loop_pre_header
    _
  $region3: #{rec_trac_head2.4} parent=0 // loop_header
    %s9 = sphi 0, %s13
    %p10 = scmp.ge.s32.totalorder %s9, 4
    %s19 = sphi 0, %s21
    %s22 = sphi 0, %s19
    %s23 = sphi 0, %s22
    %s39 = sphi 0, %s23
    %s43 = sphi 0, %s43
    %s45 = sphi 0, %s43
    %s46 = sphi 0, %s45
    %s60 = sphi 0, %s46
    %s64 = sphi 0, %s64
    %s66 = sphi 0, %s64
    %s67 = sphi 0, %s66
    %s81 = sphi 0, %s67
    %s87 = sphi 0, %s89
    %s90 = sphi 0, %s87
    %s91 = sphi 0, %s90
    %s107 = sphi 0, %s91
  $region4: #{rec_trac_head2.4} parent=0 // loop_header_branch
    %12 = sbr.rel (%p10) target = $region8
  $region5: #{rec_trac_head2.4} parent=0 // loop_body
    %s14 = ssub.s32 %s9, 1
    %s15 = ssub.s32 %s9, 2
    %s16 = sadd.s32 %s9, 1
    %s17 = ssub.s32 %s9, %s16
    %p18 = scmp.eq.s32.totalorder %s17, 0
    %s20 = sadd.s32 %s19, 1
    %s21 = scalar_select %p18, %s19, %s20
    %p24 = pneg %p18
    %p25 = scmp.eq.s32.totalorder %s9, 1
    %p26 = por %p24, %p25
    %p27 = scmp.ne.s32.totalorder %s19, %s22
    %p28 = scmp.eq.s32.totalorder %s9, 0
    %p29 = por %p27, %p28
    %p30 = scmp.ne.s32.totalorder %s19, %s22
    %p31 = scmp.eq.s32.totalorder %s14, 1
    %p32 = por %p30, %p31
    %p33 = scmp.ne.s32.totalorder %s22, %s23
    %p34 = scmp.eq.s32.totalorder %s14, 0
    %p35 = por %p33, %p34
    %p36 = scmp.ne.s32.totalorder %s22, %s23
    %p37 = scmp.eq.s32.totalorder %s15, 1
    %p38 = por %p36, %p37
    %p40 = scmp.ne.s32.totalorder %s23, %s39
    %p41 = scmp.eq.s32.totalorder %s15, 0
    %p42 = por %p40, %p41
    %s44 = sadd.s32 %s43, 1
    %p47 = scmp.eq.s32.totalorder %s9, 1
    %p48 = scmp.ne.s32.totalorder %s43, %s45
    %p49 = scmp.eq.s32.totalorder %s9, 0
    %p50 = por %p48, %p49
    %p51 = scmp.ne.s32.totalorder %s43, %s45
    %p52 = scmp.eq.s32.totalorder %s14, 1
    %p53 = por %p51, %p52
    %p54 = scmp.ne.s32.totalorder %s45, %s46
    %p55 = scmp.eq.s32.totalorder %s14, 0
    %p56 = por %p54, %p55
    %p57 = scmp.ne.s32.totalorder %s45, %s46
    %p58 = scmp.eq.s32.totalorder %s15, 1
    %p59 = por %p57, %p58
    %p61 = scmp.ne.s32.totalorder %s46, %s60
    %p62 = scmp.eq.s32.totalorder %s15, 0
    %p63 = por %p61, %p62
    %s65 = sadd.s32 %s64, 1
    %p68 = scmp.eq.s32.totalorder %s9, 1
    %p69 = scmp.ne.s32.totalorder %s64, %s66
    %p70 = scmp.eq.s32.totalorder %s9, 0
    %p71 = por %p69, %p70
    %p72 = scmp.ne.s32.totalorder %s64, %s66
    %p73 = scmp.eq.s32.totalorder %s14, 1
    %p74 = por %p72, %p73
    %p75 = scmp.ne.s32.totalorder %s66, %s67
    %p76 = scmp.eq.s32.totalorder %s14, 0
    %p77 = por %p75, %p76
    %p78 = scmp.ne.s32.totalorder %s66, %s67
    %p79 = scmp.eq.s32.totalorder %s15, 1
    %p80 = por %p78, %p79
    %p82 = scmp.ne.s32.totalorder %s67, %s81
    %p83 = scmp.eq.s32.totalorder %s15, 0
    %p84 = por %p82, %p83
    %s85 = ssub.s32 %s9, %s16
    %p86 = scmp.eq.s32.totalorder %s85, 0
    %s88 = sadd.s32 %s87, 1
    %s89 = scalar_select %p86, %s87, %s88
    %p92 = pneg %p86
    %p93 = scmp.eq.s32.totalorder %s9, 1
    %p94 = por %p92, %p93
    %p95 = scmp.ne.s32.totalorder %s87, %s90
    %p96 = scmp.eq.s32.totalorder %s9, 0
    %p97 = por %p95, %p96
    %p98 = scmp.ne.s32.totalorder %s87, %s90
    %p99 = scmp.eq.s32.totalorder %s14, 1
    %p100 = por %p98, %p99
    %p101 = scmp.ne.s32.totalorder %s90, %s91
    %p102 = scmp.eq.s32.totalorder %s14, 0
    %p103 = por %p101, %p102
    %p104 = scmp.ne.s32.totalorder %s90, %s91
    %p105 = scmp.eq.s32.totalorder %s15, 1
    %p106 = por %p104, %p105
    %p108 = scmp.ne.s32.totalorder %s91, %s107
    %p109 = scmp.eq.s32.totalorder %s15, 0
    %p110 = por %p108, %p109
    %p111 = scmp.le.s32.totalorder 1, %s9
    %p112 = scmp.lt.s32.totalorder %s9, 3
    %p113 = pnand %p111, %p112
    %p114 = pneg %p113
    // Predicated region
    $region9: #{rec_trac_head2.4} parent=5 // pred_check
      _
    $region10: #{rec_trac_head2.4} parent=5 // pred_check_branch
      %116 = sbr.rel (%p113) target = $region12
    $region11: #{rec_trac_head2.4} parent=5 // pred_region
      %s117 = ssub.s32 %s9, 1
      // Predicated region
      $region13: #{rec_trac_head2.4} parent=11 // pred_check
        %p118 = pneg %p56
      $region14: #{rec_trac_head2.4} parent=11 // pred_check_branch
        %120 = sbr.rel (%p118) target = $region16
      $region15: #{rec_trac_head2.4} parent=11 // pred_region
        _
      $region16: #{rec_trac_head2.4} parent=11 // pred_fallthru
        _
      // Predicated region
      $region17: #{rec_trac_head2.4} parent=11 // pred_check
        %p121 = pneg %p77
      $region18: #{rec_trac_head2.4} parent=11 // pred_check_branch
        %123 = sbr.rel (%p121) target = $region20
      $region19: #{rec_trac_head2.4} parent=11 // pred_region
        _
      $region20: #{rec_trac_head2.4} parent=11 // pred_fallthru
        _
    $region12: #{rec_trac_head2.4} parent=5 // pred_fallthru
      _
    %p124 = scmp.lt.s32.totalorder %s9, 2
    // Predicated region
    $region21: #{rec_trac_head2.4} parent=5 // pred_check
      %p125 = pneg %p124
    $region22: #{rec_trac_head2.4} parent=5 // pred_check_branch
      %127 = sbr.rel (%p125) target = $region24
    $region23: #{rec_trac_head2.4} parent=5 // pred_region
      // Predicated region
      $region25: #{rec_trac_head2.4} parent=23 // pred_check
        %p128 = pneg %p29
      $region26: #{rec_trac_head2.4} parent=23 // pred_check_branch
        %130 = sbr.rel (%p128) target = $region28
      $region27: #{rec_trac_head2.4} parent=23 // pred_region
        %p131 = scmp.lt.s32.totalorder %s9, 1
        %s132 = scalar_select %p131, %s9, 1
        %s133 = smul.addr %s132, 12
        %s134 = smul.addr %s133, 8
        %s135 = scalar_lea.vmem %s0, %s134
      $region28: #{rec_trac_head2.4} parent=23 // pred_fallthru
        _
    $region24: #{rec_trac_head2.4} parent=5 // pred_fallthru
      _
    %p136 = scmp.le.s32.totalorder 1, %s9
    %p137 = scmp.lt.s32.totalorder %s9, 3
    %p138 = pnand %p136, %p137
    %p139 = pneg %p138
    // Predicated region
    $region29: #{rec_trac_head2.4} parent=5 // pred_check
      _
    $region30: #{rec_trac_head2.4} parent=5 // pred_check_branch
      %141 = sbr.rel (%p138) target = $region32
    $region31: #{rec_trac_head2.4} parent=5 // pred_region
      %s142 = ssub.s32 %s9, 1
      %p143 = scmp.lt.s32.totalorder %s14, 1
      %s144 = scalar_select %p143, %s14, 1
      %s145 = smul.addr %s144, 12
      %s146 = smul.addr %s145, 8
      %s147 = scalar_lea.vmem %s0, %s146
      %p148 = pneg %p35
      %p149 = pneg %p32
      %p150 = pneg %p56
      %p151 = pneg %p53
      %p152 = pneg %p77
      %p153 = pneg %p74
      %p154 = pneg %p103
      %p155 = pneg %p100
      %p156 = scmp.lt.s32.totalorder %s14, 1
      %s157 = scalar_select %p156, %s14, 1
      %s158 = smul.addr %s157, 44
      %s159 = smul.addr %s158, 8
      %s160 = scalar_lea.vmem %s3, %s159
      %p161 = scmp.lt.s32.totalorder %s14, 1
      %s162 = scalar_select %p161, %s14, 1
      %s163 = smul.addr %s162, 12
      %s164 = smul.addr %s163, 8
      %s165 = scalar_lea.vmem %s0, %s164
      %p166 = scmp.lt.s32.totalorder %s14, 1
      %s167 = scalar_select %p166, %s14, 1
      %s168 = smul.addr %s167, 44
      %s169 = smul.addr %s168, 8
      %s170 = scalar_lea.vmem %s3, %s169
      %v171 = vld [vmem:[%s2] sm:$0x1]
      %s172 = scalar_lea.vmem %s1, 256
      %v173 = vld [vmem:[%s172] sm:$0xff]
      %v174 = vld [vmem:[%s172 + $0x8] sm:$0xff]
      %v175 = vld [vmem:[%s172 + $0x10] sm:$0xff]
      %v176 = vld [vmem:[%s172 + $0x18] sm:$0xff]
      %v177 = vld [vmem:[%s172 + $0x20] sm:$0xff]
      %v178 = vld [vmem:[%s172 + $0x28] sm:$0xff]
      %v179 = vld [vmem:[%s172 + $0x30] sm:$0xff]
      %v180 = vld [vmem:[%s172 + $0x38] sm:$0xff]
      %s181 = scalar_lea.vmem %s1, 320
      %v182 = vld [vmem:[%s181] sm:$0xff]
      %v183 = vld [vmem:[%s181 + $0x8] sm:$0xff]
      %v184 = vld [vmem:[%s181 + $0x10] sm:$0xff]
      %v185 = vld [vmem:[%s181 + $0x18] sm:$0xff]
      %v186 = vld [vmem:[%s181 + $0x20] sm:$0xff]
      %v187 = vld [vmem:[%s181 + $0x28] sm:$0xff]
      %v188 = vld [vmem:[%s181 + $0x30] sm:$0xff]
      %v189 = vld [vmem:[%s181 + $0x38] sm:$0xff]
      %s190 = scalar_lea.vmem %s1, 192
      %v191 = vld [vmem:[%s190] sm:$0xff]
      %v192 = vld [vmem:[%s190 + $0x8] sm:$0xff]
      %v193 = vld [vmem:[%s190 + $0x10] sm:$0xff]
      %v194 = vld [vmem:[%s190 + $0x18] sm:$0xff]
      %v195 = vld [vmem:[%s190 + $0x20] sm:$0xff]
      %v196 = vld [vmem:[%s190 + $0x28] sm:$0xff]
      %v197 = vld [vmem:[%s190 + $0x30] sm:$0xff]
      %v198 = vld [vmem:[%s190 + $0x38] sm:$0xff]
      %s199 = scalar_lea.vmem %s1, 448
      %v200 = vld [vmem:[%s199] sm:$0xff]
      %v201 = vld [vmem:[%s199 + $0x8] sm:$0xff]
      %v202 = vld [vmem:[%s199 + $0x10] sm:$0xff]
      %v203 = vld [vmem:[%s199 + $0x18] sm:$0xff]
      %v204 = vld [vmem:[%s199 + $0x20] sm:$0xff]
      %v205 = vld [vmem:[%s199 + $0x28] sm:$0xff]
      %v206 = vld [vmem:[%s199 + $0x30] sm:$0xff]
      %v207 = vld [vmem:[%s199 + $0x38] sm:$0xff]
      %s208 = scalar_lea.vmem %s1, 64
      %v209 = vld [vmem:[%s208] sm:$0xff]
      %v210 = vld [vmem:[%s208 + $0x8] sm:$0xff]
      %v211 = vld [vmem:[%s208 + $0x10] sm:$0xff]
      %v212 = vld [vmem:[%s208 + $0x18] sm:$0xff]
      %v213 = vld [vmem:[%s208 + $0x20] sm:$0xff]
      %v214 = vld [vmem:[%s208 + $0x28] sm:$0xff]
      %v215 = vld [vmem:[%s208 + $0x30] sm:$0xff]
      %v216 = vld [vmem:[%s208 + $0x38] sm:$0xff]
      %s217 = scalar_lea.vmem %s1, 512
      %v218 = vld [vmem:[%s217] sm:$0xff]
      %v219 = vld [vmem:[%s217 + $0x8] sm:$0xff]
      %v220 = vld [vmem:[%s217 + $0x10] sm:$0xff]
      %v221 = vld [vmem:[%s217 + $0x18] sm:$0xff]
      %v222 = vld [vmem:[%s217 + $0x20] sm:$0xff]
      %v223 = vld [vmem:[%s217 + $0x28] sm:$0xff]
      %v224 = vld [vmem:[%s217 + $0x30] sm:$0xff]
      %v225 = vld [vmem:[%s217 + $0x38] sm:$0xff]
      %s226 = scalar_lea.vmem %s1, 384
      %v227 = vld [vmem:[%s226] sm:$0xff]
      %v228 = vld [vmem:[%s226 + $0x8] sm:$0xff]
      %v229 = vld [vmem:[%s226 + $0x10] sm:$0xff]
      %v230 = vld [vmem:[%s226 + $0x18] sm:$0xff]
      %v231 = vld [vmem:[%s226 + $0x20] sm:$0xff]
      %v232 = vld [vmem:[%s226 + $0x28] sm:$0xff]
      %v233 = vld [vmem:[%s226 + $0x30] sm:$0xff]
      %v234 = vld [vmem:[%s226 + $0x38] sm:$0xff]
      %s235 = scalar_lea.vmem %s1, 128
      %v236 = vld [vmem:[%s235] sm:$0xff]
      %v237 = vld [vmem:[%s235 + $0x8] sm:$0xff]
      %v238 = vld [vmem:[%s235 + $0x10] sm:$0xff]
      %v239 = vld [vmem:[%s235 + $0x18] sm:$0xff]
      %v240 = vld [vmem:[%s235 + $0x20] sm:$0xff]
      %v241 = vld [vmem:[%s235 + $0x28] sm:$0xff]
      %v242 = vld [vmem:[%s235 + $0x30] sm:$0xff]
      %v243 = vld [vmem:[%s235 + $0x38] sm:$0xff]
      %v244 = vld [vmem:[%s1] sm:$0xff]
      %v245 = vld [vmem:[%s1 + $0x8] sm:$0xff]
      %v246 = vld [vmem:[%s1 + $0x10] sm:$0xff]
      %v247 = vld [vmem:[%s1 + $0x18] sm:$0xff]
      %v248 = vld [vmem:[%s1 + $0x20] sm:$0xff]
      %v249 = vld [vmem:[%s1 + $0x28] sm:$0xff]
      %v250 = vld [vmem:[%s1 + $0x30] sm:$0xff]
      %v251 = vld [vmem:[%s1 + $0x38] sm:$0xff]
      %v252 = vld [vmem:[%s165] sm:$0xff]
      %v253 = vld [vmem:[%s165 + $0x8] sm:$0xff]
      %v254 = vld [vmem:[%s165 + $0x10] sm:$0xff]
      %v255 = vld [vmem:[%s165 + $0x18] sm:$0xff]
      %v256 = vld [vmem:[%s165 + $0x20] sm:$0xff]
      %v257 = vld [vmem:[%s165 + $0x28] sm:$0xff]
      %v258 = vld [vmem:[%s165 + $0x30] sm:$0xff]
      %v259 = vld [vmem:[%s165 + $0x38] sm:$0xff]
      %v260 = vld [vmem:[%s165 + $0x40] sm:$0xff]
      %v261 = vld [vmem:[%s165 + $0x48] sm:$0xff]
      %v262 = vld [vmem:[%s165 + $0x50] sm:$0x1]
      %v263 = vld [vmem:[%s165 + $0x1] sm:$0xff]
      %v264 = vld [vmem:[%s165 + $0x9] sm:$0xff]
      %v265 = vld [vmem:[%s165 + $0x11] sm:$0xff]
      %v266 = vld [vmem:[%s165 + $0x19] sm:$0xff]
      %v267 = vld [vmem:[%s165 + $0x21] sm:$0xff]
      %v268 = vld [vmem:[%s165 + $0x29] sm:$0xff]
      %v269 = vld [vmem:[%s165 + $0x31] sm:$0xff]
      %v270 = vld [vmem:[%s165 + $0x39] sm:$0xff]
      %v271 = vld [vmem:[%s165 + $0x41] sm:$0xff]
      %v272 = vld [vmem:[%s165 + $0x49] sm:$0xff]
      %v273 = vld [vmem:[%s165 + $0x51] sm:$0x1]
      %v274 = vld [vmem:[%s165 + $0x51] sm:$0xff]
      %v275 = vld [vmem:[%s165 + $0x59] sm:$0x1]
      %v276 = vld [vmem:[%s165 + $0xa] sm:$0xff]
      %v277 = vld [vmem:[%s165 + $0x12] sm:$0xff]
      %v278 = vld [vmem:[%s165 + $0x1a] sm:$0xff]
      %v279 = vld [vmem:[%s165 + $0x22] sm:$0xff]
      %v280 = vld [vmem:[%s165 + $0x2a] sm:$0xff]
      %v281 = vld [vmem:[%s165 + $0x32] sm:$0xff]
      %v282 = vld [vmem:[%s165 + $0x3a] sm:$0xff]
      %v283 = vld [vmem:[%s165 + $0x42] sm:$0xff]
      %v284 = vld [vmem:[%s165 + $0x4a] sm:$0xff]
      %v285 = vld [vmem:[%s165 + $0x52] sm:$0xff]
      %v286 = vld [vmem:[%s165 + $0x5a] sm:$0x1]
      %vm287 = vcmask 523264
      %v289 = vsel %vm287, %v263, 0
      %v292 = vsel %vm287, %v264, 0
      %v295 = vsel %vm287, %v265, 0
      %v298 = vsel %vm287, %v266, 0
      %v301 = vsel %vm287, %v267, 0
      %v304 = vsel %vm287, %v268, 0
      %v307 = vsel %vm287, %v269, 0
      %v310 = vsel %vm287, %v270, 0
      %v313 = vsel %vm287, %v271, 0
      %v316 = vsel %vm287, %v272, 0
      %v319 = vsel %vm287, %v273, 0
      %321 = vmatprep.subr.mxu0 0.0
      %322 = vmatpush1.msra.mxu0 0.0
      %323 = vmatprep.subr.mxu0 0.0
      %324 = vmatpush1.msra.mxu0 0.0
      %325 = vmatprep.subr.mxu0 0.0
      %326 = vmatpush1.msra.mxu0 0.0
      %327 = vmatprep.subr.mxu0 0.0
      %328 = vmatpush1.msra.mxu0 0.0
      %329 = vmatprep.subr.mxu0 0.0
      %330 = vmatpush1.msra.mxu0 0.0
      %331 = vmatprep.subr.mxu0 0.0
      %332 = vmatpush1.msra.mxu0 0.0
      %333 = vmatprep.subr.mxu0 0.0
      %334 = vmatpush1.msra.mxu0 0.0
      %335 = vmatprep.subr.mxu0 0.0
      %336 = vmatpush1.msra.mxu0 0.0
      %337 = vmatprep.subr.mxu0 0.0
      %338 = vmatpush1.msra.mxu0 %v198
      %339 = vmatprep.subr.mxu0 0.0
      %340 = vmatpush1.msra.mxu0 %v197
      %341 = vmatprep.subr.mxu0 0.0
      %342 = vmatpush1.msra.mxu0 %v196
      %343 = vmatprep.subr.mxu0 0.0
      %344 = vmatpush1.msra.mxu0 %v195
      %345 = vmatprep.subr.mxu0 0.0
      %346 = vmatpush1.msra.mxu0 %v194
      %347 = vmatprep.subr.mxu0 0.0
      %348 = vmatpush1.msra.mxu0 %v193
      %349 = vmatprep.subr.mxu0 0.0
      %350 = vmatpush1.msra.mxu0 %v192
      %351 = vmatprep.subr.mxu0 0.0
      %352 = vmatpush1.msra.mxu0 %v191
      %353 = vmatprep.subr.mxu0 0.0
      %354 = vmatpush2.msra.mxu0 0.0
      %355 = vmatprep.subr.mxu0 0.0
      %356 = vmatpush2.msra.mxu0 0.0
      %357 = vmatprep.subr.mxu0 0.0
      %358 = vmatpush2.msra.mxu0 0.0
      %359 = vmatprep.subr.mxu0 0.0
      %360 = vmatpush2.msra.mxu0 0.0
      %361 = vmatprep.subr.mxu0 0.0
      %362 = vmatpush2.msra.mxu0 0.0
      %363 = vmatprep.subr.mxu0 0.0
      %364 = vmatpush2.msra.mxu0 0.0
      %365 = vmatprep.subr.mxu0 0.0
      %366 = vmatpush2.msra.mxu0 0.0
      %367 = vmatprep.subr.mxu0 0.0
      %368 = vmatpush2.msra.mxu0 0.0
      %369 = vmatprep.subr.mxu0 0.0
      %370 = vmatpush2.msra.mxu0 0.0
      %371 = vmatprep.subr.mxu0 0.0
      %372 = vmatpush2.msra.mxu0 0.0
      %373 = vmatprep.subr.mxu0 0.0
      %374 = vmatpush2.msra.mxu0 0.0
      %375 = vmatprep.subr.mxu0 0.0
      %376 = vmatpush2.msra.mxu0 0.0
      %377 = vmatprep.subr.mxu0 0.0
      %378 = vmatpush2.msra.mxu0 0.0
      %379 = vmatprep.subr.mxu0 0.0
      %380 = vmatpush2.msra.mxu0 0.0
      %381 = vmatprep.subr.mxu0 0.0
      %382 = vmatpush2.msra.mxu0 0.0
      %383 = vmatprep.subr.mxu0 0.0
      %384 = vmatpush2.msra.mxu0 0.0
      %385 = vmatprep.mubr.f32.mxu0 0.0
      %386 = vmatmul.mubr.f32.gmra.mxu0 %v289
      %v387 = vpop.f32.mrf.mxu0
      %v388 = vadd.f32 0.0, %v387
      %v389 = vpop.f32.mrf.mxu0
      %390 = vmatprep.mubr.f32.mxu0 0.0
      %391 = vmatmul.mubr.f32.gmra.mxu0 %v292
      %v392 = vpop.f32.mrf.mxu0
      %v393 = vadd.f32 0.0, %v392
      %v394 = vpop.f32.mrf.mxu0
      %395 = vmatprep.mubr.f32.mxu0 0.0
      %396 = vmatmul.mubr.f32.gmra.mxu0 %v295
      %v397 = vpop.f32.mrf.mxu0
      %v398 = vadd.f32 0.0, %v397
      %v399 = vpop.f32.mrf.mxu0
      %400 = vmatprep.mubr.f32.mxu0 0.0
      %401 = vmatmul.mubr.f32.gmra.mxu0 %v298
      %v402 = vpop.f32.mrf.mxu0
      %v403 = vadd.f32 0.0, %v402
      %v404 = vpop.f32.mrf.mxu0
      %405 = vmatprep.mubr.f32.mxu0 0.0
      %406 = vmatmul.mubr.f32.gmra.mxu0 %v301
      %v407 = vpop.f32.mrf.mxu0
      %v408 = vadd.f32 0.0, %v407
      %v409 = vpop.f32.mrf.mxu0
      %410 = vmatprep.mubr.f32.mxu0 0.0
      %411 = vmatmul.mubr.f32.gmra.mxu0 %v304
      %v412 = vpop.f32.mrf.mxu0
      %v413 = vadd.f32 0.0, %v412
      %v414 = vpop.f32.mrf.mxu0
      %415 = vmatprep.mubr.f32.mxu0 0.0
      %416 = vmatmul.mubr.f32.gmra.mxu0 %v307
      %v417 = vpop.f32.mrf.mxu0
      %v418 = vadd.f32 0.0, %v417
      %v419 = vpop.f32.mrf.mxu0
      %420 = vmatprep.mubr.f32.mxu0 0.0
      %421 = vmatmul.mubr.f32.gmra.mxu0 %v310
      %v422 = vpop.f32.mrf.mxu0
      %v423 = vadd.f32 0.0, %v422
      %v424 = vpop.f32.mrf.mxu0
      %425 = vmatprep.mubr.f32.mxu0 0.0
      %426 = vmatmul.mubr.f32.gmra.mxu0 %v313
      %v427 = vpop.f32.mrf.mxu0
      %v428 = vadd.f32 0.0, %v427
      %v429 = vpop.f32.mrf.mxu0
      %430 = vmatprep.mubr.f32.mxu0 0.0
      %431 = vmatmul.mubr.f32.gmra.mxu0 %v316
      %v432 = vpop.f32.mrf.mxu0
      %v433 = vadd.f32 0.0, %v432
      %v434 = vpop.f32.mrf.mxu0
      %435 = vmatprep.mubr.f32.mxu0 0.0
      %436 = vmatmul.mubr.f32.gmra.mxu0 %v319
      %v437 = vpop.f32.mrf.mxu0
      %v438 = vadd.f32 0.0, %v437
      %v439 = vpop.f32.mrf.mxu0
      %440 = vdwg.mxu0
      %v442 = vsel %vm287, %v252, 0
      %v445 = vsel %vm287, %v253, 0
      %v448 = vsel %vm287, %v254, 0
      %v451 = vsel %vm287, %v255, 0
      %v454 = vsel %vm287, %v256, 0
      %v457 = vsel %vm287, %v257, 0
      %v460 = vsel %vm287, %v258, 0
      %v463 = vsel %vm287, %v259, 0
      %v466 = vsel %vm287, %v260, 0
      %v469 = vsel %vm287, %v261, 0
      %v472 = vsel %vm287, %v262, 0
      %474 = vmatprep.subr.mxu0 0.0
      %475 = vmatpush1.msra.mxu0 0.0
      %476 = vmatprep.subr.mxu0 0.0
      %477 = vmatpush1.msra.mxu0 0.0
      %478 = vmatprep.subr.mxu0 0.0
      %479 = vmatpush1.msra.mxu0 0.0
      %480 = vmatprep.subr.mxu0 0.0
      %481 = vmatpush1.msra.mxu0 0.0
      %482 = vmatprep.subr.mxu0 0.0
      %483 = vmatpush1.msra.mxu0 0.0
      %484 = vmatprep.subr.mxu0 0.0
      %485 = vmatpush1.msra.mxu0 0.0
      %486 = vmatprep.subr.mxu0 0.0
      %487 = vmatpush1.msra.mxu0 0.0
      %488 = vmatprep.subr.mxu0 0.0
      %489 = vmatpush1.msra.mxu0 0.0
      %490 = vmatprep.subr.mxu0 0.0
      %491 = vmatpush1.msra.mxu0 %v189
      %492 = vmatprep.subr.mxu0 0.0
      %493 = vmatpush1.msra.mxu0 %v188
      %494 = vmatprep.subr.mxu0 0.0
      %495 = vmatpush1.msra.mxu0 %v187
      %496 = vmatprep.subr.mxu0 0.0
      %497 = vmatpush1.msra.mxu0 %v186
      %498 = vmatprep.subr.mxu0 0.0
      %499 = vmatpush1.msra.mxu0 %v185
      %500 = vmatprep.subr.mxu0 0.0
      %501 = vmatpush1.msra.mxu0 %v184
      %502 = vmatprep.subr.mxu0 0.0
      %503 = vmatpush1.msra.mxu0 %v183
      %504 = vmatprep.subr.mxu0 0.0
      %505 = vmatpush1.msra.mxu0 %v182
      %506 = vmatprep.subr.mxu0 0.0
      %507 = vmatpush2.msra.mxu0 0.0
      %508 = vmatprep.subr.mxu0 0.0
      %509 = vmatpush2.msra.mxu0 0.0
      %510 = vmatprep.subr.mxu0 0.0
      %511 = vmatpush2.msra.mxu0 0.0
      %512 = vmatprep.subr.mxu0 0.0
      %513 = vmatpush2.msra.mxu0 0.0
      %514 = vmatprep.subr.mxu0 0.0
      %515 = vmatpush2.msra.mxu0 0.0
      %516 = vmatprep.subr.mxu0 0.0
      %517 = vmatpush2.msra.mxu0 0.0
      %518 = vmatprep.subr.mxu0 0.0
      %519 = vmatpush2.msra.mxu0 0.0
      %520 = vmatprep.subr.mxu0 0.0
      %521 = vmatpush2.msra.mxu0 0.0
      %522 = vmatprep.subr.mxu0 0.0
      %523 = vmatpush2.msra.mxu0 0.0
      %524 = vmatprep.subr.mxu0 0.0
      %525 = vmatpush2.msra.mxu0 0.0
      %526 = vmatprep.subr.mxu0 0.0
      %527 = vmatpush2.msra.mxu0 0.0
      %528 = vmatprep.subr.mxu0 0.0
      %529 = vmatpush2.msra.mxu0 0.0
      %530 = vmatprep.subr.mxu0 0.0
      %531 = vmatpush2.msra.mxu0 0.0
      %532 = vmatprep.subr.mxu0 0.0
      %533 = vmatpush2.msra.mxu0 0.0
      %534 = vmatprep.subr.mxu0 0.0
      %535 = vmatpush2.msra.mxu0 0.0
      %536 = vmatprep.subr.mxu0 0.0
      %537 = vmatpush2.msra.mxu0 0.0
      %538 = vmatprep.mubr.f32.mxu0 0.0
      %539 = vmatmul.mubr.f32.gmra.mxu0 %v442
      %v540 = vpop.f32.mrf.mxu0
      %v541 = vadd.f32 %v388, %v540
      %v542 = vpop.f32.mrf.mxu0
      %543 = vmatprep.mubr.f32.mxu0 0.0
      %544 = vmatmul.mubr.f32.gmra.mxu0 %v445
      %v545 = vpop.f32.mrf.mxu0
      %v546 = vadd.f32 %v393, %v545
      %v547 = vpop.f32.mrf.mxu0
      %548 = vmatprep.mubr.f32.mxu0 0.0
      %549 = vmatmul.mubr.f32.gmra.mxu0 %v448
      %v550 = vpop.f32.mrf.mxu0
      %v551 = vadd.f32 %v398, %v550
      %v552 = vpop.f32.mrf.mxu0
      %553 = vmatprep.mubr.f32.mxu0 0.0
      %554 = vmatmul.mubr.f32.gmra.mxu0 %v451
      %v555 = vpop.f32.mrf.mxu0
      %v556 = vadd.f32 %v403, %v555
      %v557 = vpop.f32.mrf.mxu0
      %558 = vmatprep.mubr.f32.mxu0 0.0
      %559 = vmatmul.mubr.f32.gmra.mxu0 %v454
      %v560 = vpop.f32.mrf.mxu0
      %v561 = vadd.f32 %v408, %v560
      %v562 = vpop.f32.mrf.mxu0
      %563 = vmatprep.mubr.f32.mxu0 0.0
      %564 = vmatmul.mubr.f32.gmra.mxu0 %v457
      %v565 = vpop.f32.mrf.mxu0
      %v566 = vadd.f32 %v413, %v565
      %v567 = vpop.f32.mrf.mxu0
      %568 = vmatprep.mubr.f32.mxu0 0.0
      %569 = vmatmul.mubr.f32.gmra.mxu0 %v460
      %v570 = vpop.f32.mrf.mxu0
      %v571 = vadd.f32 %v418, %v570
      %v572 = vpop.f32.mrf.mxu0
      %573 = vmatprep.mubr.f32.mxu0 0.0
      %574 = vmatmul.mubr.f32.gmra.mxu0 %v463
      %v575 = vpop.f32.mrf.mxu0
      %v576 = vadd.f32 %v423, %v575
      %v577 = vpop.f32.mrf.mxu0
      %578 = vmatprep.mubr.f32.mxu0 0.0
      %579 = vmatmul.mubr.f32.gmra.mxu0 %v466
      %v580 = vpop.f32.mrf.mxu0
      %v581 = vadd.f32 %v428, %v580
      %v582 = vpop.f32.mrf.mxu0
      %583 = vmatprep.mubr.f32.mxu0 0.0
      %584 = vmatmul.mubr.f32.gmra.mxu0 %v469
      %v585 = vpop.f32.mrf.mxu0
      %v586 = vadd.f32 %v433, %v585
      %v587 = vpop.f32.mrf.mxu0
      %588 = vmatprep.mubr.f32.mxu0 0.0
      %589 = vmatmul.mubr.f32.gmra.mxu0 %v472
      %v590 = vpop.f32.mrf.mxu0
      %v591 = vadd.f32 %v438, %v590
      %v592 = vpop.f32.mrf.mxu0
      %593 = vdwg.mxu0
      %v595 = vsel %vm287, %v274, 0
      %v598 = vsel %vm287, %v275, 0
      %600 = vmatprep.subr.mxu0 0.0
      %601 = vmatpush1.msra.mxu0 0.0
      %602 = vmatprep.subr.mxu0 0.0
      %603 = vmatpush1.msra.mxu0 0.0
      %604 = vmatprep.subr.mxu0 0.0
      %605 = vmatpush1.msra.mxu0 0.0
      %606 = vmatprep.subr.mxu0 0.0
      %607 = vmatpush1.msra.mxu0 0.0
      %608 = vmatprep.subr.mxu0 0.0
      %609 = vmatpush1.msra.mxu0 0.0
      %610 = vmatprep.subr.mxu0 0.0
      %611 = vmatpush1.msra.mxu0 0.0
      %612 = vmatprep.subr.mxu0 0.0
      %613 = vmatpush1.msra.mxu0 0.0
      %614 = vmatprep.subr.mxu0 0.0
      %615 = vmatpush1.msra.mxu0 0.0
      %616 = vmatprep.subr.mxu0 0.0
      %617 = vmatpush1.msra.mxu0 %v216
      %618 = vmatprep.subr.mxu0 0.0
      %619 = vmatpush1.msra.mxu0 %v215
      %620 = vmatprep.subr.mxu0 0.0
      %621 = vmatpush1.msra.mxu0 %v214
      %622 = vmatprep.subr.mxu0 0.0
      %623 = vmatpush1.msra.mxu0 %v213
      %624 = vmatprep.subr.mxu0 0.0
      %625 = vmatpush1.msra.mxu0 %v212
      %626 = vmatprep.subr.mxu0 0.0
      %627 = vmatpush1.msra.mxu0 %v211
      %628 = vmatprep.subr.mxu0 0.0
      %629 = vmatpush1.msra.mxu0 %v210
      %630 = vmatprep.subr.mxu0 0.0
      %631 = vmatpush1.msra.mxu0 %v209
      %632 = vmatprep.subr.mxu0 0.0
      %633 = vmatpush2.msra.mxu0 0.0
      %634 = vmatprep.subr.mxu0 0.0
      %635 = vmatpush2.msra.mxu0 0.0
      %636 = vmatprep.subr.mxu0 0.0
      %637 = vmatpush2.msra.mxu0 0.0
      %638 = vmatprep.subr.mxu0 0.0
      %639 = vmatpush2.msra.mxu0 0.0
      %640 = vmatprep.subr.mxu0 0.0
      %641 = vmatpush2.msra.mxu0 0.0
      %642 = vmatprep.subr.mxu0 0.0
      %643 = vmatpush2.msra.mxu0 0.0
      %644 = vmatprep.subr.mxu0 0.0
      %645 = vmatpush2.msra.mxu0 0.0
      %646 = vmatprep.subr.mxu0 0.0
      %647 = vmatpush2.msra.mxu0 0.0
      %648 = vmatprep.subr.mxu0 0.0
      %649 = vmatpush2.msra.mxu0 0.0
      %650 = vmatprep.subr.mxu0 0.0
      %651 = vmatpush2.msra.mxu0 0.0
      %652 = vmatprep.subr.mxu0 0.0
      %653 = vmatpush2.msra.mxu0 0.0
      %654 = vmatprep.subr.mxu0 0.0
      %655 = vmatpush2.msra.mxu0 0.0
      %656 = vmatprep.subr.mxu0 0.0
      %657 = vmatpush2.msra.mxu0 0.0
      %658 = vmatprep.subr.mxu0 0.0
      %659 = vmatpush2.msra.mxu0 0.0
      %660 = vmatprep.subr.mxu0 0.0
      %661 = vmatpush2.msra.mxu0 0.0
      %662 = vmatprep.subr.mxu0 0.0
      %663 = vmatpush2.msra.mxu0 0.0
      %664 = vmatprep.mubr.f32.mxu0 0.0
      %665 = vmatmul.mubr.f32.gmra.mxu0 %v292
      %v666 = vpop.f32.mrf.mxu0
      %v667 = vadd.f32 0.0, %v666
      %v668 = vpop.f32.mrf.mxu0
      %669 = vmatprep.mubr.f32.mxu0 0.0
      %670 = vmatmul.mubr.f32.gmra.mxu0 %v295
      %v671 = vpop.f32.mrf.mxu0
      %v672 = vadd.f32 0.0, %v671
      %v673 = vpop.f32.mrf.mxu0
      %674 = vmatprep.mubr.f32.mxu0 0.0
      %675 = vmatmul.mubr.f32.gmra.mxu0 %v298
      %v676 = vpop.f32.mrf.mxu0
      %v677 = vadd.f32 0.0, %v676
      %v678 = vpop.f32.mrf.mxu0
      %679 = vmatprep.mubr.f32.mxu0 0.0
      %680 = vmatmul.mubr.f32.gmra.mxu0 %v301
      %v681 = vpop.f32.mrf.mxu0
      %v682 = vadd.f32 0.0, %v681
      %v683 = vpop.f32.mrf.mxu0
      %684 = vmatprep.mubr.f32.mxu0 0.0
      %685 = vmatmul.mubr.f32.gmra.mxu0 %v304
      %v686 = vpop.f32.mrf.mxu0
      %v687 = vadd.f32 0.0, %v686
      %v688 = vpop.f32.mrf.mxu0
      %689 = vmatprep.mubr.f32.mxu0 0.0
      %690 = vmatmul.mubr.f32.gmra.mxu0 %v307
      %v691 = vpop.f32.mrf.mxu0
      %v692 = vadd.f32 0.0, %v691
      %v693 = vpop.f32.mrf.mxu0
      %694 = vmatprep.mubr.f32.mxu0 0.0
      %695 = vmatmul.mubr.f32.gmra.mxu0 %v310
      %v696 = vpop.f32.mrf.mxu0
      %v697 = vadd.f32 0.0, %v696
      %v698 = vpop.f32.mrf.mxu0
      %699 = vmatprep.mubr.f32.mxu0 0.0
      %700 = vmatmul.mubr.f32.gmra.mxu0 %v313
      %v701 = vpop.f32.mrf.mxu0
      %v702 = vadd.f32 0.0, %v701
      %v703 = vpop.f32.mrf.mxu0
      %704 = vmatprep.mubr.f32.mxu0 0.0
      %705 = vmatmul.mubr.f32.gmra.mxu0 %v316
      %v706 = vpop.f32.mrf.mxu0
      %v707 = vadd.f32 0.0, %v706
      %v708 = vpop.f32.mrf.mxu0
      %709 = vmatprep.mubr.f32.mxu0 0.0
      %710 = vmatmul.mubr.f32.gmra.mxu0 %v595
      %v711 = vpop.f32.mrf.mxu0
      %v712 = vadd.f32 0.0, %v711
      %v713 = vpop.f32.mrf.mxu0
      %714 = vmatprep.mubr.f32.mxu0 0.0
      %715 = vmatmul.mubr.f32.gmra.mxu0 %v598
      %v716 = vpop.f32.mrf.mxu0
      %v717 = vadd.f32 0.0, %v716
      %v718 = vpop.f32.mrf.mxu0
      %719 = vdwg.mxu0
      %720 = vmatprep.subr.mxu0 0.0
      %721 = vmatpush1.msra.mxu0 0.0
      %722 = vmatprep.subr.mxu0 0.0
      %723 = vmatpush1.msra.mxu0 0.0
      %724 = vmatprep.subr.mxu0 0.0
      %725 = vmatpush1.msra.mxu0 0.0
      %726 = vmatprep.subr.mxu0 0.0
      %727 = vmatpush1.msra.mxu0 0.0
      %728 = vmatprep.subr.mxu0 0.0
      %729 = vmatpush1.msra.mxu0 0.0
      %730 = vmatprep.subr.mxu0 0.0
      %731 = vmatpush1.msra.mxu0 0.0
      %732 = vmatprep.subr.mxu0 0.0
      %733 = vmatpush1.msra.mxu0 0.0
      %734 = vmatprep.subr.mxu0 0.0
      %735 = vmatpush1.msra.mxu0 0.0
      %736 = vmatprep.subr.mxu0 0.0
      %737 = vmatpush1.msra.mxu0 %v207
      %738 = vmatprep.subr.mxu0 0.0
      %739 = vmatpush1.msra.mxu0 %v206
      %740 = vmatprep.subr.mxu0 0.0
      %741 = vmatpush1.msra.mxu0 %v205
      %742 = vmatprep.subr.mxu0 0.0
      %743 = vmatpush1.msra.mxu0 %v204
      %744 = vmatprep.subr.mxu0 0.0
      %745 = vmatpush1.msra.mxu0 %v203
      %746 = vmatprep.subr.mxu0 0.0
      %747 = vmatpush1.msra.mxu0 %v202
      %748 = vmatprep.subr.mxu0 0.0
      %749 = vmatpush1.msra.mxu0 %v201
      %750 = vmatprep.subr.mxu0 0.0
      %751 = vmatpush1.msra.mxu0 %v200
      %752 = vmatprep.subr.mxu0 0.0
      %753 = vmatpush2.msra.mxu0 0.0
      %754 = vmatprep.subr.mxu0 0.0
      %755 = vmatpush2.msra.mxu0 0.0
      %756 = vmatprep.subr.mxu0 0.0
      %757 = vmatpush2.msra.mxu0 0.0
      %758 = vmatprep.subr.mxu0 0.0
      %759 = vmatpush2.msra.mxu0 0.0
      %760 = vmatprep.subr.mxu0 0.0
      %761 = vmatpush2.msra.mxu0 0.0
      %762 = vmatprep.subr.mxu0 0.0
      %763 = vmatpush2.msra.mxu0 0.0
      %764 = vmatprep.subr.mxu0 0.0
      %765 = vmatpush2.msra.mxu0 0.0
      %766 = vmatprep.subr.mxu0 0.0
      %767 = vmatpush2.msra.mxu0 0.0
      %768 = vmatprep.subr.mxu0 0.0
      %769 = vmatpush2.msra.mxu0 0.0
      %770 = vmatprep.subr.mxu0 0.0
      %771 = vmatpush2.msra.mxu0 0.0
      %772 = vmatprep.subr.mxu0 0.0
      %773 = vmatpush2.msra.mxu0 0.0
      %774 = vmatprep.subr.mxu0 0.0
      %775 = vmatpush2.msra.mxu0 0.0
      %776 = vmatprep.subr.mxu0 0.0
      %777 = vmatpush2.msra.mxu0 0.0
      %778 = vmatprep.subr.mxu0 0.0
      %779 = vmatpush2.msra.mxu0 0.0
      %780 = vmatprep.subr.mxu0 0.0
      %781 = vmatpush2.msra.mxu0 0.0
      %782 = vmatprep.subr.mxu0 0.0
      %783 = vmatpush2.msra.mxu0 0.0
      %784 = vmatprep.mubr.f32.mxu0 0.0
      %785 = vmatmul.mubr.f32.gmra.mxu0 %v442
      %v786 = vpop.f32.mrf.mxu0
      %v787 = vadd.f32 %v667, %v786
      %v788 = vpop.f32.mrf.mxu0
      %789 = vmatprep.mubr.f32.mxu0 0.0
      %790 = vmatmul.mubr.f32.gmra.mxu0 %v445
      %v791 = vpop.f32.mrf.mxu0
      %v792 = vadd.f32 %v672, %v791
      %v793 = vpop.f32.mrf.mxu0
      %794 = vmatprep.mubr.f32.mxu0 0.0
      %795 = vmatmul.mubr.f32.gmra.mxu0 %v448
      %v796 = vpop.f32.mrf.mxu0
      %v797 = vadd.f32 %v677, %v796
      %v798 = vpop.f32.mrf.mxu0
      %799 = vmatprep.mubr.f32.mxu0 0.0
      %800 = vmatmul.mubr.f32.gmra.mxu0 %v451
      %v801 = vpop.f32.mrf.mxu0
      %v802 = vadd.f32 %v682, %v801
      %v803 = vpop.f32.mrf.mxu0
      %804 = vmatprep.mubr.f32.mxu0 0.0
      %805 = vmatmul.mubr.f32.gmra.mxu0 %v454
      %v806 = vpop.f32.mrf.mxu0
      %v807 = vadd.f32 %v687, %v806
      %v808 = vpop.f32.mrf.mxu0
      %809 = vmatprep.mubr.f32.mxu0 0.0
      %810 = vmatmul.mubr.f32.gmra.mxu0 %v457
      %v811 = vpop.f32.mrf.mxu0
      %v812 = vadd.f32 %v692, %v811
      %v813 = vpop.f32.mrf.mxu0
      %814 = vmatprep.mubr.f32.mxu0 0.0
      %815 = vmatmul.mubr.f32.gmra.mxu0 %v460
      %v816 = vpop.f32.mrf.mxu0
      %v817 = vadd.f32 %v697, %v816
      %v818 = vpop.f32.mrf.mxu0
      %819 = vmatprep.mubr.f32.mxu0 0.0
      %820 = vmatmul.mubr.f32.gmra.mxu0 %v463
      %v821 = vpop.f32.mrf.mxu0
      %v822 = vadd.f32 %v702, %v821
      %v823 = vpop.f32.mrf.mxu0
      %824 = vmatprep.mubr.f32.mxu0 0.0
      %825 = vmatmul.mubr.f32.gmra.mxu0 %v466
      %v826 = vpop.f32.mrf.mxu0
      %v827 = vadd.f32 %v707, %v826
      %v828 = vpop.f32.mrf.mxu0
      %829 = vmatprep.mubr.f32.mxu0 0.0
      %830 = vmatmul.mubr.f32.gmra.mxu0 %v469
      %v831 = vpop.f32.mrf.mxu0
      %v832 = vadd.f32 %v712, %v831
      %v833 = vpop.f32.mrf.mxu0
      %834 = vmatprep.mubr.f32.mxu0 0.0
      %835 = vmatmul.mubr.f32.gmra.mxu0 %v472
      %v836 = vpop.f32.mrf.mxu0
      %v837 = vadd.f32 %v717, %v836
      %v838 = vpop.f32.mrf.mxu0
      %839 = vdwg.mxu0
      %840 = vmatprep.subr.mxu0 0.0
      %841 = vmatpush1.msra.mxu0 0.0
      %842 = vmatprep.subr.mxu0 0.0
      %843 = vmatpush1.msra.mxu0 0.0
      %844 = vmatprep.subr.mxu0 0.0
      %845 = vmatpush1.msra.mxu0 0.0
      %846 = vmatprep.subr.mxu0 0.0
      %847 = vmatpush1.msra.mxu0 0.0
      %848 = vmatprep.subr.mxu0 0.0
      %849 = vmatpush1.msra.mxu0 0.0
      %850 = vmatprep.subr.mxu0 0.0
      %851 = vmatpush1.msra.mxu0 0.0
      %852 = vmatprep.subr.mxu0 0.0
      %853 = vmatpush1.msra.mxu0 0.0
      %854 = vmatprep.subr.mxu0 0.0
      %855 = vmatpush1.msra.mxu0 0.0
      %856 = vmatprep.subr.mxu0 0.0
      %857 = vmatpush1.msra.mxu0 %v234
      %858 = vmatprep.subr.mxu0 0.0
      %859 = vmatpush1.msra.mxu0 %v233
      %860 = vmatprep.subr.mxu0 0.0
      %861 = vmatpush1.msra.mxu0 %v232
      %862 = vmatprep.subr.mxu0 0.0
      %863 = vmatpush1.msra.mxu0 %v231
      %864 = vmatprep.subr.mxu0 0.0
      %865 = vmatpush1.msra.mxu0 %v230
      %866 = vmatprep.subr.mxu0 0.0
      %867 = vmatpush1.msra.mxu0 %v229
      %868 = vmatprep.subr.mxu0 0.0
      %869 = vmatpush1.msra.mxu0 %v228
      %870 = vmatprep.subr.mxu0 0.0
      %871 = vmatpush1.msra.mxu0 %v227
      %872 = vmatprep.subr.mxu0 0.0
      %873 = vmatpush2.msra.mxu0 0.0
      %874 = vmatprep.subr.mxu0 0.0
      %875 = vmatpush2.msra.mxu0 0.0
      %876 = vmatprep.subr.mxu0 0.0
      %877 = vmatpush2.msra.mxu0 0.0
      %878 = vmatprep.subr.mxu0 0.0
      %879 = vmatpush2.msra.mxu0 0.0
      %880 = vmatprep.subr.mxu0 0.0
      %881 = vmatpush2.msra.mxu0 0.0
      %882 = vmatprep.subr.mxu0 0.0
      %883 = vmatpush2.msra.mxu0 0.0
      %884 = vmatprep.subr.mxu0 0.0
      %885 = vmatpush2.msra.mxu0 0.0
      %886 = vmatprep.subr.mxu0 0.0
      %887 = vmatpush2.msra.mxu0 0.0
      %888 = vmatprep.subr.mxu0 0.0
      %889 = vmatpush2.msra.mxu0 0.0
      %890 = vmatprep.subr.mxu0 0.0
      %891 = vmatpush2.msra.mxu0 0.0
      %892 = vmatprep.subr.mxu0 0.0
      %893 = vmatpush2.msra.mxu0 0.0
      %894 = vmatprep.subr.mxu0 0.0
      %895 = vmatpush2.msra.mxu0 0.0
      %896 = vmatprep.subr.mxu0 0.0
      %897 = vmatpush2.msra.mxu0 0.0
      %898 = vmatprep.subr.mxu0 0.0
      %899 = vmatpush2.msra.mxu0 0.0
      %900 = vmatprep.subr.mxu0 0.0
      %901 = vmatpush2.msra.mxu0 0.0
      %902 = vmatprep.subr.mxu0 0.0
      %903 = vmatpush2.msra.mxu0 0.0
      %904 = vmatprep.mubr.f32.mxu0 0.0
      %905 = vmatmul.mubr.f32.gmra.mxu0 %v289
      %v906 = vpop.f32.mrf.mxu0
      %v907 = vadd.f32 0.0, %v906
      %v908 = vpop.f32.mrf.mxu0
      %909 = vmatprep.mubr.f32.mxu0 0.0
      %910 = vmatmul.mubr.f32.gmra.mxu0 %v292
      %v911 = vpop.f32.mrf.mxu0
      %v912 = vadd.f32 0.0, %v911
      %v913 = vpop.f32.mrf.mxu0
      %914 = vmatprep.mubr.f32.mxu0 0.0
      %915 = vmatmul.mubr.f32.gmra.mxu0 %v295
      %v916 = vpop.f32.mrf.mxu0
      %v917 = vadd.f32 0.0, %v916
      %v918 = vpop.f32.mrf.mxu0
      %919 = vmatprep.mubr.f32.mxu0 0.0
      %920 = vmatmul.mubr.f32.gmra.mxu0 %v298
      %v921 = vpop.f32.mrf.mxu0
      %v922 = vadd.f32 0.0, %v921
      %v923 = vpop.f32.mrf.mxu0
      %924 = vmatprep.mubr.f32.mxu0 0.0
      %925 = vmatmul.mubr.f32.gmra.mxu0 %v301
      %v926 = vpop.f32.mrf.mxu0
      %v927 = vadd.f32 0.0, %v926
      %v928 = vpop.f32.mrf.mxu0
      %929 = vmatprep.mubr.f32.mxu0 0.0
      %930 = vmatmul.mubr.f32.gmra.mxu0 %v304
      %v931 = vpop.f32.mrf.mxu0
      %v932 = vadd.f32 0.0, %v931
      %v933 = vpop.f32.mrf.mxu0
      %934 = vmatprep.mubr.f32.mxu0 0.0
      %935 = vmatmul.mubr.f32.gmra.mxu0 %v307
      %v936 = vpop.f32.mrf.mxu0
      %v937 = vadd.f32 0.0, %v936
      %v938 = vpop.f32.mrf.mxu0
      %939 = vmatprep.mubr.f32.mxu0 0.0
      %940 = vmatmul.mubr.f32.gmra.mxu0 %v310
      %v941 = vpop.f32.mrf.mxu0
      %v942 = vadd.f32 0.0, %v941
      %v943 = vpop.f32.mrf.mxu0
      %944 = vmatprep.mubr.f32.mxu0 0.0
      %945 = vmatmul.mubr.f32.gmra.mxu0 %v313
      %v946 = vpop.f32.mrf.mxu0
      %v947 = vadd.f32 0.0, %v946
      %v948 = vpop.f32.mrf.mxu0
      %949 = vmatprep.mubr.f32.mxu0 0.0
      %950 = vmatmul.mubr.f32.gmra.mxu0 %v316
      %v951 = vpop.f32.mrf.mxu0
      %v952 = vadd.f32 0.0, %v951
      %v953 = vpop.f32.mrf.mxu0
      %954 = vmatprep.mubr.f32.mxu0 0.0
      %955 = vmatmul.mubr.f32.gmra.mxu0 %v319
      %v956 = vpop.f32.mrf.mxu0
      %v957 = vadd.f32 0.0, %v956
      %v958 = vpop.f32.mrf.mxu0
      %959 = vdwg.mxu0
      %960 = vmatprep.subr.mxu0 0.0
      %961 = vmatpush1.msra.mxu0 0.0
      %962 = vmatprep.subr.mxu0 0.0
      %963 = vmatpush1.msra.mxu0 0.0
      %964 = vmatprep.subr.mxu0 0.0
      %965 = vmatpush1.msra.mxu0 0.0
      %966 = vmatprep.subr.mxu0 0.0
      %967 = vmatpush1.msra.mxu0 0.0
      %968 = vmatprep.subr.mxu0 0.0
      %969 = vmatpush1.msra.mxu0 0.0
      %970 = vmatprep.subr.mxu0 0.0
      %971 = vmatpush1.msra.mxu0 0.0
      %972 = vmatprep.subr.mxu0 0.0
      %973 = vmatpush1.msra.mxu0 0.0
      %974 = vmatprep.subr.mxu0 0.0
      %975 = vmatpush1.msra.mxu0 0.0
      %976 = vmatprep.subr.mxu0 0.0
      %977 = vmatpush1.msra.mxu0 %v225
      %978 = vmatprep.subr.mxu0 0.0
      %979 = vmatpush1.msra.mxu0 %v224
      %980 = vmatprep.subr.mxu0 0.0
      %981 = vmatpush1.msra.mxu0 %v223
      %982 = vmatprep.subr.mxu0 0.0
      %983 = vmatpush1.msra.mxu0 %v222
      %984 = vmatprep.subr.mxu0 0.0
      %985 = vmatpush1.msra.mxu0 %v221
      %986 = vmatprep.subr.mxu0 0.0
      %987 = vmatpush1.msra.mxu0 %v220
      %988 = vmatprep.subr.mxu0 0.0
      %989 = vmatpush1.msra.mxu0 %v219
      %990 = vmatprep.subr.mxu0 0.0
      %991 = vmatpush1.msra.mxu0 %v218
      %992 = vmatprep.subr.mxu0 0.0
      %993 = vmatpush2.msra.mxu0 0.0
      %994 = vmatprep.subr.mxu0 0.0
      %995 = vmatpush2.msra.mxu0 0.0
      %996 = vmatprep.subr.mxu0 0.0
      %997 = vmatpush2.msra.mxu0 0.0
      %998 = vmatprep.subr.mxu0 0.0
      %999 = vmatpush2.msra.mxu0 0.0
      %1000 = vmatprep.subr.mxu0 0.0
      %1001 = vmatpush2.msra.mxu0 0.0
      %1002 = vmatprep.subr.mxu0 0.0
      %1003 = vmatpush2.msra.mxu0 0.0
      %1004 = vmatprep.subr.mxu0 0.0
      %1005 = vmatpush2.msra.mxu0 0.0
      %1006 = vmatprep.subr.mxu0 0.0
      %1007 = vmatpush2.msra.mxu0 0.0
      %1008 = vmatprep.subr.mxu0 0.0
      %1009 = vmatpush2.msra.mxu0 0.0
      %1010 = vmatprep.subr.mxu0 0.0
      %1011 = vmatpush2.msra.mxu0 0.0
      %1012 = vmatprep.subr.mxu0 0.0
      %1013 = vmatpush2.msra.mxu0 0.0
      %1014 = vmatprep.subr.mxu0 0.0
      %1015 = vmatpush2.msra.mxu0 0.0
      %1016 = vmatprep.subr.mxu0 0.0
      %1017 = vmatpush2.msra.mxu0 0.0
      %1018 = vmatprep.subr.mxu0 0.0
      %1019 = vmatpush2.msra.mxu0 0.0
      %1020 = vmatprep.subr.mxu0 0.0
      %1021 = vmatpush2.msra.mxu0 0.0
      %1022 = vmatprep.subr.mxu0 0.0
      %1023 = vmatpush2.msra.mxu0 0.0
      %1024 = vmatprep.mubr.f32.mxu0 0.0
      %1025 = vmatmul.mubr.f32.gmra.mxu0 %v442
      %v1026 = vpop.f32.mrf.mxu0
      %v1027 = vadd.f32 %v907, %v1026
      %v1028 = vpop.f32.mrf.mxu0
      %1029 = vmatprep.mubr.f32.mxu0 0.0
      %1030 = vmatmul.mubr.f32.gmra.mxu0 %v445
      %v1031 = vpop.f32.mrf.mxu0
      %v1032 = vadd.f32 %v912, %v1031
      %v1033 = vpop.f32.mrf.mxu0
      %1034 = vmatprep.mubr.f32.mxu0 0.0
      %1035 = vmatmul.mubr.f32.gmra.mxu0 %v448
      %v1036 = vpop.f32.mrf.mxu0
      %v1037 = vadd.f32 %v917, %v1036
      %v1038 = vpop.f32.mrf.mxu0
      %1039 = vmatprep.mubr.f32.mxu0 0.0
      %1040 = vmatmul.mubr.f32.gmra.mxu0 %v451
      %v1041 = vpop.f32.mrf.mxu0
      %v1042 = vadd.f32 %v922, %v1041
      %v1043 = vpop.f32.mrf.mxu0
      %1044 = vmatprep.mubr.f32.mxu0 0.0
      %1045 = vmatmul.mubr.f32.gmra.mxu0 %v454
      %v1046 = vpop.f32.mrf.mxu0
      %v1047 = vadd.f32 %v927, %v1046
      %v1048 = vpop.f32.mrf.mxu0
      %1049 = vmatprep.mubr.f32.mxu0 0.0
      %1050 = vmatmul.mubr.f32.gmra.mxu0 %v457
      %v1051 = vpop.f32.mrf.mxu0
      %v1052 = vadd.f32 %v932, %v1051
      %v1053 = vpop.f32.mrf.mxu0
      %1054 = vmatprep.mubr.f32.mxu0 0.0
      %1055 = vmatmul.mubr.f32.gmra.mxu0 %v460
      %v1056 = vpop.f32.mrf.mxu0
      %v1057 = vadd.f32 %v937, %v1056
      %v1058 = vpop.f32.mrf.mxu0
      %1059 = vmatprep.mubr.f32.mxu0 0.0
      %1060 = vmatmul.mubr.f32.gmra.mxu0 %v463
      %v1061 = vpop.f32.mrf.mxu0
      %v1062 = vadd.f32 %v942, %v1061
      %v1063 = vpop.f32.mrf.mxu0
      %1064 = vmatprep.mubr.f32.mxu0 0.0
      %1065 = vmatmul.mubr.f32.gmra.mxu0 %v466
      %v1066 = vpop.f32.mrf.mxu0
      %v1067 = vadd.f32 %v947, %v1066
      %v1068 = vpop.f32.mrf.mxu0
      %1069 = vmatprep.mubr.f32.mxu0 0.0
      %1070 = vmatmul.mubr.f32.gmra.mxu0 %v469
      %v1071 = vpop.f32.mrf.mxu0
      %v1072 = vadd.f32 %v952, %v1071
      %v1073 = vpop.f32.mrf.mxu0
      %1074 = vmatprep.mubr.f32.mxu0 0.0
      %1075 = vmatmul.mubr.f32.gmra.mxu0 %v472
      %v1076 = vpop.f32.mrf.mxu0
      %v1077 = vadd.f32 %v957, %v1076
      %v1078 = vpop.f32.mrf.mxu0
      %1079 = vdwg.mxu0
      %1080 = vmatprep.subr.mxu0 0.0
      %1081 = vmatpush1.msra.mxu0 0.0
      %1082 = vmatprep.subr.mxu0 0.0
      %1083 = vmatpush1.msra.mxu0 0.0
      %1084 = vmatprep.subr.mxu0 0.0
      %1085 = vmatpush1.msra.mxu0 0.0
      %1086 = vmatprep.subr.mxu0 0.0
      %1087 = vmatpush1.msra.mxu0 0.0
      %1088 = vmatprep.subr.mxu0 0.0
      %1089 = vmatpush1.msra.mxu0 0.0
      %1090 = vmatprep.subr.mxu0 0.0
      %1091 = vmatpush1.msra.mxu0 0.0
      %1092 = vmatprep.subr.mxu0 0.0
      %1093 = vmatpush1.msra.mxu0 0.0
      %1094 = vmatprep.subr.mxu0 0.0
      %1095 = vmatpush1.msra.mxu0 0.0
      %1096 = vmatprep.subr.mxu0 0.0
      %1097 = vmatpush1.msra.mxu0 %v243
      %1098 = vmatprep.subr.mxu0 0.0
      %1099 = vmatpush1.msra.mxu0 %v242
      %1100 = vmatprep.subr.mxu0 0.0
      %1101 = vmatpush1.msra.mxu0 %v241
      %1102 = vmatprep.subr.mxu0 0.0
      %1103 = vmatpush1.msra.mxu0 %v240
      %1104 = vmatprep.subr.mxu0 0.0
      %1105 = vmatpush1.msra.mxu0 %v239
      %1106 = vmatprep.subr.mxu0 0.0
      %1107 = vmatpush1.msra.mxu0 %v238
      %1108 = vmatprep.subr.mxu0 0.0
      %1109 = vmatpush1.msra.mxu0 %v237
      %1110 = vmatprep.subr.mxu0 0.0
      %1111 = vmatpush1.msra.mxu0 %v236
      %1112 = vmatprep.subr.mxu0 0.0
      %1113 = vmatpush2.msra.mxu0 0.0
      %1114 = vmatprep.subr.mxu0 0.0
      %1115 = vmatpush2.msra.mxu0 0.0
      %1116 = vmatprep.subr.mxu0 0.0
      %1117 = vmatpush2.msra.mxu0 0.0
      %1118 = vmatprep.subr.mxu0 0.0
      %1119 = vmatpush2.msra.mxu0 0.0
      %1120 = vmatprep.subr.mxu0 0.0
      %1121 = vmatpush2.msra.mxu0 0.0
      %1122 = vmatprep.subr.mxu0 0.0
      %1123 = vmatpush2.msra.mxu0 0.0
      %1124 = vmatprep.subr.mxu0 0.0
      %1125 = vmatpush2.msra.mxu0 0.0
      %1126 = vmatprep.subr.mxu0 0.0
      %1127 = vmatpush2.msra.mxu0 0.0
      %1128 = vmatprep.subr.mxu0 0.0
      %1129 = vmatpush2.msra.mxu0 0.0
      %1130 = vmatprep.subr.mxu0 0.0
      %1131 = vmatpush2.msra.mxu0 0.0
      %1132 = vmatprep.subr.mxu0 0.0
      %1133 = vmatpush2.msra.mxu0 0.0
      %1134 = vmatprep.subr.mxu0 0.0
      %1135 = vmatpush2.msra.mxu0 0.0
      %1136 = vmatprep.subr.mxu0 0.0
      %1137 = vmatpush2.msra.mxu0 0.0
      %1138 = vmatprep.subr.mxu0 0.0
      %1139 = vmatpush2.msra.mxu0 0.0
      %1140 = vmatprep.subr.mxu0 0.0
      %1141 = vmatpush2.msra.mxu0 0.0
      %1142 = vmatprep.subr.mxu0 0.0
      %1143 = vmatpush2.msra.mxu0 0.0
      %1144 = vmatprep.mubr.f32.mxu0 0.0
      %1145 = vmatmul.mubr.f32.gmra.mxu0 %v292
      %v1146 = vpop.f32.mrf.mxu0
      %v1147 = vadd.f32 0.0, %v1146
      %v1148 = vpop.f32.mrf.mxu0
      %1149 = vmatprep.mubr.f32.mxu0 0.0
      %1150 = vmatmul.mubr.f32.gmra.mxu0 %v295
      %v1151 = vpop.f32.mrf.mxu0
      %v1152 = vadd.f32 0.0, %v1151
      %v1153 = vpop.f32.mrf.mxu0
      %1154 = vmatprep.mubr.f32.mxu0 0.0
      %1155 = vmatmul.mubr.f32.gmra.mxu0 %v298
      %v1156 = vpop.f32.mrf.mxu0
      %v1157 = vadd.f32 0.0, %v1156
      %v1158 = vpop.f32.mrf.mxu0
      %1159 = vmatprep.mubr.f32.mxu0 0.0
      %1160 = vmatmul.mubr.f32.gmra.mxu0 %v301
      %v1161 = vpop.f32.mrf.mxu0
      %v1162 = vadd.f32 0.0, %v1161
      %v1163 = vpop.f32.mrf.mxu0
      %1164 = vmatprep.mubr.f32.mxu0 0.0
      %1165 = vmatmul.mubr.f32.gmra.mxu0 %v304
      %v1166 = vpop.f32.mrf.mxu0
      %v1167 = vadd.f32 0.0, %v1166
      %v1168 = vpop.f32.mrf.mxu0
      %1169 = vmatprep.mubr.f32.mxu0 0.0
      %1170 = vmatmul.mubr.f32.gmra.mxu0 %v307
      %v1171 = vpop.f32.mrf.mxu0
      %v1172 = vadd.f32 0.0, %v1171
      %v1173 = vpop.f32.mrf.mxu0
      %1174 = vmatprep.mubr.f32.mxu0 0.0
      %1175 = vmatmul.mubr.f32.gmra.mxu0 %v310
      %v1176 = vpop.f32.mrf.mxu0
      %v1177 = vadd.f32 0.0, %v1176
      %v1178 = vpop.f32.mrf.mxu0
      %1179 = vmatprep.mubr.f32.mxu0 0.0
      %1180 = vmatmul.mubr.f32.gmra.mxu0 %v313
      %v1181 = vpop.f32.mrf.mxu0
      %v1182 = vadd.f32 0.0, %v1181
      %v1183 = vpop.f32.mrf.mxu0
      %1184 = vmatprep.mubr.f32.mxu0 0.0
      %1185 = vmatmul.mubr.f32.gmra.mxu0 %v316
      %v1186 = vpop.f32.mrf.mxu0
      %v1187 = vadd.f32 0.0, %v1186
      %v1188 = vpop.f32.mrf.mxu0
      %1189 = vmatprep.mubr.f32.mxu0 0.0
      %1190 = vmatmul.mubr.f32.gmra.mxu0 %v595
      %v1191 = vpop.f32.mrf.mxu0
      %v1192 = vadd.f32 0.0, %v1191
      %v1193 = vpop.f32.mrf.mxu0
      %1194 = vmatprep.mubr.f32.mxu0 0.0
      %1195 = vmatmul.mubr.f32.gmra.mxu0 %v598
      %v1196 = vpop.f32.mrf.mxu0
      %v1197 = vadd.f32 0.0, %v1196
      %v1198 = vpop.f32.mrf.mxu0
      %1199 = vdwg.mxu0
      %v1200 = vadd.f32 %v1027, %v1147
      %v1201 = vadd.f32 %v1032, %v1152
      %v1202 = vadd.f32 %v1037, %v1157
      %v1203 = vadd.f32 %v1042, %v1162
      %v1204 = vadd.f32 %v1047, %v1167
      %v1205 = vadd.f32 %v1052, %v1172
      %v1206 = vadd.f32 %v1057, %v1177
      %v1207 = vadd.f32 %v1062, %v1182
      %v1208 = vadd.f32 %v1067, %v1187
      %v1209 = vadd.f32 %v1072, %v1192
      %v1210 = vadd.f32 %v1077, %v1197
      %v1212 = vsel %vm287, %v276, 0
      %v1215 = vsel %vm287, %v277, 0
      %v1218 = vsel %vm287, %v278, 0
      %v1221 = vsel %vm287, %v279, 0
      %v1224 = vsel %vm287, %v280, 0
      %v1227 = vsel %vm287, %v281, 0
      %v1230 = vsel %vm287, %v282, 0
      %v1233 = vsel %vm287, %v283, 0
      %v1236 = vsel %vm287, %v284, 0
      %v1239 = vsel %vm287, %v285, 0
      %v1242 = vsel %vm287, %v286, 0
      %1244 = vmatprep.subr.mxu0 0.0
      %1245 = vmatpush1.msra.mxu0 0.0
      %1246 = vmatprep.subr.mxu0 0.0
      %1247 = vmatpush1.msra.mxu0 0.0
      %1248 = vmatprep.subr.mxu0 0.0
      %1249 = vmatpush1.msra.mxu0 0.0
      %1250 = vmatprep.subr.mxu0 0.0
      %1251 = vmatpush1.msra.mxu0 0.0
      %1252 = vmatprep.subr.mxu0 0.0
      %1253 = vmatpush1.msra.mxu0 0.0
      %1254 = vmatprep.subr.mxu0 0.0
      %1255 = vmatpush1.msra.mxu0 0.0
      %1256 = vmatprep.subr.mxu0 0.0
      %1257 = vmatpush1.msra.mxu0 0.0
      %1258 = vmatprep.subr.mxu0 0.0
      %1259 = vmatpush1.msra.mxu0 0.0
      %1260 = vmatprep.subr.mxu0 0.0
      %1261 = vmatpush1.msra.mxu0 %v251
      %1262 = vmatprep.subr.mxu0 0.0
      %1263 = vmatpush1.msra.mxu0 %v250
      %1264 = vmatprep.subr.mxu0 0.0
      %1265 = vmatpush1.msra.mxu0 %v249
      %1266 = vmatprep.subr.mxu0 0.0
      %1267 = vmatpush1.msra.mxu0 %v248
      %1268 = vmatprep.subr.mxu0 0.0
      %1269 = vmatpush1.msra.mxu0 %v247
      %1270 = vmatprep.subr.mxu0 0.0
      %1271 = vmatpush1.msra.mxu0 %v246
      %1272 = vmatprep.subr.mxu0 0.0
      %1273 = vmatpush1.msra.mxu0 %v245
      %1274 = vmatprep.subr.mxu0 0.0
      %1275 = vmatpush1.msra.mxu0 %v244
      %1276 = vmatprep.subr.mxu0 0.0
      %1277 = vmatpush2.msra.mxu0 0.0
      %1278 = vmatprep.subr.mxu0 0.0
      %1279 = vmatpush2.msra.mxu0 0.0
      %1280 = vmatprep.subr.mxu0 0.0
      %1281 = vmatpush2.msra.mxu0 0.0
      %1282 = vmatprep.subr.mxu0 0.0
      %1283 = vmatpush2.msra.mxu0 0.0
      %1284 = vmatprep.subr.mxu0 0.0
      %1285 = vmatpush2.msra.mxu0 0.0
      %1286 = vmatprep.subr.mxu0 0.0
      %1287 = vmatpush2.msra.mxu0 0.0
      %1288 = vmatprep.subr.mxu0 0.0
      %1289 = vmatpush2.msra.mxu0 0.0
      %1290 = vmatprep.subr.mxu0 0.0
      %1291 = vmatpush2.msra.mxu0 0.0
      %1292 = vmatprep.subr.mxu0 0.0
      %1293 = vmatpush2.msra.mxu0 0.0
      %1294 = vmatprep.subr.mxu0 0.0
      %1295 = vmatpush2.msra.mxu0 0.0
      %1296 = vmatprep.subr.mxu0 0.0
      %1297 = vmatpush2.msra.mxu0 0.0
      %1298 = vmatprep.subr.mxu0 0.0
      %1299 = vmatpush2.msra.mxu0 0.0
      %1300 = vmatprep.subr.mxu0 0.0
      %1301 = vmatpush2.msra.mxu0 0.0
      %1302 = vmatprep.subr.mxu0 0.0
      %1303 = vmatpush2.msra.mxu0 0.0
      %1304 = vmatprep.subr.mxu0 0.0
      %1305 = vmatpush2.msra.mxu0 0.0
      %1306 = vmatprep.subr.mxu0 0.0
      %1307 = vmatpush2.msra.mxu0 0.0
      %1308 = vmatprep.mubr.f32.mxu0 0.0
      %1309 = vmatmul.mubr.f32.gmra.mxu0 %v1212
      %v1310 = vpop.f32.mrf.mxu0
      %v1311 = vadd.f32 0.0, %v1310
      %v1312 = vpop.f32.mrf.mxu0
      %1313 = vmatprep.mubr.f32.mxu0 0.0
      %1314 = vmatmul.mubr.f32.gmra.mxu0 %v1215
      %v1315 = vpop.f32.mrf.mxu0
      %v1316 = vadd.f32 0.0, %v1315
      %v1317 = vpop.f32.mrf.mxu0
      %1318 = vmatprep.mubr.f32.mxu0 0.0
      %1319 = vmatmul.mubr.f32.gmra.mxu0 %v1218
      %v1320 = vpop.f32.mrf.mxu0
      %v1321 = vadd.f32 0.0, %v1320
      %v1322 = vpop.f32.mrf.mxu0
      %1323 = vmatprep.mubr.f32.mxu0 0.0
      %1324 = vmatmul.mubr.f32.gmra.mxu0 %v1221
      %v1325 = vpop.f32.mrf.mxu0
      %v1326 = vadd.f32 0.0, %v1325
      %v1327 = vpop.f32.mrf.mxu0
      %1328 = vmatprep.mubr.f32.mxu0 0.0
      %1329 = vmatmul.mubr.f32.gmra.mxu0 %v1224
      %v1330 = vpop.f32.mrf.mxu0
      %v1331 = vadd.f32 0.0, %v1330
      %v1332 = vpop.f32.mrf.mxu0
      %1333 = vmatprep.mubr.f32.mxu0 0.0
      %1334 = vmatmul.mubr.f32.gmra.mxu0 %v1227
      %v1335 = vpop.f32.mrf.mxu0
      %v1336 = vadd.f32 0.0, %v1335
      %v1337 = vpop.f32.mrf.mxu0
      %1338 = vmatprep.mubr.f32.mxu0 0.0
      %1339 = vmatmul.mubr.f32.gmra.mxu0 %v1230
      %v1340 = vpop.f32.mrf.mxu0
      %v1341 = vadd.f32 0.0, %v1340
      %v1342 = vpop.f32.mrf.mxu0
      %1343 = vmatprep.mubr.f32.mxu0 0.0
      %1344 = vmatmul.mubr.f32.gmra.mxu0 %v1233
      %v1345 = vpop.f32.mrf.mxu0
      %v1346 = vadd.f32 0.0, %v1345
      %v1347 = vpop.f32.mrf.mxu0
      %1348 = vmatprep.mubr.f32.mxu0 0.0
      %1349 = vmatmul.mubr.f32.gmra.mxu0 %v1236
      %v1350 = vpop.f32.mrf.mxu0
      %v1351 = vadd.f32 0.0, %v1350
      %v1352 = vpop.f32.mrf.mxu0
      %1353 = vmatprep.mubr.f32.mxu0 0.0
      %1354 = vmatmul.mubr.f32.gmra.mxu0 %v1239
      %v1355 = vpop.f32.mrf.mxu0
      %v1356 = vadd.f32 0.0, %v1355
      %v1357 = vpop.f32.mrf.mxu0
      %1358 = vmatprep.mubr.f32.mxu0 0.0
      %1359 = vmatmul.mubr.f32.gmra.mxu0 %v1242
      %v1360 = vpop.f32.mrf.mxu0
      %v1361 = vadd.f32 0.0, %v1360
      %v1362 = vpop.f32.mrf.mxu0
      %1363 = vdwg.mxu0
      %v1364 = vadd.f32 %v1200, %v1311
      %v1365 = vadd.f32 %v1201, %v1316
      %v1366 = vadd.f32 %v1202, %v1321
      %v1367 = vadd.f32 %v1203, %v1326
      %v1368 = vadd.f32 %v1204, %v1331
      %v1369 = vadd.f32 %v1205, %v1336
      %v1370 = vadd.f32 %v1206, %v1341
      %v1371 = vadd.f32 %v1207, %v1346
      %v1372 = vadd.f32 %v1208, %v1351
      %v1373 = vadd.f32 %v1209, %v1356
      %v1374 = vadd.f32 %v1210, %v1361
      %v1376 = vlaneseq
      %v1377 = vshrl.u32 %v1376, 7
      %v1378 = vsub.s32 0, %v1377
      %v1379 = vrot.slane %v171, %v1378
      %1381 = vmatprep.subr.mxu0 0.0
      %1382 = vmatpush1.msra.mxu0 0.0
      %1383 = vmatprep.subr.mxu0 0.0
      %1384 = vmatpush1.msra.mxu0 0.0
      %1385 = vmatprep.subr.mxu0 0.0
      %1386 = vmatpush1.msra.mxu0 0.0
      %1387 = vmatprep.subr.mxu0 0.0
      %1388 = vmatpush1.msra.mxu0 0.0
      %1389 = vmatprep.subr.mxu0 0.0
      %1390 = vmatpush1.msra.mxu0 0.0
      %1391 = vmatprep.subr.mxu0 0.0
      %1392 = vmatpush1.msra.mxu0 0.0
      %1393 = vmatprep.subr.mxu0 0.0
      %1394 = vmatpush1.msra.mxu0 0.0
      %1395 = vmatprep.subr.mxu0 0.0
      %1396 = vmatpush1.msra.mxu0 0.0
      %1397 = vmatprep.subr.mxu0 0.0
      %1398 = vmatpush1.msra.mxu0 %v180
      %1399 = vmatprep.subr.mxu0 0.0
      %1400 = vmatpush1.msra.mxu0 %v179
      %1401 = vmatprep.subr.mxu0 0.0
      %1402 = vmatpush1.msra.mxu0 %v178
      %1403 = vmatprep.subr.mxu0 0.0
      %1404 = vmatpush1.msra.mxu0 %v177
      %1405 = vmatprep.subr.mxu0 0.0
      %1406 = vmatpush1.msra.mxu0 %v176
      %1407 = vmatprep.subr.mxu0 0.0
      %1408 = vmatpush1.msra.mxu0 %v175
      %1409 = vmatprep.subr.mxu0 0.0
      %1410 = vmatpush1.msra.mxu0 %v174
      %1411 = vmatprep.subr.mxu0 0.0
      %1412 = vmatpush1.msra.mxu0 %v173
      %1413 = vmatprep.subr.mxu0 0.0
      %1414 = vmatpush2.msra.mxu0 0.0
      %1415 = vmatprep.subr.mxu0 0.0
      %1416 = vmatpush2.msra.mxu0 0.0
      %1417 = vmatprep.subr.mxu0 0.0
      %1418 = vmatpush2.msra.mxu0 0.0
      %1419 = vmatprep.subr.mxu0 0.0
      %1420 = vmatpush2.msra.mxu0 0.0
      %1421 = vmatprep.subr.mxu0 0.0
      %1422 = vmatpush2.msra.mxu0 0.0
      %1423 = vmatprep.subr.mxu0 0.0
      %1424 = vmatpush2.msra.mxu0 0.0
      %1425 = vmatprep.subr.mxu0 0.0
      %1426 = vmatpush2.msra.mxu0 0.0
      %1427 = vmatprep.subr.mxu0 0.0
      %1428 = vmatpush2.msra.mxu0 0.0
      %1429 = vmatprep.subr.mxu0 0.0
      %1430 = vmatpush2.msra.mxu0 0.0
      %1431 = vmatprep.subr.mxu0 0.0
      %1432 = vmatpush2.msra.mxu0 0.0
      %1433 = vmatprep.subr.mxu0 0.0
      %1434 = vmatpush2.msra.mxu0 0.0
      %1435 = vmatprep.subr.mxu0 0.0
      %1436 = vmatpush2.msra.mxu0 0.0
      %1437 = vmatprep.subr.mxu0 0.0
      %1438 = vmatpush2.msra.mxu0 0.0
      %1439 = vmatprep.subr.mxu0 0.0
      %1440 = vmatpush2.msra.mxu0 0.0
      %1441 = vmatprep.subr.mxu0 0.0
      %1442 = vmatpush2.msra.mxu0 0.0
      %1443 = vmatprep.subr.mxu0 0.0
      %1444 = vmatpush2.msra.mxu0 0.0
      %1445 = vmatprep.mubr.f32.mxu0 0.0
      %1446 = vmatmul.mubr.f32.gmra.mxu0 %v442
      %v1447 = vpop.f32.mrf.mxu0
      %v1448 = vadd.f32 %v1379, %v1447
      %v1449 = vpop.f32.mrf.mxu0
      %1450 = vmatprep.mubr.f32.mxu0 0.0
      %1451 = vmatmul.mubr.f32.gmra.mxu0 %v445
      %v1452 = vpop.f32.mrf.mxu0
      %v1453 = vadd.f32 %v1379, %v1452
      %v1454 = vpop.f32.mrf.mxu0
      %1455 = vmatprep.mubr.f32.mxu0 0.0
      %1456 = vmatmul.mubr.f32.gmra.mxu0 %v448
      %v1457 = vpop.f32.mrf.mxu0
      %v1458 = vadd.f32 %v1379, %v1457
      %v1459 = vpop.f32.mrf.mxu0
      %1460 = vmatprep.mubr.f32.mxu0 0.0
      %1461 = vmatmul.mubr.f32.gmra.mxu0 %v451
      %v1462 = vpop.f32.mrf.mxu0
      %v1463 = vadd.f32 %v1379, %v1462
      %v1464 = vpop.f32.mrf.mxu0
      %1465 = vmatprep.mubr.f32.mxu0 0.0
      %1466 = vmatmul.mubr.f32.gmra.mxu0 %v454
      %v1467 = vpop.f32.mrf.mxu0
      %v1468 = vadd.f32 %v1379, %v1467
      %v1469 = vpop.f32.mrf.mxu0
      %1470 = vmatprep.mubr.f32.mxu0 0.0
      %1471 = vmatmul.mubr.f32.gmra.mxu0 %v457
      %v1472 = vpop.f32.mrf.mxu0
      %v1473 = vadd.f32 %v1379, %v1472
      %v1474 = vpop.f32.mrf.mxu0
      %1475 = vmatprep.mubr.f32.mxu0 0.0
      %1476 = vmatmul.mubr.f32.gmra.mxu0 %v460
      %v1477 = vpop.f32.mrf.mxu0
      %v1478 = vadd.f32 %v1379, %v1477
      %v1479 = vpop.f32.mrf.mxu0
      %1480 = vmatprep.mubr.f32.mxu0 0.0
      %1481 = vmatmul.mubr.f32.gmra.mxu0 %v463
      %v1482 = vpop.f32.mrf.mxu0
      %v1483 = vadd.f32 %v1379, %v1482
      %v1484 = vpop.f32.mrf.mxu0
      %1485 = vmatprep.mubr.f32.mxu0 0.0
      %1486 = vmatmul.mubr.f32.gmra.mxu0 %v466
      %v1487 = vpop.f32.mrf.mxu0
      %v1488 = vadd.f32 %v1379, %v1487
      %v1489 = vpop.f32.mrf.mxu0
      %1490 = vmatprep.mubr.f32.mxu0 0.0
      %1491 = vmatmul.mubr.f32.gmra.mxu0 %v469
      %v1492 = vpop.f32.mrf.mxu0
      %v1493 = vadd.f32 %v1379, %v1492
      %v1494 = vpop.f32.mrf.mxu0
      %1495 = vmatprep.mubr.f32.mxu0 0.0
      %1496 = vmatmul.mubr.f32.gmra.mxu0 %v472
      %v1497 = vpop.f32.mrf.mxu0
      %v1498 = vadd.f32 %v1379, %v1497
      %v1499 = vpop.f32.mrf.mxu0
      %1500 = vdwg.mxu0
      %v1501 = vmul.f32 %v1448, %v1448
      %v1502 = vmul.f32 %v1453, %v1453
      %v1503 = vmul.f32 %v1458, %v1458
      %v1504 = vmul.f32 %v1463, %v1463
      %v1505 = vmul.f32 %v1468, %v1468
      %v1506 = vmul.f32 %v1473, %v1473
      %v1507 = vmul.f32 %v1478, %v1478
      %v1508 = vmul.f32 %v1483, %v1483
      %v1509 = vmul.f32 %v1488, %v1488
      %v1510 = vmul.f32 %v1493, %v1493
      %v1511 = vmul.f32 %v1498, %v1498
      %v1512 = vmul.f32 %v1448, %v1501
      %v1513 = vmul.f32 %v1453, %v1502
      %v1514 = vmul.f32 %v1458, %v1503
      %v1515 = vmul.f32 %v1463, %v1504
      %v1516 = vmul.f32 %v1468, %v1505
      %v1517 = vmul.f32 %v1473, %v1506
      %v1518 = vmul.f32 %v1478, %v1507
      %v1519 = vmul.f32 %v1483, %v1508
      %v1520 = vmul.f32 %v1488, %v1509
      %v1521 = vmul.f32 %v1493, %v1510
      %v1522 = vmul.f32 %v1498, %v1511
      %v1523 = vmul.f32 %v1512, 0.044715
      %v1524 = vmul.f32 %v1513, 0.044715
      %v1525 = vmul.f32 %v1514, 0.044715
      %v1526 = vmul.f32 %v1515, 0.044715
      %v1527 = vmul.f32 %v1516, 0.044715
      %v1528 = vmul.f32 %v1517, 0.044715
      %v1529 = vmul.f32 %v1518, 0.044715
      %v1530 = vmul.f32 %v1519, 0.044715
      %v1531 = vmul.f32 %v1520, 0.044715
      %v1532 = vmul.f32 %v1521, 0.044715
      %v1533 = vmul.f32 %v1522, 0.044715
      %v1534 = vadd.f32 %v1448, %v1523
      %v1535 = vadd.f32 %v1453, %v1524
      %v1536 = vadd.f32 %v1458, %v1525
      %v1537 = vadd.f32 %v1463, %v1526
      %v1538 = vadd.f32 %v1468, %v1527
      %v1539 = vadd.f32 %v1473, %v1528
      %v1540 = vadd.f32 %v1478, %v1529
      %v1541 = vadd.f32 %v1483, %v1530
      %v1542 = vadd.f32 %v1488, %v1531
      %v1543 = vadd.f32 %v1493, %v1532
      %v1544 = vadd.f32 %v1498, %v1533
      %v1545 = vmul.f32 %v1534, 0.7978846
      %v1546 = vmul.f32 %v1535, 0.7978846
      %v1547 = vmul.f32 %v1536, 0.7978846
      %v1548 = vmul.f32 %v1537, 0.7978846
      %v1549 = vmul.f32 %v1538, 0.7978846
      %v1550 = vmul.f32 %v1539, 0.7978846
      %v1551 = vmul.f32 %v1540, 0.7978846
      %v1552 = vmul.f32 %v1541, 0.7978846
      %v1553 = vmul.f32 %v1542, 0.7978846
      %v1554 = vmul.f32 %v1543, 0.7978846
      %v1555 = vmul.f32 %v1544, 0.7978846
      %v1556 = vtanh.pop %v1545
      %v1557 = vtanh.pop %v1546
      %v1558 = vtanh.pop %v1547
      %v1559 = vtanh.pop %v1548
      %v1560 = vtanh.pop %v1549
      %v1561 = vtanh.pop %v1550
      %v1562 = vtanh.pop %v1551
      %v1563 = vtanh.pop %v1552
      %v1564 = vtanh.pop %v1553
      %v1565 = vtanh.pop %v1554
      %v1566 = vtanh.pop %v1555
      %v1567 = vadd.f32 %v1556, 1.0
      %v1568 = vadd.f32 %v1557, 1.0
      %v1569 = vadd.f32 %v1558, 1.0
      %v1570 = vadd.f32 %v1559, 1.0
      %v1571 = vadd.f32 %v1560, 1.0
      %v1572 = vadd.f32 %v1561, 1.0
      %v1573 = vadd.f32 %v1562, 1.0
      %v1574 = vadd.f32 %v1563, 1.0
      %v1575 = vadd.f32 %v1564, 1.0
      %v1576 = vadd.f32 %v1565, 1.0
      %v1577 = vadd.f32 %v1566, 1.0
      %v1578 = vmul.f32 %v1567, 0.5
      %v1579 = vmul.f32 %v1568, 0.5
      %v1580 = vmul.f32 %v1569, 0.5
      %v1581 = vmul.f32 %v1570, 0.5
      %v1582 = vmul.f32 %v1571, 0.5
      %v1583 = vmul.f32 %v1572, 0.5
      %v1584 = vmul.f32 %v1573, 0.5
      %v1585 = vmul.f32 %v1574, 0.5
      %v1586 = vmul.f32 %v1575, 0.5
      %v1587 = vmul.f32 %v1576, 0.5
      %v1588 = vmul.f32 %v1577, 0.5
      %v1589 = vmul.f32 %v1448, %v1578
      %v1590 = vmul.f32 %v1453, %v1579
      %v1591 = vmul.f32 %v1458, %v1580
      %v1592 = vmul.f32 %v1463, %v1581
      %v1593 = vmul.f32 %v1468, %v1582
      %v1594 = vmul.f32 %v1473, %v1583
      %v1595 = vmul.f32 %v1478, %v1584
      %v1596 = vmul.f32 %v1483, %v1585
      %v1597 = vmul.f32 %v1488, %v1586
      %v1598 = vmul.f32 %v1493, %v1587
      %v1599 = vmul.f32 %v1498, %v1588
      %vm1600 = vcmask 261120
      %1601 = vst.msk [vmem:[%s170] sm:$0xff] %vm1600, %v1589
      %1602 = vst.msk [vmem:[%s170 + $0x8] sm:$0xff] %vm1600, %v1590
      %1603 = vst.msk [vmem:[%s170 + $0x10] sm:$0xff] %vm1600, %v1591
      %1604 = vst.msk [vmem:[%s170 + $0x18] sm:$0xff] %vm1600, %v1592
      %1605 = vst.msk [vmem:[%s170 + $0x20] sm:$0xff] %vm1600, %v1593
      %1606 = vst.msk [vmem:[%s170 + $0x28] sm:$0xff] %vm1600, %v1594
      %1607 = vst.msk [vmem:[%s170 + $0x30] sm:$0xff] %vm1600, %v1595
      %1608 = vst.msk [vmem:[%s170 + $0x38] sm:$0xff] %vm1600, %v1596
      %1609 = vst.msk [vmem:[%s170 + $0x40] sm:$0xff] %vm1600, %v1597
      %1610 = vst.msk [vmem:[%s170 + $0x48] sm:$0xff] %vm1600, %v1598
      %vm1611 = vcmask 253952
      %1612 = vst.msk [vmem:[%s170 + $0x50] sm:$0x1] %vm1611, %v1599
      %v1613 = vadd.f32 %v541, %v1379
      %v1614 = vadd.f32 %v546, %v1379
      %v1615 = vadd.f32 %v551, %v1379
      %v1616 = vadd.f32 %v556, %v1379
      %v1617 = vadd.f32 %v561, %v1379
      %v1618 = vadd.f32 %v566, %v1379
      %v1619 = vadd.f32 %v571, %v1379
      %v1620 = vadd.f32 %v576, %v1379
      %v1621 = vadd.f32 %v581, %v1379
      %v1622 = vadd.f32 %v586, %v1379
      %v1623 = vadd.f32 %v591, %v1379
      %v1624 = vmul.f32 %v1613, %v1613
      %v1625 = vmul.f32 %v1614, %v1614
      %v1626 = vmul.f32 %v1615, %v1615
      %v1627 = vmul.f32 %v1616, %v1616
      %v1628 = vmul.f32 %v1617, %v1617
      %v1629 = vmul.f32 %v1618, %v1618
      %v1630 = vmul.f32 %v1619, %v1619
      %v1631 = vmul.f32 %v1620, %v1620
      %v1632 = vmul.f32 %v1621, %v1621
      %v1633 = vmul.f32 %v1622, %v1622
      %v1634 = vmul.f32 %v1623, %v1623
      %v1635 = vmul.f32 %v1613, %v1624
      %v1636 = vmul.f32 %v1614, %v1625
      %v1637 = vmul.f32 %v1615, %v1626
      %v1638 = vmul.f32 %v1616, %v1627
      %v1639 = vmul.f32 %v1617, %v1628
      %v1640 = vmul.f32 %v1618, %v1629
      %v1641 = vmul.f32 %v1619, %v1630
      %v1642 = vmul.f32 %v1620, %v1631
      %v1643 = vmul.f32 %v1621, %v1632
      %v1644 = vmul.f32 %v1622, %v1633
      %v1645 = vmul.f32 %v1623, %v1634
      %v1646 = vmul.f32 %v1635, 0.044715
      %v1647 = vmul.f32 %v1636, 0.044715
      %v1648 = vmul.f32 %v1637, 0.044715
      %v1649 = vmul.f32 %v1638, 0.044715
      %v1650 = vmul.f32 %v1639, 0.044715
      %v1651 = vmul.f32 %v1640, 0.044715
      %v1652 = vmul.f32 %v1641, 0.044715
      %v1653 = vmul.f32 %v1642, 0.044715
      %v1654 = vmul.f32 %v1643, 0.044715
      %v1655 = vmul.f32 %v1644, 0.044715
      %v1656 = vmul.f32 %v1645, 0.044715
      %v1657 = vadd.f32 %v1613, %v1646
      %v1658 = vadd.f32 %v1614, %v1647
      %v1659 = vadd.f32 %v1615, %v1648
      %v1660 = vadd.f32 %v1616, %v1649
      %v1661 = vadd.f32 %v1617, %v1650
      %v1662 = vadd.f32 %v1618, %v1651
      %v1663 = vadd.f32 %v1619, %v1652
      %v1664 = vadd.f32 %v1620, %v1653
      %v1665 = vadd.f32 %v1621, %v1654
      %v1666 = vadd.f32 %v1622, %v1655
      %v1667 = vadd.f32 %v1623, %v1656
      %v1668 = vmul.f32 %v1657, 0.7978846
      %v1669 = vmul.f32 %v1658, 0.7978846
      %v1670 = vmul.f32 %v1659, 0.7978846
      %v1671 = vmul.f32 %v1660, 0.7978846
      %v1672 = vmul.f32 %v1661, 0.7978846
      %v1673 = vmul.f32 %v1662, 0.7978846
      %v1674 = vmul.f32 %v1663, 0.7978846
      %v1675 = vmul.f32 %v1664, 0.7978846
      %v1676 = vmul.f32 %v1665, 0.7978846
      %v1677 = vmul.f32 %v1666, 0.7978846
      %v1678 = vmul.f32 %v1667, 0.7978846
      %v1679 = vtanh.pop %v1668
      %v1680 = vtanh.pop %v1669
      %v1681 = vtanh.pop %v1670
      %v1682 = vtanh.pop %v1671
      %v1683 = vtanh.pop %v1672
      %v1684 = vtanh.pop %v1673
      %v1685 = vtanh.pop %v1674
      %v1686 = vtanh.pop %v1675
      %v1687 = vtanh.pop %v1676
      %v1688 = vtanh.pop %v1677
      %v1689 = vtanh.pop %v1678
      %v1690 = vadd.f32 %v1679, 1.0
      %v1691 = vadd.f32 %v1680, 1.0
      %v1692 = vadd.f32 %v1681, 1.0
      %v1693 = vadd.f32 %v1682, 1.0
      %v1694 = vadd.f32 %v1683, 1.0
      %v1695 = vadd.f32 %v1684, 1.0
      %v1696 = vadd.f32 %v1685, 1.0
      %v1697 = vadd.f32 %v1686, 1.0
      %v1698 = vadd.f32 %v1687, 1.0
      %v1699 = vadd.f32 %v1688, 1.0
      %v1700 = vadd.f32 %v1689, 1.0
      %v1701 = vmul.f32 %v1690, 0.5
      %v1702 = vmul.f32 %v1691, 0.5
      %v1703 = vmul.f32 %v1692, 0.5
      %v1704 = vmul.f32 %v1693, 0.5
      %v1705 = vmul.f32 %v1694, 0.5
      %v1706 = vmul.f32 %v1695, 0.5
      %v1707 = vmul.f32 %v1696, 0.5
      %v1708 = vmul.f32 %v1697, 0.5
      %v1709 = vmul.f32 %v1698, 0.5
      %v1710 = vmul.f32 %v1699, 0.5
      %v1711 = vmul.f32 %v1700, 0.5
      %v1712 = vmul.f32 %v1613, %v1701
      %v1713 = vmul.f32 %v1614, %v1702
      %v1714 = vmul.f32 %v1615, %v1703
      %v1715 = vmul.f32 %v1616, %v1704
      %v1716 = vmul.f32 %v1617, %v1705
      %v1717 = vmul.f32 %v1618, %v1706
      %v1718 = vmul.f32 %v1619, %v1707
      %v1719 = vmul.f32 %v1620, %v1708
      %v1720 = vmul.f32 %v1621, %v1709
      %v1721 = vmul.f32 %v1622, %v1710
      %v1722 = vmul.f32 %v1623, %v1711
      %s1723 = scalar_lea.vmem %s170, 88
      %1724 = vst.msk [vmem:[%s1723] sm:$0xff] %vm1600, %v1712
      %1725 = vst.msk [vmem:[%s1723 + $0x8] sm:$0xff] %vm1600, %v1713
      %1726 = vst.msk [vmem:[%s1723 + $0x10] sm:$0xff] %vm1600, %v1714
      %1727 = vst.msk [vmem:[%s1723 + $0x18] sm:$0xff] %vm1600, %v1715
      %1728 = vst.msk [vmem:[%s1723 + $0x20] sm:$0xff] %vm1600, %v1716
      %1729 = vst.msk [vmem:[%s1723 + $0x28] sm:$0xff] %vm1600, %v1717
      %1730 = vst.msk [vmem:[%s1723 + $0x30] sm:$0xff] %vm1600, %v1718
      %1731 = vst.msk [vmem:[%s1723 + $0x38] sm:$0xff] %vm1600, %v1719
      %1732 = vst.msk [vmem:[%s1723 + $0x40] sm:$0xff] %vm1600, %v1720
      %1733 = vst.msk [vmem:[%s1723 + $0x48] sm:$0xff] %vm1600, %v1721
      %1734 = vst.msk [vmem:[%s1723 + $0x50] sm:$0x1] %vm1611, %v1722
      %v1735 = vadd.f32 %v787, %v1379
      %v1736 = vadd.f32 %v792, %v1379
      %v1737 = vadd.f32 %v797, %v1379
      %v1738 = vadd.f32 %v802, %v1379
      %v1739 = vadd.f32 %v807, %v1379
      %v1740 = vadd.f32 %v812, %v1379
      %v1741 = vadd.f32 %v817, %v1379
      %v1742 = vadd.f32 %v822, %v1379
      %v1743 = vadd.f32 %v827, %v1379
      %v1744 = vadd.f32 %v832, %v1379
      %v1745 = vadd.f32 %v837, %v1379
      %v1746 = vmul.f32 %v1735, %v1735
      %v1747 = vmul.f32 %v1736, %v1736
      %v1748 = vmul.f32 %v1737, %v1737
      %v1749 = vmul.f32 %v1738, %v1738
      %v1750 = vmul.f32 %v1739, %v1739
      %v1751 = vmul.f32 %v1740, %v1740
      %v1752 = vmul.f32 %v1741, %v1741
      %v1753 = vmul.f32 %v1742, %v1742
      %v1754 = vmul.f32 %v1743, %v1743
      %v1755 = vmul.f32 %v1744, %v1744
      %v1756 = vmul.f32 %v1745, %v1745
      %v1757 = vmul.f32 %v1735, %v1746
      %v1758 = vmul.f32 %v1736, %v1747
      %v1759 = vmul.f32 %v1737, %v1748
      %v1760 = vmul.f32 %v1738, %v1749
      %v1761 = vmul.f32 %v1739, %v1750
      %v1762 = vmul.f32 %v1740, %v1751
      %v1763 = vmul.f32 %v1741, %v1752
      %v1764 = vmul.f32 %v1742, %v1753
      %v1765 = vmul.f32 %v1743, %v1754
      %v1766 = vmul.f32 %v1744, %v1755
      %v1767 = vmul.f32 %v1745, %v1756
      %v1768 = vmul.f32 %v1757, 0.044715
      %v1769 = vmul.f32 %v1758, 0.044715
      %v1770 = vmul.f32 %v1759, 0.044715
      %v1771 = vmul.f32 %v1760, 0.044715
      %v1772 = vmul.f32 %v1761, 0.044715
      %v1773 = vmul.f32 %v1762, 0.044715
      %v1774 = vmul.f32 %v1763, 0.044715
      %v1775 = vmul.f32 %v1764, 0.044715
      %v1776 = vmul.f32 %v1765, 0.044715
      %v1777 = vmul.f32 %v1766, 0.044715
      %v1778 = vmul.f32 %v1767, 0.044715
      %v1779 = vadd.f32 %v1735, %v1768
      %v1780 = vadd.f32 %v1736, %v1769
      %v1781 = vadd.f32 %v1737, %v1770
      %v1782 = vadd.f32 %v1738, %v1771
      %v1783 = vadd.f32 %v1739, %v1772
      %v1784 = vadd.f32 %v1740, %v1773
      %v1785 = vadd.f32 %v1741, %v1774
      %v1786 = vadd.f32 %v1742, %v1775
      %v1787 = vadd.f32 %v1743, %v1776
      %v1788 = vadd.f32 %v1744, %v1777
      %v1789 = vadd.f32 %v1745, %v1778
      %v1790 = vmul.f32 %v1779, 0.7978846
      %v1791 = vmul.f32 %v1780, 0.7978846
      %v1792 = vmul.f32 %v1781, 0.7978846
      %v1793 = vmul.f32 %v1782, 0.7978846
      %v1794 = vmul.f32 %v1783, 0.7978846
      %v1795 = vmul.f32 %v1784, 0.7978846
      %v1796 = vmul.f32 %v1785, 0.7978846
      %v1797 = vmul.f32 %v1786, 0.7978846
      %v1798 = vmul.f32 %v1787, 0.7978846
      %v1799 = vmul.f32 %v1788, 0.7978846
      %v1800 = vmul.f32 %v1789, 0.7978846
      %v1801 = vtanh.pop %v1790
      %v1802 = vtanh.pop %v1791
      %v1803 = vtanh.pop %v1792
      %v1804 = vtanh.pop %v1793
      %v1805 = vtanh.pop %v1794
      %v1806 = vtanh.pop %v1795
      %v1807 = vtanh.pop %v1796
      %v1808 = vtanh.pop %v1797
      %v1809 = vtanh.pop %v1798
      %v1810 = vtanh.pop %v1799
      %v1811 = vtanh.pop %v1800
      %v1812 = vadd.f32 %v1801, 1.0
      %v1813 = vadd.f32 %v1802, 1.0
      %v1814 = vadd.f32 %v1803, 1.0
      %v1815 = vadd.f32 %v1804, 1.0
      %v1816 = vadd.f32 %v1805, 1.0
      %v1817 = vadd.f32 %v1806, 1.0
      %v1818 = vadd.f32 %v1807, 1.0
      %v1819 = vadd.f32 %v1808, 1.0
      %v1820 = vadd.f32 %v1809, 1.0
      %v1821 = vadd.f32 %v1810, 1.0
      %v1822 = vadd.f32 %v1811, 1.0
      %v1823 = vmul.f32 %v1812, 0.5
      %v1824 = vmul.f32 %v1813, 0.5
      %v1825 = vmul.f32 %v1814, 0.5
      %v1826 = vmul.f32 %v1815, 0.5
      %v1827 = vmul.f32 %v1816, 0.5
      %v1828 = vmul.f32 %v1817, 0.5
      %v1829 = vmul.f32 %v1818, 0.5
      %v1830 = vmul.f32 %v1819, 0.5
      %v1831 = vmul.f32 %v1820, 0.5
      %v1832 = vmul.f32 %v1821, 0.5
      %v1833 = vmul.f32 %v1822, 0.5
      %v1834 = vmul.f32 %v1735, %v1823
      %v1835 = vmul.f32 %v1736, %v1824
      %v1836 = vmul.f32 %v1737, %v1825
      %v1837 = vmul.f32 %v1738, %v1826
      %v1838 = vmul.f32 %v1739, %v1827
      %v1839 = vmul.f32 %v1740, %v1828
      %v1840 = vmul.f32 %v1741, %v1829
      %v1841 = vmul.f32 %v1742, %v1830
      %v1842 = vmul.f32 %v1743, %v1831
      %v1843 = vmul.f32 %v1744, %v1832
      %v1844 = vmul.f32 %v1745, %v1833
      %s1845 = scalar_lea.vmem %s170, 176
      %1846 = vst.msk [vmem:[%s1845] sm:$0xff] %vm1600, %v1834
      %1847 = vst.msk [vmem:[%s1845 + $0x8] sm:$0xff] %vm1600, %v1835
      %1848 = vst.msk [vmem:[%s1845 + $0x10] sm:$0xff] %vm1600, %v1836
      %1849 = vst.msk [vmem:[%s1845 + $0x18] sm:$0xff] %vm1600, %v1837
      %1850 = vst.msk [vmem:[%s1845 + $0x20] sm:$0xff] %vm1600, %v1838
      %1851 = vst.msk [vmem:[%s1845 + $0x28] sm:$0xff] %vm1600, %v1839
      %1852 = vst.msk [vmem:[%s1845 + $0x30] sm:$0xff] %vm1600, %v1840
      %1853 = vst.msk [vmem:[%s1845 + $0x38] sm:$0xff] %vm1600, %v1841
      %1854 = vst.msk [vmem:[%s1845 + $0x40] sm:$0xff] %vm1600, %v1842
      %1855 = vst.msk [vmem:[%s1845 + $0x48] sm:$0xff] %vm1600, %v1843
      %1856 = vst.msk [vmem:[%s1845 + $0x50] sm:$0x1] %vm1611, %v1844
      %v1857 = vadd.f32 %v1364, %v1379
      %v1858 = vadd.f32 %v1365, %v1379
      %v1859 = vadd.f32 %v1366, %v1379
      %v1860 = vadd.f32 %v1367, %v1379
      %v1861 = vadd.f32 %v1368, %v1379
      %v1862 = vadd.f32 %v1369, %v1379
      %v1863 = vadd.f32 %v1370, %v1379
      %v1864 = vadd.f32 %v1371, %v1379
      %v1865 = vadd.f32 %v1372, %v1379
      %v1866 = vadd.f32 %v1373, %v1379
      %v1867 = vadd.f32 %v1374, %v1379
      %v1868 = vmul.f32 %v1857, %v1857
      %v1869 = vmul.f32 %v1858, %v1858
      %v1870 = vmul.f32 %v1859, %v1859
      %v1871 = vmul.f32 %v1860, %v1860
      %v1872 = vmul.f32 %v1861, %v1861
      %v1873 = vmul.f32 %v1862, %v1862
      %v1874 = vmul.f32 %v1863, %v1863
      %v1875 = vmul.f32 %v1864, %v1864
      %v1876 = vmul.f32 %v1865, %v1865
      %v1877 = vmul.f32 %v1866, %v1866
      %v1878 = vmul.f32 %v1867, %v1867
      %v1879 = vmul.f32 %v1857, %v1868
      %v1880 = vmul.f32 %v1858, %v1869
      %v1881 = vmul.f32 %v1859, %v1870
      %v1882 = vmul.f32 %v1860, %v1871
      %v1883 = vmul.f32 %v1861, %v1872
      %v1884 = vmul.f32 %v1862, %v1873
      %v1885 = vmul.f32 %v1863, %v1874
      %v1886 = vmul.f32 %v1864, %v1875
      %v1887 = vmul.f32 %v1865, %v1876
      %v1888 = vmul.f32 %v1866, %v1877
      %v1889 = vmul.f32 %v1867, %v1878
      %v1890 = vmul.f32 %v1879, 0.044715
      %v1891 = vmul.f32 %v1880, 0.044715
      %v1892 = vmul.f32 %v1881, 0.044715
      %v1893 = vmul.f32 %v1882, 0.044715
      %v1894 = vmul.f32 %v1883, 0.044715
      %v1895 = vmul.f32 %v1884, 0.044715
      %v1896 = vmul.f32 %v1885, 0.044715
      %v1897 = vmul.f32 %v1886, 0.044715
      %v1898 = vmul.f32 %v1887, 0.044715
      %v1899 = vmul.f32 %v1888, 0.044715
      %v1900 = vmul.f32 %v1889, 0.044715
      %v1901 = vadd.f32 %v1857, %v1890
      %v1902 = vadd.f32 %v1858, %v1891
      %v1903 = vadd.f32 %v1859, %v1892
      %v1904 = vadd.f32 %v1860, %v1893
      %v1905 = vadd.f32 %v1861, %v1894
      %v1906 = vadd.f32 %v1862, %v1895
      %v1907 = vadd.f32 %v1863, %v1896
      %v1908 = vadd.f32 %v1864, %v1897
      %v1909 = vadd.f32 %v1865, %v1898
      %v1910 = vadd.f32 %v1866, %v1899
      %v1911 = vadd.f32 %v1867, %v1900
      %v1912 = vmul.f32 %v1901, 0.7978846
      %v1913 = vmul.f32 %v1902, 0.7978846
      %v1914 = vmul.f32 %v1903, 0.7978846
      %v1915 = vmul.f32 %v1904, 0.7978846
      %v1916 = vmul.f32 %v1905, 0.7978846
      %v1917 = vmul.f32 %v1906, 0.7978846
      %v1918 = vmul.f32 %v1907, 0.7978846
      %v1919 = vmul.f32 %v1908, 0.7978846
      %v1920 = vmul.f32 %v1909, 0.7978846
      %v1921 = vmul.f32 %v1910, 0.7978846
      %v1922 = vmul.f32 %v1911, 0.7978846
      %v1923 = vtanh.pop %v1912
      %v1924 = vtanh.pop %v1913
      %v1925 = vtanh.pop %v1914
      %v1926 = vtanh.pop %v1915
      %v1927 = vtanh.pop %v1916
      %v1928 = vtanh.pop %v1917
      %v1929 = vtanh.pop %v1918
      %v1930 = vtanh.pop %v1919
      %v1931 = vtanh.pop %v1920
      %v1932 = vtanh.pop %v1921
      %v1933 = vtanh.pop %v1922
      %v1934 = vadd.f32 %v1923, 1.0
      %v1935 = vadd.f32 %v1924, 1.0
      %v1936 = vadd.f32 %v1925, 1.0
      %v1937 = vadd.f32 %v1926, 1.0
      %v1938 = vadd.f32 %v1927, 1.0
      %v1939 = vadd.f32 %v1928, 1.0
      %v1940 = vadd.f32 %v1929, 1.0
      %v1941 = vadd.f32 %v1930, 1.0
      %v1942 = vadd.f32 %v1931, 1.0
      %v1943 = vadd.f32 %v1932, 1.0
      %v1944 = vadd.f32 %v1933, 1.0
      %v1945 = vmul.f32 %v1934, 0.5
      %v1946 = vmul.f32 %v1935, 0.5
      %v1947 = vmul.f32 %v1936, 0.5
      %v1948 = vmul.f32 %v1937, 0.5
      %v1949 = vmul.f32 %v1938, 0.5
      %v1950 = vmul.f32 %v1939, 0.5
      %v1951 = vmul.f32 %v1940, 0.5
      %v1952 = vmul.f32 %v1941, 0.5
      %v1953 = vmul.f32 %v1942, 0.5
      %v1954 = vmul.f32 %v1943, 0.5
      %v1955 = vmul.f32 %v1944, 0.5
      %v1956 = vmul.f32 %v1857, %v1945
      %v1957 = vmul.f32 %v1858, %v1946
      %v1958 = vmul.f32 %v1859, %v1947
      %v1959 = vmul.f32 %v1860, %v1948
      %v1960 = vmul.f32 %v1861, %v1949
      %v1961 = vmul.f32 %v1862, %v1950
      %v1962 = vmul.f32 %v1863, %v1951
      %v1963 = vmul.f32 %v1864, %v1952
      %v1964 = vmul.f32 %v1865, %v1953
      %v1965 = vmul.f32 %v1866, %v1954
      %v1966 = vmul.f32 %v1867, %v1955
      %s1967 = scalar_lea.vmem %s170, 264
      %1968 = vst.msk [vmem:[%s1967] sm:$0xff] %vm1600, %v1956
      %1969 = vst.msk [vmem:[%s1967 + $0x8] sm:$0xff] %vm1600, %v1957
      %1970 = vst.msk [vmem:[%s1967 + $0x10] sm:$0xff] %vm1600, %v1958
      %1971 = vst.msk [vmem:[%s1967 + $0x18] sm:$0xff] %vm1600, %v1959
      %1972 = vst.msk [vmem:[%s1967 + $0x20] sm:$0xff] %vm1600, %v1960
      %1973 = vst.msk [vmem:[%s1967 + $0x28] sm:$0xff] %vm1600, %v1961
      %1974 = vst.msk [vmem:[%s1967 + $0x30] sm:$0xff] %vm1600, %v1962
      %1975 = vst.msk [vmem:[%s1967 + $0x38] sm:$0xff] %vm1600, %v1963
      %1976 = vst.msk [vmem:[%s1967 + $0x40] sm:$0xff] %vm1600, %v1964
      %1977 = vst.msk [vmem:[%s1967 + $0x48] sm:$0xff] %vm1600, %v1965
      %1978 = vst.msk [vmem:[%s1967 + $0x50] sm:$0x1] %vm1611, %v1966
      %p1979 = scmp.lt.s32.totalorder %s14, 1
      %s1980 = scalar_select %p1979, %s14, 1
      %s1981 = smul.addr %s1980, 44
      %s1982 = smul.addr %s1981, 8
      %s1983 = scalar_lea.vmem %s3, %s1982
      // Predicated region
      $region33: #{rec_trac_head2.4} parent=31 // pred_check
        %p1984 = pneg %p100
      $region34: #{rec_trac_head2.4} parent=31 // pred_check_branch
        %1986 = sbr.rel (%p1984) target = $region36
      $region35: #{rec_trac_head2.4} parent=31 // pred_region
        _
      $region36: #{rec_trac_head2.4} parent=31 // pred_fallthru
        _
    $region32: #{rec_trac_head2.4} parent=5 // pred_fallthru
      _
    %p1987 = scmp.le.s32.totalorder 2, %s9
    // Predicated region
    $region37: #{rec_trac_head2.4} parent=5 // pred_check
      %p1988 = pneg %p1987
    $region38: #{rec_trac_head2.4} parent=5 // pred_check_branch
      %1990 = sbr.rel (%p1988) target = $region40
    $region39: #{rec_trac_head2.4} parent=5 // pred_region
      %s1991 = ssub.s32 %s9, 2
      // Predicated region
      $region41: #{rec_trac_head2.4} parent=39 // pred_check
        %p1992 = pneg %p106
      $region42: #{rec_trac_head2.4} parent=39 // pred_check_branch
        %1994 = sbr.rel (%p1992) target = $region44
      $region43: #{rec_trac_head2.4} parent=39 // pred_region
        %p1995 = scmp.lt.s32.totalorder %s15, 1
        %s1996 = scalar_select %p1995, %s15, 1
        %s1997 = smul.addr %s1996, 44
        %s1998 = smul.addr %s1997, 8
        %s1999 = scalar_lea.vmem %s3, %s1998
      $region44: #{rec_trac_head2.4} parent=39 // pred_fallthru
        _
    $region40: #{rec_trac_head2.4} parent=5 // pred_fallthru
      _
  $region6: #{rec_trac_head2.4} parent=0 // loop_footer
    %s13 = sadd.s32 1, %s9
  $region7: #{rec_trac_head2.4} parent=0 // loop_footer_branch
    %8 = sbr.rel target = $region3
  $region8: #{rec_trac_head2.4} parent=0 // loop_exit
    _

// kernel: rec_trac_head2.5
$region0: #{rec_trac_head2.5}
  #allocation0 [shape = 'u32[]', space=smem, size = 0x4, offset = 0x4, fixed_abs, tag = 'smem constant byte address 0x4 - core index']
  #allocation1 [shape = 'u32[144,128]{1,0:T(1,128)}', space=vmem, size = 0x12000, scoped, tag = 'internal scratch']
  %s0 = inlined_call_operand.vmem [shape: f32[2,307,32], index: 0, kind: input, shape index: {}]
  %s1 = inlined_call_operand.vmem [shape: f32[3,3,32,2], index: 1, kind: input, shape index: {}]
  %s2 = inlined_call_operand.vmem [shape: f32[1,2], index: 2, kind: input, shape index: {}]
  %s3 = inlined_call_operand.vmem [shape: f32[2,4,289,2], index: 3, kind: output, shape index: {}]
  %s4 = sld [smem:[#allocation0]]
  $region45: #{rec_trac_head2.5} parent=0
    _
  %s6 = ssub.s32 1, %s4
  %s7 = scalar_select 0, %s6, %s4
  loop: start=0, step=1, limit=4
  $region2: #{rec_trac_head2.5} parent=0 // loop_pre_header
    _
  $region3: #{rec_trac_head2.5} parent=0 // loop_header
    %s9 = sphi 0, %s13
    %p10 = scmp.ge.s32.totalorder %s9, 4
    %s19 = sphi 0, %s21
    %s22 = sphi 0, %s19
    %s23 = sphi 0, %s22
    %s39 = sphi 0, %s23
    %s43 = sphi 0, %s43
    %s45 = sphi 0, %s43
    %s46 = sphi 0, %s45
    %s60 = sphi 0, %s46
    %s64 = sphi 0, %s64
    %s66 = sphi 0, %s64
    %s67 = sphi 0, %s66
    %s81 = sphi 0, %s67
    %s87 = sphi 0, %s89
    %s90 = sphi 0, %s87
    %s91 = sphi 0, %s90
    %s107 = sphi 0, %s91
  $region4: #{rec_trac_head2.5} parent=0 // loop_header_branch
    %12 = sbr.rel (%p10) target = $region8
  $region5: #{rec_trac_head2.5} parent=0 // loop_body
    %s14 = ssub.s32 %s9, 1
    %s15 = ssub.s32 %s9, 2
    %s16 = sadd.s32 %s9, 1
    %s17 = ssub.s32 %s9, %s16
    %p18 = scmp.eq.s32.totalorder %s17, 0
    %s20 = sadd.s32 %s19, 1
    %s21 = scalar_select %p18, %s19, %s20
    %p24 = pneg %p18
    %p25 = scmp.eq.s32.totalorder %s9, 1
    %p26 = por %p24, %p25
    %p27 = scmp.ne.s32.totalorder %s19, %s22
    %p28 = scmp.eq.s32.totalorder %s9, 0
    %p29 = por %p27, %p28
    %p30 = scmp.ne.s32.totalorder %s19, %s22
    %p31 = scmp.eq.s32.totalorder %s14, 1
    %p32 = por %p30, %p31
    %p33 = scmp.ne.s32.totalorder %s22, %s23
    %p34 = scmp.eq.s32.totalorder %s14, 0
    %p35 = por %p33, %p34
    %p36 = scmp.ne.s32.totalorder %s22, %s23
    %p37 = scmp.eq.s32.totalorder %s15, 1
    %p38 = por %p36, %p37
    %p40 = scmp.ne.s32.totalorder %s23, %s39
    %p41 = scmp.eq.s32.totalorder %s15, 0
    %p42 = por %p40, %p41
    %s44 = sadd.s32 %s43, 1
    %p47 = scmp.eq.s32.totalorder %s9, 1
    %p48 = scmp.ne.s32.totalorder %s43, %s45
    %p49 = scmp.eq.s32.totalorder %s9, 0
    %p50 = por %p48, %p49
    %p51 = scmp.ne.s32.totalorder %s43, %s45
    %p52 = scmp.eq.s32.totalorder %s14, 1
    %p53 = por %p51, %p52
    %p54 = scmp.ne.s32.totalorder %s45, %s46
    %p55 = scmp.eq.s32.totalorder %s14, 0
    %p56 = por %p54, %p55
    %p57 = scmp.ne.s32.totalorder %s45, %s46
    %p58 = scmp.eq.s32.totalorder %s15, 1
    %p59 = por %p57, %p58
    %p61 = scmp.ne.s32.totalorder %s46, %s60
    %p62 = scmp.eq.s32.totalorder %s15, 0
    %p63 = por %p61, %p62
    %s65 = sadd.s32 %s64, 1
    %p68 = scmp.eq.s32.totalorder %s9, 1
    %p69 = scmp.ne.s32.totalorder %s64, %s66
    %p70 = scmp.eq.s32.totalorder %s9, 0
    %p71 = por %p69, %p70
    %p72 = scmp.ne.s32.totalorder %s64, %s66
    %p73 = scmp.eq.s32.totalorder %s14, 1
    %p74 = por %p72, %p73
    %p75 = scmp.ne.s32.totalorder %s66, %s67
    %p76 = scmp.eq.s32.totalorder %s14, 0
    %p77 = por %p75, %p76
    %p78 = scmp.ne.s32.totalorder %s66, %s67
    %p79 = scmp.eq.s32.totalorder %s15, 1
    %p80 = por %p78, %p79
    %p82 = scmp.ne.s32.totalorder %s67, %s81
    %p83 = scmp.eq.s32.totalorder %s15, 0
    %p84 = por %p82, %p83
    %s85 = ssub.s32 %s9, %s16
    %p86 = scmp.eq.s32.totalorder %s85, 0
    %s88 = sadd.s32 %s87, 1
    %s89 = scalar_select %p86, %s87, %s88
    %p92 = pneg %p86
    %p93 = scmp.eq.s32.totalorder %s9, 1
    %p94 = por %p92, %p93
    %p95 = scmp.ne.s32.totalorder %s87, %s90
    %p96 = scmp.eq.s32.totalorder %s9, 0
    %p97 = por %p95, %p96
    %p98 = scmp.ne.s32.totalorder %s87, %s90
    %p99 = scmp.eq.s32.totalorder %s14, 1
    %p100 = por %p98, %p99
    %p101 = scmp.ne.s32.totalorder %s90, %s91
    %p102 = scmp.eq.s32.totalorder %s14, 0
    %p103 = por %p101, %p102
    %p104 = scmp.ne.s32.totalorder %s90, %s91
    %p105 = scmp.eq.s32.totalorder %s15, 1
    %p106 = por %p104, %p105
    %p108 = scmp.ne.s32.totalorder %s91, %s107
    %p109 = scmp.eq.s32.totalorder %s15, 0
    %p110 = por %p108, %p109
    %p111 = scmp.le.s32.totalorder 1, %s9
    %p112 = scmp.lt.s32.totalorder %s9, 3
    %p113 = pnand %p111, %p112
    %p114 = pneg %p113
    // Predicated region
    $region9: #{rec_trac_head2.5} parent=5 // pred_check
      _
    $region10: #{rec_trac_head2.5} parent=5 // pred_check_branch
      %116 = sbr.rel (%p113) target = $region12
    $region11: #{rec_trac_head2.5} parent=5 // pred_region
      %s117 = ssub.s32 %s9, 1
      // Predicated region
      $region13: #{rec_trac_head2.5} parent=11 // pred_check
        %p118 = pneg %p56
      $region14: #{rec_trac_head2.5} parent=11 // pred_check_branch
        %120 = sbr.rel (%p118) target = $region16
      $region15: #{rec_trac_head2.5} parent=11 // pred_region
        _
      $region16: #{rec_trac_head2.5} parent=11 // pred_fallthru
        _
      // Predicated region
      $region17: #{rec_trac_head2.5} parent=11 // pred_check
        %p121 = pneg %p77
      $region18: #{rec_trac_head2.5} parent=11 // pred_check_branch
        %123 = sbr.rel (%p121) target = $region20
      $region19: #{rec_trac_head2.5} parent=11 // pred_region
        _
      $region20: #{rec_trac_head2.5} parent=11 // pred_fallthru
        _
    $region12: #{rec_trac_head2.5} parent=5 // pred_fallthru
      _
    %p124 = scmp.lt.s32.totalorder %s9, 2
    // Predicated region
    $region21: #{rec_trac_head2.5} parent=5 // pred_check
      %p125 = pneg %p124
    $region22: #{rec_trac_head2.5} parent=5 // pred_check_branch
      %127 = sbr.rel (%p125) target = $region24
    $region23: #{rec_trac_head2.5} parent=5 // pred_region
      // Predicated region
      $region25: #{rec_trac_head2.5} parent=23 // pred_check
        %p128 = pneg %p29
      $region26: #{rec_trac_head2.5} parent=23 // pred_check_branch
        %130 = sbr.rel (%p128) target = $region28
      $region27: #{rec_trac_head2.5} parent=23 // pred_region
        %p131 = scmp.lt.s32.totalorder %s9, 1
        %s132 = scalar_select %p131, %s9, 1
        %s133 = smul.addr %s132, 39
        %s134 = smul.addr %s133, 8
        %s135 = scalar_lea.vmem %s0, %s134
      $region28: #{rec_trac_head2.5} parent=23 // pred_fallthru
        _
    $region24: #{rec_trac_head2.5} parent=5 // pred_fallthru
      _
    %p136 = scmp.le.s32.totalorder 1, %s9
    %p137 = scmp.lt.s32.totalorder %s9, 3
    %p138 = pnand %p136, %p137
    %p139 = pneg %p138
    // Predicated region
    $region29: #{rec_trac_head2.5} parent=5 // pred_check
      _
    $region30: #{rec_trac_head2.5} parent=5 // pred_check_branch
      %141 = sbr.rel (%p138) target = $region32
    $region31: #{rec_trac_head2.5} parent=5 // pred_region
      %s142 = ssub.s32 %s9, 1
      %p143 = scmp.lt.s32.totalorder %s14, 1
      %s144 = scalar_select %p143, %s14, 1
      %s145 = smul.addr %s144, 39
      %s146 = smul.addr %s145, 8
      %s147 = scalar_lea.vmem %s0, %s146
      %p148 = pneg %p35
      %p149 = pneg %p32
      %p150 = pneg %p56
      %p151 = pneg %p53
      %p152 = pneg %p77
      %p153 = pneg %p74
      %p154 = pneg %p103
      %p155 = pneg %p100
      %p156 = scmp.lt.s32.totalorder %s14, 1
      %s157 = scalar_select %p156, %s14, 1
      %s158 = smul.addr %s157, 148
      %s159 = smul.addr %s158, 8
      %s160 = scalar_lea.vmem %s3, %s159
      %p161 = scmp.lt.s32.totalorder %s14, 1
      %s162 = scalar_select %p161, %s14, 1
      %s163 = smul.addr %s162, 39
      %s164 = smul.addr %s163, 8
      %s165 = scalar_lea.vmem %s0, %s164
      %p166 = scmp.lt.s32.totalorder %s14, 1
      %s167 = scalar_select %p166, %s14, 1
      %s168 = smul.addr %s167, 148
      %s169 = smul.addr %s168, 8
      %s170 = scalar_lea.vmem %s3, %s169
      %v171 = vld [vmem:[%s2] sm:$0x1]
      %s172 = scalar_lea.vmem %s1, 128
      %v173 = vld [vmem:[%s172] sm:$0xff]
      %v174 = vld [vmem:[%s172 + $0x8] sm:$0xff]
      %v175 = vld [vmem:[%s172 + $0x10] sm:$0xff]
      %v176 = vld [vmem:[%s172 + $0x18] sm:$0xff]
      %s177 = scalar_lea.vmem %s1, 160
      %v178 = vld [vmem:[%s177] sm:$0xff]
      %v179 = vld [vmem:[%s177 + $0x8] sm:$0xff]
      %v180 = vld [vmem:[%s177 + $0x10] sm:$0xff]
      %v181 = vld [vmem:[%s177 + $0x18] sm:$0xff]
      %s182 = scalar_lea.vmem %s1, 96
      %v183 = vld [vmem:[%s182] sm:$0xff]
      %v184 = vld [vmem:[%s182 + $0x8] sm:$0xff]
      %v185 = vld [vmem:[%s182 + $0x10] sm:$0xff]
      %v186 = vld [vmem:[%s182 + $0x18] sm:$0xff]
      %s187 = scalar_lea.vmem %s1, 224
      %v188 = vld [vmem:[%s187] sm:$0xff]
      %v189 = vld [vmem:[%s187 + $0x8] sm:$0xff]
      %v190 = vld [vmem:[%s187 + $0x10] sm:$0xff]
      %v191 = vld [vmem:[%s187 + $0x18] sm:$0xff]
      %s192 = scalar_lea.vmem %s1, 32
      %v193 = vld [vmem:[%s192] sm:$0xff]
      %v194 = vld [vmem:[%s192 + $0x8] sm:$0xff]
      %v195 = vld [vmem:[%s192 + $0x10] sm:$0xff]
      %v196 = vld [vmem:[%s192 + $0x18] sm:$0xff]
      %s197 = scalar_lea.vmem %s1, 256
      %v198 = vld [vmem:[%s197] sm:$0xff]
      %v199 = vld [vmem:[%s197 + $0x8] sm:$0xff]
      %v200 = vld [vmem:[%s197 + $0x10] sm:$0xff]
      %v201 = vld [vmem:[%s197 + $0x18] sm:$0xff]
      %s202 = scalar_lea.vmem %s1, 192
      %v203 = vld [vmem:[%s202] sm:$0xff]
      %v204 = vld [vmem:[%s202 + $0x8] sm:$0xff]
      %v205 = vld [vmem:[%s202 + $0x10] sm:$0xff]
      %v206 = vld [vmem:[%s202 + $0x18] sm:$0xff]
      %s207 = scalar_lea.vmem %s1, 64
      %v208 = vld [vmem:[%s207] sm:$0xff]
      %v209 = vld [vmem:[%s207 + $0x8] sm:$0xff]
      %v210 = vld [vmem:[%s207 + $0x10] sm:$0xff]
      %v211 = vld [vmem:[%s207 + $0x18] sm:$0xff]
      %v212 = vld [vmem:[%s1] sm:$0xff]
      %v213 = vld [vmem:[%s1 + $0x8] sm:$0xff]
      %v214 = vld [vmem:[%s1 + $0x10] sm:$0xff]
      %v215 = vld [vmem:[%s1 + $0x18] sm:$0xff]
      %v216 = vld [vmem:[%s165] sm:$0xff]
      %v217 = vld [vmem:[%s165 + $0x8] sm:$0xff]
      %v218 = vld [vmem:[%s165 + $0x10] sm:$0xff]
      %v219 = vld [vmem:[%s165 + $0x18] sm:$0xff]
      %v220 = vld [vmem:[%s165 + $0x20] sm:$0xff]
      %v221 = vld [vmem:[%s165 + $0x28] sm:$0xff]
      %v222 = vld [vmem:[%s165 + $0x30] sm:$0xff]
      %v223 = vld [vmem:[%s165 + $0x38] sm:$0xff]
      %v224 = vld [vmem:[%s165 + $0x40] sm:$0xff]
      %v225 = vld [vmem:[%s165 + $0x48] sm:$0xff]
      %v226 = vld [vmem:[%s165 + $0x50] sm:$0xff]
      %v227 = vld [vmem:[%s165 + $0x58] sm:$0xff]
      %v228 = vld [vmem:[%s165 + $0x60] sm:$0xff]
      %v229 = vld [vmem:[%s165 + $0x68] sm:$0xff]
      %v230 = vld [vmem:[%s165 + $0x70] sm:$0xff]
      %v231 = vld [vmem:[%s165 + $0x78] sm:$0xff]
      %v232 = vld [vmem:[%s165 + $0x80] sm:$0xff]
      %v233 = vld [vmem:[%s165 + $0x88] sm:$0xff]
      %v234 = vld [vmem:[%s165 + $0x90] sm:$0xff]
      %v235 = vld [vmem:[%s165 + $0x98] sm:$0xff]
      %v236 = vld [vmem:[%s165 + $0xa0] sm:$0xff]
      %v237 = vld [vmem:[%s165 + $0xa8] sm:$0xff]
      %v238 = vld [vmem:[%s165 + $0xb0] sm:$0xff]
      %v239 = vld [vmem:[%s165 + $0xb8] sm:$0xff]
      %v240 = vld [vmem:[%s165 + $0xc0] sm:$0xff]
      %v241 = vld [vmem:[%s165 + $0xc8] sm:$0xff]
      %v242 = vld [vmem:[%s165 + $0xd0] sm:$0xff]
      %v243 = vld [vmem:[%s165 + $0xd8] sm:$0xff]
      %v244 = vld [vmem:[%s165 + $0xe0] sm:$0xff]
      %v245 = vld [vmem:[%s165 + $0xe8] sm:$0xff]
      %v246 = vld [vmem:[%s165 + $0xf0] sm:$0xff]
      %v247 = vld [vmem:[%s165 + $0xf8] sm:$0xff]
      %v248 = vld [vmem:[%s165 + $0x100] sm:$0xff]
      %v249 = vld [vmem:[%s165 + $0x108] sm:$0xff]
      %v250 = vld [vmem:[%s165 + $0x110] sm:$0xff]
      %v251 = vld [vmem:[%s165 + $0x118] sm:$0xff]
      %v252 = vld [vmem:[%s165 + $0x120] sm:$0x1]
      %v253 = vld [vmem:[%s165 + $0x1] sm:$0xff]
      %v254 = vld [vmem:[%s165 + $0x9] sm:$0xff]
      %v255 = vld [vmem:[%s165 + $0x11] sm:$0xff]
      %v256 = vld [vmem:[%s165 + $0x19] sm:$0xff]
      %v257 = vld [vmem:[%s165 + $0x21] sm:$0xff]
      %v258 = vld [vmem:[%s165 + $0x29] sm:$0xff]
      %v259 = vld [vmem:[%s165 + $0x31] sm:$0xff]
      %v260 = vld [vmem:[%s165 + $0x39] sm:$0xff]
      %v261 = vld [vmem:[%s165 + $0x41] sm:$0xff]
      %v262 = vld [vmem:[%s165 + $0x49] sm:$0xff]
      %v263 = vld [vmem:[%s165 + $0x51] sm:$0xff]
      %v264 = vld [vmem:[%s165 + $0x59] sm:$0xff]
      %v265 = vld [vmem:[%s165 + $0x61] sm:$0xff]
      %v266 = vld [vmem:[%s165 + $0x69] sm:$0xff]
      %v267 = vld [vmem:[%s165 + $0x71] sm:$0xff]
      %v268 = vld [vmem:[%s165 + $0x79] sm:$0xff]
      %v269 = vld [vmem:[%s165 + $0x81] sm:$0xff]
      %v270 = vld [vmem:[%s165 + $0x89] sm:$0xff]
      %v271 = vld [vmem:[%s165 + $0x91] sm:$0xff]
      %v272 = vld [vmem:[%s165 + $0x99] sm:$0xff]
      %v273 = vld [vmem:[%s165 + $0xa1] sm:$0xff]
      %v274 = vld [vmem:[%s165 + $0xa9] sm:$0xff]
      %v275 = vld [vmem:[%s165 + $0xb1] sm:$0xff]
      %v276 = vld [vmem:[%s165 + $0xb9] sm:$0xff]
      %v277 = vld [vmem:[%s165 + $0xc1] sm:$0xff]
      %v278 = vld [vmem:[%s165 + $0xc9] sm:$0xff]
      %v279 = vld [vmem:[%s165 + $0xd1] sm:$0xff]
      %v280 = vld [vmem:[%s165 + $0xd9] sm:$0xff]
      %v281 = vld [vmem:[%s165 + $0xe1] sm:$0xff]
      %v282 = vld [vmem:[%s165 + $0xe9] sm:$0xff]
      %v283 = vld [vmem:[%s165 + $0xf1] sm:$0xff]
      %v284 = vld [vmem:[%s165 + $0xf9] sm:$0xff]
      %v285 = vld [vmem:[%s165 + $0x101] sm:$0xff]
      %v286 = vld [vmem:[%s165 + $0x109] sm:$0xff]
      %v287 = vld [vmem:[%s165 + $0x111] sm:$0xff]
      %v288 = vld [vmem:[%s165 + $0x119] sm:$0xff]
      %v289 = vld [vmem:[%s165 + $0x121] sm:$0x1]
      %v290 = vld [vmem:[%s165 + $0x121] sm:$0xff]
      %v291 = vld [vmem:[%s165 + $0x129] sm:$0xff]
      %v292 = vld [vmem:[%s165 + $0x131] sm:$0x1]
      %v293 = vld [vmem:[%s165 + $0x12] sm:$0xff]
      %v294 = vld [vmem:[%s165 + $0x1a] sm:$0xff]
      %v295 = vld [vmem:[%s165 + $0x22] sm:$0xff]
      %v296 = vld [vmem:[%s165 + $0x2a] sm:$0xff]
      %v297 = vld [vmem:[%s165 + $0x32] sm:$0xff]
      %v298 = vld [vmem:[%s165 + $0x3a] sm:$0xff]
      %v299 = vld [vmem:[%s165 + $0x42] sm:$0xff]
      %v300 = vld [vmem:[%s165 + $0x4a] sm:$0xff]
      %v301 = vld [vmem:[%s165 + $0x52] sm:$0xff]
      %v302 = vld [vmem:[%s165 + $0x5a] sm:$0xff]
      %v303 = vld [vmem:[%s165 + $0x62] sm:$0xff]
      %v304 = vld [vmem:[%s165 + $0x6a] sm:$0xff]
      %v305 = vld [vmem:[%s165 + $0x72] sm:$0xff]
      %v306 = vld [vmem:[%s165 + $0x7a] sm:$0xff]
      %v307 = vld [vmem:[%s165 + $0x82] sm:$0xff]
      %v308 = vld [vmem:[%s165 + $0x8a] sm:$0xff]
      %v309 = vld [vmem:[%s165 + $0x92] sm:$0xff]
      %v310 = vld [vmem:[%s165 + $0x9a] sm:$0xff]
      %v311 = vld [vmem:[%s165 + $0xa2] sm:$0xff]
      %v312 = vld [vmem:[%s165 + $0xaa] sm:$0xff]
      %v313 = vld [vmem:[%s165 + $0xb2] sm:$0xff]
      %v314 = vld [vmem:[%s165 + $0xba] sm:$0xff]
      %v315 = vld [vmem:[%s165 + $0xc2] sm:$0xff]
      %v316 = vld [vmem:[%s165 + $0xca] sm:$0xff]
      %v317 = vld [vmem:[%s165 + $0xd2] sm:$0xff]
      %v318 = vld [vmem:[%s165 + $0xda] sm:$0xff]
      %v319 = vld [vmem:[%s165 + $0xe2] sm:$0xff]
      %v320 = vld [vmem:[%s165 + $0xea] sm:$0xff]
      %v321 = vld [vmem:[%s165 + $0xf2] sm:$0xff]
      %v322 = vld [vmem:[%s165 + $0xfa] sm:$0xff]
      %v323 = vld [vmem:[%s165 + $0x102] sm:$0xff]
      %v324 = vld [vmem:[%s165 + $0x10a] sm:$0xff]
      %v325 = vld [vmem:[%s165 + $0x112] sm:$0xff]
      %v326 = vld [vmem:[%s165 + $0x11a] sm:$0xff]
      %v327 = vld [vmem:[%s165 + $0x122] sm:$0xff]
      %v328 = vld [vmem:[%s165 + $0x12a] sm:$0xff]
      %v329 = vld [vmem:[%s165 + $0x132] sm:$0x1]
      %vm330 = vcmask 261120
      %v332 = vsel %vm330, %v253, 0
      %v335 = vsel %vm330, %v254, 0
      %v338 = vsel %vm330, %v255, 0
      %v341 = vsel %vm330, %v256, 0
      %v344 = vsel %vm330, %v257, 0
      %v347 = vsel %vm330, %v258, 0
      %v350 = vsel %vm330, %v259, 0
      %v353 = vsel %vm330, %v260, 0
      %v356 = vsel %vm330, %v261, 0
      %v359 = vsel %vm330, %v262, 0
      %v362 = vsel %vm330, %v263, 0
      %v365 = vsel %vm330, %v264, 0
      %v368 = vsel %vm330, %v265, 0
      %v371 = vsel %vm330, %v266, 0
      %v374 = vsel %vm330, %v267, 0
      %v377 = vsel %vm330, %v268, 0
      %v380 = vsel %vm330, %v269, 0
      %v383 = vsel %vm330, %v270, 0
      %v386 = vsel %vm330, %v271, 0
      %v389 = vsel %vm330, %v272, 0
      %v392 = vsel %vm330, %v273, 0
      %v395 = vsel %vm330, %v274, 0
      %v398 = vsel %vm330, %v275, 0
      %v401 = vsel %vm330, %v276, 0
      %v404 = vsel %vm330, %v277, 0
      %v407 = vsel %vm330, %v278, 0
      %v410 = vsel %vm330, %v279, 0
      %v413 = vsel %vm330, %v280, 0
      %v416 = vsel %vm330, %v281, 0
      %v419 = vsel %vm330, %v282, 0
      %v422 = vsel %vm330, %v283, 0
      %v425 = vsel %vm330, %v284, 0
      %v428 = vsel %vm330, %v285, 0
      %v431 = vsel %vm330, %v286, 0
      %v434 = vsel %vm330, %v287, 0
      %v437 = vsel %vm330, %v288, 0
      %v440 = vsel %vm330, %v289, 0
      %442 = vmatprep.subr.mxu0 0.0
      %443 = vmatpush1.msra.mxu0 0.0
      %444 = vmatprep.subr.mxu0 0.0
      %445 = vmatpush1.msra.mxu0 0.0
      %446 = vmatprep.subr.mxu0 0.0
      %447 = vmatpush1.msra.mxu0 0.0
      %448 = vmatprep.subr.mxu0 0.0
      %449 = vmatpush1.msra.mxu0 0.0
      %450 = vmatprep.subr.mxu0 0.0
      %451 = vmatpush1.msra.mxu0 0.0
      %452 = vmatprep.subr.mxu0 0.0
      %453 = vmatpush1.msra.mxu0 0.0
      %454 = vmatprep.subr.mxu0 0.0
      %455 = vmatpush1.msra.mxu0 0.0
      %456 = vmatprep.subr.mxu0 0.0
      %457 = vmatpush1.msra.mxu0 0.0
      %458 = vmatprep.subr.mxu0 0.0
      %459 = vmatpush1.msra.mxu0 0.0
      %460 = vmatprep.subr.mxu0 0.0
      %461 = vmatpush1.msra.mxu0 0.0
      %462 = vmatprep.subr.mxu0 0.0
      %463 = vmatpush1.msra.mxu0 0.0
      %464 = vmatprep.subr.mxu0 0.0
      %465 = vmatpush1.msra.mxu0 0.0
      %466 = vmatprep.subr.mxu0 0.0
      %467 = vmatpush1.msra.mxu0 %v186
      %468 = vmatprep.subr.mxu0 0.0
      %469 = vmatpush1.msra.mxu0 %v185
      %470 = vmatprep.subr.mxu0 0.0
      %471 = vmatpush1.msra.mxu0 %v184
      %472 = vmatprep.subr.mxu0 0.0
      %473 = vmatpush1.msra.mxu0 %v183
      %474 = vmatprep.subr.mxu0 0.0
      %475 = vmatpush2.msra.mxu0 0.0
      %476 = vmatprep.subr.mxu0 0.0
      %477 = vmatpush2.msra.mxu0 0.0
      %478 = vmatprep.subr.mxu0 0.0
      %479 = vmatpush2.msra.mxu0 0.0
      %480 = vmatprep.subr.mxu0 0.0
      %481 = vmatpush2.msra.mxu0 0.0
      %482 = vmatprep.subr.mxu0 0.0
      %483 = vmatpush2.msra.mxu0 0.0
      %484 = vmatprep.subr.mxu0 0.0
      %485 = vmatpush2.msra.mxu0 0.0
      %486 = vmatprep.subr.mxu0 0.0
      %487 = vmatpush2.msra.mxu0 0.0
      %488 = vmatprep.subr.mxu0 0.0
      %489 = vmatpush2.msra.mxu0 0.0
      %490 = vmatprep.subr.mxu0 0.0
      %491 = vmatpush2.msra.mxu0 0.0
      %492 = vmatprep.subr.mxu0 0.0
      %493 = vmatpush2.msra.mxu0 0.0
      %494 = vmatprep.subr.mxu0 0.0
      %495 = vmatpush2.msra.mxu0 0.0
      %496 = vmatprep.subr.mxu0 0.0
      %497 = vmatpush2.msra.mxu0 0.0
      %498 = vmatprep.subr.mxu0 0.0
      %499 = vmatpush2.msra.mxu0 0.0
      %500 = vmatprep.subr.mxu0 0.0
      %501 = vmatpush2.msra.mxu0 0.0
      %502 = vmatprep.subr.mxu0 0.0
      %503 = vmatpush2.msra.mxu0 0.0
      %504 = vmatprep.subr.mxu0 0.0
      %505 = vmatpush2.msra.mxu0 0.0
      %506 = vmatprep.mubr.f32.mxu0 0.0
      %507 = vmatmul.mubr.f32.gmra.mxu0 %v332
      %v508 = vpop.f32.mrf.mxu0
      %v509 = vadd.f32 0.0, %v508
      %v510 = vpop.f32.mrf.mxu0
      %511 = vmatprep.mubr.f32.mxu0 0.0
      %512 = vmatmul.mubr.f32.gmra.mxu0 %v335
      %v513 = vpop.f32.mrf.mxu0
      %v514 = vadd.f32 0.0, %v513
      %v515 = vpop.f32.mrf.mxu0
      %516 = vmatprep.mubr.f32.mxu0 0.0
      %517 = vmatmul.mubr.f32.gmra.mxu0 %v338
      %v518 = vpop.f32.mrf.mxu0
      %v519 = vadd.f32 0.0, %v518
      %v520 = vpop.f32.mrf.mxu0
      %521 = vmatprep.mubr.f32.mxu0 0.0
      %522 = vmatmul.mubr.f32.gmra.mxu0 %v341
      %v523 = vpop.f32.mrf.mxu0
      %v524 = vadd.f32 0.0, %v523
      %v525 = vpop.f32.mrf.mxu0
      %526 = vmatprep.mubr.f32.mxu0 0.0
      %527 = vmatmul.mubr.f32.gmra.mxu0 %v344
      %v528 = vpop.f32.mrf.mxu0
      %v529 = vadd.f32 0.0, %v528
      %v530 = vpop.f32.mrf.mxu0
      %531 = vmatprep.mubr.f32.mxu0 0.0
      %532 = vmatmul.mubr.f32.gmra.mxu0 %v347
      %v533 = vpop.f32.mrf.mxu0
      %v534 = vadd.f32 0.0, %v533
      %v535 = vpop.f32.mrf.mxu0
      %536 = vmatprep.mubr.f32.mxu0 0.0
      %537 = vmatmul.mubr.f32.gmra.mxu0 %v350
      %v538 = vpop.f32.mrf.mxu0
      %v539 = vadd.f32 0.0, %v538
      %v540 = vpop.f32.mrf.mxu0
      %541 = vmatprep.mubr.f32.mxu0 0.0
      %542 = vmatmul.mubr.f32.gmra.mxu0 %v353
      %v543 = vpop.f32.mrf.mxu0
      %v544 = vadd.f32 0.0, %v543
      %v545 = vpop.f32.mrf.mxu0
      %546 = vmatprep.mubr.f32.mxu0 0.0
      %547 = vmatmul.mubr.f32.gmra.mxu0 %v356
      %v548 = vpop.f32.mrf.mxu0
      %v549 = vadd.f32 0.0, %v548
      %v550 = vpop.f32.mrf.mxu0
      %551 = vmatprep.mubr.f32.mxu0 0.0
      %552 = vmatmul.mubr.f32.gmra.mxu0 %v359
      %v553 = vpop.f32.mrf.mxu0
      %v554 = vadd.f32 0.0, %v553
      %v555 = vpop.f32.mrf.mxu0
      %556 = vmatprep.mubr.f32.mxu0 0.0
      %557 = vmatmul.mubr.f32.gmra.mxu0 %v362
      %v558 = vpop.f32.mrf.mxu0
      %v559 = vadd.f32 0.0, %v558
      %v560 = vpop.f32.mrf.mxu0
      %561 = vmatprep.mubr.f32.mxu0 0.0
      %562 = vmatmul.mubr.f32.gmra.mxu0 %v365
      %v563 = vpop.f32.mrf.mxu0
      %v564 = vadd.f32 0.0, %v563
      %v565 = vpop.f32.mrf.mxu0
      %566 = vmatprep.mubr.f32.mxu0 0.0
      %567 = vmatmul.mubr.f32.gmra.mxu0 %v368
      %v568 = vpop.f32.mrf.mxu0
      %v569 = vadd.f32 0.0, %v568
      %v570 = vpop.f32.mrf.mxu0
      %571 = vmatprep.mubr.f32.mxu0 0.0
      %572 = vmatmul.mubr.f32.gmra.mxu0 %v371
      %v573 = vpop.f32.mrf.mxu0
      %v574 = vadd.f32 0.0, %v573
      %v575 = vpop.f32.mrf.mxu0
      %576 = vmatprep.mubr.f32.mxu0 0.0
      %577 = vmatmul.mubr.f32.gmra.mxu0 %v374
      %v578 = vpop.f32.mrf.mxu0
      %v579 = vadd.f32 0.0, %v578
      %v580 = vpop.f32.mrf.mxu0
      %581 = vmatprep.mubr.f32.mxu0 0.0
      %582 = vmatmul.mubr.f32.gmra.mxu0 %v377
      %v583 = vpop.f32.mrf.mxu0
      %v584 = vadd.f32 0.0, %v583
      %v585 = vpop.f32.mrf.mxu0
      %586 = vmatprep.mubr.f32.mxu0 0.0
      %587 = vmatmul.mubr.f32.gmra.mxu0 %v380
      %v588 = vpop.f32.mrf.mxu0
      %v589 = vadd.f32 0.0, %v588
      %v590 = vpop.f32.mrf.mxu0
      %591 = vmatprep.mubr.f32.mxu0 0.0
      %592 = vmatmul.mubr.f32.gmra.mxu0 %v383
      %v593 = vpop.f32.mrf.mxu0
      %v594 = vadd.f32 0.0, %v593
      %v595 = vpop.f32.mrf.mxu0
      %596 = vmatprep.mubr.f32.mxu0 0.0
      %597 = vmatmul.mubr.f32.gmra.mxu0 %v386
      %v598 = vpop.f32.mrf.mxu0
      %v599 = vadd.f32 0.0, %v598
      %v600 = vpop.f32.mrf.mxu0
      %601 = vmatprep.mubr.f32.mxu0 0.0
      %602 = vmatmul.mubr.f32.gmra.mxu0 %v389
      %v603 = vpop.f32.mrf.mxu0
      %v604 = vadd.f32 0.0, %v603
      %v605 = vpop.f32.mrf.mxu0
      %606 = vmatprep.mubr.f32.mxu0 0.0
      %607 = vmatmul.mubr.f32.gmra.mxu0 %v392
      %v608 = vpop.f32.mrf.mxu0
      %v609 = vadd.f32 0.0, %v608
      %v610 = vpop.f32.mrf.mxu0
      %611 = vmatprep.mubr.f32.mxu0 0.0
      %612 = vmatmul.mubr.f32.gmra.mxu0 %v395
      %v613 = vpop.f32.mrf.mxu0
      %v614 = vadd.f32 0.0, %v613
      %v615 = vpop.f32.mrf.mxu0
      %616 = vmatprep.mubr.f32.mxu0 0.0
      %617 = vmatmul.mubr.f32.gmra.mxu0 %v398
      %v618 = vpop.f32.mrf.mxu0
      %v619 = vadd.f32 0.0, %v618
      %v620 = vpop.f32.mrf.mxu0
      %621 = vmatprep.mubr.f32.mxu0 0.0
      %622 = vmatmul.mubr.f32.gmra.mxu0 %v401
      %v623 = vpop.f32.mrf.mxu0
      %v624 = vadd.f32 0.0, %v623
      %v625 = vpop.f32.mrf.mxu0
      %626 = vmatprep.mubr.f32.mxu0 0.0
      %627 = vmatmul.mubr.f32.gmra.mxu0 %v404
      %v628 = vpop.f32.mrf.mxu0
      %v629 = vadd.f32 0.0, %v628
      %v630 = vpop.f32.mrf.mxu0
      %631 = vmatprep.mubr.f32.mxu0 0.0
      %632 = vmatmul.mubr.f32.gmra.mxu0 %v407
      %v633 = vpop.f32.mrf.mxu0
      %v634 = vadd.f32 0.0, %v633
      %v635 = vpop.f32.mrf.mxu0
      %636 = vmatprep.mubr.f32.mxu0 0.0
      %637 = vmatmul.mubr.f32.gmra.mxu0 %v410
      %v638 = vpop.f32.mrf.mxu0
      %v639 = vadd.f32 0.0, %v638
      %v640 = vpop.f32.mrf.mxu0
      %641 = vmatprep.mubr.f32.mxu0 0.0
      %642 = vmatmul.mubr.f32.gmra.mxu0 %v413
      %v643 = vpop.f32.mrf.mxu0
      %v644 = vadd.f32 0.0, %v643
      %v645 = vpop.f32.mrf.mxu0
      %646 = vmatprep.mubr.f32.mxu0 0.0
      %647 = vmatmul.mubr.f32.gmra.mxu0 %v416
      %v648 = vpop.f32.mrf.mxu0
      %v649 = vadd.f32 0.0, %v648
      %v650 = vpop.f32.mrf.mxu0
      %651 = vmatprep.mubr.f32.mxu0 0.0
      %652 = vmatmul.mubr.f32.gmra.mxu0 %v419
      %v653 = vpop.f32.mrf.mxu0
      %v654 = vadd.f32 0.0, %v653
      %v655 = vpop.f32.mrf.mxu0
      %656 = vmatprep.mubr.f32.mxu0 0.0
      %657 = vmatmul.mubr.f32.gmra.mxu0 %v422
      %v658 = vpop.f32.mrf.mxu0
      %v659 = vadd.f32 0.0, %v658
      %v660 = vpop.f32.mrf.mxu0
      %661 = vmatprep.mubr.f32.mxu0 0.0
      %662 = vmatmul.mubr.f32.gmra.mxu0 %v425
      %v663 = vpop.f32.mrf.mxu0
      %v664 = vadd.f32 0.0, %v663
      %v665 = vpop.f32.mrf.mxu0
      %666 = vmatprep.mubr.f32.mxu0 0.0
      %667 = vmatmul.mubr.f32.gmra.mxu0 %v428
      %v668 = vpop.f32.mrf.mxu0
      %v669 = vadd.f32 0.0, %v668
      %v670 = vpop.f32.mrf.mxu0
      %671 = vmatprep.mubr.f32.mxu0 0.0
      %672 = vmatmul.mubr.f32.gmra.mxu0 %v431
      %v673 = vpop.f32.mrf.mxu0
      %v674 = vadd.f32 0.0, %v673
      %v675 = vpop.f32.mrf.mxu0
      %676 = vmatprep.mubr.f32.mxu0 0.0
      %677 = vmatmul.mubr.f32.gmra.mxu0 %v434
      %v678 = vpop.f32.mrf.mxu0
      %v679 = vadd.f32 0.0, %v678
      %v680 = vpop.f32.mrf.mxu0
      %681 = vmatprep.mubr.f32.mxu0 0.0
      %682 = vmatmul.mubr.f32.gmra.mxu0 %v437
      %v683 = vpop.f32.mrf.mxu0
      %v684 = vadd.f32 0.0, %v683
      %v685 = vpop.f32.mrf.mxu0
      %686 = vmatprep.mubr.f32.mxu0 0.0
      %687 = vmatmul.mubr.f32.gmra.mxu0 %v440
      %v688 = vpop.f32.mrf.mxu0
      %v689 = vadd.f32 0.0, %v688
      %v690 = vpop.f32.mrf.mxu0
      %691 = vdwg.mxu0
      %v693 = vsel %vm330, %v216, 0
      %v696 = vsel %vm330, %v217, 0
      %v699 = vsel %vm330, %v218, 0
      %v702 = vsel %vm330, %v219, 0
      %v705 = vsel %vm330, %v220, 0
      %v708 = vsel %vm330, %v221, 0
      %v711 = vsel %vm330, %v222, 0
      %v714 = vsel %vm330, %v223, 0
      %v717 = vsel %vm330, %v224, 0
      %v720 = vsel %vm330, %v225, 0
      %v723 = vsel %vm330, %v226, 0
      %v726 = vsel %vm330, %v227, 0
      %v729 = vsel %vm330, %v228, 0
      %v732 = vsel %vm330, %v229, 0
      %v735 = vsel %vm330, %v230, 0
      %v738 = vsel %vm330, %v231, 0
      %v741 = vsel %vm330, %v232, 0
      %v744 = vsel %vm330, %v233, 0
      %v747 = vsel %vm330, %v234, 0
      %v750 = vsel %vm330, %v235, 0
      %v753 = vsel %vm330, %v236, 0
      %v756 = vsel %vm330, %v237, 0
      %v759 = vsel %vm330, %v238, 0
      %v762 = vsel %vm330, %v239, 0
      %v765 = vsel %vm330, %v240, 0
      %v768 = vsel %vm330, %v241, 0
      %v771 = vsel %vm330, %v242, 0
      %v774 = vsel %vm330, %v243, 0
      %v777 = vsel %vm330, %v244, 0
      %v780 = vsel %vm330, %v245, 0
      %v783 = vsel %vm330, %v246, 0
      %v786 = vsel %vm330, %v247, 0
      %v789 = vsel %vm330, %v248, 0
      %v792 = vsel %vm330, %v249, 0
      %v795 = vsel %vm330, %v250, 0
      %v798 = vsel %vm330, %v251, 0
      %v801 = vsel %vm330, %v252, 0
      %803 = vmatprep.subr.mxu0 0.0
      %804 = vmatpush1.msra.mxu0 0.0
      %805 = vmatprep.subr.mxu0 0.0
      %806 = vmatpush1.msra.mxu0 0.0
      %807 = vmatprep.subr.mxu0 0.0
      %808 = vmatpush1.msra.mxu0 0.0
      %809 = vmatprep.subr.mxu0 0.0
      %810 = vmatpush1.msra.mxu0 0.0
      %811 = vmatprep.subr.mxu0 0.0
      %812 = vmatpush1.msra.mxu0 0.0
      %813 = vmatprep.subr.mxu0 0.0
      %814 = vmatpush1.msra.mxu0 0.0
      %815 = vmatprep.subr.mxu0 0.0
      %816 = vmatpush1.msra.mxu0 0.0
      %817 = vmatprep.subr.mxu0 0.0
      %818 = vmatpush1.msra.mxu0 0.0
      %819 = vmatprep.subr.mxu0 0.0
      %820 = vmatpush1.msra.mxu0 0.0
      %821 = vmatprep.subr.mxu0 0.0
      %822 = vmatpush1.msra.mxu0 0.0
      %823 = vmatprep.subr.mxu0 0.0
      %824 = vmatpush1.msra.mxu0 0.0
      %825 = vmatprep.subr.mxu0 0.0
      %826 = vmatpush1.msra.mxu0 0.0
      %827 = vmatprep.subr.mxu0 0.0
      %828 = vmatpush1.msra.mxu0 %v181
      %829 = vmatprep.subr.mxu0 0.0
      %830 = vmatpush1.msra.mxu0 %v180
      %831 = vmatprep.subr.mxu0 0.0
      %832 = vmatpush1.msra.mxu0 %v179
      %833 = vmatprep.subr.mxu0 0.0
      %834 = vmatpush1.msra.mxu0 %v178
      %835 = vmatprep.subr.mxu0 0.0
      %836 = vmatpush2.msra.mxu0 0.0
      %837 = vmatprep.subr.mxu0 0.0
      %838 = vmatpush2.msra.mxu0 0.0
      %839 = vmatprep.subr.mxu0 0.0
      %840 = vmatpush2.msra.mxu0 0.0
      %841 = vmatprep.subr.mxu0 0.0
      %842 = vmatpush2.msra.mxu0 0.0
      %843 = vmatprep.subr.mxu0 0.0
      %844 = vmatpush2.msra.mxu0 0.0
      %845 = vmatprep.subr.mxu0 0.0
      %846 = vmatpush2.msra.mxu0 0.0
      %847 = vmatprep.subr.mxu0 0.0
      %848 = vmatpush2.msra.mxu0 0.0
      %849 = vmatprep.subr.mxu0 0.0
      %850 = vmatpush2.msra.mxu0 0.0
      %851 = vmatprep.subr.mxu0 0.0
      %852 = vmatpush2.msra.mxu0 0.0
      %853 = vmatprep.subr.mxu0 0.0
      %854 = vmatpush2.msra.mxu0 0.0
      %855 = vmatprep.subr.mxu0 0.0
      %856 = vmatpush2.msra.mxu0 0.0
      %857 = vmatprep.subr.mxu0 0.0
      %858 = vmatpush2.msra.mxu0 0.0
      %859 = vmatprep.subr.mxu0 0.0
      %860 = vmatpush2.msra.mxu0 0.0
      %861 = vmatprep.subr.mxu0 0.0
      %862 = vmatpush2.msra.mxu0 0.0
      %863 = vmatprep.subr.mxu0 0.0
      %864 = vmatpush2.msra.mxu0 0.0
      %865 = vmatprep.subr.mxu0 0.0
      %866 = vmatpush2.msra.mxu0 0.0
      %867 = vmatprep.mubr.f32.mxu0 0.0
      %868 = vmatmul.mubr.f32.gmra.mxu0 %v693
      %v869 = vpop.f32.mrf.mxu0
      %v870 = vadd.f32 %v509, %v869
      %v871 = vpop.f32.mrf.mxu0
      %872 = vmatprep.mubr.f32.mxu0 0.0
      %873 = vmatmul.mubr.f32.gmra.mxu0 %v696
      %v874 = vpop.f32.mrf.mxu0
      %v875 = vadd.f32 %v514, %v874
      %v876 = vpop.f32.mrf.mxu0
      %877 = vmatprep.mubr.f32.mxu0 0.0
      %878 = vmatmul.mubr.f32.gmra.mxu0 %v699
      %v879 = vpop.f32.mrf.mxu0
      %v880 = vadd.f32 %v519, %v879
      %v881 = vpop.f32.mrf.mxu0
      %882 = vmatprep.mubr.f32.mxu0 0.0
      %883 = vmatmul.mubr.f32.gmra.mxu0 %v702
      %v884 = vpop.f32.mrf.mxu0
      %v885 = vadd.f32 %v524, %v884
      %v886 = vpop.f32.mrf.mxu0
      %887 = vmatprep.mubr.f32.mxu0 0.0
      %888 = vmatmul.mubr.f32.gmra.mxu0 %v705
      %v889 = vpop.f32.mrf.mxu0
      %v890 = vadd.f32 %v529, %v889
      %v891 = vpop.f32.mrf.mxu0
      %892 = vmatprep.mubr.f32.mxu0 0.0
      %893 = vmatmul.mubr.f32.gmra.mxu0 %v708
      %v894 = vpop.f32.mrf.mxu0
      %v895 = vadd.f32 %v534, %v894
      %v896 = vpop.f32.mrf.mxu0
      %897 = vmatprep.mubr.f32.mxu0 0.0
      %898 = vmatmul.mubr.f32.gmra.mxu0 %v711
      %v899 = vpop.f32.mrf.mxu0
      %v900 = vadd.f32 %v539, %v899
      %v901 = vpop.f32.mrf.mxu0
      %902 = vmatprep.mubr.f32.mxu0 0.0
      %903 = vmatmul.mubr.f32.gmra.mxu0 %v714
      %v904 = vpop.f32.mrf.mxu0
      %v905 = vadd.f32 %v544, %v904
      %v906 = vpop.f32.mrf.mxu0
      %907 = vmatprep.mubr.f32.mxu0 0.0
      %908 = vmatmul.mubr.f32.gmra.mxu0 %v717
      %v909 = vpop.f32.mrf.mxu0
      %v910 = vadd.f32 %v549, %v909
      %v911 = vpop.f32.mrf.mxu0
      %912 = vmatprep.mubr.f32.mxu0 0.0
      %913 = vmatmul.mubr.f32.gmra.mxu0 %v720
      %v914 = vpop.f32.mrf.mxu0
      %v915 = vadd.f32 %v554, %v914
      %v916 = vpop.f32.mrf.mxu0
      %917 = vmatprep.mubr.f32.mxu0 0.0
      %918 = vmatmul.mubr.f32.gmra.mxu0 %v723
      %v919 = vpop.f32.mrf.mxu0
      %v920 = vadd.f32 %v559, %v919
      %v921 = vpop.f32.mrf.mxu0
      %922 = vmatprep.mubr.f32.mxu0 0.0
      %923 = vmatmul.mubr.f32.gmra.mxu0 %v726
      %v924 = vpop.f32.mrf.mxu0
      %v925 = vadd.f32 %v564, %v924
      %v926 = vpop.f32.mrf.mxu0
      %927 = vmatprep.mubr.f32.mxu0 0.0
      %928 = vmatmul.mubr.f32.gmra.mxu0 %v729
      %v929 = vpop.f32.mrf.mxu0
      %v930 = vadd.f32 %v569, %v929
      %v931 = vpop.f32.mrf.mxu0
      %932 = vmatprep.mubr.f32.mxu0 0.0
      %933 = vmatmul.mubr.f32.gmra.mxu0 %v732
      %v934 = vpop.f32.mrf.mxu0
      %v935 = vadd.f32 %v574, %v934
      %v936 = vpop.f32.mrf.mxu0
      %937 = vmatprep.mubr.f32.mxu0 0.0
      %938 = vmatmul.mubr.f32.gmra.mxu0 %v735
      %v939 = vpop.f32.mrf.mxu0
      %v940 = vadd.f32 %v579, %v939
      %v941 = vpop.f32.mrf.mxu0
      %942 = vmatprep.mubr.f32.mxu0 0.0
      %943 = vmatmul.mubr.f32.gmra.mxu0 %v738
      %v944 = vpop.f32.mrf.mxu0
      %v945 = vadd.f32 %v584, %v944
      %v946 = vpop.f32.mrf.mxu0
      %947 = vmatprep.mubr.f32.mxu0 0.0
      %948 = vmatmul.mubr.f32.gmra.mxu0 %v741
      %v949 = vpop.f32.mrf.mxu0
      %v950 = vadd.f32 %v589, %v949
      %v951 = vpop.f32.mrf.mxu0
      %952 = vmatprep.mubr.f32.mxu0 0.0
      %953 = vmatmul.mubr.f32.gmra.mxu0 %v744
      %v954 = vpop.f32.mrf.mxu0
      %v955 = vadd.f32 %v594, %v954
      %v956 = vpop.f32.mrf.mxu0
      %957 = vmatprep.mubr.f32.mxu0 0.0
      %958 = vmatmul.mubr.f32.gmra.mxu0 %v747
      %v959 = vpop.f32.mrf.mxu0
      %v960 = vadd.f32 %v599, %v959
      %v961 = vpop.f32.mrf.mxu0
      %962 = vmatprep.mubr.f32.mxu0 0.0
      %963 = vmatmul.mubr.f32.gmra.mxu0 %v750
      %v964 = vpop.f32.mrf.mxu0
      %v965 = vadd.f32 %v604, %v964
      %v966 = vpop.f32.mrf.mxu0
      %967 = vmatprep.mubr.f32.mxu0 0.0
      %968 = vmatmul.mubr.f32.gmra.mxu0 %v753
      %v969 = vpop.f32.mrf.mxu0
      %v970 = vadd.f32 %v609, %v969
      %v971 = vpop.f32.mrf.mxu0
      %972 = vmatprep.mubr.f32.mxu0 0.0
      %973 = vmatmul.mubr.f32.gmra.mxu0 %v756
      %v974 = vpop.f32.mrf.mxu0
      %v975 = vadd.f32 %v614, %v974
      %v976 = vpop.f32.mrf.mxu0
      %977 = vmatprep.mubr.f32.mxu0 0.0
      %978 = vmatmul.mubr.f32.gmra.mxu0 %v759
      %v979 = vpop.f32.mrf.mxu0
      %v980 = vadd.f32 %v619, %v979
      %v981 = vpop.f32.mrf.mxu0
      %982 = vmatprep.mubr.f32.mxu0 0.0
      %983 = vmatmul.mubr.f32.gmra.mxu0 %v762
      %v984 = vpop.f32.mrf.mxu0
      %v985 = vadd.f32 %v624, %v984
      %v986 = vpop.f32.mrf.mxu0
      %987 = vmatprep.mubr.f32.mxu0 0.0
      %988 = vmatmul.mubr.f32.gmra.mxu0 %v765
      %v989 = vpop.f32.mrf.mxu0
      %v990 = vadd.f32 %v629, %v989
      %v991 = vpop.f32.mrf.mxu0
      %992 = vmatprep.mubr.f32.mxu0 0.0
      %993 = vmatmul.mubr.f32.gmra.mxu0 %v768
      %v994 = vpop.f32.mrf.mxu0
      %v995 = vadd.f32 %v634, %v994
      %v996 = vpop.f32.mrf.mxu0
      %997 = vmatprep.mubr.f32.mxu0 0.0
      %998 = vmatmul.mubr.f32.gmra.mxu0 %v771
      %v999 = vpop.f32.mrf.mxu0
      %v1000 = vadd.f32 %v639, %v999
      %v1001 = vpop.f32.mrf.mxu0
      %1002 = vmatprep.mubr.f32.mxu0 0.0
      %1003 = vmatmul.mubr.f32.gmra.mxu0 %v774
      %v1004 = vpop.f32.mrf.mxu0
      %v1005 = vadd.f32 %v644, %v1004
      %v1006 = vpop.f32.mrf.mxu0
      %1007 = vmatprep.mubr.f32.mxu0 0.0
      %1008 = vmatmul.mubr.f32.gmra.mxu0 %v777
      %v1009 = vpop.f32.mrf.mxu0
      %v1010 = vadd.f32 %v649, %v1009
      %v1011 = vpop.f32.mrf.mxu0
      %1012 = vmatprep.mubr.f32.mxu0 0.0
      %1013 = vmatmul.mubr.f32.gmra.mxu0 %v780
      %v1014 = vpop.f32.mrf.mxu0
      %v1015 = vadd.f32 %v654, %v1014
      %v1016 = vpop.f32.mrf.mxu0
      %1017 = vmatprep.mubr.f32.mxu0 0.0
      %1018 = vmatmul.mubr.f32.gmra.mxu0 %v783
      %v1019 = vpop.f32.mrf.mxu0
      %v1020 = vadd.f32 %v659, %v1019
      %v1021 = vpop.f32.mrf.mxu0
      %1022 = vmatprep.mubr.f32.mxu0 0.0
      %1023 = vmatmul.mubr.f32.gmra.mxu0 %v786
      %v1024 = vpop.f32.mrf.mxu0
      %v1025 = vadd.f32 %v664, %v1024
      %v1026 = vpop.f32.mrf.mxu0
      %1027 = vmatprep.mubr.f32.mxu0 0.0
      %1028 = vmatmul.mubr.f32.gmra.mxu0 %v789
      %v1029 = vpop.f32.mrf.mxu0
      %v1030 = vadd.f32 %v669, %v1029
      %v1031 = vpop.f32.mrf.mxu0
      %1032 = vmatprep.mubr.f32.mxu0 0.0
      %1033 = vmatmul.mubr.f32.gmra.mxu0 %v792
      %v1034 = vpop.f32.mrf.mxu0
      %v1035 = vadd.f32 %v674, %v1034
      %v1036 = vpop.f32.mrf.mxu0
      %1037 = vmatprep.mubr.f32.mxu0 0.0
      %1038 = vmatmul.mubr.f32.gmra.mxu0 %v795
      %v1039 = vpop.f32.mrf.mxu0
      %v1040 = vadd.f32 %v679, %v1039
      %v1041 = vpop.f32.mrf.mxu0
      %1042 = vmatprep.mubr.f32.mxu0 0.0
      %1043 = vmatmul.mubr.f32.gmra.mxu0 %v798
      %v1044 = vpop.f32.mrf.mxu0
      %v1045 = vadd.f32 %v684, %v1044
      %v1046 = vpop.f32.mrf.mxu0
      %1047 = vmatprep.mubr.f32.mxu0 0.0
      %1048 = vmatmul.mubr.f32.gmra.mxu0 %v801
      %v1049 = vpop.f32.mrf.mxu0
      %v1050 = vadd.f32 %v689, %v1049
      %v1051 = vpop.f32.mrf.mxu0
      %1052 = vdwg.mxu0
      %v1054 = vsel %vm330, %v290, 0
      %v1057 = vsel %vm330, %v291, 0
      %v1060 = vsel %vm330, %v292, 0
      %1062 = vmatprep.subr.mxu0 0.0
      %1063 = vmatpush1.msra.mxu0 0.0
      %1064 = vmatprep.subr.mxu0 0.0
      %1065 = vmatpush1.msra.mxu0 0.0
      %1066 = vmatprep.subr.mxu0 0.0
      %1067 = vmatpush1.msra.mxu0 0.0
      %1068 = vmatprep.subr.mxu0 0.0
      %1069 = vmatpush1.msra.mxu0 0.0
      %1070 = vmatprep.subr.mxu0 0.0
      %1071 = vmatpush1.msra.mxu0 0.0
      %1072 = vmatprep.subr.mxu0 0.0
      %1073 = vmatpush1.msra.mxu0 0.0
      %1074 = vmatprep.subr.mxu0 0.0
      %1075 = vmatpush1.msra.mxu0 0.0
      %1076 = vmatprep.subr.mxu0 0.0
      %1077 = vmatpush1.msra.mxu0 0.0
      %1078 = vmatprep.subr.mxu0 0.0
      %1079 = vmatpush1.msra.mxu0 0.0
      %1080 = vmatprep.subr.mxu0 0.0
      %1081 = vmatpush1.msra.mxu0 0.0
      %1082 = vmatprep.subr.mxu0 0.0
      %1083 = vmatpush1.msra.mxu0 0.0
      %1084 = vmatprep.subr.mxu0 0.0
      %1085 = vmatpush1.msra.mxu0 0.0
      %1086 = vmatprep.subr.mxu0 0.0
      %1087 = vmatpush1.msra.mxu0 %v196
      %1088 = vmatprep.subr.mxu0 0.0
      %1089 = vmatpush1.msra.mxu0 %v195
      %1090 = vmatprep.subr.mxu0 0.0
      %1091 = vmatpush1.msra.mxu0 %v194
      %1092 = vmatprep.subr.mxu0 0.0
      %1093 = vmatpush1.msra.mxu0 %v193
      %1094 = vmatprep.subr.mxu0 0.0
      %1095 = vmatpush2.msra.mxu0 0.0
      %1096 = vmatprep.subr.mxu0 0.0
      %1097 = vmatpush2.msra.mxu0 0.0
      %1098 = vmatprep.subr.mxu0 0.0
      %1099 = vmatpush2.msra.mxu0 0.0
      %1100 = vmatprep.subr.mxu0 0.0
      %1101 = vmatpush2.msra.mxu0 0.0
      %1102 = vmatprep.subr.mxu0 0.0
      %1103 = vmatpush2.msra.mxu0 0.0
      %1104 = vmatprep.subr.mxu0 0.0
      %1105 = vmatpush2.msra.mxu0 0.0
      %1106 = vmatprep.subr.mxu0 0.0
      %1107 = vmatpush2.msra.mxu0 0.0
      %1108 = vmatprep.subr.mxu0 0.0
      %1109 = vmatpush2.msra.mxu0 0.0
      %1110 = vmatprep.subr.mxu0 0.0
      %1111 = vmatpush2.msra.mxu0 0.0
      %1112 = vmatprep.subr.mxu0 0.0
      %1113 = vmatpush2.msra.mxu0 0.0
      %1114 = vmatprep.subr.mxu0 0.0
      %1115 = vmatpush2.msra.mxu0 0.0
      %1116 = vmatprep.subr.mxu0 0.0
      %1117 = vmatpush2.msra.mxu0 0.0
      %1118 = vmatprep.subr.mxu0 0.0
      %1119 = vmatpush2.msra.mxu0 0.0
      %1120 = vmatprep.subr.mxu0 0.0
      %1121 = vmatpush2.msra.mxu0 0.0
      %1122 = vmatprep.subr.mxu0 0.0
      %1123 = vmatpush2.msra.mxu0 0.0
      %1124 = vmatprep.subr.mxu0 0.0
      %1125 = vmatpush2.msra.mxu0 0.0
      %1126 = vmatprep.mubr.f32.mxu0 0.0
      %1127 = vmatmul.mubr.f32.gmra.mxu0 %v338
      %v1128 = vpop.f32.mrf.mxu0
      %v1129 = vadd.f32 0.0, %v1128
      %v1130 = vpop.f32.mrf.mxu0
      %1131 = vmatprep.mubr.f32.mxu0 0.0
      %1132 = vmatmul.mubr.f32.gmra.mxu0 %v341
      %v1133 = vpop.f32.mrf.mxu0
      %v1134 = vadd.f32 0.0, %v1133
      %v1135 = vpop.f32.mrf.mxu0
      %1136 = vmatprep.mubr.f32.mxu0 0.0
      %1137 = vmatmul.mubr.f32.gmra.mxu0 %v344
      %v1138 = vpop.f32.mrf.mxu0
      %v1139 = vadd.f32 0.0, %v1138
      %v1140 = vpop.f32.mrf.mxu0
      %1141 = vmatprep.mubr.f32.mxu0 0.0
      %1142 = vmatmul.mubr.f32.gmra.mxu0 %v347
      %v1143 = vpop.f32.mrf.mxu0
      %v1144 = vadd.f32 0.0, %v1143
      %v1145 = vpop.f32.mrf.mxu0
      %1146 = vmatprep.mubr.f32.mxu0 0.0
      %1147 = vmatmul.mubr.f32.gmra.mxu0 %v350
      %v1148 = vpop.f32.mrf.mxu0
      %v1149 = vadd.f32 0.0, %v1148
      %v1150 = vpop.f32.mrf.mxu0
      %1151 = vmatprep.mubr.f32.mxu0 0.0
      %1152 = vmatmul.mubr.f32.gmra.mxu0 %v353
      %v1153 = vpop.f32.mrf.mxu0
      %v1154 = vadd.f32 0.0, %v1153
      %v1155 = vpop.f32.mrf.mxu0
      %1156 = vmatprep.mubr.f32.mxu0 0.0
      %1157 = vmatmul.mubr.f32.gmra.mxu0 %v356
      %v1158 = vpop.f32.mrf.mxu0
      %v1159 = vadd.f32 0.0, %v1158
      %v1160 = vpop.f32.mrf.mxu0
      %1161 = vmatprep.mubr.f32.mxu0 0.0
      %1162 = vmatmul.mubr.f32.gmra.mxu0 %v359
      %v1163 = vpop.f32.mrf.mxu0
      %v1164 = vadd.f32 0.0, %v1163
      %v1165 = vpop.f32.mrf.mxu0
      %1166 = vmatprep.mubr.f32.mxu0 0.0
      %1167 = vmatmul.mubr.f32.gmra.mxu0 %v362
      %v1168 = vpop.f32.mrf.mxu0
      %v1169 = vadd.f32 0.0, %v1168
      %v1170 = vpop.f32.mrf.mxu0
      %1171 = vmatprep.mubr.f32.mxu0 0.0
      %1172 = vmatmul.mubr.f32.gmra.mxu0 %v365
      %v1173 = vpop.f32.mrf.mxu0
      %v1174 = vadd.f32 0.0, %v1173
      %v1175 = vpop.f32.mrf.mxu0
      %1176 = vmatprep.mubr.f32.mxu0 0.0
      %1177 = vmatmul.mubr.f32.gmra.mxu0 %v368
      %v1178 = vpop.f32.mrf.mxu0
      %v1179 = vadd.f32 0.0, %v1178
      %v1180 = vpop.f32.mrf.mxu0
      %1181 = vmatprep.mubr.f32.mxu0 0.0
      %1182 = vmatmul.mubr.f32.gmra.mxu0 %v371
      %v1183 = vpop.f32.mrf.mxu0
      %v1184 = vadd.f32 0.0, %v1183
      %v1185 = vpop.f32.mrf.mxu0
      %1186 = vmatprep.mubr.f32.mxu0 0.0
      %1187 = vmatmul.mubr.f32.gmra.mxu0 %v374
      %v1188 = vpop.f32.mrf.mxu0
      %v1189 = vadd.f32 0.0, %v1188
      %v1190 = vpop.f32.mrf.mxu0
      %1191 = vmatprep.mubr.f32.mxu0 0.0
      %1192 = vmatmul.mubr.f32.gmra.mxu0 %v377
      %v1193 = vpop.f32.mrf.mxu0
      %v1194 = vadd.f32 0.0, %v1193
      %v1195 = vpop.f32.mrf.mxu0
      %1196 = vmatprep.mubr.f32.mxu0 0.0
      %1197 = vmatmul.mubr.f32.gmra.mxu0 %v380
      %v1198 = vpop.f32.mrf.mxu0
      %v1199 = vadd.f32 0.0, %v1198
      %v1200 = vpop.f32.mrf.mxu0
      %1201 = vmatprep.mubr.f32.mxu0 0.0
      %1202 = vmatmul.mubr.f32.gmra.mxu0 %v383
      %v1203 = vpop.f32.mrf.mxu0
      %v1204 = vadd.f32 0.0, %v1203
      %v1205 = vpop.f32.mrf.mxu0
      %1206 = vmatprep.mubr.f32.mxu0 0.0
      %1207 = vmatmul.mubr.f32.gmra.mxu0 %v386
      %v1208 = vpop.f32.mrf.mxu0
      %v1209 = vadd.f32 0.0, %v1208
      %v1210 = vpop.f32.mrf.mxu0
      %1211 = vmatprep.mubr.f32.mxu0 0.0
      %1212 = vmatmul.mubr.f32.gmra.mxu0 %v389
      %v1213 = vpop.f32.mrf.mxu0
      %v1214 = vadd.f32 0.0, %v1213
      %v1215 = vpop.f32.mrf.mxu0
      %1216 = vmatprep.mubr.f32.mxu0 0.0
      %1217 = vmatmul.mubr.f32.gmra.mxu0 %v392
      %v1218 = vpop.f32.mrf.mxu0
      %v1219 = vadd.f32 0.0, %v1218
      %v1220 = vpop.f32.mrf.mxu0
      %1221 = vmatprep.mubr.f32.mxu0 0.0
      %1222 = vmatmul.mubr.f32.gmra.mxu0 %v395
      %v1223 = vpop.f32.mrf.mxu0
      %v1224 = vadd.f32 0.0, %v1223
      %v1225 = vpop.f32.mrf.mxu0
      %1226 = vmatprep.mubr.f32.mxu0 0.0
      %1227 = vmatmul.mubr.f32.gmra.mxu0 %v398
      %v1228 = vpop.f32.mrf.mxu0
      %v1229 = vadd.f32 0.0, %v1228
      %v1230 = vpop.f32.mrf.mxu0
      %1231 = vmatprep.mubr.f32.mxu0 0.0
      %1232 = vmatmul.mubr.f32.gmra.mxu0 %v401
      %v1233 = vpop.f32.mrf.mxu0
      %v1234 = vadd.f32 0.0, %v1233
      %v1235 = vpop.f32.mrf.mxu0
      %1236 = vmatprep.mubr.f32.mxu0 0.0
      %1237 = vmatmul.mubr.f32.gmra.mxu0 %v404
      %v1238 = vpop.f32.mrf.mxu0
      %v1239 = vadd.f32 0.0, %v1238
      %v1240 = vpop.f32.mrf.mxu0
      %1241 = vmatprep.mubr.f32.mxu0 0.0
      %1242 = vmatmul.mubr.f32.gmra.mxu0 %v407
      %v1243 = vpop.f32.mrf.mxu0
      %v1244 = vadd.f32 0.0, %v1243
      %v1245 = vpop.f32.mrf.mxu0
      %1246 = vmatprep.mubr.f32.mxu0 0.0
      %1247 = vmatmul.mubr.f32.gmra.mxu0 %v410
      %v1248 = vpop.f32.mrf.mxu0
      %v1249 = vadd.f32 0.0, %v1248
      %v1250 = vpop.f32.mrf.mxu0
      %1251 = vmatprep.mubr.f32.mxu0 0.0
      %1252 = vmatmul.mubr.f32.gmra.mxu0 %v413
      %v1253 = vpop.f32.mrf.mxu0
      %v1254 = vadd.f32 0.0, %v1253
      %v1255 = vpop.f32.mrf.mxu0
      %1256 = vmatprep.mubr.f32.mxu0 0.0
      %1257 = vmatmul.mubr.f32.gmra.mxu0 %v416
      %v1258 = vpop.f32.mrf.mxu0
      %v1259 = vadd.f32 0.0, %v1258
      %v1260 = vpop.f32.mrf.mxu0
      %1261 = vmatprep.mubr.f32.mxu0 0.0
      %1262 = vmatmul.mubr.f32.gmra.mxu0 %v419
      %v1263 = vpop.f32.mrf.mxu0
      %v1264 = vadd.f32 0.0, %v1263
      %v1265 = vpop.f32.mrf.mxu0
      %1266 = vmatprep.mubr.f32.mxu0 0.0
      %1267 = vmatmul.mubr.f32.gmra.mxu0 %v422
      %v1268 = vpop.f32.mrf.mxu0
      %v1269 = vadd.f32 0.0, %v1268
      %v1270 = vpop.f32.mrf.mxu0
      %1271 = vmatprep.mubr.f32.mxu0 0.0
      %1272 = vmatmul.mubr.f32.gmra.mxu0 %v425
      %v1273 = vpop.f32.mrf.mxu0
      %v1274 = vadd.f32 0.0, %v1273
      %v1275 = vpop.f32.mrf.mxu0
      %1276 = vmatprep.mubr.f32.mxu0 0.0
      %1277 = vmatmul.mubr.f32.gmra.mxu0 %v428
      %v1278 = vpop.f32.mrf.mxu0
      %v1279 = vadd.f32 0.0, %v1278
      %v1280 = vpop.f32.mrf.mxu0
      %1281 = vmatprep.mubr.f32.mxu0 0.0
      %1282 = vmatmul.mubr.f32.gmra.mxu0 %v431
      %v1283 = vpop.f32.mrf.mxu0
      %v1284 = vadd.f32 0.0, %v1283
      %v1285 = vpop.f32.mrf.mxu0
      %1286 = vmatprep.mubr.f32.mxu0 0.0
      %1287 = vmatmul.mubr.f32.gmra.mxu0 %v434
      %v1288 = vpop.f32.mrf.mxu0
      %v1289 = vadd.f32 0.0, %v1288
      %v1290 = vpop.f32.mrf.mxu0
      %1291 = vmatprep.mubr.f32.mxu0 0.0
      %1292 = vmatmul.mubr.f32.gmra.mxu0 %v437
      %v1293 = vpop.f32.mrf.mxu0
      %v1294 = vadd.f32 0.0, %v1293
      %v1295 = vpop.f32.mrf.mxu0
      %1296 = vmatprep.mubr.f32.mxu0 0.0
      %1297 = vmatmul.mubr.f32.gmra.mxu0 %v1054
      %v1298 = vpop.f32.mrf.mxu0
      %v1299 = vadd.f32 0.0, %v1298
      %v1300 = vpop.f32.mrf.mxu0
      %1301 = vmatprep.mubr.f32.mxu0 0.0
      %1302 = vmatmul.mubr.f32.gmra.mxu0 %v1057
      %v1303 = vpop.f32.mrf.mxu0
      %v1304 = vadd.f32 0.0, %v1303
      %v1305 = vpop.f32.mrf.mxu0
      %1306 = vmatprep.mubr.f32.mxu0 0.0
      %1307 = vmatmul.mubr.f32.gmra.mxu0 %v1060
      %v1308 = vpop.f32.mrf.mxu0
      %v1309 = vadd.f32 0.0, %v1308
      %v1310 = vpop.f32.mrf.mxu0
      %1311 = vdwg.mxu0
      %1312 = vmatprep.subr.mxu0 0.0
      %1313 = vmatpush1.msra.mxu0 0.0
      %1314 = vmatprep.subr.mxu0 0.0
      %1315 = vmatpush1.msra.mxu0 0.0
      %1316 = vmatprep.subr.mxu0 0.0
      %1317 = vmatpush1.msra.mxu0 0.0
      %1318 = vmatprep.subr.mxu0 0.0
      %1319 = vmatpush1.msra.mxu0 0.0
      %1320 = vmatprep.subr.mxu0 0.0
      %1321 = vmatpush1.msra.mxu0 0.0
      %1322 = vmatprep.subr.mxu0 0.0
      %1323 = vmatpush1.msra.mxu0 0.0
      %1324 = vmatprep.subr.mxu0 0.0
      %1325 = vmatpush1.msra.mxu0 0.0
      %1326 = vmatprep.subr.mxu0 0.0
      %1327 = vmatpush1.msra.mxu0 0.0
      %1328 = vmatprep.subr.mxu0 0.0
      %1329 = vmatpush1.msra.mxu0 0.0
      %1330 = vmatprep.subr.mxu0 0.0
      %1331 = vmatpush1.msra.mxu0 0.0
      %1332 = vmatprep.subr.mxu0 0.0
      %1333 = vmatpush1.msra.mxu0 0.0
      %1334 = vmatprep.subr.mxu0 0.0
      %1335 = vmatpush1.msra.mxu0 0.0
      %1336 = vmatprep.subr.mxu0 0.0
      %1337 = vmatpush1.msra.mxu0 %v191
      %1338 = vmatprep.subr.mxu0 0.0
      %1339 = vmatpush1.msra.mxu0 %v190
      %1340 = vmatprep.subr.mxu0 0.0
      %1341 = vmatpush1.msra.mxu0 %v189
      %1342 = vmatprep.subr.mxu0 0.0
      %1343 = vmatpush1.msra.mxu0 %v188
      %1344 = vmatprep.subr.mxu0 0.0
      %1345 = vmatpush2.msra.mxu0 0.0
      %1346 = vmatprep.subr.mxu0 0.0
      %1347 = vmatpush2.msra.mxu0 0.0
      %1348 = vmatprep.subr.mxu0 0.0
      %1349 = vmatpush2.msra.mxu0 0.0
      %1350 = vmatprep.subr.mxu0 0.0
      %1351 = vmatpush2.msra.mxu0 0.0
      %1352 = vmatprep.subr.mxu0 0.0
      %1353 = vmatpush2.msra.mxu0 0.0
      %1354 = vmatprep.subr.mxu0 0.0
      %1355 = vmatpush2.msra.mxu0 0.0
      %1356 = vmatprep.subr.mxu0 0.0
      %1357 = vmatpush2.msra.mxu0 0.0
      %1358 = vmatprep.subr.mxu0 0.0
      %1359 = vmatpush2.msra.mxu0 0.0
      %1360 = vmatprep.subr.mxu0 0.0
      %1361 = vmatpush2.msra.mxu0 0.0
      %1362 = vmatprep.subr.mxu0 0.0
      %1363 = vmatpush2.msra.mxu0 0.0
      %1364 = vmatprep.subr.mxu0 0.0
      %1365 = vmatpush2.msra.mxu0 0.0
      %1366 = vmatprep.subr.mxu0 0.0
      %1367 = vmatpush2.msra.mxu0 0.0
      %1368 = vmatprep.subr.mxu0 0.0
      %1369 = vmatpush2.msra.mxu0 0.0
      %1370 = vmatprep.subr.mxu0 0.0
      %1371 = vmatpush2.msra.mxu0 0.0
      %1372 = vmatprep.subr.mxu0 0.0
      %1373 = vmatpush2.msra.mxu0 0.0
      %1374 = vmatprep.subr.mxu0 0.0
      %1375 = vmatpush2.msra.mxu0 0.0
      %1376 = vmatprep.mubr.f32.mxu0 0.0
      %1377 = vmatmul.mubr.f32.gmra.mxu0 %v693
      %v1378 = vpop.f32.mrf.mxu0
      %v1379 = vadd.f32 %v1129, %v1378
      %v1380 = vpop.f32.mrf.mxu0
      %1381 = vmatprep.mubr.f32.mxu0 0.0
      %1382 = vmatmul.mubr.f32.gmra.mxu0 %v696
      %v1383 = vpop.f32.mrf.mxu0
      %v1384 = vadd.f32 %v1134, %v1383
      %v1385 = vpop.f32.mrf.mxu0
      %1386 = vmatprep.mubr.f32.mxu0 0.0
      %1387 = vmatmul.mubr.f32.gmra.mxu0 %v699
      %v1388 = vpop.f32.mrf.mxu0
      %v1389 = vadd.f32 %v1139, %v1388
      %v1390 = vpop.f32.mrf.mxu0
      %1391 = vmatprep.mubr.f32.mxu0 0.0
      %1392 = vmatmul.mubr.f32.gmra.mxu0 %v702
      %v1393 = vpop.f32.mrf.mxu0
      %v1394 = vadd.f32 %v1144, %v1393
      %v1395 = vpop.f32.mrf.mxu0
      %1396 = vmatprep.mubr.f32.mxu0 0.0
      %1397 = vmatmul.mubr.f32.gmra.mxu0 %v705
      %v1398 = vpop.f32.mrf.mxu0
      %v1399 = vadd.f32 %v1149, %v1398
      %v1400 = vpop.f32.mrf.mxu0
      %1401 = vmatprep.mubr.f32.mxu0 0.0
      %1402 = vmatmul.mubr.f32.gmra.mxu0 %v708
      %v1403 = vpop.f32.mrf.mxu0
      %v1404 = vadd.f32 %v1154, %v1403
      %v1405 = vpop.f32.mrf.mxu0
      %1406 = vmatprep.mubr.f32.mxu0 0.0
      %1407 = vmatmul.mubr.f32.gmra.mxu0 %v711
      %v1408 = vpop.f32.mrf.mxu0
      %v1409 = vadd.f32 %v1159, %v1408
      %v1410 = vpop.f32.mrf.mxu0
      %1411 = vmatprep.mubr.f32.mxu0 0.0
      %1412 = vmatmul.mubr.f32.gmra.mxu0 %v714
      %v1413 = vpop.f32.mrf.mxu0
      %v1414 = vadd.f32 %v1164, %v1413
      %v1415 = vpop.f32.mrf.mxu0
      %1416 = vmatprep.mubr.f32.mxu0 0.0
      %1417 = vmatmul.mubr.f32.gmra.mxu0 %v717
      %v1418 = vpop.f32.mrf.mxu0
      %v1419 = vadd.f32 %v1169, %v1418
      %v1420 = vpop.f32.mrf.mxu0
      %1421 = vmatprep.mubr.f32.mxu0 0.0
      %1422 = vmatmul.mubr.f32.gmra.mxu0 %v720
      %v1423 = vpop.f32.mrf.mxu0
      %v1424 = vadd.f32 %v1174, %v1423
      %v1425 = vpop.f32.mrf.mxu0
      %1426 = vmatprep.mubr.f32.mxu0 0.0
      %1427 = vmatmul.mubr.f32.gmra.mxu0 %v723
      %v1428 = vpop.f32.mrf.mxu0
      %v1429 = vadd.f32 %v1179, %v1428
      %v1430 = vpop.f32.mrf.mxu0
      %1431 = vmatprep.mubr.f32.mxu0 0.0
      %1432 = vmatmul.mubr.f32.gmra.mxu0 %v726
      %v1433 = vpop.f32.mrf.mxu0
      %v1434 = vadd.f32 %v1184, %v1433
      %v1435 = vpop.f32.mrf.mxu0
      %1436 = vmatprep.mubr.f32.mxu0 0.0
      %1437 = vmatmul.mubr.f32.gmra.mxu0 %v729
      %v1438 = vpop.f32.mrf.mxu0
      %v1439 = vadd.f32 %v1189, %v1438
      %v1440 = vpop.f32.mrf.mxu0
      %1441 = vmatprep.mubr.f32.mxu0 0.0
      %1442 = vmatmul.mubr.f32.gmra.mxu0 %v732
      %v1443 = vpop.f32.mrf.mxu0
      %v1444 = vadd.f32 %v1194, %v1443
      %v1445 = vpop.f32.mrf.mxu0
      %1446 = vmatprep.mubr.f32.mxu0 0.0
      %1447 = vmatmul.mubr.f32.gmra.mxu0 %v735
      %v1448 = vpop.f32.mrf.mxu0
      %v1449 = vadd.f32 %v1199, %v1448
      %v1450 = vpop.f32.mrf.mxu0
      %1451 = vmatprep.mubr.f32.mxu0 0.0
      %1452 = vmatmul.mubr.f32.gmra.mxu0 %v738
      %v1453 = vpop.f32.mrf.mxu0
      %v1454 = vadd.f32 %v1204, %v1453
      %v1455 = vpop.f32.mrf.mxu0
      %1456 = vmatprep.mubr.f32.mxu0 0.0
      %1457 = vmatmul.mubr.f32.gmra.mxu0 %v741
      %v1458 = vpop.f32.mrf.mxu0
      %v1459 = vadd.f32 %v1209, %v1458
      %v1460 = vpop.f32.mrf.mxu0
      %1461 = vmatprep.mubr.f32.mxu0 0.0
      %1462 = vmatmul.mubr.f32.gmra.mxu0 %v744
      %v1463 = vpop.f32.mrf.mxu0
      %v1464 = vadd.f32 %v1214, %v1463
      %v1465 = vpop.f32.mrf.mxu0
      %1466 = vmatprep.mubr.f32.mxu0 0.0
      %1467 = vmatmul.mubr.f32.gmra.mxu0 %v747
      %v1468 = vpop.f32.mrf.mxu0
      %v1469 = vadd.f32 %v1219, %v1468
      %v1470 = vpop.f32.mrf.mxu0
      %1471 = vmatprep.mubr.f32.mxu0 0.0
      %1472 = vmatmul.mubr.f32.gmra.mxu0 %v750
      %v1473 = vpop.f32.mrf.mxu0
      %v1474 = vadd.f32 %v1224, %v1473
      %v1475 = vpop.f32.mrf.mxu0
      %1476 = vmatprep.mubr.f32.mxu0 0.0
      %1477 = vmatmul.mubr.f32.gmra.mxu0 %v753
      %v1478 = vpop.f32.mrf.mxu0
      %v1479 = vadd.f32 %v1229, %v1478
      %v1480 = vpop.f32.mrf.mxu0
      %1481 = vmatprep.mubr.f32.mxu0 0.0
      %1482 = vmatmul.mubr.f32.gmra.mxu0 %v756
      %v1483 = vpop.f32.mrf.mxu0
      %v1484 = vadd.f32 %v1234, %v1483
      %v1485 = vpop.f32.mrf.mxu0
      %1486 = vmatprep.mubr.f32.mxu0 0.0
      %1487 = vmatmul.mubr.f32.gmra.mxu0 %v759
      %v1488 = vpop.f32.mrf.mxu0
      %v1489 = vadd.f32 %v1239, %v1488
      %v1490 = vpop.f32.mrf.mxu0
      %1491 = vmatprep.mubr.f32.mxu0 0.0
      %1492 = vmatmul.mubr.f32.gmra.mxu0 %v762
      %v1493 = vpop.f32.mrf.mxu0
      %v1494 = vadd.f32 %v1244, %v1493
      %v1495 = vpop.f32.mrf.mxu0
      %1496 = vmatprep.mubr.f32.mxu0 0.0
      %1497 = vmatmul.mubr.f32.gmra.mxu0 %v765
      %v1498 = vpop.f32.mrf.mxu0
      %v1499 = vadd.f32 %v1249, %v1498
      %v1500 = vpop.f32.mrf.mxu0
      %1501 = vmatprep.mubr.f32.mxu0 0.0
      %1502 = vmatmul.mubr.f32.gmra.mxu0 %v768
      %v1503 = vpop.f32.mrf.mxu0
      %v1504 = vadd.f32 %v1254, %v1503
      %v1505 = vpop.f32.mrf.mxu0
      %1506 = vmatprep.mubr.f32.mxu0 0.0
      %1507 = vmatmul.mubr.f32.gmra.mxu0 %v771
      %v1508 = vpop.f32.mrf.mxu0
      %v1509 = vadd.f32 %v1259, %v1508
      %v1510 = vpop.f32.mrf.mxu0
      %1511 = vmatprep.mubr.f32.mxu0 0.0
      %1512 = vmatmul.mubr.f32.gmra.mxu0 %v774
      %v1513 = vpop.f32.mrf.mxu0
      %v1514 = vadd.f32 %v1264, %v1513
      %v1515 = vpop.f32.mrf.mxu0
      %1516 = vmatprep.mubr.f32.mxu0 0.0
      %1517 = vmatmul.mubr.f32.gmra.mxu0 %v777
      %v1518 = vpop.f32.mrf.mxu0
      %v1519 = vadd.f32 %v1269, %v1518
      %v1520 = vpop.f32.mrf.mxu0
      %1521 = vmatprep.mubr.f32.mxu0 0.0
      %1522 = vmatmul.mubr.f32.gmra.mxu0 %v780
      %v1523 = vpop.f32.mrf.mxu0
      %v1524 = vadd.f32 %v1274, %v1523
      %v1525 = vpop.f32.mrf.mxu0
      %1526 = vmatprep.mubr.f32.mxu0 0.0
      %1527 = vmatmul.mubr.f32.gmra.mxu0 %v783
      %v1528 = vpop.f32.mrf.mxu0
      %v1529 = vadd.f32 %v1279, %v1528
      %v1530 = vpop.f32.mrf.mxu0
      %1531 = vmatprep.mubr.f32.mxu0 0.0
      %1532 = vmatmul.mubr.f32.gmra.mxu0 %v786
      %v1533 = vpop.f32.mrf.mxu0
      %v1534 = vadd.f32 %v1284, %v1533
      %v1535 = vpop.f32.mrf.mxu0
      %1536 = vmatprep.mubr.f32.mxu0 0.0
      %1537 = vmatmul.mubr.f32.gmra.mxu0 %v789
      %v1538 = vpop.f32.mrf.mxu0
      %v1539 = vadd.f32 %v1289, %v1538
      %v1540 = vpop.f32.mrf.mxu0
      %1541 = vmatprep.mubr.f32.mxu0 0.0
      %1542 = vmatmul.mubr.f32.gmra.mxu0 %v792
      %v1543 = vpop.f32.mrf.mxu0
      %v1544 = vadd.f32 %v1294, %v1543
      %v1545 = vpop.f32.mrf.mxu0
      %1546 = vmatprep.mubr.f32.mxu0 0.0
      %1547 = vmatmul.mubr.f32.gmra.mxu0 %v795
      %v1548 = vpop.f32.mrf.mxu0
      %v1549 = vadd.f32 %v1299, %v1548
      %v1550 = vpop.f32.mrf.mxu0
      %1551 = vmatprep.mubr.f32.mxu0 0.0
      %1552 = vmatmul.mubr.f32.gmra.mxu0 %v798
      %v1553 = vpop.f32.mrf.mxu0
      %v1554 = vadd.f32 %v1304, %v1553
      %v1555 = vpop.f32.mrf.mxu0
      %1556 = vmatprep.mubr.f32.mxu0 0.0
      %1557 = vmatmul.mubr.f32.gmra.mxu0 %v801
      %v1558 = vpop.f32.mrf.mxu0
      %v1559 = vadd.f32 %v1309, %v1558
      %v1560 = vpop.f32.mrf.mxu0
      %1561 = vdwg.mxu0
      %1562 = vmatprep.subr.mxu0 0.0
      %1563 = vmatpush1.msra.mxu0 0.0
      %1564 = vmatprep.subr.mxu0 0.0
      %1565 = vmatpush1.msra.mxu0 0.0
      %1566 = vmatprep.subr.mxu0 0.0
      %1567 = vmatpush1.msra.mxu0 0.0
      %1568 = vmatprep.subr.mxu0 0.0
      %1569 = vmatpush1.msra.mxu0 0.0
      %1570 = vmatprep.subr.mxu0 0.0
      %1571 = vmatpush1.msra.mxu0 0.0
      %1572 = vmatprep.subr.mxu0 0.0
      %1573 = vmatpush1.msra.mxu0 0.0
      %1574 = vmatprep.subr.mxu0 0.0
      %1575 = vmatpush1.msra.mxu0 0.0
      %1576 = vmatprep.subr.mxu0 0.0
      %1577 = vmatpush1.msra.mxu0 0.0
      %1578 = vmatprep.subr.mxu0 0.0
      %1579 = vmatpush1.msra.mxu0 0.0
      %1580 = vmatprep.subr.mxu0 0.0
      %1581 = vmatpush1.msra.mxu0 0.0
      %1582 = vmatprep.subr.mxu0 0.0
      %1583 = vmatpush1.msra.mxu0 0.0
      %1584 = vmatprep.subr.mxu0 0.0
      %1585 = vmatpush1.msra.mxu0 0.0
      %1586 = vmatprep.subr.mxu0 0.0
      %1587 = vmatpush1.msra.mxu0 %v206
      %1588 = vmatprep.subr.mxu0 0.0
      %1589 = vmatpush1.msra.mxu0 %v205
      %1590 = vmatprep.subr.mxu0 0.0
      %1591 = vmatpush1.msra.mxu0 %v204
      %1592 = vmatprep.subr.mxu0 0.0
      %1593 = vmatpush1.msra.mxu0 %v203
      %1594 = vmatprep.subr.mxu0 0.0
      %1595 = vmatpush2.msra.mxu0 0.0
      %1596 = vmatprep.subr.mxu0 0.0
      %1597 = vmatpush2.msra.mxu0 0.0
      %1598 = vmatprep.subr.mxu0 0.0
      %1599 = vmatpush2.msra.mxu0 0.0
      %1600 = vmatprep.subr.mxu0 0.0
      %1601 = vmatpush2.msra.mxu0 0.0
      %1602 = vmatprep.subr.mxu0 0.0
      %1603 = vmatpush2.msra.mxu0 0.0
      %1604 = vmatprep.subr.mxu0 0.0
      %1605 = vmatpush2.msra.mxu0 0.0
      %1606 = vmatprep.subr.mxu0 0.0
      %1607 = vmatpush2.msra.mxu0 0.0
      %1608 = vmatprep.subr.mxu0 0.0
      %1609 = vmatpush2.msra.mxu0 0.0
      %1610 = vmatprep.subr.mxu0 0.0
      %1611 = vmatpush2.msra.mxu0 0.0
      %1612 = vmatprep.subr.mxu0 0.0
      %1613 = vmatpush2.msra.mxu0 0.0
      %1614 = vmatprep.subr.mxu0 0.0
      %1615 = vmatpush2.msra.mxu0 0.0
      %1616 = vmatprep.subr.mxu0 0.0
      %1617 = vmatpush2.msra.mxu0 0.0
      %1618 = vmatprep.subr.mxu0 0.0
      %1619 = vmatpush2.msra.mxu0 0.0
      %1620 = vmatprep.subr.mxu0 0.0
      %1621 = vmatpush2.msra.mxu0 0.0
      %1622 = vmatprep.subr.mxu0 0.0
      %1623 = vmatpush2.msra.mxu0 0.0
      %1624 = vmatprep.subr.mxu0 0.0
      %1625 = vmatpush2.msra.mxu0 0.0
      %1626 = vmatprep.mubr.f32.mxu0 0.0
      %1627 = vmatmul.mubr.f32.gmra.mxu0 %v332
      %v1628 = vpop.f32.mrf.mxu0
      %v1629 = vadd.f32 0.0, %v1628
      %v1630 = vpop.f32.mrf.mxu0
      %1631 = vmatprep.mubr.f32.mxu0 0.0
      %1632 = vmatmul.mubr.f32.gmra.mxu0 %v335
      %v1633 = vpop.f32.mrf.mxu0
      %v1634 = vadd.f32 0.0, %v1633
      %v1635 = vpop.f32.mrf.mxu0
      %1636 = vmatprep.mubr.f32.mxu0 0.0
      %1637 = vmatmul.mubr.f32.gmra.mxu0 %v338
      %v1638 = vpop.f32.mrf.mxu0
      %v1639 = vadd.f32 0.0, %v1638
      %v1640 = vpop.f32.mrf.mxu0
      %1641 = vmatprep.mubr.f32.mxu0 0.0
      %1642 = vmatmul.mubr.f32.gmra.mxu0 %v341
      %v1643 = vpop.f32.mrf.mxu0
      %v1644 = vadd.f32 0.0, %v1643
      %v1645 = vpop.f32.mrf.mxu0
      %1646 = vmatprep.mubr.f32.mxu0 0.0
      %1647 = vmatmul.mubr.f32.gmra.mxu0 %v344
      %v1648 = vpop.f32.mrf.mxu0
      %v1649 = vadd.f32 0.0, %v1648
      %v1650 = vpop.f32.mrf.mxu0
      %1651 = vmatprep.mubr.f32.mxu0 0.0
      %1652 = vmatmul.mubr.f32.gmra.mxu0 %v347
      %v1653 = vpop.f32.mrf.mxu0
      %v1654 = vadd.f32 0.0, %v1653
      %v1655 = vpop.f32.mrf.mxu0
      %1656 = vmatprep.mubr.f32.mxu0 0.0
      %1657 = vmatmul.mubr.f32.gmra.mxu0 %v350
      %v1658 = vpop.f32.mrf.mxu0
      %v1659 = vadd.f32 0.0, %v1658
      %v1660 = vpop.f32.mrf.mxu0
      %1661 = vmatprep.mubr.f32.mxu0 0.0
      %1662 = vmatmul.mubr.f32.gmra.mxu0 %v353
      %v1663 = vpop.f32.mrf.mxu0
      %v1664 = vadd.f32 0.0, %v1663
      %v1665 = vpop.f32.mrf.mxu0
      %1666 = vmatprep.mubr.f32.mxu0 0.0
      %1667 = vmatmul.mubr.f32.gmra.mxu0 %v356
      %v1668 = vpop.f32.mrf.mxu0
      %v1669 = vadd.f32 0.0, %v1668
      %v1670 = vpop.f32.mrf.mxu0
      %1671 = vmatprep.mubr.f32.mxu0 0.0
      %1672 = vmatmul.mubr.f32.gmra.mxu0 %v359
      %v1673 = vpop.f32.mrf.mxu0
      %v1674 = vadd.f32 0.0, %v1673
      %v1675 = vpop.f32.mrf.mxu0
      %1676 = vmatprep.mubr.f32.mxu0 0.0
      %1677 = vmatmul.mubr.f32.gmra.mxu0 %v362
      %v1678 = vpop.f32.mrf.mxu0
      %v1679 = vadd.f32 0.0, %v1678
      %v1680 = vpop.f32.mrf.mxu0
      %1681 = vmatprep.mubr.f32.mxu0 0.0
      %1682 = vmatmul.mubr.f32.gmra.mxu0 %v365
      %v1683 = vpop.f32.mrf.mxu0
      %v1684 = vadd.f32 0.0, %v1683
      %v1685 = vpop.f32.mrf.mxu0
      %1686 = vmatprep.mubr.f32.mxu0 0.0
      %1687 = vmatmul.mubr.f32.gmra.mxu0 %v368
      %v1688 = vpop.f32.mrf.mxu0
      %v1689 = vadd.f32 0.0, %v1688
      %v1690 = vpop.f32.mrf.mxu0
      %1691 = vmatprep.mubr.f32.mxu0 0.0
      %1692 = vmatmul.mubr.f32.gmra.mxu0 %v371
      %v1693 = vpop.f32.mrf.mxu0
      %v1694 = vadd.f32 0.0, %v1693
      %v1695 = vpop.f32.mrf.mxu0
      %1696 = vmatprep.mubr.f32.mxu0 0.0
      %1697 = vmatmul.mubr.f32.gmra.mxu0 %v374
      %v1698 = vpop.f32.mrf.mxu0
      %v1699 = vadd.f32 0.0, %v1698
      %v1700 = vpop.f32.mrf.mxu0
      %1701 = vmatprep.mubr.f32.mxu0 0.0
      %1702 = vmatmul.mubr.f32.gmra.mxu0 %v377
      %v1703 = vpop.f32.mrf.mxu0
      %v1704 = vadd.f32 0.0, %v1703
      %v1705 = vpop.f32.mrf.mxu0
      %1706 = vmatprep.mubr.f32.mxu0 0.0
      %1707 = vmatmul.mubr.f32.gmra.mxu0 %v380
      %v1708 = vpop.f32.mrf.mxu0
      %v1709 = vadd.f32 0.0, %v1708
      %v1710 = vpop.f32.mrf.mxu0
      %1711 = vmatprep.mubr.f32.mxu0 0.0
      %1712 = vmatmul.mubr.f32.gmra.mxu0 %v383
      %v1713 = vpop.f32.mrf.mxu0
      %v1714 = vadd.f32 0.0, %v1713
      %v1715 = vpop.f32.mrf.mxu0
      %1716 = vmatprep.mubr.f32.mxu0 0.0
      %1717 = vmatmul.mubr.f32.gmra.mxu0 %v386
      %v1718 = vpop.f32.mrf.mxu0
      %v1719 = vadd.f32 0.0, %v1718
      %v1720 = vpop.f32.mrf.mxu0
      %1721 = vmatprep.mubr.f32.mxu0 0.0
      %1722 = vmatmul.mubr.f32.gmra.mxu0 %v389
      %v1723 = vpop.f32.mrf.mxu0
      %v1724 = vadd.f32 0.0, %v1723
      %v1725 = vpop.f32.mrf.mxu0
      %1726 = vmatprep.mubr.f32.mxu0 0.0
      %1727 = vmatmul.mubr.f32.gmra.mxu0 %v392
      %v1728 = vpop.f32.mrf.mxu0
      %v1729 = vadd.f32 0.0, %v1728
      %v1730 = vpop.f32.mrf.mxu0
      %1731 = vmatprep.mubr.f32.mxu0 0.0
      %1732 = vmatmul.mubr.f32.gmra.mxu0 %v395
      %v1733 = vpop.f32.mrf.mxu0
      %v1734 = vadd.f32 0.0, %v1733
      %v1735 = vpop.f32.mrf.mxu0
      %1736 = vmatprep.mubr.f32.mxu0 0.0
      %1737 = vmatmul.mubr.f32.gmra.mxu0 %v398
      %v1738 = vpop.f32.mrf.mxu0
      %v1739 = vadd.f32 0.0, %v1738
      %v1740 = vpop.f32.mrf.mxu0
      %1741 = vmatprep.mubr.f32.mxu0 0.0
      %1742 = vmatmul.mubr.f32.gmra.mxu0 %v401
      %v1743 = vpop.f32.mrf.mxu0
      %v1744 = vadd.f32 0.0, %v1743
      %v1745 = vpop.f32.mrf.mxu0
      %1746 = vmatprep.mubr.f32.mxu0 0.0
      %1747 = vmatmul.mubr.f32.gmra.mxu0 %v404
      %v1748 = vpop.f32.mrf.mxu0
      %v1749 = vadd.f32 0.0, %v1748
      %v1750 = vpop.f32.mrf.mxu0
      %1751 = vmatprep.mubr.f32.mxu0 0.0
      %1752 = vmatmul.mubr.f32.gmra.mxu0 %v407
      %v1753 = vpop.f32.mrf.mxu0
      %v1754 = vadd.f32 0.0, %v1753
      %v1755 = vpop.f32.mrf.mxu0
      %1756 = vmatprep.mubr.f32.mxu0 0.0
      %1757 = vmatmul.mubr.f32.gmra.mxu0 %v410
      %v1758 = vpop.f32.mrf.mxu0
      %v1759 = vadd.f32 0.0, %v1758
      %v1760 = vpop.f32.mrf.mxu0
      %1761 = vmatprep.mubr.f32.mxu0 0.0
      %1762 = vmatmul.mubr.f32.gmra.mxu0 %v413
      %v1763 = vpop.f32.mrf.mxu0
      %v1764 = vadd.f32 0.0, %v1763
      %v1765 = vpop.f32.mrf.mxu0
      %1766 = vmatprep.mubr.f32.mxu0 0.0
      %1767 = vmatmul.mubr.f32.gmra.mxu0 %v416
      %v1768 = vpop.f32.mrf.mxu0
      %v1769 = vadd.f32 0.0, %v1768
      %v1770 = vpop.f32.mrf.mxu0
      %1771 = vmatprep.mubr.f32.mxu0 0.0
      %1772 = vmatmul.mubr.f32.gmra.mxu0 %v419
      %v1773 = vpop.f32.mrf.mxu0
      %v1774 = vadd.f32 0.0, %v1773
      %v1775 = vpop.f32.mrf.mxu0
      %1776 = vmatprep.mubr.f32.mxu0 0.0
      %1777 = vmatmul.mubr.f32.gmra.mxu0 %v422
      %v1778 = vpop.f32.mrf.mxu0
      %v1779 = vadd.f32 0.0, %v1778
      %v1780 = vpop.f32.mrf.mxu0
      %1781 = vmatprep.mubr.f32.mxu0 0.0
      %1782 = vmatmul.mubr.f32.gmra.mxu0 %v425
      %v1783 = vpop.f32.mrf.mxu0
      %v1784 = vadd.f32 0.0, %v1783
      %v1785 = vpop.f32.mrf.mxu0
      %1786 = vmatprep.mubr.f32.mxu0 0.0
      %1787 = vmatmul.mubr.f32.gmra.mxu0 %v428
      %v1788 = vpop.f32.mrf.mxu0
      %v1789 = vadd.f32 0.0, %v1788
      %v1790 = vpop.f32.mrf.mxu0
      %1791 = vmatprep.mubr.f32.mxu0 0.0
      %1792 = vmatmul.mubr.f32.gmra.mxu0 %v431
      %v1793 = vpop.f32.mrf.mxu0
      %v1794 = vadd.f32 0.0, %v1793
      %v1795 = vpop.f32.mrf.mxu0
      %1796 = vmatprep.mubr.f32.mxu0 0.0
      %1797 = vmatmul.mubr.f32.gmra.mxu0 %v434
      %v1798 = vpop.f32.mrf.mxu0
      %v1799 = vadd.f32 0.0, %v1798
      %v1800 = vpop.f32.mrf.mxu0
      %1801 = vmatprep.mubr.f32.mxu0 0.0
      %1802 = vmatmul.mubr.f32.gmra.mxu0 %v437
      %v1803 = vpop.f32.mrf.mxu0
      %v1804 = vadd.f32 0.0, %v1803
      %v1805 = vpop.f32.mrf.mxu0
      %1806 = vmatprep.mubr.f32.mxu0 0.0
      %1807 = vmatmul.mubr.f32.gmra.mxu0 %v440
      %v1808 = vpop.f32.mrf.mxu0
      %v1809 = vadd.f32 0.0, %v1808
      %v1810 = vpop.f32.mrf.mxu0
      %1811 = vdwg.mxu0
      %1812 = vmatprep.subr.mxu0 0.0
      %1813 = vmatpush1.msra.mxu0 0.0
      %1814 = vmatprep.subr.mxu0 0.0
      %1815 = vmatpush1.msra.mxu0 0.0
      %1816 = vmatprep.subr.mxu0 0.0
      %1817 = vmatpush1.msra.mxu0 0.0
      %1818 = vmatprep.subr.mxu0 0.0
      %1819 = vmatpush1.msra.mxu0 0.0
      %1820 = vmatprep.subr.mxu0 0.0
      %1821 = vmatpush1.msra.mxu0 0.0
      %1822 = vmatprep.subr.mxu0 0.0
      %1823 = vmatpush1.msra.mxu0 0.0
      %1824 = vmatprep.subr.mxu0 0.0
      %1825 = vmatpush1.msra.mxu0 0.0
      %1826 = vmatprep.subr.mxu0 0.0
      %1827 = vmatpush1.msra.mxu0 0.0
      %1828 = vmatprep.subr.mxu0 0.0
      %1829 = vmatpush1.msra.mxu0 0.0
      %1830 = vmatprep.subr.mxu0 0.0
      %1831 = vmatpush1.msra.mxu0 0.0
      %1832 = vmatprep.subr.mxu0 0.0
      %1833 = vmatpush1.msra.mxu0 0.0
      %1834 = vmatprep.subr.mxu0 0.0
      %1835 = vmatpush1.msra.mxu0 0.0
      %1836 = vmatprep.subr.mxu0 0.0
      %1837 = vmatpush1.msra.mxu0 %v201
      %1838 = vmatprep.subr.mxu0 0.0
      %1839 = vmatpush1.msra.mxu0 %v200
      %1840 = vmatprep.subr.mxu0 0.0
      %1841 = vmatpush1.msra.mxu0 %v199
      %1842 = vmatprep.subr.mxu0 0.0
      %1843 = vmatpush1.msra.mxu0 %v198
      %1844 = vmatprep.subr.mxu0 0.0
      %1845 = vmatpush2.msra.mxu0 0.0
      %1846 = vmatprep.subr.mxu0 0.0
      %1847 = vmatpush2.msra.mxu0 0.0
      %1848 = vmatprep.subr.mxu0 0.0
      %1849 = vmatpush2.msra.mxu0 0.0
      %1850 = vmatprep.subr.mxu0 0.0
      %1851 = vmatpush2.msra.mxu0 0.0
      %1852 = vmatprep.subr.mxu0 0.0
      %1853 = vmatpush2.msra.mxu0 0.0
      %1854 = vmatprep.subr.mxu0 0.0
      %1855 = vmatpush2.msra.mxu0 0.0
      %1856 = vmatprep.subr.mxu0 0.0
      %1857 = vmatpush2.msra.mxu0 0.0
      %1858 = vmatprep.subr.mxu0 0.0
      %1859 = vmatpush2.msra.mxu0 0.0
      %1860 = vmatprep.subr.mxu0 0.0
      %1861 = vmatpush2.msra.mxu0 0.0
      %1862 = vmatprep.subr.mxu0 0.0
      %1863 = vmatpush2.msra.mxu0 0.0
      %1864 = vmatprep.subr.mxu0 0.0
      %1865 = vmatpush2.msra.mxu0 0.0
      %1866 = vmatprep.subr.mxu0 0.0
      %1867 = vmatpush2.msra.mxu0 0.0
      %1868 = vmatprep.subr.mxu0 0.0
      %1869 = vmatpush2.msra.mxu0 0.0
      %1870 = vmatprep.subr.mxu0 0.0
      %1871 = vmatpush2.msra.mxu0 0.0
      %1872 = vmatprep.subr.mxu0 0.0
      %1873 = vmatpush2.msra.mxu0 0.0
      %1874 = vmatprep.subr.mxu0 0.0
      %1875 = vmatpush2.msra.mxu0 0.0
      %1876 = vmatprep.mubr.f32.mxu0 0.0
      %1877 = vmatmul.mubr.f32.gmra.mxu0 %v693
      %v1878 = vpop.f32.mrf.mxu0
      %v1879 = vadd.f32 %v1629, %v1878
      %v1880 = vpop.f32.mrf.mxu0
      %1881 = vmatprep.mubr.f32.mxu0 0.0
      %1882 = vmatmul.mubr.f32.gmra.mxu0 %v696
      %v1883 = vpop.f32.mrf.mxu0
      %v1884 = vadd.f32 %v1634, %v1883
      %v1885 = vpop.f32.mrf.mxu0
      %1886 = vmatprep.mubr.f32.mxu0 0.0
      %1887 = vmatmul.mubr.f32.gmra.mxu0 %v699
      %v1888 = vpop.f32.mrf.mxu0
      %v1889 = vadd.f32 %v1639, %v1888
      %v1890 = vpop.f32.mrf.mxu0
      %1891 = vmatprep.mubr.f32.mxu0 0.0
      %1892 = vmatmul.mubr.f32.gmra.mxu0 %v702
      %v1893 = vpop.f32.mrf.mxu0
      %v1894 = vadd.f32 %v1644, %v1893
      %v1895 = vpop.f32.mrf.mxu0
      %1896 = vmatprep.mubr.f32.mxu0 0.0
      %1897 = vmatmul.mubr.f32.gmra.mxu0 %v705
      %v1898 = vpop.f32.mrf.mxu0
      %v1899 = vadd.f32 %v1649, %v1898
      %v1900 = vpop.f32.mrf.mxu0
      %1901 = vmatprep.mubr.f32.mxu0 0.0
      %1902 = vmatmul.mubr.f32.gmra.mxu0 %v708
      %v1903 = vpop.f32.mrf.mxu0
      %v1904 = vadd.f32 %v1654, %v1903
      %v1905 = vpop.f32.mrf.mxu0
      %1906 = vmatprep.mubr.f32.mxu0 0.0
      %1907 = vmatmul.mubr.f32.gmra.mxu0 %v711
      %v1908 = vpop.f32.mrf.mxu0
      %v1909 = vadd.f32 %v1659, %v1908
      %v1910 = vpop.f32.mrf.mxu0
      %1911 = vmatprep.mubr.f32.mxu0 0.0
      %1912 = vmatmul.mubr.f32.gmra.mxu0 %v714
      %v1913 = vpop.f32.mrf.mxu0
      %v1914 = vadd.f32 %v1664, %v1913
      %v1915 = vpop.f32.mrf.mxu0
      %1916 = vmatprep.mubr.f32.mxu0 0.0
      %1917 = vmatmul.mubr.f32.gmra.mxu0 %v717
      %v1918 = vpop.f32.mrf.mxu0
      %v1919 = vadd.f32 %v1669, %v1918
      %v1920 = vpop.f32.mrf.mxu0
      %1921 = vmatprep.mubr.f32.mxu0 0.0
      %1922 = vmatmul.mubr.f32.gmra.mxu0 %v720
      %v1923 = vpop.f32.mrf.mxu0
      %v1924 = vadd.f32 %v1674, %v1923
      %v1925 = vpop.f32.mrf.mxu0
      %1926 = vmatprep.mubr.f32.mxu0 0.0
      %1927 = vmatmul.mubr.f32.gmra.mxu0 %v723
      %v1928 = vpop.f32.mrf.mxu0
      %v1929 = vadd.f32 %v1679, %v1928
      %v1930 = vpop.f32.mrf.mxu0
      %1931 = vmatprep.mubr.f32.mxu0 0.0
      %1932 = vmatmul.mubr.f32.gmra.mxu0 %v726
      %v1933 = vpop.f32.mrf.mxu0
      %v1934 = vadd.f32 %v1684, %v1933
      %v1935 = vpop.f32.mrf.mxu0
      %1936 = vmatprep.mubr.f32.mxu0 0.0
      %1937 = vmatmul.mubr.f32.gmra.mxu0 %v729
      %v1938 = vpop.f32.mrf.mxu0
      %v1939 = vadd.f32 %v1689, %v1938
      %v1940 = vpop.f32.mrf.mxu0
      %1941 = vmatprep.mubr.f32.mxu0 0.0
      %1942 = vmatmul.mubr.f32.gmra.mxu0 %v732
      %v1943 = vpop.f32.mrf.mxu0
      %v1944 = vadd.f32 %v1694, %v1943
      %v1945 = vpop.f32.mrf.mxu0
      %1946 = vmatprep.mubr.f32.mxu0 0.0
      %1947 = vmatmul.mubr.f32.gmra.mxu0 %v735
      %v1948 = vpop.f32.mrf.mxu0
      %v1949 = vadd.f32 %v1699, %v1948
      %v1950 = vpop.f32.mrf.mxu0
      %1951 = vmatprep.mubr.f32.mxu0 0.0
      %1952 = vmatmul.mubr.f32.gmra.mxu0 %v738
      %v1953 = vpop.f32.mrf.mxu0
      %v1954 = vadd.f32 %v1704, %v1953
      %v1955 = vpop.f32.mrf.mxu0
      %1956 = vmatprep.mubr.f32.mxu0 0.0
      %1957 = vmatmul.mubr.f32.gmra.mxu0 %v741
      %v1958 = vpop.f32.mrf.mxu0
      %v1959 = vadd.f32 %v1709, %v1958
      %v1960 = vpop.f32.mrf.mxu0
      %1961 = vmatprep.mubr.f32.mxu0 0.0
      %1962 = vmatmul.mubr.f32.gmra.mxu0 %v744
      %v1963 = vpop.f32.mrf.mxu0
      %v1964 = vadd.f32 %v1714, %v1963
      %v1965 = vpop.f32.mrf.mxu0
      %1966 = vmatprep.mubr.f32.mxu0 0.0
      %1967 = vmatmul.mubr.f32.gmra.mxu0 %v747
      %v1968 = vpop.f32.mrf.mxu0
      %v1969 = vadd.f32 %v1719, %v1968
      %v1970 = vpop.f32.mrf.mxu0
      %1971 = vmatprep.mubr.f32.mxu0 0.0
      %1972 = vmatmul.mubr.f32.gmra.mxu0 %v750
      %v1973 = vpop.f32.mrf.mxu0
      %v1974 = vadd.f32 %v1724, %v1973
      %v1975 = vpop.f32.mrf.mxu0
      %1976 = vmatprep.mubr.f32.mxu0 0.0
      %1977 = vmatmul.mubr.f32.gmra.mxu0 %v753
      %v1978 = vpop.f32.mrf.mxu0
      %v1979 = vadd.f32 %v1729, %v1978
      %v1980 = vpop.f32.mrf.mxu0
      %1981 = vmatprep.mubr.f32.mxu0 0.0
      %1982 = vmatmul.mubr.f32.gmra.mxu0 %v756
      %v1983 = vpop.f32.mrf.mxu0
      %v1984 = vadd.f32 %v1734, %v1983
      %v1985 = vpop.f32.mrf.mxu0
      %1986 = vmatprep.mubr.f32.mxu0 0.0
      %1987 = vmatmul.mubr.f32.gmra.mxu0 %v759
      %v1988 = vpop.f32.mrf.mxu0
      %v1989 = vadd.f32 %v1739, %v1988
      %v1990 = vpop.f32.mrf.mxu0
      %1991 = vmatprep.mubr.f32.mxu0 0.0
      %1992 = vmatmul.mubr.f32.gmra.mxu0 %v762
      %v1993 = vpop.f32.mrf.mxu0
      %v1994 = vadd.f32 %v1744, %v1993
      %v1995 = vpop.f32.mrf.mxu0
      %1996 = vmatprep.mubr.f32.mxu0 0.0
      %1997 = vmatmul.mubr.f32.gmra.mxu0 %v765
      %v1998 = vpop.f32.mrf.mxu0
      %v1999 = vadd.f32 %v1749, %v1998
      %v2000 = vpop.f32.mrf.mxu0
      %2001 = vmatprep.mubr.f32.mxu0 0.0
      %2002 = vmatmul.mubr.f32.gmra.mxu0 %v768
      %v2003 = vpop.f32.mrf.mxu0
      %v2004 = vadd.f32 %v1754, %v2003
      %v2005 = vpop.f32.mrf.mxu0
      %2006 = vmatprep.mubr.f32.mxu0 0.0
      %2007 = vmatmul.mubr.f32.gmra.mxu0 %v771
      %v2008 = vpop.f32.mrf.mxu0
      %v2009 = vadd.f32 %v1759, %v2008
      %v2010 = vpop.f32.mrf.mxu0
      %2011 = vmatprep.mubr.f32.mxu0 0.0
      %2012 = vmatmul.mubr.f32.gmra.mxu0 %v774
      %v2013 = vpop.f32.mrf.mxu0
      %v2014 = vadd.f32 %v1764, %v2013
      %v2015 = vpop.f32.mrf.mxu0
      %2016 = vmatprep.mubr.f32.mxu0 0.0
      %2017 = vmatmul.mubr.f32.gmra.mxu0 %v777
      %v2018 = vpop.f32.mrf.mxu0
      %v2019 = vadd.f32 %v1769, %v2018
      %v2020 = vpop.f32.mrf.mxu0
      %2021 = vmatprep.mubr.f32.mxu0 0.0
      %2022 = vmatmul.mubr.f32.gmra.mxu0 %v780
      %v2023 = vpop.f32.mrf.mxu0
      %v2024 = vadd.f32 %v1774, %v2023
      %v2025 = vpop.f32.mrf.mxu0
      %2026 = vmatprep.mubr.f32.mxu0 0.0
      %2027 = vmatmul.mubr.f32.gmra.mxu0 %v783
      %v2028 = vpop.f32.mrf.mxu0
      %v2029 = vadd.f32 %v1779, %v2028
      %v2030 = vpop.f32.mrf.mxu0
      %2031 = vmatprep.mubr.f32.mxu0 0.0
      %2032 = vmatmul.mubr.f32.gmra.mxu0 %v786
      %v2033 = vpop.f32.mrf.mxu0
      %v2034 = vadd.f32 %v1784, %v2033
      %v2035 = vpop.f32.mrf.mxu0
      %2036 = vmatprep.mubr.f32.mxu0 0.0
      %2037 = vmatmul.mubr.f32.gmra.mxu0 %v789
      %v2038 = vpop.f32.mrf.mxu0
      %v2039 = vadd.f32 %v1789, %v2038
      %v2040 = vpop.f32.mrf.mxu0
      %2041 = vmatprep.mubr.f32.mxu0 0.0
      %2042 = vmatmul.mubr.f32.gmra.mxu0 %v792
      %v2043 = vpop.f32.mrf.mxu0
      %v2044 = vadd.f32 %v1794, %v2043
      %v2045 = vpop.f32.mrf.mxu0
      %2046 = vmatprep.mubr.f32.mxu0 0.0
      %2047 = vmatmul.mubr.f32.gmra.mxu0 %v795
      %v2048 = vpop.f32.mrf.mxu0
      %v2049 = vadd.f32 %v1799, %v2048
      %v2050 = vpop.f32.mrf.mxu0
      %2051 = vmatprep.mubr.f32.mxu0 0.0
      %2052 = vmatmul.mubr.f32.gmra.mxu0 %v798
      %v2053 = vpop.f32.mrf.mxu0
      %v2054 = vadd.f32 %v1804, %v2053
      %v2055 = vpop.f32.mrf.mxu0
      %2056 = vmatprep.mubr.f32.mxu0 0.0
      %2057 = vmatmul.mubr.f32.gmra.mxu0 %v801
      %v2058 = vpop.f32.mrf.mxu0
      %v2059 = vadd.f32 %v1809, %v2058
      %v2060 = vpop.f32.mrf.mxu0
      %2061 = vdwg.mxu0
      %2062 = vmatprep.subr.mxu0 0.0
      %2063 = vmatpush1.msra.mxu0 0.0
      %2064 = vmatprep.subr.mxu0 0.0
      %2065 = vmatpush1.msra.mxu0 0.0
      %2066 = vmatprep.subr.mxu0 0.0
      %2067 = vmatpush1.msra.mxu0 0.0
      %2068 = vmatprep.subr.mxu0 0.0
      %2069 = vmatpush1.msra.mxu0 0.0
      %2070 = vmatprep.subr.mxu0 0.0
      %2071 = vmatpush1.msra.mxu0 0.0
      %2072 = vmatprep.subr.mxu0 0.0
      %2073 = vmatpush1.msra.mxu0 0.0
      %2074 = vmatprep.subr.mxu0 0.0
      %2075 = vmatpush1.msra.mxu0 0.0
      %2076 = vmatprep.subr.mxu0 0.0
      %2077 = vmatpush1.msra.mxu0 0.0
      %2078 = vmatprep.subr.mxu0 0.0
      %2079 = vmatpush1.msra.mxu0 0.0
      %2080 = vmatprep.subr.mxu0 0.0
      %2081 = vmatpush1.msra.mxu0 0.0
      %2082 = vmatprep.subr.mxu0 0.0
      %2083 = vmatpush1.msra.mxu0 0.0
      %2084 = vmatprep.subr.mxu0 0.0
      %2085 = vmatpush1.msra.mxu0 0.0
      %2086 = vmatprep.subr.mxu0 0.0
      %2087 = vmatpush1.msra.mxu0 %v211
      %2088 = vmatprep.subr.mxu0 0.0
      %2089 = vmatpush1.msra.mxu0 %v210
      %2090 = vmatprep.subr.mxu0 0.0
      %2091 = vmatpush1.msra.mxu0 %v209
      %2092 = vmatprep.subr.mxu0 0.0
      %2093 = vmatpush1.msra.mxu0 %v208
      %2094 = vmatprep.subr.mxu0 0.0
      %2095 = vmatpush2.msra.mxu0 0.0
      %2096 = vmatprep.subr.mxu0 0.0
      %2097 = vmatpush2.msra.mxu0 0.0
      %2098 = vmatprep.subr.mxu0 0.0
      %2099 = vmatpush2.msra.mxu0 0.0
      %2100 = vmatprep.subr.mxu0 0.0
      %2101 = vmatpush2.msra.mxu0 0.0
      %2102 = vmatprep.subr.mxu0 0.0
      %2103 = vmatpush2.msra.mxu0 0.0
      %2104 = vmatprep.subr.mxu0 0.0
      %2105 = vmatpush2.msra.mxu0 0.0
      %2106 = vmatprep.subr.mxu0 0.0
      %2107 = vmatpush2.msra.mxu0 0.0
      %2108 = vmatprep.subr.mxu0 0.0
      %2109 = vmatpush2.msra.mxu0 0.0
      %2110 = vmatprep.subr.mxu0 0.0
      %2111 = vmatpush2.msra.mxu0 0.0
      %2112 = vmatprep.subr.mxu0 0.0
      %2113 = vmatpush2.msra.mxu0 0.0
      %2114 = vmatprep.subr.mxu0 0.0
      %2115 = vmatpush2.msra.mxu0 0.0
      %2116 = vmatprep.subr.mxu0 0.0
      %2117 = vmatpush2.msra.mxu0 0.0
      %2118 = vmatprep.subr.mxu0 0.0
      %2119 = vmatpush2.msra.mxu0 0.0
      %2120 = vmatprep.subr.mxu0 0.0
      %2121 = vmatpush2.msra.mxu0 0.0
      %2122 = vmatprep.subr.mxu0 0.0
      %2123 = vmatpush2.msra.mxu0 0.0
      %2124 = vmatprep.subr.mxu0 0.0
      %2125 = vmatpush2.msra.mxu0 0.0
      %2126 = vmatprep.mubr.f32.mxu0 0.0
      %2127 = vmatmul.mubr.f32.gmra.mxu0 %v338
      %v2128 = vpop.f32.mrf.mxu0
      %v2129 = vadd.f32 0.0, %v2128
      %v2130 = vpop.f32.mrf.mxu0
      %2131 = vmatprep.mubr.f32.mxu0 0.0
      %2132 = vmatmul.mubr.f32.gmra.mxu0 %v341
      %v2133 = vpop.f32.mrf.mxu0
      %v2134 = vadd.f32 0.0, %v2133
      %v2135 = vpop.f32.mrf.mxu0
      %2136 = vmatprep.mubr.f32.mxu0 0.0
      %2137 = vmatmul.mubr.f32.gmra.mxu0 %v344
      %v2138 = vpop.f32.mrf.mxu0
      %v2139 = vadd.f32 0.0, %v2138
      %v2140 = vpop.f32.mrf.mxu0
      %2141 = vmatprep.mubr.f32.mxu0 0.0
      %2142 = vmatmul.mubr.f32.gmra.mxu0 %v347
      %v2143 = vpop.f32.mrf.mxu0
      %v2144 = vadd.f32 0.0, %v2143
      %v2145 = vpop.f32.mrf.mxu0
      %2146 = vmatprep.mubr.f32.mxu0 0.0
      %2147 = vmatmul.mubr.f32.gmra.mxu0 %v350
      %v2148 = vpop.f32.mrf.mxu0
      %v2149 = vadd.f32 0.0, %v2148
      %v2150 = vpop.f32.mrf.mxu0
      %2151 = vmatprep.mubr.f32.mxu0 0.0
      %2152 = vmatmul.mubr.f32.gmra.mxu0 %v353
      %v2153 = vpop.f32.mrf.mxu0
      %v2154 = vadd.f32 0.0, %v2153
      %v2155 = vpop.f32.mrf.mxu0
      %2156 = vmatprep.mubr.f32.mxu0 0.0
      %2157 = vmatmul.mubr.f32.gmra.mxu0 %v356
      %v2158 = vpop.f32.mrf.mxu0
      %v2159 = vadd.f32 0.0, %v2158
      %v2160 = vpop.f32.mrf.mxu0
      %2161 = vmatprep.mubr.f32.mxu0 0.0
      %2162 = vmatmul.mubr.f32.gmra.mxu0 %v359
      %v2163 = vpop.f32.mrf.mxu0
      %v2164 = vadd.f32 0.0, %v2163
      %v2165 = vpop.f32.mrf.mxu0
      %2166 = vmatprep.mubr.f32.mxu0 0.0
      %2167 = vmatmul.mubr.f32.gmra.mxu0 %v362
      %v2168 = vpop.f32.mrf.mxu0
      %v2169 = vadd.f32 0.0, %v2168
      %v2170 = vpop.f32.mrf.mxu0
      %2171 = vmatprep.mubr.f32.mxu0 0.0
      %2172 = vmatmul.mubr.f32.gmra.mxu0 %v365
      %v2173 = vpop.f32.mrf.mxu0
      %v2174 = vadd.f32 0.0, %v2173
      %v2175 = vpop.f32.mrf.mxu0
      %2176 = vmatprep.mubr.f32.mxu0 0.0
      %2177 = vmatmul.mubr.f32.gmra.mxu0 %v368
      %v2178 = vpop.f32.mrf.mxu0
      %v2179 = vadd.f32 0.0, %v2178
      %v2180 = vpop.f32.mrf.mxu0
      %2181 = vmatprep.mubr.f32.mxu0 0.0
      %2182 = vmatmul.mubr.f32.gmra.mxu0 %v371
      %v2183 = vpop.f32.mrf.mxu0
      %v2184 = vadd.f32 0.0, %v2183
      %v2185 = vpop.f32.mrf.mxu0
      %2186 = vmatprep.mubr.f32.mxu0 0.0
      %2187 = vmatmul.mubr.f32.gmra.mxu0 %v374
      %v2188 = vpop.f32.mrf.mxu0
      %v2189 = vadd.f32 0.0, %v2188
      %v2190 = vpop.f32.mrf.mxu0
      %2191 = vmatprep.mubr.f32.mxu0 0.0
      %2192 = vmatmul.mubr.f32.gmra.mxu0 %v377
      %v2193 = vpop.f32.mrf.mxu0
      %v2194 = vadd.f32 0.0, %v2193
      %v2195 = vpop.f32.mrf.mxu0
      %2196 = vmatprep.mubr.f32.mxu0 0.0
      %2197 = vmatmul.mubr.f32.gmra.mxu0 %v380
      %v2198 = vpop.f32.mrf.mxu0
      %v2199 = vadd.f32 0.0, %v2198
      %v2200 = vpop.f32.mrf.mxu0
      %2201 = vmatprep.mubr.f32.mxu0 0.0
      %2202 = vmatmul.mubr.f32.gmra.mxu0 %v383
      %v2203 = vpop.f32.mrf.mxu0
      %v2204 = vadd.f32 0.0, %v2203
      %v2205 = vpop.f32.mrf.mxu0
      %2206 = vmatprep.mubr.f32.mxu0 0.0
      %2207 = vmatmul.mubr.f32.gmra.mxu0 %v386
      %v2208 = vpop.f32.mrf.mxu0
      %v2209 = vadd.f32 0.0, %v2208
      %v2210 = vpop.f32.mrf.mxu0
      %2211 = vmatprep.mubr.f32.mxu0 0.0
      %2212 = vmatmul.mubr.f32.gmra.mxu0 %v389
      %v2213 = vpop.f32.mrf.mxu0
      %v2214 = vadd.f32 0.0, %v2213
      %v2215 = vpop.f32.mrf.mxu0
      %2216 = vmatprep.mubr.f32.mxu0 0.0
      %2217 = vmatmul.mubr.f32.gmra.mxu0 %v392
      %v2218 = vpop.f32.mrf.mxu0
      %v2219 = vadd.f32 0.0, %v2218
      %v2220 = vpop.f32.mrf.mxu0
      %2221 = vmatprep.mubr.f32.mxu0 0.0
      %2222 = vmatmul.mubr.f32.gmra.mxu0 %v395
      %v2223 = vpop.f32.mrf.mxu0
      %v2224 = vadd.f32 0.0, %v2223
      %v2225 = vpop.f32.mrf.mxu0
      %2226 = vmatprep.mubr.f32.mxu0 0.0
      %2227 = vmatmul.mubr.f32.gmra.mxu0 %v398
      %v2228 = vpop.f32.mrf.mxu0
      %v2229 = vadd.f32 0.0, %v2228
      %v2230 = vpop.f32.mrf.mxu0
      %2231 = vmatprep.mubr.f32.mxu0 0.0
      %2232 = vmatmul.mubr.f32.gmra.mxu0 %v401
      %v2233 = vpop.f32.mrf.mxu0
      %v2234 = vadd.f32 0.0, %v2233
      %v2235 = vpop.f32.mrf.mxu0
      %2236 = vmatprep.mubr.f32.mxu0 0.0
      %2237 = vmatmul.mubr.f32.gmra.mxu0 %v404
      %v2238 = vpop.f32.mrf.mxu0
      %v2239 = vadd.f32 0.0, %v2238
      %v2240 = vpop.f32.mrf.mxu0
      %2241 = vmatprep.mubr.f32.mxu0 0.0
      %2242 = vmatmul.mubr.f32.gmra.mxu0 %v407
      %v2243 = vpop.f32.mrf.mxu0
      %v2244 = vadd.f32 0.0, %v2243
      %v2245 = vpop.f32.mrf.mxu0
      %2246 = vmatprep.mubr.f32.mxu0 0.0
      %2247 = vmatmul.mubr.f32.gmra.mxu0 %v410
      %v2248 = vpop.f32.mrf.mxu0
      %v2249 = vadd.f32 0.0, %v2248
      %v2250 = vpop.f32.mrf.mxu0
      %2251 = vmatprep.mubr.f32.mxu0 0.0
      %2252 = vmatmul.mubr.f32.gmra.mxu0 %v413
      %v2253 = vpop.f32.mrf.mxu0
      %v2254 = vadd.f32 0.0, %v2253
      %v2255 = vpop.f32.mrf.mxu0
      %2256 = vmatprep.mubr.f32.mxu0 0.0
      %2257 = vmatmul.mubr.f32.gmra.mxu0 %v416
      %v2258 = vpop.f32.mrf.mxu0
      %v2259 = vadd.f32 0.0, %v2258
      %v2260 = vpop.f32.mrf.mxu0
      %2261 = vmatprep.mubr.f32.mxu0 0.0
      %2262 = vmatmul.mubr.f32.gmra.mxu0 %v419
      %v2263 = vpop.f32.mrf.mxu0
      %v2264 = vadd.f32 0.0, %v2263
      %v2265 = vpop.f32.mrf.mxu0
      %2266 = vmatprep.mubr.f32.mxu0 0.0
      %2267 = vmatmul.mubr.f32.gmra.mxu0 %v422
      %v2268 = vpop.f32.mrf.mxu0
      %v2269 = vadd.f32 0.0, %v2268
      %v2270 = vpop.f32.mrf.mxu0
      %2271 = vmatprep.mubr.f32.mxu0 0.0
      %2272 = vmatmul.mubr.f32.gmra.mxu0 %v425
      %v2273 = vpop.f32.mrf.mxu0
      %v2274 = vadd.f32 0.0, %v2273
      %v2275 = vpop.f32.mrf.mxu0
      %2276 = vmatprep.mubr.f32.mxu0 0.0
      %2277 = vmatmul.mubr.f32.gmra.mxu0 %v428
      %v2278 = vpop.f32.mrf.mxu0
      %v2279 = vadd.f32 0.0, %v2278
      %v2280 = vpop.f32.mrf.mxu0
      %2281 = vmatprep.mubr.f32.mxu0 0.0
      %2282 = vmatmul.mubr.f32.gmra.mxu0 %v431
      %v2283 = vpop.f32.mrf.mxu0
      %v2284 = vadd.f32 0.0, %v2283
      %v2285 = vpop.f32.mrf.mxu0
      %2286 = vmatprep.mubr.f32.mxu0 0.0
      %2287 = vmatmul.mubr.f32.gmra.mxu0 %v434
      %v2288 = vpop.f32.mrf.mxu0
      %v2289 = vadd.f32 0.0, %v2288
      %v2290 = vpop.f32.mrf.mxu0
      %2291 = vmatprep.mubr.f32.mxu0 0.0
      %2292 = vmatmul.mubr.f32.gmra.mxu0 %v437
      %v2293 = vpop.f32.mrf.mxu0
      %v2294 = vadd.f32 0.0, %v2293
      %v2295 = vpop.f32.mrf.mxu0
      %2296 = vmatprep.mubr.f32.mxu0 0.0
      %2297 = vmatmul.mubr.f32.gmra.mxu0 %v1054
      %v2298 = vpop.f32.mrf.mxu0
      %v2299 = vadd.f32 0.0, %v2298
      %v2300 = vpop.f32.mrf.mxu0
      %2301 = vmatprep.mubr.f32.mxu0 0.0
      %2302 = vmatmul.mubr.f32.gmra.mxu0 %v1057
      %v2303 = vpop.f32.mrf.mxu0
      %v2304 = vadd.f32 0.0, %v2303
      %v2305 = vpop.f32.mrf.mxu0
      %2306 = vmatprep.mubr.f32.mxu0 0.0
      %2307 = vmatmul.mubr.f32.gmra.mxu0 %v1060
      %v2308 = vpop.f32.mrf.mxu0
      %v2309 = vadd.f32 0.0, %v2308
      %v2310 = vpop.f32.mrf.mxu0
      %2311 = vdwg.mxu0
      %v2312 = vadd.f32 %v1879, %v2129
      %v2313 = vadd.f32 %v1884, %v2134
      %v2314 = vadd.f32 %v1889, %v2139
      %v2315 = vadd.f32 %v1894, %v2144
      %v2316 = vadd.f32 %v1899, %v2149
      %v2317 = vadd.f32 %v1904, %v2154
      %v2318 = vadd.f32 %v1909, %v2159
      %v2319 = vadd.f32 %v1914, %v2164
      %v2320 = vadd.f32 %v1919, %v2169
      %v2321 = vadd.f32 %v1924, %v2174
      %v2322 = vadd.f32 %v1929, %v2179
      %v2323 = vadd.f32 %v1934, %v2184
      %v2324 = vadd.f32 %v1939, %v2189
      %v2325 = vadd.f32 %v1944, %v2194
      %v2326 = vadd.f32 %v1949, %v2199
      %v2327 = vadd.f32 %v1954, %v2204
      %v2328 = vadd.f32 %v1959, %v2209
      %v2329 = vadd.f32 %v1964, %v2214
      %v2330 = vadd.f32 %v1969, %v2219
      %v2331 = vadd.f32 %v1974, %v2224
      %v2332 = vadd.f32 %v1979, %v2229
      %v2333 = vadd.f32 %v1984, %v2234
      %v2334 = vadd.f32 %v1989, %v2239
      %v2335 = vadd.f32 %v1994, %v2244
      %v2336 = vadd.f32 %v1999, %v2249
      %v2337 = vadd.f32 %v2004, %v2254
      %v2338 = vadd.f32 %v2009, %v2259
      %v2339 = vadd.f32 %v2014, %v2264
      %v2340 = vadd.f32 %v2019, %v2269
      %v2341 = vadd.f32 %v2024, %v2274
      %v2342 = vadd.f32 %v2029, %v2279
      %v2343 = vadd.f32 %v2034, %v2284
      %v2344 = vadd.f32 %v2039, %v2289
      %v2345 = vadd.f32 %v2044, %v2294
      %v2346 = vadd.f32 %v2049, %v2299
      %v2347 = vadd.f32 %v2054, %v2304
      %v2348 = vadd.f32 %v2059, %v2309
      %v2350 = vsel %vm330, %v293, 0
      %v2353 = vsel %vm330, %v294, 0
      %v2356 = vsel %vm330, %v295, 0
      %v2359 = vsel %vm330, %v296, 0
      %v2362 = vsel %vm330, %v297, 0
      %v2365 = vsel %vm330, %v298, 0
      %v2368 = vsel %vm330, %v299, 0
      %v2371 = vsel %vm330, %v300, 0
      %v2374 = vsel %vm330, %v301, 0
      %v2377 = vsel %vm330, %v302, 0
      %v2380 = vsel %vm330, %v303, 0
      %v2383 = vsel %vm330, %v304, 0
      %v2386 = vsel %vm330, %v305, 0
      %v2389 = vsel %vm330, %v306, 0
      %v2392 = vsel %vm330, %v307, 0
      %v2395 = vsel %vm330, %v308, 0
      %v2398 = vsel %vm330, %v309, 0
      %v2401 = vsel %vm330, %v310, 0
      %v2404 = vsel %vm330, %v311, 0
      %v2407 = vsel %vm330, %v312, 0
      %v2410 = vsel %vm330, %v313, 0
      %v2413 = vsel %vm330, %v314, 0
      %v2416 = vsel %vm330, %v315, 0
      %v2419 = vsel %vm330, %v316, 0
      %v2422 = vsel %vm330, %v317, 0
      %v2425 = vsel %vm330, %v318, 0
      %v2428 = vsel %vm330, %v319, 0
      %v2431 = vsel %vm330, %v320, 0
      %v2434 = vsel %vm330, %v321, 0
      %v2437 = vsel %vm330, %v322, 0
      %v2440 = vsel %vm330, %v323, 0
      %v2443 = vsel %vm330, %v324, 0
      %v2446 = vsel %vm330, %v325, 0
      %v2449 = vsel %vm330, %v326, 0
      %v2452 = vsel %vm330, %v327, 0
      %v2455 = vsel %vm330, %v328, 0
      %v2458 = vsel %vm330, %v329, 0
      %2460 = vmatprep.subr.mxu0 0.0
      %2461 = vmatpush1.msra.mxu0 0.0
      %2462 = vmatprep.subr.mxu0 0.0
      %2463 = vmatpush1.msra.mxu0 0.0
      %2464 = vmatprep.subr.mxu0 0.0
      %2465 = vmatpush1.msra.mxu0 0.0
      %2466 = vmatprep.subr.mxu0 0.0
      %2467 = vmatpush1.msra.mxu0 0.0
      %2468 = vmatprep.subr.mxu0 0.0
      %2469 = vmatpush1.msra.mxu0 0.0
      %2470 = vmatprep.subr.mxu0 0.0
      %2471 = vmatpush1.msra.mxu0 0.0
      %2472 = vmatprep.subr.mxu0 0.0
      %2473 = vmatpush1.msra.mxu0 0.0
      %2474 = vmatprep.subr.mxu0 0.0
      %2475 = vmatpush1.msra.mxu0 0.0
      %2476 = vmatprep.subr.mxu0 0.0
      %2477 = vmatpush1.msra.mxu0 0.0
      %2478 = vmatprep.subr.mxu0 0.0
      %2479 = vmatpush1.msra.mxu0 0.0
      %2480 = vmatprep.subr.mxu0 0.0
      %2481 = vmatpush1.msra.mxu0 0.0
      %2482 = vmatprep.subr.mxu0 0.0
      %2483 = vmatpush1.msra.mxu0 0.0
      %2484 = vmatprep.subr.mxu0 0.0
      %2485 = vmatpush1.msra.mxu0 %v215
      %2486 = vmatprep.subr.mxu0 0.0
      %2487 = vmatpush1.msra.mxu0 %v214
      %2488 = vmatprep.subr.mxu0 0.0
      %2489 = vmatpush1.msra.mxu0 %v213
      %2490 = vmatprep.subr.mxu0 0.0
      %2491 = vmatpush1.msra.mxu0 %v212
      %2492 = vmatprep.subr.mxu0 0.0
      %2493 = vmatpush2.msra.mxu0 0.0
      %2494 = vmatprep.subr.mxu0 0.0
      %2495 = vmatpush2.msra.mxu0 0.0
      %2496 = vmatprep.subr.mxu0 0.0
      %2497 = vmatpush2.msra.mxu0 0.0
      %2498 = vmatprep.subr.mxu0 0.0
      %2499 = vmatpush2.msra.mxu0 0.0
      %2500 = vmatprep.subr.mxu0 0.0
      %2501 = vmatpush2.msra.mxu0 0.0
      %2502 = vmatprep.subr.mxu0 0.0
      %2503 = vmatpush2.msra.mxu0 0.0
      %2504 = vmatprep.subr.mxu0 0.0
      %2505 = vmatpush2.msra.mxu0 0.0
      %2506 = vmatprep.subr.mxu0 0.0
      %2507 = vmatpush2.msra.mxu0 0.0
      %2508 = vmatprep.subr.mxu0 0.0
      %2509 = vmatpush2.msra.mxu0 0.0
      %2510 = vmatprep.subr.mxu0 0.0
      %2511 = vmatpush2.msra.mxu0 0.0
      %2512 = vmatprep.subr.mxu0 0.0
      %2513 = vmatpush2.msra.mxu0 0.0
      %2514 = vmatprep.subr.mxu0 0.0
      %2515 = vmatpush2.msra.mxu0 0.0
      %2516 = vmatprep.subr.mxu0 0.0
      %2517 = vmatpush2.msra.mxu0 0.0
      %2518 = vmatprep.subr.mxu0 0.0
      %2519 = vmatpush2.msra.mxu0 0.0
      %2520 = vmatprep.subr.mxu0 0.0
      %2521 = vmatpush2.msra.mxu0 0.0
      %2522 = vmatprep.subr.mxu0 0.0
      %2523 = vmatpush2.msra.mxu0 0.0
      %2524 = vmatprep.mubr.f32.mxu0 0.0
      %2525 = vmatmul.mubr.f32.gmra.mxu0 %v2350
      %v2526 = vpop.f32.mrf.mxu0
      %v2527 = vadd.f32 0.0, %v2526
      %v2528 = vpop.f32.mrf.mxu0
      %2529 = vmatprep.mubr.f32.mxu0 0.0
      %2530 = vmatmul.mubr.f32.gmra.mxu0 %v2353
      %v2531 = vpop.f32.mrf.mxu0
      %v2532 = vadd.f32 0.0, %v2531
      %v2533 = vpop.f32.mrf.mxu0
      %2534 = vmatprep.mubr.f32.mxu0 0.0
      %2535 = vmatmul.mubr.f32.gmra.mxu0 %v2356
      %v2536 = vpop.f32.mrf.mxu0
      %v2537 = vadd.f32 0.0, %v2536
      %v2538 = vpop.f32.mrf.mxu0
      %2539 = vmatprep.mubr.f32.mxu0 0.0
      %2540 = vmatmul.mubr.f32.gmra.mxu0 %v2359
      %v2541 = vpop.f32.mrf.mxu0
      %v2542 = vadd.f32 0.0, %v2541
      %v2543 = vpop.f32.mrf.mxu0
      %2544 = vmatprep.mubr.f32.mxu0 0.0
      %2545 = vmatmul.mubr.f32.gmra.mxu0 %v2362
      %v2546 = vpop.f32.mrf.mxu0
      %v2547 = vadd.f32 0.0, %v2546
      %v2548 = vpop.f32.mrf.mxu0
      %2549 = vmatprep.mubr.f32.mxu0 0.0
      %2550 = vmatmul.mubr.f32.gmra.mxu0 %v2365
      %v2551 = vpop.f32.mrf.mxu0
      %v2552 = vadd.f32 0.0, %v2551
      %v2553 = vpop.f32.mrf.mxu0
      %2554 = vmatprep.mubr.f32.mxu0 0.0
      %2555 = vmatmul.mubr.f32.gmra.mxu0 %v2368
      %v2556 = vpop.f32.mrf.mxu0
      %v2557 = vadd.f32 0.0, %v2556
      %v2558 = vpop.f32.mrf.mxu0
      %2559 = vmatprep.mubr.f32.mxu0 0.0
      %2560 = vmatmul.mubr.f32.gmra.mxu0 %v2371
      %v2561 = vpop.f32.mrf.mxu0
      %v2562 = vadd.f32 0.0, %v2561
      %v2563 = vpop.f32.mrf.mxu0
      %2564 = vmatprep.mubr.f32.mxu0 0.0
      %2565 = vmatmul.mubr.f32.gmra.mxu0 %v2374
      %v2566 = vpop.f32.mrf.mxu0
      %v2567 = vadd.f32 0.0, %v2566
      %v2568 = vpop.f32.mrf.mxu0
      %2569 = vmatprep.mubr.f32.mxu0 0.0
      %2570 = vmatmul.mubr.f32.gmra.mxu0 %v2377
      %v2571 = vpop.f32.mrf.mxu0
      %v2572 = vadd.f32 0.0, %v2571
      %v2573 = vpop.f32.mrf.mxu0
      %2574 = vmatprep.mubr.f32.mxu0 0.0
      %2575 = vmatmul.mubr.f32.gmra.mxu0 %v2380
      %v2576 = vpop.f32.mrf.mxu0
      %v2577 = vadd.f32 0.0, %v2576
      %v2578 = vpop.f32.mrf.mxu0
      %2579 = vmatprep.mubr.f32.mxu0 0.0
      %2580 = vmatmul.mubr.f32.gmra.mxu0 %v2383
      %v2581 = vpop.f32.mrf.mxu0
      %v2582 = vadd.f32 0.0, %v2581
      %v2583 = vpop.f32.mrf.mxu0
      %2584 = vmatprep.mubr.f32.mxu0 0.0
      %2585 = vmatmul.mubr.f32.gmra.mxu0 %v2386
      %v2586 = vpop.f32.mrf.mxu0
      %v2587 = vadd.f32 0.0, %v2586
      %v2588 = vpop.f32.mrf.mxu0
      %2589 = vmatprep.mubr.f32.mxu0 0.0
      %2590 = vmatmul.mubr.f32.gmra.mxu0 %v2389
      %v2591 = vpop.f32.mrf.mxu0
      %v2592 = vadd.f32 0.0, %v2591
      %v2593 = vpop.f32.mrf.mxu0
      %2594 = vmatprep.mubr.f32.mxu0 0.0
      %2595 = vmatmul.mubr.f32.gmra.mxu0 %v2392
      %v2596 = vpop.f32.mrf.mxu0
      %v2597 = vadd.f32 0.0, %v2596
      %v2598 = vpop.f32.mrf.mxu0
      %2599 = vmatprep.mubr.f32.mxu0 0.0
      %2600 = vmatmul.mubr.f32.gmra.mxu0 %v2395
      %v2601 = vpop.f32.mrf.mxu0
      %v2602 = vadd.f32 0.0, %v2601
      %v2603 = vpop.f32.mrf.mxu0
      %2604 = vmatprep.mubr.f32.mxu0 0.0
      %2605 = vmatmul.mubr.f32.gmra.mxu0 %v2398
      %v2606 = vpop.f32.mrf.mxu0
      %v2607 = vadd.f32 0.0, %v2606
      %v2608 = vpop.f32.mrf.mxu0
      %2609 = vmatprep.mubr.f32.mxu0 0.0
      %2610 = vmatmul.mubr.f32.gmra.mxu0 %v2401
      %v2611 = vpop.f32.mrf.mxu0
      %v2612 = vadd.f32 0.0, %v2611
      %v2613 = vpop.f32.mrf.mxu0
      %2614 = vmatprep.mubr.f32.mxu0 0.0
      %2615 = vmatmul.mubr.f32.gmra.mxu0 %v2404
      %v2616 = vpop.f32.mrf.mxu0
      %v2617 = vadd.f32 0.0, %v2616
      %v2618 = vpop.f32.mrf.mxu0
      %2619 = vmatprep.mubr.f32.mxu0 0.0
      %2620 = vmatmul.mubr.f32.gmra.mxu0 %v2407
      %v2621 = vpop.f32.mrf.mxu0
      %v2622 = vadd.f32 0.0, %v2621
      %v2623 = vpop.f32.mrf.mxu0
      %2624 = vmatprep.mubr.f32.mxu0 0.0
      %2625 = vmatmul.mubr.f32.gmra.mxu0 %v2410
      %v2626 = vpop.f32.mrf.mxu0
      %v2627 = vadd.f32 0.0, %v2626
      %v2628 = vpop.f32.mrf.mxu0
      %2629 = vmatprep.mubr.f32.mxu0 0.0
      %2630 = vmatmul.mubr.f32.gmra.mxu0 %v2413
      %v2631 = vpop.f32.mrf.mxu0
      %v2632 = vadd.f32 0.0, %v2631
      %v2633 = vpop.f32.mrf.mxu0
      %2634 = vmatprep.mubr.f32.mxu0 0.0
      %2635 = vmatmul.mubr.f32.gmra.mxu0 %v2416
      %v2636 = vpop.f32.mrf.mxu0
      %v2637 = vadd.f32 0.0, %v2636
      %v2638 = vpop.f32.mrf.mxu0
      %2639 = vmatprep.mubr.f32.mxu0 0.0
      %2640 = vmatmul.mubr.f32.gmra.mxu0 %v2419
      %v2641 = vpop.f32.mrf.mxu0
      %v2642 = vadd.f32 0.0, %v2641
      %v2643 = vpop.f32.mrf.mxu0
      %2644 = vmatprep.mubr.f32.mxu0 0.0
      %2645 = vmatmul.mubr.f32.gmra.mxu0 %v2422
      %v2646 = vpop.f32.mrf.mxu0
      %v2647 = vadd.f32 0.0, %v2646
      %v2648 = vpop.f32.mrf.mxu0
      %2649 = vmatprep.mubr.f32.mxu0 0.0
      %2650 = vmatmul.mubr.f32.gmra.mxu0 %v2425
      %v2651 = vpop.f32.mrf.mxu0
      %v2652 = vadd.f32 0.0, %v2651
      %v2653 = vpop.f32.mrf.mxu0
      %2654 = vmatprep.mubr.f32.mxu0 0.0
      %2655 = vmatmul.mubr.f32.gmra.mxu0 %v2428
      %v2656 = vpop.f32.mrf.mxu0
      %v2657 = vadd.f32 0.0, %v2656
      %v2658 = vpop.f32.mrf.mxu0
      %2659 = vmatprep.mubr.f32.mxu0 0.0
      %2660 = vmatmul.mubr.f32.gmra.mxu0 %v2431
      %v2661 = vpop.f32.mrf.mxu0
      %v2662 = vadd.f32 0.0, %v2661
      %v2663 = vpop.f32.mrf.mxu0
      %2664 = vmatprep.mubr.f32.mxu0 0.0
      %2665 = vmatmul.mubr.f32.gmra.mxu0 %v2434
      %v2666 = vpop.f32.mrf.mxu0
      %v2667 = vadd.f32 0.0, %v2666
      %v2668 = vpop.f32.mrf.mxu0
      %2669 = vmatprep.mubr.f32.mxu0 0.0
      %2670 = vmatmul.mubr.f32.gmra.mxu0 %v2437
      %v2671 = vpop.f32.mrf.mxu0
      %v2672 = vadd.f32 0.0, %v2671
      %v2673 = vpop.f32.mrf.mxu0
      %2674 = vmatprep.mubr.f32.mxu0 0.0
      %2675 = vmatmul.mubr.f32.gmra.mxu0 %v2440
      %v2676 = vpop.f32.mrf.mxu0
      %v2677 = vadd.f32 0.0, %v2676
      %v2678 = vpop.f32.mrf.mxu0
      %2679 = vmatprep.mubr.f32.mxu0 0.0
      %2680 = vmatmul.mubr.f32.gmra.mxu0 %v2443
      %v2681 = vpop.f32.mrf.mxu0
      %v2682 = vadd.f32 0.0, %v2681
      %v2683 = vpop.f32.mrf.mxu0
      %2684 = vmatprep.mubr.f32.mxu0 0.0
      %2685 = vmatmul.mubr.f32.gmra.mxu0 %v2446
      %v2686 = vpop.f32.mrf.mxu0
      %v2687 = vadd.f32 0.0, %v2686
      %v2688 = vpop.f32.mrf.mxu0
      %2689 = vmatprep.mubr.f32.mxu0 0.0
      %2690 = vmatmul.mubr.f32.gmra.mxu0 %v2449
      %v2691 = vpop.f32.mrf.mxu0
      %v2692 = vadd.f32 0.0, %v2691
      %v2693 = vpop.f32.mrf.mxu0
      %2694 = vmatprep.mubr.f32.mxu0 0.0
      %2695 = vmatmul.mubr.f32.gmra.mxu0 %v2452
      %v2696 = vpop.f32.mrf.mxu0
      %v2697 = vadd.f32 0.0, %v2696
      %v2698 = vpop.f32.mrf.mxu0
      %2699 = vmatprep.mubr.f32.mxu0 0.0
      %2700 = vmatmul.mubr.f32.gmra.mxu0 %v2455
      %v2701 = vpop.f32.mrf.mxu0
      %v2702 = vadd.f32 0.0, %v2701
      %v2703 = vpop.f32.mrf.mxu0
      %2704 = vmatprep.mubr.f32.mxu0 0.0
      %2705 = vmatmul.mubr.f32.gmra.mxu0 %v2458
      %v2706 = vpop.f32.mrf.mxu0
      %v2707 = vadd.f32 0.0, %v2706
      %v2708 = vpop.f32.mrf.mxu0
      %2709 = vdwg.mxu0
      %v2710 = vadd.f32 %v2312, %v2527
      %v2711 = vadd.f32 %v2313, %v2532
      %v2712 = vadd.f32 %v2314, %v2537
      %v2713 = vadd.f32 %v2315, %v2542
      %v2714 = vadd.f32 %v2316, %v2547
      %v2715 = vadd.f32 %v2317, %v2552
      %v2716 = vadd.f32 %v2318, %v2557
      %v2717 = vadd.f32 %v2319, %v2562
      %v2718 = vadd.f32 %v2320, %v2567
      %v2719 = vadd.f32 %v2321, %v2572
      %v2720 = vadd.f32 %v2322, %v2577
      %v2721 = vadd.f32 %v2323, %v2582
      %v2722 = vadd.f32 %v2324, %v2587
      %v2723 = vadd.f32 %v2325, %v2592
      %v2724 = vadd.f32 %v2326, %v2597
      %v2725 = vadd.f32 %v2327, %v2602
      %v2726 = vadd.f32 %v2328, %v2607
      %v2727 = vadd.f32 %v2329, %v2612
      %v2728 = vadd.f32 %v2330, %v2617
      %v2729 = vadd.f32 %v2331, %v2622
      %v2730 = vadd.f32 %v2332, %v2627
      %v2731 = vadd.f32 %v2333, %v2632
      %v2732 = vadd.f32 %v2334, %v2637
      %v2733 = vadd.f32 %v2335, %v2642
      %v2734 = vadd.f32 %v2336, %v2647
      %v2735 = vadd.f32 %v2337, %v2652
      %v2736 = vadd.f32 %v2338, %v2657
      %v2737 = vadd.f32 %v2339, %v2662
      %v2738 = vadd.f32 %v2340, %v2667
      %v2739 = vadd.f32 %v2341, %v2672
      %v2740 = vadd.f32 %v2342, %v2677
      %v2741 = vadd.f32 %v2343, %v2682
      %v2742 = vadd.f32 %v2344, %v2687
      %v2743 = vadd.f32 %v2345, %v2692
      %v2744 = vadd.f32 %v2346, %v2697
      %v2745 = vadd.f32 %v2347, %v2702
      %v2746 = vadd.f32 %v2348, %v2707
      %v2748 = vlaneseq
      %v2749 = vshrl.u32 %v2748, 7
      %v2750 = vsub.s32 0, %v2749
      %v2751 = vrot.slane %v171, %v2750
      %2753 = vmatprep.subr.mxu0 0.0
      %2754 = vmatpush1.msra.mxu0 0.0
      %2755 = vmatprep.subr.mxu0 0.0
      %2756 = vmatpush1.msra.mxu0 0.0
      %2757 = vmatprep.subr.mxu0 0.0
      %2758 = vmatpush1.msra.mxu0 0.0
      %2759 = vmatprep.subr.mxu0 0.0
      %2760 = vmatpush1.msra.mxu0 0.0
      %2761 = vmatprep.subr.mxu0 0.0
      %2762 = vmatpush1.msra.mxu0 0.0
      %2763 = vmatprep.subr.mxu0 0.0
      %2764 = vmatpush1.msra.mxu0 0.0
      %2765 = vmatprep.subr.mxu0 0.0
      %2766 = vmatpush1.msra.mxu0 0.0
      %2767 = vmatprep.subr.mxu0 0.0
      %2768 = vmatpush1.msra.mxu0 0.0
      %2769 = vmatprep.subr.mxu0 0.0
      %2770 = vmatpush1.msra.mxu0 0.0
      %2771 = vmatprep.subr.mxu0 0.0
      %2772 = vmatpush1.msra.mxu0 0.0
      %2773 = vmatprep.subr.mxu0 0.0
      %2774 = vmatpush1.msra.mxu0 0.0
      %2775 = vmatprep.subr.mxu0 0.0
      %2776 = vmatpush1.msra.mxu0 0.0
      %2777 = vmatprep.subr.mxu0 0.0
      %2778 = vmatpush1.msra.mxu0 %v176
      %2779 = vmatprep.subr.mxu0 0.0
      %2780 = vmatpush1.msra.mxu0 %v175
      %2781 = vmatprep.subr.mxu0 0.0
      %2782 = vmatpush1.msra.mxu0 %v174
      %2783 = vmatprep.subr.mxu0 0.0
      %2784 = vmatpush1.msra.mxu0 %v173
      %2785 = vmatprep.subr.mxu0 0.0
      %2786 = vmatpush2.msra.mxu0 0.0
      %2787 = vmatprep.subr.mxu0 0.0
      %2788 = vmatpush2.msra.mxu0 0.0
      %2789 = vmatprep.subr.mxu0 0.0
      %2790 = vmatpush2.msra.mxu0 0.0
      %2791 = vmatprep.subr.mxu0 0.0
      %2792 = vmatpush2.msra.mxu0 0.0
      %2793 = vmatprep.subr.mxu0 0.0
      %2794 = vmatpush2.msra.mxu0 0.0
      %2795 = vmatprep.subr.mxu0 0.0
      %2796 = vmatpush2.msra.mxu0 0.0
      %2797 = vmatprep.subr.mxu0 0.0
      %2798 = vmatpush2.msra.mxu0 0.0
      %2799 = vmatprep.subr.mxu0 0.0
      %2800 = vmatpush2.msra.mxu0 0.0
      %2801 = vmatprep.subr.mxu0 0.0
      %2802 = vmatpush2.msra.mxu0 0.0
      %2803 = vmatprep.subr.mxu0 0.0
      %2804 = vmatpush2.msra.mxu0 0.0
      %2805 = vmatprep.subr.mxu0 0.0
      %2806 = vmatpush2.msra.mxu0 0.0
      %2807 = vmatprep.subr.mxu0 0.0
      %2808 = vmatpush2.msra.mxu0 0.0
      %2809 = vmatprep.subr.mxu0 0.0
      %2810 = vmatpush2.msra.mxu0 0.0
      %2811 = vmatprep.subr.mxu0 0.0
      %2812 = vmatpush2.msra.mxu0 0.0
      %2813 = vmatprep.subr.mxu0 0.0
      %2814 = vmatpush2.msra.mxu0 0.0
      %2815 = vmatprep.subr.mxu0 0.0
      %2816 = vmatpush2.msra.mxu0 0.0
      %2817 = vmatprep.mubr.f32.mxu0 0.0
      %2818 = vmatmul.mubr.f32.gmra.mxu0 %v693
      %v2819 = vpop.f32.mrf.mxu0
      %v2820 = vadd.f32 %v2751, %v2819
      %v2821 = vpop.f32.mrf.mxu0
      %2822 = vmatprep.mubr.f32.mxu0 0.0
      %2823 = vmatmul.mubr.f32.gmra.mxu0 %v696
      %v2824 = vpop.f32.mrf.mxu0
      %v2825 = vadd.f32 %v2751, %v2824
      %v2826 = vpop.f32.mrf.mxu0
      %2827 = vmatprep.mubr.f32.mxu0 0.0
      %2828 = vmatmul.mubr.f32.gmra.mxu0 %v699
      %v2829 = vpop.f32.mrf.mxu0
      %v2830 = vadd.f32 %v2751, %v2829
      %v2831 = vpop.f32.mrf.mxu0
      %2832 = vmatprep.mubr.f32.mxu0 0.0
      %2833 = vmatmul.mubr.f32.gmra.mxu0 %v702
      %v2834 = vpop.f32.mrf.mxu0
      %v2835 = vadd.f32 %v2751, %v2834
      %v2836 = vpop.f32.mrf.mxu0
      %2837 = vmatprep.mubr.f32.mxu0 0.0
      %2838 = vmatmul.mubr.f32.gmra.mxu0 %v705
      %v2839 = vpop.f32.mrf.mxu0
      %v2840 = vadd.f32 %v2751, %v2839
      %v2841 = vpop.f32.mrf.mxu0
      %2842 = vmatprep.mubr.f32.mxu0 0.0
      %2843 = vmatmul.mubr.f32.gmra.mxu0 %v708
      %v2844 = vpop.f32.mrf.mxu0
      %v2845 = vadd.f32 %v2751, %v2844
      %v2846 = vpop.f32.mrf.mxu0
      %2847 = vmatprep.mubr.f32.mxu0 0.0
      %2848 = vmatmul.mubr.f32.gmra.mxu0 %v711
      %v2849 = vpop.f32.mrf.mxu0
      %v2850 = vadd.f32 %v2751, %v2849
      %v2851 = vpop.f32.mrf.mxu0
      %2852 = vmatprep.mubr.f32.mxu0 0.0
      %2853 = vmatmul.mubr.f32.gmra.mxu0 %v714
      %v2854 = vpop.f32.mrf.mxu0
      %v2855 = vadd.f32 %v2751, %v2854
      %v2856 = vpop.f32.mrf.mxu0
      %2857 = vmatprep.mubr.f32.mxu0 0.0
      %2858 = vmatmul.mubr.f32.gmra.mxu0 %v717
      %v2859 = vpop.f32.mrf.mxu0
      %v2860 = vadd.f32 %v2751, %v2859
      %v2861 = vpop.f32.mrf.mxu0
      %2862 = vmatprep.mubr.f32.mxu0 0.0
      %2863 = vmatmul.mubr.f32.gmra.mxu0 %v720
      %v2864 = vpop.f32.mrf.mxu0
      %v2865 = vadd.f32 %v2751, %v2864
      %v2866 = vpop.f32.mrf.mxu0
      %2867 = vmatprep.mubr.f32.mxu0 0.0
      %2868 = vmatmul.mubr.f32.gmra.mxu0 %v723
      %v2869 = vpop.f32.mrf.mxu0
      %v2870 = vadd.f32 %v2751, %v2869
      %v2871 = vpop.f32.mrf.mxu0
      %2872 = vmatprep.mubr.f32.mxu0 0.0
      %2873 = vmatmul.mubr.f32.gmra.mxu0 %v726
      %v2874 = vpop.f32.mrf.mxu0
      %v2875 = vadd.f32 %v2751, %v2874
      %v2876 = vpop.f32.mrf.mxu0
      %2877 = vmatprep.mubr.f32.mxu0 0.0
      %2878 = vmatmul.mubr.f32.gmra.mxu0 %v729
      %v2879 = vpop.f32.mrf.mxu0
      %v2880 = vadd.f32 %v2751, %v2879
      %v2881 = vpop.f32.mrf.mxu0
      %2882 = vmatprep.mubr.f32.mxu0 0.0
      %2883 = vmatmul.mubr.f32.gmra.mxu0 %v732
      %v2884 = vpop.f32.mrf.mxu0
      %v2885 = vadd.f32 %v2751, %v2884
      %v2886 = vpop.f32.mrf.mxu0
      %2887 = vmatprep.mubr.f32.mxu0 0.0
      %2888 = vmatmul.mubr.f32.gmra.mxu0 %v735
      %v2889 = vpop.f32.mrf.mxu0
      %v2890 = vadd.f32 %v2751, %v2889
      %v2891 = vpop.f32.mrf.mxu0
      %2892 = vmatprep.mubr.f32.mxu0 0.0
      %2893 = vmatmul.mubr.f32.gmra.mxu0 %v738
      %v2894 = vpop.f32.mrf.mxu0
      %v2895 = vadd.f32 %v2751, %v2894
      %v2896 = vpop.f32.mrf.mxu0
      %2897 = vmatprep.mubr.f32.mxu0 0.0
      %2898 = vmatmul.mubr.f32.gmra.mxu0 %v741
      %v2899 = vpop.f32.mrf.mxu0
      %v2900 = vadd.f32 %v2751, %v2899
      %v2901 = vpop.f32.mrf.mxu0
      %2902 = vmatprep.mubr.f32.mxu0 0.0
      %2903 = vmatmul.mubr.f32.gmra.mxu0 %v744
      %v2904 = vpop.f32.mrf.mxu0
      %v2905 = vadd.f32 %v2751, %v2904
      %v2906 = vpop.f32.mrf.mxu0
      %2907 = vmatprep.mubr.f32.mxu0 0.0
      %2908 = vmatmul.mubr.f32.gmra.mxu0 %v747
      %v2909 = vpop.f32.mrf.mxu0
      %v2910 = vadd.f32 %v2751, %v2909
      %v2911 = vpop.f32.mrf.mxu0
      %2912 = vmatprep.mubr.f32.mxu0 0.0
      %2913 = vmatmul.mubr.f32.gmra.mxu0 %v750
      %v2914 = vpop.f32.mrf.mxu0
      %v2915 = vadd.f32 %v2751, %v2914
      %v2916 = vpop.f32.mrf.mxu0
      %2917 = vmatprep.mubr.f32.mxu0 0.0
      %2918 = vmatmul.mubr.f32.gmra.mxu0 %v753
      %v2919 = vpop.f32.mrf.mxu0
      %v2920 = vadd.f32 %v2751, %v2919
      %v2921 = vpop.f32.mrf.mxu0
      %2922 = vmatprep.mubr.f32.mxu0 0.0
      %2923 = vmatmul.mubr.f32.gmra.mxu0 %v756
      %v2924 = vpop.f32.mrf.mxu0
      %v2925 = vadd.f32 %v2751, %v2924
      %v2926 = vpop.f32.mrf.mxu0
      %2927 = vmatprep.mubr.f32.mxu0 0.0
      %2928 = vmatmul.mubr.f32.gmra.mxu0 %v759
      %v2929 = vpop.f32.mrf.mxu0
      %v2930 = vadd.f32 %v2751, %v2929
      %v2931 = vpop.f32.mrf.mxu0
      %2932 = vmatprep.mubr.f32.mxu0 0.0
      %2933 = vmatmul.mubr.f32.gmra.mxu0 %v762
      %v2934 = vpop.f32.mrf.mxu0
      %v2935 = vadd.f32 %v2751, %v2934
      %v2936 = vpop.f32.mrf.mxu0
      %2937 = vmatprep.mubr.f32.mxu0 0.0
      %2938 = vmatmul.mubr.f32.gmra.mxu0 %v765
      %v2939 = vpop.f32.mrf.mxu0
      %v2940 = vadd.f32 %v2751, %v2939
      %v2941 = vpop.f32.mrf.mxu0
      %2942 = vmatprep.mubr.f32.mxu0 0.0
      %2943 = vmatmul.mubr.f32.gmra.mxu0 %v768
      %v2944 = vpop.f32.mrf.mxu0
      %v2945 = vadd.f32 %v2751, %v2944
      %v2946 = vpop.f32.mrf.mxu0
      %2947 = vmatprep.mubr.f32.mxu0 0.0
      %2948 = vmatmul.mubr.f32.gmra.mxu0 %v771
      %v2949 = vpop.f32.mrf.mxu0
      %v2950 = vadd.f32 %v2751, %v2949
      %v2951 = vpop.f32.mrf.mxu0
      %2952 = vmatprep.mubr.f32.mxu0 0.0
      %2953 = vmatmul.mubr.f32.gmra.mxu0 %v774
      %v2954 = vpop.f32.mrf.mxu0
      %v2955 = vadd.f32 %v2751, %v2954
      %v2956 = vpop.f32.mrf.mxu0
      %2957 = vmatprep.mubr.f32.mxu0 0.0
      %2958 = vmatmul.mubr.f32.gmra.mxu0 %v777
      %v2959 = vpop.f32.mrf.mxu0
      %v2960 = vadd.f32 %v2751, %v2959
      %v2961 = vpop.f32.mrf.mxu0
      %2962 = vmatprep.mubr.f32.mxu0 0.0
      %2963 = vmatmul.mubr.f32.gmra.mxu0 %v780
      %v2964 = vpop.f32.mrf.mxu0
      %v2965 = vadd.f32 %v2751, %v2964
      %v2966 = vpop.f32.mrf.mxu0
      %2967 = vmatprep.mubr.f32.mxu0 0.0
      %2968 = vmatmul.mubr.f32.gmra.mxu0 %v783
      %v2969 = vpop.f32.mrf.mxu0
      %v2970 = vadd.f32 %v2751, %v2969
      %v2971 = vpop.f32.mrf.mxu0
      %2972 = vmatprep.mubr.f32.mxu0 0.0
      %2973 = vmatmul.mubr.f32.gmra.mxu0 %v786
      %v2974 = vpop.f32.mrf.mxu0
      %v2975 = vadd.f32 %v2751, %v2974
      %v2976 = vpop.f32.mrf.mxu0
      %2977 = vmatprep.mubr.f32.mxu0 0.0
      %2978 = vmatmul.mubr.f32.gmra.mxu0 %v789
      %v2979 = vpop.f32.mrf.mxu0
      %v2980 = vadd.f32 %v2751, %v2979
      %v2981 = vpop.f32.mrf.mxu0
      %2982 = vmatprep.mubr.f32.mxu0 0.0
      %2983 = vmatmul.mubr.f32.gmra.mxu0 %v792
      %v2984 = vpop.f32.mrf.mxu0
      %v2985 = vadd.f32 %v2751, %v2984
      %v2986 = vpop.f32.mrf.mxu0
      %2987 = vmatprep.mubr.f32.mxu0 0.0
      %2988 = vmatmul.mubr.f32.gmra.mxu0 %v795
      %v2989 = vpop.f32.mrf.mxu0
      %v2990 = vadd.f32 %v2751, %v2989
      %v2991 = vpop.f32.mrf.mxu0
      %2992 = vmatprep.mubr.f32.mxu0 0.0
      %2993 = vmatmul.mubr.f32.gmra.mxu0 %v798
      %v2994 = vpop.f32.mrf.mxu0
      %v2995 = vadd.f32 %v2751, %v2994
      %v2996 = vpop.f32.mrf.mxu0
      %2997 = vmatprep.mubr.f32.mxu0 0.0
      %2998 = vmatmul.mubr.f32.gmra.mxu0 %v801
      %v2999 = vpop.f32.mrf.mxu0
      %v3000 = vadd.f32 %v2751, %v2999
      %v3001 = vpop.f32.mrf.mxu0
      %3002 = vdwg.mxu0
      %vm3003 = vcmask 15360
      %3004 = vst.msk [vmem:[%s170] sm:$0xff] %vm3003, %v2820
      %3005 = vst.msk [vmem:[%s170 + $0x8] sm:$0xff] %vm3003, %v2825
      %3006 = vst.msk [vmem:[%s170 + $0x10] sm:$0xff] %vm3003, %v2830
      %3007 = vst.msk [vmem:[%s170 + $0x18] sm:$0xff] %vm3003, %v2835
      %3008 = vst.msk [vmem:[%s170 + $0x20] sm:$0xff] %vm3003, %v2840
      %3009 = vst.msk [vmem:[%s170 + $0x28] sm:$0xff] %vm3003, %v2845
      %3010 = vst.msk [vmem:[%s170 + $0x30] sm:$0xff] %vm3003, %v2850
      %3011 = vst.msk [vmem:[%s170 + $0x38] sm:$0xff] %vm3003, %v2855
      %3012 = vst.msk [vmem:[%s170 + $0x40] sm:$0xff] %vm3003, %v2860
      %3013 = vst.msk [vmem:[%s170 + $0x48] sm:$0xff] %vm3003, %v2865
      %3014 = vst.msk [vmem:[%s170 + $0x50] sm:$0xff] %vm3003, %v2870
      %3015 = vst.msk [vmem:[%s170 + $0x58] sm:$0xff] %vm3003, %v2875
      %3016 = vst.msk [vmem:[%s170 + $0x60] sm:$0xff] %vm3003, %v2880
      %3017 = vst.msk [vmem:[%s170 + $0x68] sm:$0xff] %vm3003, %v2885
      %3018 = vst.msk [vmem:[%s170 + $0x70] sm:$0xff] %vm3003, %v2890
      %3019 = vst.msk [vmem:[%s170 + $0x78] sm:$0xff] %vm3003, %v2895
      %3020 = vst.msk [vmem:[%s170 + $0x80] sm:$0xff] %vm3003, %v2900
      %3021 = vst.msk [vmem:[%s170 + $0x88] sm:$0xff] %vm3003, %v2905
      %3022 = vst.msk [vmem:[%s170 + $0x90] sm:$0xff] %vm3003, %v2910
      %3023 = vst.msk [vmem:[%s170 + $0x98] sm:$0xff] %vm3003, %v2915
      %3024 = vst.msk [vmem:[%s170 + $0xa0] sm:$0xff] %vm3003, %v2920
      %3025 = vst.msk [vmem:[%s170 + $0xa8] sm:$0xff] %vm3003, %v2925
      %3026 = vst.msk [vmem:[%s170 + $0xb0] sm:$0xff] %vm3003, %v2930
      %3027 = vst.msk [vmem:[%s170 + $0xb8] sm:$0xff] %vm3003, %v2935
      %3028 = vst.msk [vmem:[%s170 + $0xc0] sm:$0xff] %vm3003, %v2940
      %3029 = vst.msk [vmem:[%s170 + $0xc8] sm:$0xff] %vm3003, %v2945
      %3030 = vst.msk [vmem:[%s170 + $0xd0] sm:$0xff] %vm3003, %v2950
      %3031 = vst.msk [vmem:[%s170 + $0xd8] sm:$0xff] %vm3003, %v2955
      %3032 = vst.msk [vmem:[%s170 + $0xe0] sm:$0xff] %vm3003, %v2960
      %3033 = vst.msk [vmem:[%s170 + $0xe8] sm:$0xff] %vm3003, %v2965
      %3034 = vst.msk [vmem:[%s170 + $0xf0] sm:$0xff] %vm3003, %v2970
      %3035 = vst.msk [vmem:[%s170 + $0xf8] sm:$0xff] %vm3003, %v2975
      %3036 = vst.msk [vmem:[%s170 + $0x100] sm:$0xff] %vm3003, %v2980
      %3037 = vst.msk [vmem:[%s170 + $0x108] sm:$0xff] %vm3003, %v2985
      %3038 = vst.msk [vmem:[%s170 + $0x110] sm:$0xff] %vm3003, %v2990
      %3039 = vst.msk [vmem:[%s170 + $0x118] sm:$0xff] %vm3003, %v2995
      %vm3040 = vcmask 8192
      %3041 = vst.msk [vmem:[%s170 + $0x120] sm:$0x1] %vm3040, %v3000
      %v3042 = vadd.f32 %v870, %v2751
      %v3043 = vadd.f32 %v875, %v2751
      %v3044 = vadd.f32 %v880, %v2751
      %v3045 = vadd.f32 %v885, %v2751
      %v3046 = vadd.f32 %v890, %v2751
      %v3047 = vadd.f32 %v895, %v2751
      %v3048 = vadd.f32 %v900, %v2751
      %v3049 = vadd.f32 %v905, %v2751
      %v3050 = vadd.f32 %v910, %v2751
      %v3051 = vadd.f32 %v915, %v2751
      %v3052 = vadd.f32 %v920, %v2751
      %v3053 = vadd.f32 %v925, %v2751
      %v3054 = vadd.f32 %v930, %v2751
      %v3055 = vadd.f32 %v935, %v2751
      %v3056 = vadd.f32 %v940, %v2751
      %v3057 = vadd.f32 %v945, %v2751
      %v3058 = vadd.f32 %v950, %v2751
      %v3059 = vadd.f32 %v955, %v2751
      %v3060 = vadd.f32 %v960, %v2751
      %v3061 = vadd.f32 %v965, %v2751
      %v3062 = vadd.f32 %v970, %v2751
      %v3063 = vadd.f32 %v975, %v2751
      %v3064 = vadd.f32 %v980, %v2751
      %v3065 = vadd.f32 %v985, %v2751
      %v3066 = vadd.f32 %v990, %v2751
      %v3067 = vadd.f32 %v995, %v2751
      %v3068 = vadd.f32 %v1000, %v2751
      %v3069 = vadd.f32 %v1005, %v2751
      %v3070 = vadd.f32 %v1010, %v2751
      %v3071 = vadd.f32 %v1015, %v2751
      %v3072 = vadd.f32 %v1020, %v2751
      %v3073 = vadd.f32 %v1025, %v2751
      %v3074 = vadd.f32 %v1030, %v2751
      %v3075 = vadd.f32 %v1035, %v2751
      %v3076 = vadd.f32 %v1040, %v2751
      %v3077 = vadd.f32 %v1045, %v2751
      %v3078 = vadd.f32 %v1050, %v2751
      %s3079 = scalar_lea.vmem %s170, 296
      %3080 = vst.msk [vmem:[%s3079] sm:$0xff] %vm3003, %v3042
      %3081 = vst.msk [vmem:[%s3079 + $0x8] sm:$0xff] %vm3003, %v3043
      %3082 = vst.msk [vmem:[%s3079 + $0x10] sm:$0xff] %vm3003, %v3044
      %3083 = vst.msk [vmem:[%s3079 + $0x18] sm:$0xff] %vm3003, %v3045
      %3084 = vst.msk [vmem:[%s3079 + $0x20] sm:$0xff] %vm3003, %v3046
      %3085 = vst.msk [vmem:[%s3079 + $0x28] sm:$0xff] %vm3003, %v3047
      %3086 = vst.msk [vmem:[%s3079 + $0x30] sm:$0xff] %vm3003, %v3048
      %3087 = vst.msk [vmem:[%s3079 + $0x38] sm:$0xff] %vm3003, %v3049
      %3088 = vst.msk [vmem:[%s3079 + $0x40] sm:$0xff] %vm3003, %v3050
      %3089 = vst.msk [vmem:[%s3079 + $0x48] sm:$0xff] %vm3003, %v3051
      %3090 = vst.msk [vmem:[%s3079 + $0x50] sm:$0xff] %vm3003, %v3052
      %3091 = vst.msk [vmem:[%s3079 + $0x58] sm:$0xff] %vm3003, %v3053
      %3092 = vst.msk [vmem:[%s3079 + $0x60] sm:$0xff] %vm3003, %v3054
      %3093 = vst.msk [vmem:[%s3079 + $0x68] sm:$0xff] %vm3003, %v3055
      %3094 = vst.msk [vmem:[%s3079 + $0x70] sm:$0xff] %vm3003, %v3056
      %3095 = vst.msk [vmem:[%s3079 + $0x78] sm:$0xff] %vm3003, %v3057
      %3096 = vst.msk [vmem:[%s3079 + $0x80] sm:$0xff] %vm3003, %v3058
      %3097 = vst.msk [vmem:[%s3079 + $0x88] sm:$0xff] %vm3003, %v3059
      %3098 = vst.msk [vmem:[%s3079 + $0x90] sm:$0xff] %vm3003, %v3060
      %3099 = vst.msk [vmem:[%s3079 + $0x98] sm:$0xff] %vm3003, %v3061
      %3100 = vst.msk [vmem:[%s3079 + $0xa0] sm:$0xff] %vm3003, %v3062
      %3101 = vst.msk [vmem:[%s3079 + $0xa8] sm:$0xff] %vm3003, %v3063
      %3102 = vst.msk [vmem:[%s3079 + $0xb0] sm:$0xff] %vm3003, %v3064
      %3103 = vst.msk [vmem:[%s3079 + $0xb8] sm:$0xff] %vm3003, %v3065
      %3104 = vst.msk [vmem:[%s3079 + $0xc0] sm:$0xff] %vm3003, %v3066
      %3105 = vst.msk [vmem:[%s3079 + $0xc8] sm:$0xff] %vm3003, %v3067
      %3106 = vst.msk [vmem:[%s3079 + $0xd0] sm:$0xff] %vm3003, %v3068
      %3107 = vst.msk [vmem:[%s3079 + $0xd8] sm:$0xff] %vm3003, %v3069
      %3108 = vst.msk [vmem:[%s3079 + $0xe0] sm:$0xff] %vm3003, %v3070
      %3109 = vst.msk [vmem:[%s3079 + $0xe8] sm:$0xff] %vm3003, %v3071
      %3110 = vst.msk [vmem:[%s3079 + $0xf0] sm:$0xff] %vm3003, %v3072
      %3111 = vst.msk [vmem:[%s3079 + $0xf8] sm:$0xff] %vm3003, %v3073
      %3112 = vst.msk [vmem:[%s3079 + $0x100] sm:$0xff] %vm3003, %v3074
      %3113 = vst.msk [vmem:[%s3079 + $0x108] sm:$0xff] %vm3003, %v3075
      %3114 = vst.msk [vmem:[%s3079 + $0x110] sm:$0xff] %vm3003, %v3076
      %3115 = vst.msk [vmem:[%s3079 + $0x118] sm:$0xff] %vm3003, %v3077
      %3116 = vst.msk [vmem:[%s3079 + $0x120] sm:$0x1] %vm3040, %v3078
      %v3117 = vadd.f32 %v1379, %v2751
      %v3118 = vadd.f32 %v1384, %v2751
      %v3119 = vadd.f32 %v1389, %v2751
      %v3120 = vadd.f32 %v1394, %v2751
      %v3121 = vadd.f32 %v1399, %v2751
      %v3122 = vadd.f32 %v1404, %v2751
      %v3123 = vadd.f32 %v1409, %v2751
      %v3124 = vadd.f32 %v1414, %v2751
      %v3125 = vadd.f32 %v1419, %v2751
      %v3126 = vadd.f32 %v1424, %v2751
      %v3127 = vadd.f32 %v1429, %v2751
      %v3128 = vadd.f32 %v1434, %v2751
      %v3129 = vadd.f32 %v1439, %v2751
      %v3130 = vadd.f32 %v1444, %v2751
      %v3131 = vadd.f32 %v1449, %v2751
      %v3132 = vadd.f32 %v1454, %v2751
      %v3133 = vadd.f32 %v1459, %v2751
      %v3134 = vadd.f32 %v1464, %v2751
      %v3135 = vadd.f32 %v1469, %v2751
      %v3136 = vadd.f32 %v1474, %v2751
      %v3137 = vadd.f32 %v1479, %v2751
      %v3138 = vadd.f32 %v1484, %v2751
      %v3139 = vadd.f32 %v1489, %v2751
      %v3140 = vadd.f32 %v1494, %v2751
      %v3141 = vadd.f32 %v1499, %v2751
      %v3142 = vadd.f32 %v1504, %v2751
      %v3143 = vadd.f32 %v1509, %v2751
      %v3144 = vadd.f32 %v1514, %v2751
      %v3145 = vadd.f32 %v1519, %v2751
      %v3146 = vadd.f32 %v1524, %v2751
      %v3147 = vadd.f32 %v1529, %v2751
      %v3148 = vadd.f32 %v1534, %v2751
      %v3149 = vadd.f32 %v1539, %v2751
      %v3150 = vadd.f32 %v1544, %v2751
      %v3151 = vadd.f32 %v1549, %v2751
      %v3152 = vadd.f32 %v1554, %v2751
      %v3153 = vadd.f32 %v1559, %v2751
      %s3154 = scalar_lea.vmem %s170, 592
      %3155 = vst.msk [vmem:[%s3154] sm:$0xff] %vm3003, %v3117
      %3156 = vst.msk [vmem:[%s3154 + $0x8] sm:$0xff] %vm3003, %v3118
      %3157 = vst.msk [vmem:[%s3154 + $0x10] sm:$0xff] %vm3003, %v3119
      %3158 = vst.msk [vmem:[%s3154 + $0x18] sm:$0xff] %vm3003, %v3120
      %3159 = vst.msk [vmem:[%s3154 + $0x20] sm:$0xff] %vm3003, %v3121
      %3160 = vst.msk [vmem:[%s3154 + $0x28] sm:$0xff] %vm3003, %v3122
      %3161 = vst.msk [vmem:[%s3154 + $0x30] sm:$0xff] %vm3003, %v3123
      %3162 = vst.msk [vmem:[%s3154 + $0x38] sm:$0xff] %vm3003, %v3124
      %3163 = vst.msk [vmem:[%s3154 + $0x40] sm:$0xff] %vm3003, %v3125
      %3164 = vst.msk [vmem:[%s3154 + $0x48] sm:$0xff] %vm3003, %v3126
      %3165 = vst.msk [vmem:[%s3154 + $0x50] sm:$0xff] %vm3003, %v3127
      %3166 = vst.msk [vmem:[%s3154 + $0x58] sm:$0xff] %vm3003, %v3128
      %3167 = vst.msk [vmem:[%s3154 + $0x60] sm:$0xff] %vm3003, %v3129
      %3168 = vst.msk [vmem:[%s3154 + $0x68] sm:$0xff] %vm3003, %v3130
      %3169 = vst.msk [vmem:[%s3154 + $0x70] sm:$0xff] %vm3003, %v3131
      %3170 = vst.msk [vmem:[%s3154 + $0x78] sm:$0xff] %vm3003, %v3132
      %3171 = vst.msk [vmem:[%s3154 + $0x80] sm:$0xff] %vm3003, %v3133
      %3172 = vst.msk [vmem:[%s3154 + $0x88] sm:$0xff] %vm3003, %v3134
      %3173 = vst.msk [vmem:[%s3154 + $0x90] sm:$0xff] %vm3003, %v3135
      %3174 = vst.msk [vmem:[%s3154 + $0x98] sm:$0xff] %vm3003, %v3136
      %3175 = vst.msk [vmem:[%s3154 + $0xa0] sm:$0xff] %vm3003, %v3137
      %3176 = vst.msk [vmem:[%s3154 + $0xa8] sm:$0xff] %vm3003, %v3138
      %3177 = vst.msk [vmem:[%s3154 + $0xb0] sm:$0xff] %vm3003, %v3139
      %3178 = vst.msk [vmem:[%s3154 + $0xb8] sm:$0xff] %vm3003, %v3140
      %3179 = vst.msk [vmem:[%s3154 + $0xc0] sm:$0xff] %vm3003, %v3141
      %3180 = vst.msk [vmem:[%s3154 + $0xc8] sm:$0xff] %vm3003, %v3142
      %3181 = vst.msk [vmem:[%s3154 + $0xd0] sm:$0xff] %vm3003, %v3143
      %3182 = vst.msk [vmem:[%s3154 + $0xd8] sm:$0xff] %vm3003, %v3144
      %3183 = vst.msk [vmem:[%s3154 + $0xe0] sm:$0xff] %vm3003, %v3145
      %3184 = vst.msk [vmem:[%s3154 + $0xe8] sm:$0xff] %vm3003, %v3146
      %3185 = vst.msk [vmem:[%s3154 + $0xf0] sm:$0xff] %vm3003, %v3147
      %3186 = vst.msk [vmem:[%s3154 + $0xf8] sm:$0xff] %vm3003, %v3148
      %3187 = vst.msk [vmem:[%s3154 + $0x100] sm:$0xff] %vm3003, %v3149
      %3188 = vst.msk [vmem:[%s3154 + $0x108] sm:$0xff] %vm3003, %v3150
      %3189 = vst.msk [vmem:[%s3154 + $0x110] sm:$0xff] %vm3003, %v3151
      %3190 = vst.msk [vmem:[%s3154 + $0x118] sm:$0xff] %vm3003, %v3152
      %3191 = vst.msk [vmem:[%s3154 + $0x120] sm:$0x1] %vm3040, %v3153
      %v3192 = vadd.f32 %v2710, %v2751
      %v3193 = vadd.f32 %v2711, %v2751
      %v3194 = vadd.f32 %v2712, %v2751
      %v3195 = vadd.f32 %v2713, %v2751
      %v3196 = vadd.f32 %v2714, %v2751
      %v3197 = vadd.f32 %v2715, %v2751
      %v3198 = vadd.f32 %v2716, %v2751
      %v3199 = vadd.f32 %v2717, %v2751
      %v3200 = vadd.f32 %v2718, %v2751
      %v3201 = vadd.f32 %v2719, %v2751
      %v3202 = vadd.f32 %v2720, %v2751
      %v3203 = vadd.f32 %v2721, %v2751
      %v3204 = vadd.f32 %v2722, %v2751
      %v3205 = vadd.f32 %v2723, %v2751
      %v3206 = vadd.f32 %v2724, %v2751
      %v3207 = vadd.f32 %v2725, %v2751
      %v3208 = vadd.f32 %v2726, %v2751
      %v3209 = vadd.f32 %v2727, %v2751
      %v3210 = vadd.f32 %v2728, %v2751
      %v3211 = vadd.f32 %v2729, %v2751
      %v3212 = vadd.f32 %v2730, %v2751
      %v3213 = vadd.f32 %v2731, %v2751
      %v3214 = vadd.f32 %v2732, %v2751
      %v3215 = vadd.f32 %v2733, %v2751
      %v3216 = vadd.f32 %v2734, %v2751
      %v3217 = vadd.f32 %v2735, %v2751
      %v3218 = vadd.f32 %v2736, %v2751
      %v3219 = vadd.f32 %v2737, %v2751
      %v3220 = vadd.f32 %v2738, %v2751
      %v3221 = vadd.f32 %v2739, %v2751
      %v3222 = vadd.f32 %v2740, %v2751
      %v3223 = vadd.f32 %v2741, %v2751
      %v3224 = vadd.f32 %v2742, %v2751
      %v3225 = vadd.f32 %v2743, %v2751
      %v3226 = vadd.f32 %v2744, %v2751
      %v3227 = vadd.f32 %v2745, %v2751
      %v3228 = vadd.f32 %v2746, %v2751
      %s3229 = scalar_lea.vmem %s170, 888
      %3230 = vst.msk [vmem:[%s3229] sm:$0xff] %vm3003, %v3192
      %3231 = vst.msk [vmem:[%s3229 + $0x8] sm:$0xff] %vm3003, %v3193
      %3232 = vst.msk [vmem:[%s3229 + $0x10] sm:$0xff] %vm3003, %v3194
      %3233 = vst.msk [vmem:[%s3229 + $0x18] sm:$0xff] %vm3003, %v3195
      %3234 = vst.msk [vmem:[%s3229 + $0x20] sm:$0xff] %vm3003, %v3196
      %3235 = vst.msk [vmem:[%s3229 + $0x28] sm:$0xff] %vm3003, %v3197
      %3236 = vst.msk [vmem:[%s3229 + $0x30] sm:$0xff] %vm3003, %v3198
      %3237 = vst.msk [vmem:[%s3229 + $0x38] sm:$0xff] %vm3003, %v3199
      %3238 = vst.msk [vmem:[%s3229 + $0x40] sm:$0xff] %vm3003, %v3200
      %3239 = vst.msk [vmem:[%s3229 + $0x48] sm:$0xff] %vm3003, %v3201
      %3240 = vst.msk [vmem:[%s3229 + $0x50] sm:$0xff] %vm3003, %v3202
      %3241 = vst.msk [vmem:[%s3229 + $0x58] sm:$0xff] %vm3003, %v3203
      %3242 = vst.msk [vmem:[%s3229 + $0x60] sm:$0xff] %vm3003, %v3204
      %3243 = vst.msk [vmem:[%s3229 + $0x68] sm:$0xff] %vm3003, %v3205
      %3244 = vst.msk [vmem:[%s3229 + $0x70] sm:$0xff] %vm3003, %v3206
      %3245 = vst.msk [vmem:[%s3229 + $0x78] sm:$0xff] %vm3003, %v3207
      %3246 = vst.msk [vmem:[%s3229 + $0x80] sm:$0xff] %vm3003, %v3208
      %3247 = vst.msk [vmem:[%s3229 + $0x88] sm:$0xff] %vm3003, %v3209
      %3248 = vst.msk [vmem:[%s3229 + $0x90] sm:$0xff] %vm3003, %v3210
      %3249 = vst.msk [vmem:[%s3229 + $0x98] sm:$0xff] %vm3003, %v3211
      %3250 = vst.msk [vmem:[%s3229 + $0xa0] sm:$0xff] %vm3003, %v3212
      %3251 = vst.msk [vmem:[%s3229 + $0xa8] sm:$0xff] %vm3003, %v3213
      %3252 = vst.msk [vmem:[%s3229 + $0xb0] sm:$0xff] %vm3003, %v3214
      %3253 = vst.msk [vmem:[%s3229 + $0xb8] sm:$0xff] %vm3003, %v3215
      %3254 = vst.msk [vmem:[%s3229 + $0xc0] sm:$0xff] %vm3003, %v3216
      %3255 = vst.msk [vmem:[%s3229 + $0xc8] sm:$0xff] %vm3003, %v3217
      %3256 = vst.msk [vmem:[%s3229 + $0xd0] sm:$0xff] %vm3003, %v3218
      %3257 = vst.msk [vmem:[%s3229 + $0xd8] sm:$0xff] %vm3003, %v3219
      %3258 = vst.msk [vmem:[%s3229 + $0xe0] sm:$0xff] %vm3003, %v3220
      %3259 = vst.msk [vmem:[%s3229 + $0xe8] sm:$0xff] %vm3003, %v3221
      %3260 = vst.msk [vmem:[%s3229 + $0xf0] sm:$0xff] %vm3003, %v3222
      %3261 = vst.msk [vmem:[%s3229 + $0xf8] sm:$0xff] %vm3003, %v3223
      %3262 = vst.msk [vmem:[%s3229 + $0x100] sm:$0xff] %vm3003, %v3224
      %3263 = vst.msk [vmem:[%s3229 + $0x108] sm:$0xff] %vm3003, %v3225
      %3264 = vst.msk [vmem:[%s3229 + $0x110] sm:$0xff] %vm3003, %v3226
      %3265 = vst.msk [vmem:[%s3229 + $0x118] sm:$0xff] %vm3003, %v3227
      %3266 = vst.msk [vmem:[%s3229 + $0x120] sm:$0x1] %vm3040, %v3228
      %p3267 = scmp.lt.s32.totalorder %s14, 1
      %s3268 = scalar_select %p3267, %s14, 1
      %s3269 = smul.addr %s3268, 148
      %s3270 = smul.addr %s3269, 8
      %s3271 = scalar_lea.vmem %s3, %s3270
      // Predicated region
      $region33: #{rec_trac_head2.5} parent=31 // pred_check
        %p3272 = pneg %p100
      $region34: #{rec_trac_head2.5} parent=31 // pred_check_branch
        %3274 = sbr.rel (%p3272) target = $region36
      $region35: #{rec_trac_head2.5} parent=31 // pred_region
        _
      $region36: #{rec_trac_head2.5} parent=31 // pred_fallthru
        _
    $region32: #{rec_trac_head2.5} parent=5 // pred_fallthru
      _
    %p3275 = scmp.le.s32.totalorder 2, %s9
    // Predicated region
    $region37: #{rec_trac_head2.5} parent=5 // pred_check
      %p3276 = pneg %p3275
    $region38: #{rec_trac_head2.5} parent=5 // pred_check_branch
      %3278 = sbr.rel (%p3276) target = $region40
    $region39: #{rec_trac_head2.5} parent=5 // pred_region
      %s3279 = ssub.s32 %s9, 2
      // Predicated region
      $region41: #{rec_trac_head2.5} parent=39 // pred_check
        %p3280 = pneg %p106
      $region42: #{rec_trac_head2.5} parent=39 // pred_check_branch
        %3282 = sbr.rel (%p3280) target = $region44
      $region43: #{rec_trac_head2.5} parent=39 // pred_region
        %p3283 = scmp.lt.s32.totalorder %s15, 1
        %s3284 = scalar_select %p3283, %s15, 1
        %s3285 = smul.addr %s3284, 148
        %s3286 = smul.addr %s3285, 8
        %s3287 = scalar_lea.vmem %s3, %s3286
      $region44: #{rec_trac_head2.5} parent=39 // pred_fallthru
        _
    $region40: #{rec_trac_head2.5} parent=5 // pred_fallthru
      _
  $region6: #{rec_trac_head2.5} parent=0 // loop_footer
    %s13 = sadd.s32 1, %s9
  $region7: #{rec_trac_head2.5} parent=0 // loop_footer_branch
    %8 = sbr.rel target = $region3
  $region8: #{rec_trac_head2.5} parent=0 // loop_exit
    _

</llo_original>
